<compile_context>
chip_gen: v5e
topology: v5e:2x2
jax: 0.10.0
libtpu: 0.0.40
codegen_flags: <defaults>
</compile_context>

<pallas_src>
import math
import numpy as np

import jax
import jax.numpy as jnp
from jax.experimental import pallas as pl
from jax.experimental.pallas import tpu as pltpu  # noqa: F401 (TPU backend)

# ----------------------------- configuration --------------------------------
L = 2                      # number of labels (batch)
P = 8                      # points per label
EMBED_DIM = 32             # torch: 256
NUM_POS_FEATS = EMBED_DIM // 2
IMAGE_SIZE = 64.0          # torch: 1024
IMG_EMB = 16               # image_embedding_size (torch: 64)
MASK_HW = 4 * IMG_EMB      # low-res input mask spatial size (torch: 256)
MASK_IN_CHANS = 16
C1 = MASK_IN_CHANS // 4    # 4
C2 = MASK_IN_CHANS         # 16
NUM_POINT_EMBEDDINGS = 4
LN_EPS = 1e-6
K1 = 4 * C1                # 16 = space-to-depth depth = conv1 output row count

# --------------------- packed weight-slab row offsets ------------------------
# Every multi-row slice starts on an 8-sublane boundary; slab is 128 lanes wide.
ROW_GAUSS = 0      # [2, 2*NUM_POS_FEATS]   gauss2 = concat([G, G], axis=1)
ROW_TABLE = 2      # [5, EMBED_DIM]         not_a_point + 4 point embeddings
ROW_W1S = 8        # [2*K1, K1]             [W1T ; M1 @ W1T]
ROW_M1 = 40        # [K1, K1]               block-diag per-4-channel averaging
ROW_W2T = 56       # [C2, K1]
ROW_W3T = 72       # [EMBED_DIM, C2]
ROW_P1 = 104       # [2*K1, 3]              col0 = [b1 ; M1@b1], col1/2 = LN1 g/b (tiled)
ROW_P2 = 136       # [C2, 3]                col0 = b2, col1 = LN2 g, col2 = LN2 b
ROW_P3 = 152       # [EMBED_DIM, 2]         col0 = b3, col1 = no_mask_embed
SLAB_ROWS = 184
SLAB_LANES = 128


# ------------------------------ kernel helpers -------------------------------
def _gelu_tanh(x):
    # tanh-approx GELU (EUP tanh + a few VPU ops); |err| vs torch's erf GELU ~1e-3.
    c = math.sqrt(2.0 / math.pi)
    return 0.5 * x * (1.0 + jnp.tanh(c * (x + 0.044715 * x * x * x)))


def _pe_rows(c, gx, gy):
    # c: [N, 2] in [0, 1]; gx, gy: [1, 2F] rows of gauss2 = concat([G, G], 1).
    # K=2 contraction via two VPU broadcast FMAs (no MXU); cat([sin, cos], -1)
    # realized with a lane-index select.
    c = 2.0 * c - 1.0
    proj = (2.0 * math.pi) * (c[:, 0:1] * gx + c[:, 1:2] * gy)
    col = jax.lax.broadcasted_iota(jnp.int32, proj.shape, 1)
    return jnp.where(col < NUM_POS_FEATS, jnp.sin(proj), jnp.cos(proj))


# -------------------------------- kernels ------------------------------------
def dense_pe_kernel(coords_ref, gauss2_ref, out_ref):
    # image positional encoding (input-independent; run once at init and cached)
    out_ref[...] = _pe_rows(coords_ref[...], gauss2_ref[0:1, :], gauss2_ref[1:2, :])


def prompt_encoder_kernel(pts_ref, x4_ref, slab_ref, sparse_ref, dense_ref):
    # pts_ref:  [L*(P+1), 4]  cols: x | y | label | has_input_mask(batch)
    # x4_ref:   [16, L*h2*w2] 4x4 space-to-depth mask (patch dim on sublanes)
    # slab_ref: [184, 128]    packed weights (see ROW_* layout)
    lb, e, hw = dense_ref.shape
    n_pts = pts_ref.shape[0] // lb

    # ---------------- sparse (point / box) embeddings ----------------
    pts = pts_ref[...]
    c = (pts[:, 0:2] + 0.5) * (1.0 / IMAGE_SIZE)          # torch: (+0.5)/image_size
    gx = slab_ref[ROW_GAUSS + 0:ROW_GAUSS + 1, 0:2 * NUM_POS_FEATS]
    gy = slab_ref[ROW_GAUSS + 1:ROW_GAUSS + 2, 0:2 * NUM_POS_FEATS]
    pe = _pe_rows(c, gx, gy)                              # [Np, E]

    lab = pts[:, 2:3]                                     # [Np, 1]
    out = pe * (lab != -1.0).astype(jnp.float32)
    # one-hot select over labels {-1,0,1,2,3} (pure VPU FMAs)
    for i, v in enumerate((-1.0, 0.0, 1.0, 2.0, 3.0)):
        row = slab_ref[ROW_TABLE + i:ROW_TABLE + i + 1, 0:EMBED_DIM]
        out = out + (lab == v).astype(jnp.float32) * row
    sparse_ref[...] = out

    # ------------- dense (mask_downscaling), channels on sublanes -------------
    x4 = x4_ref[...]                                      # [16, Nd]

    # stage 1: conv1 (1->C1, 2x2 s2) for all four (kh,kw) groups at once, with
    # the grouped-LayerNorm2d mean folded in: one [32,16]@[16,Nd] matmul yields
    # [y ; mu].  Variance needs one more (data-dependent) matmul.
    w1s = slab_ref[ROW_W1S:ROW_W1S + 2 * K1, 0:K1]        # [32, 16]
    b1s = slab_ref[ROW_P1:ROW_P1 + 2 * K1, 0:1]           # [32, 1]
    ym = jnp.dot(w1s, x4, preferred_element_type=jnp.float32) + b1s
    y = ym[0:K1, :]                                       # conv1 output (grouped)
    mu = ym[K1:2 * K1, :]                                 # per-4-channel-group mean
    d = y - mu
    m1 = slab_ref[ROW_M1:ROW_M1 + K1, 0:K1]
    var = jnp.dot(m1, d * d, preferred_element_type=jnp.float32)
    g1 = slab_ref[ROW_P1:ROW_P1 + K1, 1:2]
    be1 = slab_ref[ROW_P1:ROW_P1 + K1, 2:3]
    a1 = _gelu_tanh(d * jax.lax.rsqrt(var + LN_EPS) * g1 + be1)   # [16, Nd]

    # stage 2: conv2 (C1->C2, 2x2 s2) == [C2,16]@[16,Nd], LayerNorm2d(C2), GELU
    w2t = slab_ref[ROW_W2T:ROW_W2T + C2, 0:K1]
    b2 = slab_ref[ROW_P2:ROW_P2 + C2, 0:1]
    y2 = jnp.dot(w2t, a1, preferred_element_type=jnp.float32) + b2
    mu2 = jnp.mean(y2, axis=0, keepdims=True)
    d2 = y2 - mu2
    var2 = jnp.mean(d2 * d2, axis=0, keepdims=True)
    g2 = slab_ref[ROW_P2:ROW_P2 + C2, 1:2]
    be2 = slab_ref[ROW_P2:ROW_P2 + C2, 2:3]
    a2 = _gelu_tanh(d2 * jax.lax.rsqrt(var2 + LN_EPS) * g2 + be2)  # [16, Nd]

    # stage 3: 1x1 conv (C2->E), then per-batch blend with no_mask_embed and
    # store directly in consumer layout (L, E, h2*w2): lane-dense 256-wide slabs.
    w3t = slab_ref[ROW_W3T:ROW_W3T + EMBED_DIM, 0:C2]
    b3 = slab_ref[ROW_P3:ROW_P3 + EMBED_DIM, 0:1]
    y3 = jnp.dot(w3t, a2, preferred_element_type=jnp.float32) + b3  # [E, Nd]

    nm = slab_ref[ROW_P3:ROW_P3 + EMBED_DIM, 1:2]         # [E, 1] no_mask_embed
    nm_full = jnp.broadcast_to(nm, (e, hw))
    for b in range(lb):
        has_b = pts_ref[b * n_pts:b * n_pts + 1, 3:4]     # [1, 1] (0.0 or 1.0)
        cond = jnp.broadcast_to(has_b, (e, hw)) != 0.0
        # select (not multiply-blend): an unused NaN/Inf mask cannot leak through
        dense_ref[b] = jnp.where(cond, y3[:, b * hw:(b + 1) * hw], nm_full)


# ------------------------------ parameters -----------------------------------
def init_params(key):
    ks = jax.random.split(key, 10)
    raw = {}
    raw["gauss"] = jax.random.normal(ks[0], (2, NUM_POS_FEATS), jnp.float32)
    # rows: [not_a_point_embed, point_embeddings[0..3]]
    raw["point_table"] = 0.02 * jax.random.normal(
        ks[1], (NUM_POINT_EMBEDDINGS + 1, EMBED_DIM), jnp.float32)
    raw["no_mask_embed"] = 0.02 * jax.random.normal(ks[2], (1, EMBED_DIM), jnp.float32)
    # mask_downscaling convs, torch weight layout [out, in, kh, kw]
    raw["w1"] = 0.1 * jax.random.normal(ks[3], (C1, 1, 2, 2), jnp.float32)
    raw["b1"] = 0.1 * jax.random.normal(ks[4], (C1,), jnp.float32)
    raw["ln1_w"] = jnp.ones((C1,), jnp.float32)
    raw["ln1_b"] = jnp.zeros((C1,), jnp.float32)
    raw["w2"] = 0.1 * jax.random.normal(ks[5], (C2, C1, 2, 2), jnp.float32)
    raw["b2"] = 0.1 * jax.random.normal(ks[6], (C2,), jnp.float32)
    raw["ln2_w"] = jnp.ones((C2,), jnp.float32)
    raw["ln2_b"] = jnp.zeros((C2,), jnp.float32)
    raw["w3"] = 0.1 * jax.random.normal(ks[7], (EMBED_DIM, C2, 1, 1), jnp.float32)
    raw["b3"] = 0.1 * jax.random.normal(ks[8], (EMBED_DIM,), jnp.float32)
    return raw


def prepare_params(raw):
    """One-time weight re-layout into a single 128-lane slab + cached image_pe."""
    gauss = np.asarray(raw["gauss"], np.float32)
    gauss2 = np.concatenate([gauss, gauss], axis=1)                 # [2, 2F]
    table = np.asarray(raw["point_table"], np.float32)              # [5, E]

    # conv1 folded for the 4x4 space-to-depth layout:
    # W1T[g*C1+c, (2kh+a)*4+(2kw+b)] = w1[c,0,a,b],  g = kh*2+kw
    w1 = np.asarray(raw["w1"], np.float32)
    w1t = np.zeros((K1, K1), np.float32)
    for kh in range(2):
        for kw in range(2):
            g = kh * 2 + kw
            for c in range(C1):
                for a in range(2):
                    for b in range(2):
                        w1t[g * C1 + c, (2 * kh + a) * 4 + (2 * kw + b)] = w1[c, 0, a, b]
    # block-diagonal averaging matrix (per 4-channel-group mean), and the
    # mean matmul folded into conv1's LHS / bias.
    m1 = np.kron(np.eye(4, dtype=np.float32), np.full((C1, C1), 1.0 / C1, np.float32))
    w1s = np.concatenate([w1t, m1 @ w1t], axis=0)                   # [32, 16]
    b1t = np.tile(np.asarray(raw["b1"], np.float32), 4)             # [16]
    b1s = np.concatenate([b1t, m1 @ b1t], axis=0)                   # [32]
    g1t = np.tile(np.asarray(raw["ln1_w"], np.float32), 4)
    be1t = np.tile(np.asarray(raw["ln1_b"], np.float32), 4)

    # conv2: patch order (kh, kw, c1) matches the stage-1 row ordering
    w2t = np.asarray(raw["w2"], np.float32).transpose(0, 2, 3, 1).reshape(C2, K1)
    # conv3 (1x1)
    w3t = np.asarray(raw["w3"], np.float32).reshape(EMBED_DIM, C2)

    slab = np.zeros((SLAB_ROWS, SLAB_LANES), np.float32)
    slab[ROW_GAUSS:ROW_GAUSS + 2, 0:2 * NUM_POS_FEATS] = gauss2
    slab[ROW_TABLE:ROW_TABLE + 5, 0:EMBED_DIM] = table
    slab[ROW_W1S:ROW_W1S + 2 * K1, 0:K1] = w1s
    slab[ROW_M1:ROW_M1 + K1, 0:K1] = m1
    slab[ROW_W2T:ROW_W2T + C2, 0:K1] = w2t
    slab[ROW_W3T:ROW_W3T + EMBED_DIM, 0:C2] = w3t
    slab[ROW_P1:ROW_P1 + 2 * K1, 0] = b1s
    slab[ROW_P1:ROW_P1 + K1, 1] = g1t
    slab[ROW_P1:ROW_P1 + K1, 2] = be1t
    slab[ROW_P2:ROW_P2 + C2, 0] = np.asarray(raw["b2"], np.float32)
    slab[ROW_P2:ROW_P2 + C2, 1] = np.asarray(raw["ln2_w"], np.float32)
    slab[ROW_P2:ROW_P2 + C2, 2] = np.asarray(raw["ln2_b"], np.float32)
    slab[ROW_P3:ROW_P3 + EMBED_DIM, 0] = np.asarray(raw["b3"], np.float32)
    slab[ROW_P3:ROW_P3 + EMBED_DIM, 1] = np.asarray(raw["no_mask_embed"], np.float32)[0]

    params = {"slab": jnp.asarray(slab)}

    # image_pe depends only on gauss + grid size: compute once, cache.
    h = w = IMG_EMB
    ye = (np.arange(h, dtype=np.float32) + 0.5) / h
    xe = (np.arange(w, dtype=np.float32) + 0.5) / w
    xg, yg = np.meshgrid(xe, ye)                                    # coord[y,x] = (xe[x], ye[y])
    grid_coords = np.stack([xg, yg], axis=-1).reshape(h * w, 2).astype(np.float32)
    pe = pl.pallas_call(
        dense_pe_kernel,
        out_shape=jax.ShapeDtypeStruct((h * w, EMBED_DIM), jnp.float32),
    )(jnp.asarray(grid_coords), jnp.asarray(gauss2))
    params["image_pe"] = pe.reshape(h, w, EMBED_DIM).transpose(2, 0, 1)[None]  # [1,E,h,w]
    return params


# ------------------------------- forward -------------------------------------
def prompt_encoder_forward(params, point_coords, point_labels, input_masks, has_input_masks):
    Lb, Pp = point_labels.shape
    n_pts = Pp + 1

    # sparse-prompt glue: append padding point/label and pack [x|y|label|has]
    # into one [Np,4] operand.  Pad coord is -0.5 so the in-kernel
    # (c+0.5)/image_size normalization reproduces torch's 0.0.
    coords = jnp.concatenate(
        [point_coords.astype(jnp.float32),
         jnp.full((Lb, 1, 2), -0.5, jnp.float32)], axis=1)                      # [L, n_pts, 2]
    labels = jnp.concatenate(
        [point_labels.astype(jnp.float32)[..., None],
         -jnp.ones((Lb, 1, 1), jnp.float32)], axis=1)                           # [L, n_pts, 1]
    has_col = jnp.broadcast_to(
        has_input_masks.astype(jnp.float32).reshape(Lb, 1, 1), (Lb, n_pts, 1))
    pts = jnp.concatenate([coords, labels, has_col], axis=-1).reshape(Lb * n_pts, 4)

    # dense-mask glue: 4x4 space-to-depth; patch dim on sublanes, pixels on lanes
    # (batch-major so the kernel can emit per-batch lane-dense output slabs).
    Hm, Wm = input_masks.shape[2], input_masks.shape[3]
    h2, w2 = Hm // 4, Wm // 4
    nd = Lb * h2 * w2
    x4 = (input_masks[:, 0]
          .reshape(Lb, h2, 4, w2, 4)
          .transpose(2, 4, 0, 1, 3)
          .reshape(16, nd))

    # NOTE: the literal PyTorch broadcast of has_input_masks [L] against
    # [L,C,H,W] is only valid for L==1; the intended per-batch broadcast is
    # implemented here (identical for L == 1).
    sparse, dense = pl.pallas_call(
        prompt_encoder_kernel,
        out_shape=(jax.ShapeDtypeStruct((Lb * n_pts, EMBED_DIM), jnp.float32),
                   jax.ShapeDtypeStruct((Lb, EMBED_DIM, h2 * w2), jnp.float32)),
    )(pts, x4, params["slab"])

    sparse_embeddings = sparse.reshape(Lb, n_pts, EMBED_DIM)
    dense_embeddings = dense.reshape(Lb, EMBED_DIM, h2, w2)   # pure reshape, no transpose
    return sparse_embeddings, dense_embeddings, params["image_pe"]


# --------------------------------- main ---------------------------------------
if __name__ == "__main__":
    key = jax.random.PRNGKey(0)
    k1, k2, k3, kp = jax.random.split(key, 4)
    raw = init_params(kp)
    params = prepare_params(raw)   # one-time: weight slab packing + cached image_pe

    point_coords = jax.random.uniform(k1, (L, P, 2), jnp.float32, 0.0, IMAGE_SIZE)
    point_labels = jax.random.randint(k2, (L, P), -1, 4).astype(jnp.int32)
    input_masks = jax.random.normal(k3, (L, 1, MASK_HW, MASK_HW), jnp.float32)
    has_input_masks = jnp.array([1.0, 0.0], jnp.float32)[:L]

    fwd = jax.jit(prompt_encoder_forward)
    sparse, dense, image_pe = fwd(params, point_coords, point_labels,
                                  input_masks, has_input_masks)
    jax.block_until_ready((sparse, dense, image_pe))

    assert sparse.shape == (L, P + 1, EMBED_DIM)
    assert dense.shape == (L, EMBED_DIM, IMG_EMB, IMG_EMB)
    assert image_pe.shape == (1, EMBED_DIM, IMG_EMB, IMG_EMB)
    print("KERNEL_OK")
</pallas_src>

<mosaic_0001>
module attributes {stable_mosaic.version = 11 : i64} {
  func.func @dense_pe_kernel(%arg0: memref<256x2xf32, #tpu.memory_space<vmem>>, %arg1: memref<2x32xf32, #tpu.memory_space<vmem>>, %arg2: memref<256x32xf32, #tpu.memory_space<vmem>>) attributes {dimension_semantics = [], scalar_prefetch = 0 : i64, scratch_operands = 0 : i64, tpu.core_type = #tpu.core_type<tc>} {
    %c0 = arith.constant 0 : index
    %c0_0 = arith.constant 0 : index
    %0 = vector.load %arg0[%c0, %c0_0] : memref<256x2xf32, #tpu.memory_space<vmem>>, vector<256x2xf32>
    %c0_1 = arith.constant 0 : index
    %c0_2 = arith.constant 0 : index
    %1 = vector.load %arg1[%c0_1, %c0_2] : memref<2x32xf32, #tpu.memory_space<vmem>>, vector<1x32xf32>
    %c1 = arith.constant 1 : index
    %c0_3 = arith.constant 0 : index
    %2 = vector.load %arg1[%c1, %c0_3] : memref<2x32xf32, #tpu.memory_space<vmem>>, vector<1x32xf32>
    %cst = arith.constant 2.000000e+00 : f32
    %3 = vector.broadcast %cst : f32 to vector<256x2xf32>
    %4 = arith.mulf %3, %0 : vector<256x2xf32>
    %cst_4 = arith.constant 1.000000e+00 : f32
    %5 = vector.broadcast %cst_4 : f32 to vector<256x2xf32>
    %6 = arith.subf %4, %5 : vector<256x2xf32>
    %7 = vector.extract_strided_slice %6 {offsets = [0, 0], sizes = [256, 1], strides = [1, 1]} : vector<256x2xf32> to vector<256x1xf32>
    %8 = vector.broadcast %7 : vector<256x1xf32> to vector<256x32xf32>
    %9 = vector.broadcast %1 : vector<1x32xf32> to vector<256x32xf32>
    %10 = arith.mulf %8, %9 : vector<256x32xf32>
    %11 = vector.extract_strided_slice %6 {offsets = [0, 1], sizes = [256, 1], strides = [1, 1]} : vector<256x2xf32> to vector<256x1xf32>
    %12 = vector.broadcast %11 : vector<256x1xf32> to vector<256x32xf32>
    %13 = vector.broadcast %2 : vector<1x32xf32> to vector<256x32xf32>
    %14 = arith.mulf %12, %13 : vector<256x32xf32>
    %15 = arith.addf %10, %14 : vector<256x32xf32>
    %cst_5 = arith.constant 6.28318548 : f32
    %16 = vector.broadcast %cst_5 : f32 to vector<256x32xf32>
    %17 = arith.mulf %16, %15 : vector<256x32xf32>
    %18 = tpu.iota {dimensions = array<i32: 1>} : vector<256x32xi32>
    %c16_i32 = arith.constant 16 : i32
    %19 = vector.broadcast %c16_i32 : i32 to vector<256x32xi32>
    %20 = arith.cmpi slt, %18, %19 : vector<256x32xi32>
    %21 = math.sin %17 : vector<256x32xf32>
    %22 = math.cos %17 : vector<256x32xf32>
    %23 = arith.select %20, %21, %22 : vector<256x32xi1>, vector<256x32xf32>
    %c0_6 = arith.constant 0 : index
    %c0_7 = arith.constant 0 : index
    %24 = vector.load %arg2[%c0_6, %c0_7] : memref<256x32xf32, #tpu.memory_space<vmem>>, vector<256x32xf32>
    tpu.vector_store %arg2[%c0_6, %c0_7], %23 {strides = array<i32>} : memref<256x32xf32, #tpu.memory_space<vmem>>, vector<256x32xf32>,
    return
  }
}

</mosaic_0001>

<llo_original>
// kernel: tpu_custom_call.1
$region0: #{tpu_custom_call.1}
  #allocation0 [shape = 'u32[]', space=smem, size = 0x4, offset = 0x4, fixed_abs, tag = 'smem constant byte address 0x4 - core index']
  #allocation1 [shape = 'u32[72,128]{1,0:T(1,128)}', space=vmem, size = 0x9000, scoped, tag = 'internal scratch']
  %s0 = inlined_call_operand.vmem [shape: f32[256,2], index: 0, kind: input, shape index: {}]
  %s1 = inlined_call_operand.vmem [shape: f32[2,32], index: 1, kind: input, shape index: {}]
  %s2 = inlined_call_operand.vmem [shape: f32[256,32], index: 2, kind: output, shape index: {}]
  %s3 = sld [smem:[#allocation0]]
  $region18: #{tpu_custom_call.1} parent=0
    _
  %s5 = ssub.s32 1, %s3
  %s6 = scalar_select 0, %s5, %s3
  // Predicated region
  $region2: #{tpu_custom_call.1} parent=0 // pred_check
    _
  $region3: #{tpu_custom_call.1} parent=0 // pred_check_branch
    %8 = sbr.rel (0) target = $region5
  $region4: #{tpu_custom_call.1} parent=0 // pred_region
    _
  $region5: #{tpu_custom_call.1} parent=0 // pred_fallthru
    _
  // Predicated region
  $region6: #{tpu_custom_call.1} parent=0 // pred_check
    _
  $region7: #{tpu_custom_call.1} parent=0 // pred_check_branch
    %10 = sbr.rel (0) target = $region9
  $region8: #{tpu_custom_call.1} parent=0 // pred_region
    _
  $region9: #{tpu_custom_call.1} parent=0 // pred_fallthru
    _
  %v11 = vld [vmem:[%s0] sm:$0xff]
  %v12 = vld [vmem:[%s0 + $0x8] sm:$0xff]
  %v13 = vld [vmem:[%s0 + $0x10] sm:$0xff]
  %v14 = vld [vmem:[%s0 + $0x18] sm:$0xff]
  %v15 = vld [vmem:[%s0 + $0x20] sm:$0xff]
  %v16 = vld [vmem:[%s0 + $0x28] sm:$0xff]
  %v17 = vld [vmem:[%s0 + $0x30] sm:$0xff]
  %v18 = vld [vmem:[%s0 + $0x38] sm:$0xff]
  %v19 = vld [vmem:[%s0 + $0x40] sm:$0xff]
  %v20 = vld [vmem:[%s0 + $0x48] sm:$0xff]
  %v21 = vld [vmem:[%s0 + $0x50] sm:$0xff]
  %v22 = vld [vmem:[%s0 + $0x58] sm:$0xff]
  %v23 = vld [vmem:[%s0 + $0x60] sm:$0xff]
  %v24 = vld [vmem:[%s0 + $0x68] sm:$0xff]
  %v25 = vld [vmem:[%s0 + $0x70] sm:$0xff]
  %v26 = vld [vmem:[%s0 + $0x78] sm:$0xff]
  %v27 = vld [vmem:[%s0 + $0x80] sm:$0xff]
  %v28 = vld [vmem:[%s0 + $0x88] sm:$0xff]
  %v29 = vld [vmem:[%s0 + $0x90] sm:$0xff]
  %v30 = vld [vmem:[%s0 + $0x98] sm:$0xff]
  %v31 = vld [vmem:[%s0 + $0xa0] sm:$0xff]
  %v32 = vld [vmem:[%s0 + $0xa8] sm:$0xff]
  %v33 = vld [vmem:[%s0 + $0xb0] sm:$0xff]
  %v34 = vld [vmem:[%s0 + $0xb8] sm:$0xff]
  %v35 = vld [vmem:[%s0 + $0xc0] sm:$0xff]
  %v36 = vld [vmem:[%s0 + $0xc8] sm:$0xff]
  %v37 = vld [vmem:[%s0 + $0xd0] sm:$0xff]
  %v38 = vld [vmem:[%s0 + $0xd8] sm:$0xff]
  %v39 = vld [vmem:[%s0 + $0xe0] sm:$0xff]
  %v40 = vld [vmem:[%s0 + $0xe8] sm:$0xff]
  %v41 = vld [vmem:[%s0 + $0xf0] sm:$0xff]
  %v42 = vld [vmem:[%s0 + $0xf8] sm:$0xff]
  %v43 = vld [vmem:[%s1] sm:$0x1]
  %v44 = vld [vmem:[%s1 + $0x1] sm:$0x1]
  %v45 = vmul.f32 %v11, 2.0
  %v46 = vmul.f32 %v12, 2.0
  %v47 = vmul.f32 %v13, 2.0
  %v48 = vmul.f32 %v14, 2.0
  %v49 = vmul.f32 %v15, 2.0
  %v50 = vmul.f32 %v16, 2.0
  %v51 = vmul.f32 %v17, 2.0
  %v52 = vmul.f32 %v18, 2.0
  %v53 = vmul.f32 %v19, 2.0
  %v54 = vmul.f32 %v20, 2.0
  %v55 = vmul.f32 %v21, 2.0
  %v56 = vmul.f32 %v22, 2.0
  %v57 = vmul.f32 %v23, 2.0
  %v58 = vmul.f32 %v24, 2.0
  %v59 = vmul.f32 %v25, 2.0
  %v60 = vmul.f32 %v26, 2.0
  %v61 = vmul.f32 %v27, 2.0
  %v62 = vmul.f32 %v28, 2.0
  %v63 = vmul.f32 %v29, 2.0
  %v64 = vmul.f32 %v30, 2.0
  %v65 = vmul.f32 %v31, 2.0
  %v66 = vmul.f32 %v32, 2.0
  %v67 = vmul.f32 %v33, 2.0
  %v68 = vmul.f32 %v34, 2.0
  %v69 = vmul.f32 %v35, 2.0
  %v70 = vmul.f32 %v36, 2.0
  %v71 = vmul.f32 %v37, 2.0
  %v72 = vmul.f32 %v38, 2.0
  %v73 = vmul.f32 %v39, 2.0
  %v74 = vmul.f32 %v40, 2.0
  %v75 = vmul.f32 %v41, 2.0
  %v76 = vmul.f32 %v42, 2.0
  %v77 = vsub.f32 %v45, 1.0
  %v78 = vsub.f32 %v46, 1.0
  %v79 = vsub.f32 %v47, 1.0
  %v80 = vsub.f32 %v48, 1.0
  %v81 = vsub.f32 %v49, 1.0
  %v82 = vsub.f32 %v50, 1.0
  %v83 = vsub.f32 %v51, 1.0
  %v84 = vsub.f32 %v52, 1.0
  %v85 = vsub.f32 %v53, 1.0
  %v86 = vsub.f32 %v54, 1.0
  %v87 = vsub.f32 %v55, 1.0
  %v88 = vsub.f32 %v56, 1.0
  %v89 = vsub.f32 %v57, 1.0
  %v90 = vsub.f32 %v58, 1.0
  %v91 = vsub.f32 %v59, 1.0
  %v92 = vsub.f32 %v60, 1.0
  %v93 = vsub.f32 %v61, 1.0
  %v94 = vsub.f32 %v62, 1.0
  %v95 = vsub.f32 %v63, 1.0
  %v96 = vsub.f32 %v64, 1.0
  %v97 = vsub.f32 %v65, 1.0
  %v98 = vsub.f32 %v66, 1.0
  %v99 = vsub.f32 %v67, 1.0
  %v100 = vsub.f32 %v68, 1.0
  %v101 = vsub.f32 %v69, 1.0
  %v102 = vsub.f32 %v70, 1.0
  %v103 = vsub.f32 %v71, 1.0
  %v104 = vsub.f32 %v72, 1.0
  %v105 = vsub.f32 %v73, 1.0
  %v106 = vsub.f32 %v74, 1.0
  %v107 = vsub.f32 %v75, 1.0
  %v108 = vsub.f32 %v76, 1.0
  %110 = vset.pattern.permute.xlu0 0
  %111 = vperm.xlu0 %110, %v77
  %v112 = vpop.permute.xlu0 %111
  %115 = vset.pattern.permute.xlu0 0
  %116 = vperm.xlu0 %115, %v78
  %v117 = vpop.permute.xlu0 %116
  %120 = vset.pattern.permute.xlu0 0
  %121 = vperm.xlu0 %120, %v79
  %v122 = vpop.permute.xlu0 %121
  %125 = vset.pattern.permute.xlu0 0
  %126 = vperm.xlu0 %125, %v80
  %v127 = vpop.permute.xlu0 %126
  %130 = vset.pattern.permute.xlu0 0
  %131 = vperm.xlu0 %130, %v81
  %v132 = vpop.permute.xlu0 %131
  %135 = vset.pattern.permute.xlu0 0
  %136 = vperm.xlu0 %135, %v82
  %v137 = vpop.permute.xlu0 %136
  %140 = vset.pattern.permute.xlu0 0
  %141 = vperm.xlu0 %140, %v83
  %v142 = vpop.permute.xlu0 %141
  %145 = vset.pattern.permute.xlu0 0
  %146 = vperm.xlu0 %145, %v84
  %v147 = vpop.permute.xlu0 %146
  %150 = vset.pattern.permute.xlu0 0
  %151 = vperm.xlu0 %150, %v85
  %v152 = vpop.permute.xlu0 %151
  %155 = vset.pattern.permute.xlu0 0
  %156 = vperm.xlu0 %155, %v86
  %v157 = vpop.permute.xlu0 %156
  %160 = vset.pattern.permute.xlu0 0
  %161 = vperm.xlu0 %160, %v87
  %v162 = vpop.permute.xlu0 %161
  %165 = vset.pattern.permute.xlu0 0
  %166 = vperm.xlu0 %165, %v88
  %v167 = vpop.permute.xlu0 %166
  %170 = vset.pattern.permute.xlu0 0
  %171 = vperm.xlu0 %170, %v89
  %v172 = vpop.permute.xlu0 %171
  %175 = vset.pattern.permute.xlu0 0
  %176 = vperm.xlu0 %175, %v90
  %v177 = vpop.permute.xlu0 %176
  %180 = vset.pattern.permute.xlu0 0
  %181 = vperm.xlu0 %180, %v91
  %v182 = vpop.permute.xlu0 %181
  %185 = vset.pattern.permute.xlu0 0
  %186 = vperm.xlu0 %185, %v92
  %v187 = vpop.permute.xlu0 %186
  %190 = vset.pattern.permute.xlu0 0
  %191 = vperm.xlu0 %190, %v93
  %v192 = vpop.permute.xlu0 %191
  %195 = vset.pattern.permute.xlu0 0
  %196 = vperm.xlu0 %195, %v94
  %v197 = vpop.permute.xlu0 %196
  %200 = vset.pattern.permute.xlu0 0
  %201 = vperm.xlu0 %200, %v95
  %v202 = vpop.permute.xlu0 %201
  %205 = vset.pattern.permute.xlu0 0
  %206 = vperm.xlu0 %205, %v96
  %v207 = vpop.permute.xlu0 %206
  %210 = vset.pattern.permute.xlu0 0
  %211 = vperm.xlu0 %210, %v97
  %v212 = vpop.permute.xlu0 %211
  %215 = vset.pattern.permute.xlu0 0
  %216 = vperm.xlu0 %215, %v98
  %v217 = vpop.permute.xlu0 %216
  %220 = vset.pattern.permute.xlu0 0
  %221 = vperm.xlu0 %220, %v99
  %v222 = vpop.permute.xlu0 %221
  %225 = vset.pattern.permute.xlu0 0
  %226 = vperm.xlu0 %225, %v100
  %v227 = vpop.permute.xlu0 %226
  %230 = vset.pattern.permute.xlu0 0
  %231 = vperm.xlu0 %230, %v101
  %v232 = vpop.permute.xlu0 %231
  %235 = vset.pattern.permute.xlu0 0
  %236 = vperm.xlu0 %235, %v102
  %v237 = vpop.permute.xlu0 %236
  %240 = vset.pattern.permute.xlu0 0
  %241 = vperm.xlu0 %240, %v103
  %v242 = vpop.permute.xlu0 %241
  %245 = vset.pattern.permute.xlu0 0
  %246 = vperm.xlu0 %245, %v104
  %v247 = vpop.permute.xlu0 %246
  %250 = vset.pattern.permute.xlu0 0
  %251 = vperm.xlu0 %250, %v105
  %v252 = vpop.permute.xlu0 %251
  %255 = vset.pattern.permute.xlu0 0
  %256 = vperm.xlu0 %255, %v106
  %v257 = vpop.permute.xlu0 %256
  %260 = vset.pattern.permute.xlu0 0
  %261 = vperm.xlu0 %260, %v107
  %v262 = vpop.permute.xlu0 %261
  %265 = vset.pattern.permute.xlu0 0
  %266 = vperm.xlu0 %265, %v108
  %v267 = vpop.permute.xlu0 %266
  %v269 = vperm.slane %v43, 0
  %v270 = vmul.f32 %v112, %v269
  %v271 = vmul.f32 %v117, %v269
  %v272 = vmul.f32 %v122, %v269
  %v273 = vmul.f32 %v127, %v269
  %v274 = vmul.f32 %v132, %v269
  %v275 = vmul.f32 %v137, %v269
  %v276 = vmul.f32 %v142, %v269
  %v277 = vmul.f32 %v147, %v269
  %v278 = vmul.f32 %v152, %v269
  %v279 = vmul.f32 %v157, %v269
  %v280 = vmul.f32 %v162, %v269
  %v281 = vmul.f32 %v167, %v269
  %v282 = vmul.f32 %v172, %v269
  %v283 = vmul.f32 %v177, %v269
  %v284 = vmul.f32 %v182, %v269
  %v285 = vmul.f32 %v187, %v269
  %v286 = vmul.f32 %v192, %v269
  %v287 = vmul.f32 %v197, %v269
  %v288 = vmul.f32 %v202, %v269
  %v289 = vmul.f32 %v207, %v269
  %v290 = vmul.f32 %v212, %v269
  %v291 = vmul.f32 %v217, %v269
  %v292 = vmul.f32 %v222, %v269
  %v293 = vmul.f32 %v227, %v269
  %v294 = vmul.f32 %v232, %v269
  %v295 = vmul.f32 %v237, %v269
  %v296 = vmul.f32 %v242, %v269
  %v297 = vmul.f32 %v247, %v269
  %v298 = vmul.f32 %v252, %v269
  %v299 = vmul.f32 %v257, %v269
  %v300 = vmul.f32 %v262, %v269
  %v301 = vmul.f32 %v267, %v269
  %302 = vset.pattern.permute.xlu0 1
  %303 = vperm.xlu0 %302, %v77
  %v304 = vpop.permute.xlu0 %303
  %306 = vset.pattern.permute.xlu0 1
  %307 = vperm.xlu0 %306, %v78
  %v308 = vpop.permute.xlu0 %307
  %310 = vset.pattern.permute.xlu0 1
  %311 = vperm.xlu0 %310, %v79
  %v312 = vpop.permute.xlu0 %311
  %314 = vset.pattern.permute.xlu0 1
  %315 = vperm.xlu0 %314, %v80
  %v316 = vpop.permute.xlu0 %315
  %318 = vset.pattern.permute.xlu0 1
  %319 = vperm.xlu0 %318, %v81
  %v320 = vpop.permute.xlu0 %319
  %322 = vset.pattern.permute.xlu0 1
  %323 = vperm.xlu0 %322, %v82
  %v324 = vpop.permute.xlu0 %323
  %326 = vset.pattern.permute.xlu0 1
  %327 = vperm.xlu0 %326, %v83
  %v328 = vpop.permute.xlu0 %327
  %330 = vset.pattern.permute.xlu0 1
  %331 = vperm.xlu0 %330, %v84
  %v332 = vpop.permute.xlu0 %331
  %334 = vset.pattern.permute.xlu0 1
  %335 = vperm.xlu0 %334, %v85
  %v336 = vpop.permute.xlu0 %335
  %338 = vset.pattern.permute.xlu0 1
  %339 = vperm.xlu0 %338, %v86
  %v340 = vpop.permute.xlu0 %339
  %342 = vset.pattern.permute.xlu0 1
  %343 = vperm.xlu0 %342, %v87
  %v344 = vpop.permute.xlu0 %343
  %346 = vset.pattern.permute.xlu0 1
  %347 = vperm.xlu0 %346, %v88
  %v348 = vpop.permute.xlu0 %347
  %350 = vset.pattern.permute.xlu0 1
  %351 = vperm.xlu0 %350, %v89
  %v352 = vpop.permute.xlu0 %351
  %354 = vset.pattern.permute.xlu0 1
  %355 = vperm.xlu0 %354, %v90
  %v356 = vpop.permute.xlu0 %355
  %358 = vset.pattern.permute.xlu0 1
  %359 = vperm.xlu0 %358, %v91
  %v360 = vpop.permute.xlu0 %359
  %362 = vset.pattern.permute.xlu0 1
  %363 = vperm.xlu0 %362, %v92
  %v364 = vpop.permute.xlu0 %363
  %366 = vset.pattern.permute.xlu0 1
  %367 = vperm.xlu0 %366, %v93
  %v368 = vpop.permute.xlu0 %367
  %370 = vset.pattern.permute.xlu0 1
  %371 = vperm.xlu0 %370, %v94
  %v372 = vpop.permute.xlu0 %371
  %374 = vset.pattern.permute.xlu0 1
  %375 = vperm.xlu0 %374, %v95
  %v376 = vpop.permute.xlu0 %375
  %378 = vset.pattern.permute.xlu0 1
  %379 = vperm.xlu0 %378, %v96
  %v380 = vpop.permute.xlu0 %379
  %382 = vset.pattern.permute.xlu0 1
  %383 = vperm.xlu0 %382, %v97
  %v384 = vpop.permute.xlu0 %383
  %386 = vset.pattern.permute.xlu0 1
  %387 = vperm.xlu0 %386, %v98
  %v388 = vpop.permute.xlu0 %387
  %390 = vset.pattern.permute.xlu0 1
  %391 = vperm.xlu0 %390, %v99
  %v392 = vpop.permute.xlu0 %391
  %394 = vset.pattern.permute.xlu0 1
  %395 = vperm.xlu0 %394, %v100
  %v396 = vpop.permute.xlu0 %395
  %398 = vset.pattern.permute.xlu0 1
  %399 = vperm.xlu0 %398, %v101
  %v400 = vpop.permute.xlu0 %399
  %402 = vset.pattern.permute.xlu0 1
  %403 = vperm.xlu0 %402, %v102
  %v404 = vpop.permute.xlu0 %403
  %406 = vset.pattern.permute.xlu0 1
  %407 = vperm.xlu0 %406, %v103
  %v408 = vpop.permute.xlu0 %407
  %410 = vset.pattern.permute.xlu0 1
  %411 = vperm.xlu0 %410, %v104
  %v412 = vpop.permute.xlu0 %411
  %414 = vset.pattern.permute.xlu0 1
  %415 = vperm.xlu0 %414, %v105
  %v416 = vpop.permute.xlu0 %415
  %418 = vset.pattern.permute.xlu0 1
  %419 = vperm.xlu0 %418, %v106
  %v420 = vpop.permute.xlu0 %419
  %422 = vset.pattern.permute.xlu0 1
  %423 = vperm.xlu0 %422, %v107
  %v424 = vpop.permute.xlu0 %423
  %426 = vset.pattern.permute.xlu0 1
  %427 = vperm.xlu0 %426, %v108
  %v428 = vpop.permute.xlu0 %427
  %v430 = vperm.slane %v44, 0
  %v431 = vmul.f32 %v304, %v430
  %v432 = vmul.f32 %v308, %v430
  %v433 = vmul.f32 %v312, %v430
  %v434 = vmul.f32 %v316, %v430
  %v435 = vmul.f32 %v320, %v430
  %v436 = vmul.f32 %v324, %v430
  %v437 = vmul.f32 %v328, %v430
  %v438 = vmul.f32 %v332, %v430
  %v439 = vmul.f32 %v336, %v430
  %v440 = vmul.f32 %v340, %v430
  %v441 = vmul.f32 %v344, %v430
  %v442 = vmul.f32 %v348, %v430
  %v443 = vmul.f32 %v352, %v430
  %v444 = vmul.f32 %v356, %v430
  %v445 = vmul.f32 %v360, %v430
  %v446 = vmul.f32 %v364, %v430
  %v447 = vmul.f32 %v368, %v430
  %v448 = vmul.f32 %v372, %v430
  %v449 = vmul.f32 %v376, %v430
  %v450 = vmul.f32 %v380, %v430
  %v451 = vmul.f32 %v384, %v430
  %v452 = vmul.f32 %v388, %v430
  %v453 = vmul.f32 %v392, %v430
  %v454 = vmul.f32 %v396, %v430
  %v455 = vmul.f32 %v400, %v430
  %v456 = vmul.f32 %v404, %v430
  %v457 = vmul.f32 %v408, %v430
  %v458 = vmul.f32 %v412, %v430
  %v459 = vmul.f32 %v416, %v430
  %v460 = vmul.f32 %v420, %v430
  %v461 = vmul.f32 %v424, %v430
  %v462 = vmul.f32 %v428, %v430
  %v463 = vadd.f32 %v270, %v431
  %v464 = vadd.f32 %v271, %v432
  %v465 = vadd.f32 %v272, %v433
  %v466 = vadd.f32 %v273, %v434
  %v467 = vadd.f32 %v274, %v435
  %v468 = vadd.f32 %v275, %v436
  %v469 = vadd.f32 %v276, %v437
  %v470 = vadd.f32 %v277, %v438
  %v471 = vadd.f32 %v278, %v439
  %v472 = vadd.f32 %v279, %v440
  %v473 = vadd.f32 %v280, %v441
  %v474 = vadd.f32 %v281, %v442
  %v475 = vadd.f32 %v282, %v443
  %v476 = vadd.f32 %v283, %v444
  %v477 = vadd.f32 %v284, %v445
  %v478 = vadd.f32 %v285, %v446
  %v479 = vadd.f32 %v286, %v447
  %v480 = vadd.f32 %v287, %v448
  %v481 = vadd.f32 %v288, %v449
  %v482 = vadd.f32 %v289, %v450
  %v483 = vadd.f32 %v290, %v451
  %v484 = vadd.f32 %v291, %v452
  %v485 = vadd.f32 %v292, %v453
  %v486 = vadd.f32 %v293, %v454
  %v487 = vadd.f32 %v294, %v455
  %v488 = vadd.f32 %v295, %v456
  %v489 = vadd.f32 %v296, %v457
  %v490 = vadd.f32 %v297, %v458
  %v491 = vadd.f32 %v298, %v459
  %v492 = vadd.f32 %v299, %v460
  %v493 = vadd.f32 %v300, %v461
  %v494 = vadd.f32 %v301, %v462
  %v495 = vmul.f32 %v463, 6.2831855
  %v496 = vmul.f32 %v464, 6.2831855
  %v497 = vmul.f32 %v465, 6.2831855
  %v498 = vmul.f32 %v466, 6.2831855
  %v499 = vmul.f32 %v467, 6.2831855
  %v500 = vmul.f32 %v468, 6.2831855
  %v501 = vmul.f32 %v469, 6.2831855
  %v502 = vmul.f32 %v470, 6.2831855
  %v503 = vmul.f32 %v471, 6.2831855
  %v504 = vmul.f32 %v472, 6.2831855
  %v505 = vmul.f32 %v473, 6.2831855
  %v506 = vmul.f32 %v474, 6.2831855
  %v507 = vmul.f32 %v475, 6.2831855
  %v508 = vmul.f32 %v476, 6.2831855
  %v509 = vmul.f32 %v477, 6.2831855
  %v510 = vmul.f32 %v478, 6.2831855
  %v511 = vmul.f32 %v479, 6.2831855
  %v512 = vmul.f32 %v480, 6.2831855
  %v513 = vmul.f32 %v481, 6.2831855
  %v514 = vmul.f32 %v482, 6.2831855
  %v515 = vmul.f32 %v483, 6.2831855
  %v516 = vmul.f32 %v484, 6.2831855
  %v517 = vmul.f32 %v485, 6.2831855
  %v518 = vmul.f32 %v486, 6.2831855
  %v519 = vmul.f32 %v487, 6.2831855
  %v520 = vmul.f32 %v488, 6.2831855
  %v521 = vmul.f32 %v489, 6.2831855
  %v522 = vmul.f32 %v490, 6.2831855
  %v523 = vmul.f32 %v491, 6.2831855
  %v524 = vmul.f32 %v492, 6.2831855
  %v525 = vmul.f32 %v493, 6.2831855
  %v526 = vmul.f32 %v494, 6.2831855
  %v527 = vlaneseq
  %v528 = vand.u32 %v527, 127
  %vm529 = vcmp.lt.s32.totalorder %v528, 16
  %v530 = vand.u32 2147483647, %v495
  %vm531 = vcmp.le.f32.partialorder %v530, 0.7853982
  %vm532 = vcmp.lt.s32.totalorder %v495, 0
  %v533 = vand.u32 %v495, 2139095040
  %v534 = vshrl.u32 %v533, 23
  %v535 = vsub.s32 %v534, 127
  %v536 = vand.u32 2147483647, %v495
  %v537 = vand.u32 %v536, 8388607
  %v538 = vor.u32 %v537, 8388608
  %v539 = vsub.s32 0, %v538
  %v540 = vadd.s32 %v535, 1
  %vm541 = vcmp.gt.s32.totalorder %v540, 0
  %v542 = vsel %vm541, %v540, 0
  %v543 = vshrl.u32 %v542, 5
  %v544 = vand.u32 %v542, 31
  %v545 = vsub.s32 32, %v544
  %v546 = vshrl.u32 683565275, %v545
  %v547 = vshll.u32 683565275, %v544
  %v548 = vshrl.u32 2475754826, %v545
  %v549 = vor.u32 %v547, %v548
  %v550 = vshll.u32 2475754826, %v544
  %v551 = vshrl.u32 2131351028, %v545
  %v552 = vor.u32 %v550, %v551
  %v553 = vshll.u32 2131351028, %v544
  %v554 = vshrl.u32 2102212464, %v545
  %v555 = vor.u32 %v553, %v554
  %v556 = vshll.u32 2102212464, %v544
  %v557 = vshrl.u32 920167782, %v545
  %v558 = vor.u32 %v556, %v557
  %v559 = vshll.u32 920167782, %v544
  %v560 = vshrl.u32 1326507024, %v545
  %v561 = vor.u32 %v559, %v560
  %vm562 = vcmp.lt.s32.totalorder %v543, 1
  %vm563 = vcmp.lt.s32.totalorder %v543, 2
  %vm564 = vcmp.lt.s32.totalorder %v543, 3
  %vm565 = vcmp.lt.s32.totalorder %v543, 4
  %v566 = vsel %vm562, %v546, %v549
  %v567 = vsel %vm565, %v555, 2102212464
  %v568 = vsel %vm564, %v552, %v567
  %v569 = vsel %vm563, %v566, %v568
  %v570 = vsel %vm562, %v549, %v552
  %v571 = vsel %vm565, %v558, 920167782
  %v572 = vsel %vm564, %v555, %v571
  %v573 = vsel %vm563, %v570, %v572
  %v574 = vsel %vm562, %v552, %v555
  %v575 = vsel %vm565, %v561, 1326507024
  %v576 = vsel %vm564, %v558, %v575
  %v577 = vsel %vm563, %v574, %v576
  %v578 = vshll.u32 %v538, 8
  %v579 = vand.u32 %v578, 65535
  %v580 = vshrl.u32 %v578, 16
  %v581 = vand.u32 %v577, 65535
  %v582 = vshrl.u32 %v577, 16
  %v583 = vmul.u32 %v579, %v581
  %v584 = vmul.u32 %v579, %v582
  %v585 = vmul.u32 %v580, %v581
  %v586 = vmul.u32 %v580, %v582
  %v587 = vshll.u32 %v584, 16
  %v588 = vshrl.u32 %v584, 16
  %v589 = vshll.u32 %v585, 16
  %v590 = vshrl.u32 %v585, 16
  %vm591 = vc.u32 %v583, %v587
  %v592 = vsel %vm591, 1, 0
  %v593 = vadd.s32 %v583, %v587
  %v594 = vadd.s32 %v586, %v592
  %vm595 = vc.u32 %v593, %v589
  %v596 = vsel %vm595, 1, 0
  %v597 = vadd.s32 %v593, %v589
  %v598 = vadd.s32 %v594, %v596
  %v599 = vadd.s32 %v598, %v588
  %v600 = vadd.s32 %v599, %v590
  %v601 = vand.u32 %v578, 65535
  %v602 = vshrl.u32 %v578, 16
  %v603 = vand.u32 %v573, 65535
  %v604 = vshrl.u32 %v573, 16
  %v605 = vmul.u32 %v601, %v603
  %v606 = vmul.u32 %v601, %v604
  %v607 = vmul.u32 %v602, %v603
  %v608 = vmul.u32 %v602, %v604
  %v609 = vshll.u32 %v606, 16
  %v610 = vshrl.u32 %v606, 16
  %v611 = vshll.u32 %v607, 16
  %v612 = vshrl.u32 %v607, 16
  %vm613 = vc.u32 %v605, %v609
  %v614 = vsel %vm613, 1, 0
  %v615 = vadd.s32 %v605, %v609
  %v616 = vadd.s32 %v608, %v614
  %vm617 = vc.u32 %v615, %v611
  %v618 = vsel %vm617, 1, 0
  %v619 = vadd.s32 %v615, %v611
  %v620 = vadd.s32 %v616, %v618
  %v621 = vadd.s32 %v620, %v610
  %v622 = vadd.s32 %v621, %v612
  %v623 = vmul.u32 %v578, %v569
  %v624 = vadd.s32 %v600, %v619
  %vm625 = vc.u32 %v600, %v619
  %v626 = vadd.s32 %v622, 1
  %v627 = vsel %vm625, %v626, %v622
  %v628 = vadd.s32 %v623, %v627
  %v629 = vadd.s32 %v628, 536870912
  %v630 = vshrl.u32 %v629, 30
  %v631 = vshll.u32 %v630, 30
  %v632 = vsub.s32 %v628, %v631
  %vm633 = vcmp.lt.s32.totalorder %v632, 0
  %v634 = vsub.s32 0, %v632
  %v635 = vsel %vm633, %v634, %v632
  %v636 = vclz %v635
  %v637 = vsub.s32 %v636, 2
  %vm638 = vcmp.gt.s32.totalorder 0, %v637
  %v639 = vsel %vm638, 0, %v637
  %v640 = vsub.s32 32, %v639
  %v641 = vshll.u32 %v632, %v639
  %v642 = vshrl.u32 %v624, %v640
  %v643 = vor.u32 %v641, %v642
  %v644 = vsub.s32 4294967266, %v639
  %v645 = vadd.s32 %v644, 127
  %v646 = vshll.u32 %v645, 23
  %v647 = vor.u32 4788187, %v646
  %v648 = vand.u32 2147483647, %v647
  %v650 = vcvt.s32.f32 %v643
  %v651 = vmul.f32 %v650, %v648
  %v652 = vxor.u32 %v651, 2147483648
  %v653 = vsel %vm532, %v652, %v651
  %v654 = vsub.s32 4, %v630
  %v655 = vsel %vm532, %v654, %v630
  %v656 = vsel %vm531, %v495, %v653
  %v657 = vsel %vm531, 0, %v655
  %v658 = vmul.f32 %v656, %v656
  %v659 = vmul.f32 %v658, -0.001358992
  %v660 = vadd.f32 %v659, 0.041655596
  %v661 = vmul.f32 %v658, %v660
  %v662 = vadd.f32 %v661, -0.4999988
  %v663 = vmul.f32 %v658, %v662
  %v664 = vadd.f32 1.0, %v663
  %v665 = vmul.f32 %v656, %v656
  %v666 = vmul.f32 %v665, -0.00019511016
  %v667 = vadd.f32 %v666, 0.008332121
  %v668 = vmul.f32 %v665, %v667
  %v669 = vadd.f32 %v668, -0.16666654
  %v670 = vmul.f32 %v665, %v669
  %v671 = vadd.f32 %v670, 1.0
  %v672 = vmul.f32 %v671, %v656
  %vm673 = vweird.f32 %v495
  %v674 = vadd.s32 %v657, 3
  %v675 = vand.u32 %v674, 3
  %vm676 = vcmp.lt.s32.totalorder %v675, 2
  %vm677 = vcmp.eq.s32.totalorder %v675, 0
  %v678 = vxor.u32 %v672, 2147483648
  %v679 = vsel %vm677, %v664, %v678
  %vm680 = vcmp.eq.s32.totalorder %v675, 2
  %v681 = vxor.u32 %v664, 2147483648
  %v682 = vsel %vm680, %v681, %v672
  %v683 = vsel %vm676, %v679, %v682
  %v684 = vsel %vm673, nan, %v683
  %v685 = vand.u32 2147483647, %v496
  %vm686 = vcmp.le.f32.partialorder %v685, 0.7853982
  %vm687 = vcmp.lt.s32.totalorder %v496, 0
  %v688 = vand.u32 %v496, 2139095040
  %v689 = vshrl.u32 %v688, 23
  %v690 = vsub.s32 %v689, 127
  %v691 = vand.u32 2147483647, %v496
  %v692 = vand.u32 %v691, 8388607
  %v693 = vor.u32 %v692, 8388608
  %v694 = vsub.s32 0, %v693
  %v695 = vadd.s32 %v690, 1
  %vm696 = vcmp.gt.s32.totalorder %v695, 0
  %v697 = vsel %vm696, %v695, 0
  %v698 = vshrl.u32 %v697, 5
  %v699 = vand.u32 %v697, 31
  %v700 = vsub.s32 32, %v699
  %v701 = vshrl.u32 683565275, %v700
  %v702 = vshll.u32 683565275, %v699
  %v703 = vshrl.u32 2475754826, %v700
  %v704 = vor.u32 %v702, %v703
  %v705 = vshll.u32 2475754826, %v699
  %v706 = vshrl.u32 2131351028, %v700
  %v707 = vor.u32 %v705, %v706
  %v708 = vshll.u32 2131351028, %v699
  %v709 = vshrl.u32 2102212464, %v700
  %v710 = vor.u32 %v708, %v709
  %v711 = vshll.u32 2102212464, %v699
  %v712 = vshrl.u32 920167782, %v700
  %v713 = vor.u32 %v711, %v712
  %v714 = vshll.u32 920167782, %v699
  %v715 = vshrl.u32 1326507024, %v700
  %v716 = vor.u32 %v714, %v715
  %vm717 = vcmp.lt.s32.totalorder %v698, 1
  %vm718 = vcmp.lt.s32.totalorder %v698, 2
  %vm719 = vcmp.lt.s32.totalorder %v698, 3
  %vm720 = vcmp.lt.s32.totalorder %v698, 4
  %v721 = vsel %vm717, %v701, %v704
  %v722 = vsel %vm720, %v710, 2102212464
  %v723 = vsel %vm719, %v707, %v722
  %v724 = vsel %vm718, %v721, %v723
  %v725 = vsel %vm717, %v704, %v707
  %v726 = vsel %vm720, %v713, 920167782
  %v727 = vsel %vm719, %v710, %v726
  %v728 = vsel %vm718, %v725, %v727
  %v729 = vsel %vm717, %v707, %v710
  %v730 = vsel %vm720, %v716, 1326507024
  %v731 = vsel %vm719, %v713, %v730
  %v732 = vsel %vm718, %v729, %v731
  %v733 = vshll.u32 %v693, 8
  %v734 = vand.u32 %v733, 65535
  %v735 = vshrl.u32 %v733, 16
  %v736 = vand.u32 %v732, 65535
  %v737 = vshrl.u32 %v732, 16
  %v738 = vmul.u32 %v734, %v736
  %v739 = vmul.u32 %v734, %v737
  %v740 = vmul.u32 %v735, %v736
  %v741 = vmul.u32 %v735, %v737
  %v742 = vshll.u32 %v739, 16
  %v743 = vshrl.u32 %v739, 16
  %v744 = vshll.u32 %v740, 16
  %v745 = vshrl.u32 %v740, 16
  %vm746 = vc.u32 %v738, %v742
  %v747 = vsel %vm746, 1, 0
  %v748 = vadd.s32 %v738, %v742
  %v749 = vadd.s32 %v741, %v747
  %vm750 = vc.u32 %v748, %v744
  %v751 = vsel %vm750, 1, 0
  %v752 = vadd.s32 %v748, %v744
  %v753 = vadd.s32 %v749, %v751
  %v754 = vadd.s32 %v753, %v743
  %v755 = vadd.s32 %v754, %v745
  %v756 = vand.u32 %v733, 65535
  %v757 = vshrl.u32 %v733, 16
  %v758 = vand.u32 %v728, 65535
  %v759 = vshrl.u32 %v728, 16
  %v760 = vmul.u32 %v756, %v758
  %v761 = vmul.u32 %v756, %v759
  %v762 = vmul.u32 %v757, %v758
  %v763 = vmul.u32 %v757, %v759
  %v764 = vshll.u32 %v761, 16
  %v765 = vshrl.u32 %v761, 16
  %v766 = vshll.u32 %v762, 16
  %v767 = vshrl.u32 %v762, 16
  %vm768 = vc.u32 %v760, %v764
  %v769 = vsel %vm768, 1, 0
  %v770 = vadd.s32 %v760, %v764
  %v771 = vadd.s32 %v763, %v769
  %vm772 = vc.u32 %v770, %v766
  %v773 = vsel %vm772, 1, 0
  %v774 = vadd.s32 %v770, %v766
  %v775 = vadd.s32 %v771, %v773
  %v776 = vadd.s32 %v775, %v765
  %v777 = vadd.s32 %v776, %v767
  %v778 = vmul.u32 %v733, %v724
  %v779 = vadd.s32 %v755, %v774
  %vm780 = vc.u32 %v755, %v774
  %v781 = vadd.s32 %v777, 1
  %v782 = vsel %vm780, %v781, %v777
  %v783 = vadd.s32 %v778, %v782
  %v784 = vadd.s32 %v783, 536870912
  %v785 = vshrl.u32 %v784, 30
  %v786 = vshll.u32 %v785, 30
  %v787 = vsub.s32 %v783, %v786
  %vm788 = vcmp.lt.s32.totalorder %v787, 0
  %v789 = vsub.s32 0, %v787
  %v790 = vsel %vm788, %v789, %v787
  %v791 = vclz %v790
  %v792 = vsub.s32 %v791, 2
  %vm793 = vcmp.gt.s32.totalorder 0, %v792
  %v794 = vsel %vm793, 0, %v792
  %v795 = vsub.s32 32, %v794
  %v796 = vshll.u32 %v787, %v794
  %v797 = vshrl.u32 %v779, %v795
  %v798 = vor.u32 %v796, %v797
  %v799 = vsub.s32 4294967266, %v794
  %v800 = vadd.s32 %v799, 127
  %v801 = vshll.u32 %v800, 23
  %v802 = vor.u32 4788187, %v801
  %v803 = vand.u32 2147483647, %v802
  %v805 = vcvt.s32.f32 %v798
  %v806 = vmul.f32 %v805, %v803
  %v807 = vxor.u32 %v806, 2147483648
  %v808 = vsel %vm687, %v807, %v806
  %v809 = vsub.s32 4, %v785
  %v810 = vsel %vm687, %v809, %v785
  %v811 = vsel %vm686, %v496, %v808
  %v812 = vsel %vm686, 0, %v810
  %v813 = vmul.f32 %v811, %v811
  %v814 = vmul.f32 %v813, -0.001358992
  %v815 = vadd.f32 %v814, 0.041655596
  %v816 = vmul.f32 %v813, %v815
  %v817 = vadd.f32 %v816, -0.4999988
  %v818 = vmul.f32 %v813, %v817
  %v819 = vadd.f32 1.0, %v818
  %v820 = vmul.f32 %v811, %v811
  %v821 = vmul.f32 %v820, -0.00019511016
  %v822 = vadd.f32 %v821, 0.008332121
  %v823 = vmul.f32 %v820, %v822
  %v824 = vadd.f32 %v823, -0.16666654
  %v825 = vmul.f32 %v820, %v824
  %v826 = vadd.f32 %v825, 1.0
  %v827 = vmul.f32 %v826, %v811
  %vm828 = vweird.f32 %v496
  %v829 = vadd.s32 %v812, 3
  %v830 = vand.u32 %v829, 3
  %vm831 = vcmp.lt.s32.totalorder %v830, 2
  %vm832 = vcmp.eq.s32.totalorder %v830, 0
  %v833 = vxor.u32 %v827, 2147483648
  %v834 = vsel %vm832, %v819, %v833
  %vm835 = vcmp.eq.s32.totalorder %v830, 2
  %v836 = vxor.u32 %v819, 2147483648
  %v837 = vsel %vm835, %v836, %v827
  %v838 = vsel %vm831, %v834, %v837
  %v839 = vsel %vm828, nan, %v838
  %v840 = vand.u32 2147483647, %v497
  %vm841 = vcmp.le.f32.partialorder %v840, 0.7853982
  %vm842 = vcmp.lt.s32.totalorder %v497, 0
  %v843 = vand.u32 %v497, 2139095040
  %v844 = vshrl.u32 %v843, 23
  %v845 = vsub.s32 %v844, 127
  %v846 = vand.u32 2147483647, %v497
  %v847 = vand.u32 %v846, 8388607
  %v848 = vor.u32 %v847, 8388608
  %v849 = vsub.s32 0, %v848
  %v850 = vadd.s32 %v845, 1
  %vm851 = vcmp.gt.s32.totalorder %v850, 0
  %v852 = vsel %vm851, %v850, 0
  %v853 = vshrl.u32 %v852, 5
  %v854 = vand.u32 %v852, 31
  %v855 = vsub.s32 32, %v854
  %v856 = vshrl.u32 683565275, %v855
  %v857 = vshll.u32 683565275, %v854
  %v858 = vshrl.u32 2475754826, %v855
  %v859 = vor.u32 %v857, %v858
  %v860 = vshll.u32 2475754826, %v854
  %v861 = vshrl.u32 2131351028, %v855
  %v862 = vor.u32 %v860, %v861
  %v863 = vshll.u32 2131351028, %v854
  %v864 = vshrl.u32 2102212464, %v855
  %v865 = vor.u32 %v863, %v864
  %v866 = vshll.u32 2102212464, %v854
  %v867 = vshrl.u32 920167782, %v855
  %v868 = vor.u32 %v866, %v867
  %v869 = vshll.u32 920167782, %v854
  %v870 = vshrl.u32 1326507024, %v855
  %v871 = vor.u32 %v869, %v870
  %vm872 = vcmp.lt.s32.totalorder %v853, 1
  %vm873 = vcmp.lt.s32.totalorder %v853, 2
  %vm874 = vcmp.lt.s32.totalorder %v853, 3
  %vm875 = vcmp.lt.s32.totalorder %v853, 4
  %v876 = vsel %vm872, %v856, %v859
  %v877 = vsel %vm875, %v865, 2102212464
  %v878 = vsel %vm874, %v862, %v877
  %v879 = vsel %vm873, %v876, %v878
  %v880 = vsel %vm872, %v859, %v862
  %v881 = vsel %vm875, %v868, 920167782
  %v882 = vsel %vm874, %v865, %v881
  %v883 = vsel %vm873, %v880, %v882
  %v884 = vsel %vm872, %v862, %v865
  %v885 = vsel %vm875, %v871, 1326507024
  %v886 = vsel %vm874, %v868, %v885
  %v887 = vsel %vm873, %v884, %v886
  %v888 = vshll.u32 %v848, 8
  %v889 = vand.u32 %v888, 65535
  %v890 = vshrl.u32 %v888, 16
  %v891 = vand.u32 %v887, 65535
  %v892 = vshrl.u32 %v887, 16
  %v893 = vmul.u32 %v889, %v891
  %v894 = vmul.u32 %v889, %v892
  %v895 = vmul.u32 %v890, %v891
  %v896 = vmul.u32 %v890, %v892
  %v897 = vshll.u32 %v894, 16
  %v898 = vshrl.u32 %v894, 16
  %v899 = vshll.u32 %v895, 16
  %v900 = vshrl.u32 %v895, 16
  %vm901 = vc.u32 %v893, %v897
  %v902 = vsel %vm901, 1, 0
  %v903 = vadd.s32 %v893, %v897
  %v904 = vadd.s32 %v896, %v902
  %vm905 = vc.u32 %v903, %v899
  %v906 = vsel %vm905, 1, 0
  %v907 = vadd.s32 %v903, %v899
  %v908 = vadd.s32 %v904, %v906
  %v909 = vadd.s32 %v908, %v898
  %v910 = vadd.s32 %v909, %v900
  %v911 = vand.u32 %v888, 65535
  %v912 = vshrl.u32 %v888, 16
  %v913 = vand.u32 %v883, 65535
  %v914 = vshrl.u32 %v883, 16
  %v915 = vmul.u32 %v911, %v913
  %v916 = vmul.u32 %v911, %v914
  %v917 = vmul.u32 %v912, %v913
  %v918 = vmul.u32 %v912, %v914
  %v919 = vshll.u32 %v916, 16
  %v920 = vshrl.u32 %v916, 16
  %v921 = vshll.u32 %v917, 16
  %v922 = vshrl.u32 %v917, 16
  %vm923 = vc.u32 %v915, %v919
  %v924 = vsel %vm923, 1, 0
  %v925 = vadd.s32 %v915, %v919
  %v926 = vadd.s32 %v918, %v924
  %vm927 = vc.u32 %v925, %v921
  %v928 = vsel %vm927, 1, 0
  %v929 = vadd.s32 %v925, %v921
  %v930 = vadd.s32 %v926, %v928
  %v931 = vadd.s32 %v930, %v920
  %v932 = vadd.s32 %v931, %v922
  %v933 = vmul.u32 %v888, %v879
  %v934 = vadd.s32 %v910, %v929
  %vm935 = vc.u32 %v910, %v929
  %v936 = vadd.s32 %v932, 1
  %v937 = vsel %vm935, %v936, %v932
  %v938 = vadd.s32 %v933, %v937
  %v939 = vadd.s32 %v938, 536870912
  %v940 = vshrl.u32 %v939, 30
  %v941 = vshll.u32 %v940, 30
  %v942 = vsub.s32 %v938, %v941
  %vm943 = vcmp.lt.s32.totalorder %v942, 0
  %v944 = vsub.s32 0, %v942
  %v945 = vsel %vm943, %v944, %v942
  %v946 = vclz %v945
  %v947 = vsub.s32 %v946, 2
  %vm948 = vcmp.gt.s32.totalorder 0, %v947
  %v949 = vsel %vm948, 0, %v947
  %v950 = vsub.s32 32, %v949
  %v951 = vshll.u32 %v942, %v949
  %v952 = vshrl.u32 %v934, %v950
  %v953 = vor.u32 %v951, %v952
  %v954 = vsub.s32 4294967266, %v949
  %v955 = vadd.s32 %v954, 127
  %v956 = vshll.u32 %v955, 23
  %v957 = vor.u32 4788187, %v956
  %v958 = vand.u32 2147483647, %v957
  %v960 = vcvt.s32.f32 %v953
  %v961 = vmul.f32 %v960, %v958
  %v962 = vxor.u32 %v961, 2147483648
  %v963 = vsel %vm842, %v962, %v961
  %v964 = vsub.s32 4, %v940
  %v965 = vsel %vm842, %v964, %v940
  %v966 = vsel %vm841, %v497, %v963
  %v967 = vsel %vm841, 0, %v965
  %v968 = vmul.f32 %v966, %v966
  %v969 = vmul.f32 %v968, -0.001358992
  %v970 = vadd.f32 %v969, 0.041655596
  %v971 = vmul.f32 %v968, %v970
  %v972 = vadd.f32 %v971, -0.4999988
  %v973 = vmul.f32 %v968, %v972
  %v974 = vadd.f32 1.0, %v973
  %v975 = vmul.f32 %v966, %v966
  %v976 = vmul.f32 %v975, -0.00019511016
  %v977 = vadd.f32 %v976, 0.008332121
  %v978 = vmul.f32 %v975, %v977
  %v979 = vadd.f32 %v978, -0.16666654
  %v980 = vmul.f32 %v975, %v979
  %v981 = vadd.f32 %v980, 1.0
  %v982 = vmul.f32 %v981, %v966
  %vm983 = vweird.f32 %v497
  %v984 = vadd.s32 %v967, 3
  %v985 = vand.u32 %v984, 3
  %vm986 = vcmp.lt.s32.totalorder %v985, 2
  %vm987 = vcmp.eq.s32.totalorder %v985, 0
  %v988 = vxor.u32 %v982, 2147483648
  %v989 = vsel %vm987, %v974, %v988
  %vm990 = vcmp.eq.s32.totalorder %v985, 2
  %v991 = vxor.u32 %v974, 2147483648
  %v992 = vsel %vm990, %v991, %v982
  %v993 = vsel %vm986, %v989, %v992
  %v994 = vsel %vm983, nan, %v993
  %v995 = vand.u32 2147483647, %v498
  %vm996 = vcmp.le.f32.partialorder %v995, 0.7853982
  %vm997 = vcmp.lt.s32.totalorder %v498, 0
  %v998 = vand.u32 %v498, 2139095040
  %v999 = vshrl.u32 %v998, 23
  %v1000 = vsub.s32 %v999, 127
  %v1001 = vand.u32 2147483647, %v498
  %v1002 = vand.u32 %v1001, 8388607
  %v1003 = vor.u32 %v1002, 8388608
  %v1004 = vsub.s32 0, %v1003
  %v1005 = vadd.s32 %v1000, 1
  %vm1006 = vcmp.gt.s32.totalorder %v1005, 0
  %v1007 = vsel %vm1006, %v1005, 0
  %v1008 = vshrl.u32 %v1007, 5
  %v1009 = vand.u32 %v1007, 31
  %v1010 = vsub.s32 32, %v1009
  %v1011 = vshrl.u32 683565275, %v1010
  %v1012 = vshll.u32 683565275, %v1009
  %v1013 = vshrl.u32 2475754826, %v1010
  %v1014 = vor.u32 %v1012, %v1013
  %v1015 = vshll.u32 2475754826, %v1009
  %v1016 = vshrl.u32 2131351028, %v1010
  %v1017 = vor.u32 %v1015, %v1016
  %v1018 = vshll.u32 2131351028, %v1009
  %v1019 = vshrl.u32 2102212464, %v1010
  %v1020 = vor.u32 %v1018, %v1019
  %v1021 = vshll.u32 2102212464, %v1009
  %v1022 = vshrl.u32 920167782, %v1010
  %v1023 = vor.u32 %v1021, %v1022
  %v1024 = vshll.u32 920167782, %v1009
  %v1025 = vshrl.u32 1326507024, %v1010
  %v1026 = vor.u32 %v1024, %v1025
  %vm1027 = vcmp.lt.s32.totalorder %v1008, 1
  %vm1028 = vcmp.lt.s32.totalorder %v1008, 2
  %vm1029 = vcmp.lt.s32.totalorder %v1008, 3
  %vm1030 = vcmp.lt.s32.totalorder %v1008, 4
  %v1031 = vsel %vm1027, %v1011, %v1014
  %v1032 = vsel %vm1030, %v1020, 2102212464
  %v1033 = vsel %vm1029, %v1017, %v1032
  %v1034 = vsel %vm1028, %v1031, %v1033
  %v1035 = vsel %vm1027, %v1014, %v1017
  %v1036 = vsel %vm1030, %v1023, 920167782
  %v1037 = vsel %vm1029, %v1020, %v1036
  %v1038 = vsel %vm1028, %v1035, %v1037
  %v1039 = vsel %vm1027, %v1017, %v1020
  %v1040 = vsel %vm1030, %v1026, 1326507024
  %v1041 = vsel %vm1029, %v1023, %v1040
  %v1042 = vsel %vm1028, %v1039, %v1041
  %v1043 = vshll.u32 %v1003, 8
  %v1044 = vand.u32 %v1043, 65535
  %v1045 = vshrl.u32 %v1043, 16
  %v1046 = vand.u32 %v1042, 65535
  %v1047 = vshrl.u32 %v1042, 16
  %v1048 = vmul.u32 %v1044, %v1046
  %v1049 = vmul.u32 %v1044, %v1047
  %v1050 = vmul.u32 %v1045, %v1046
  %v1051 = vmul.u32 %v1045, %v1047
  %v1052 = vshll.u32 %v1049, 16
  %v1053 = vshrl.u32 %v1049, 16
  %v1054 = vshll.u32 %v1050, 16
  %v1055 = vshrl.u32 %v1050, 16
  %vm1056 = vc.u32 %v1048, %v1052
  %v1057 = vsel %vm1056, 1, 0
  %v1058 = vadd.s32 %v1048, %v1052
  %v1059 = vadd.s32 %v1051, %v1057
  %vm1060 = vc.u32 %v1058, %v1054
  %v1061 = vsel %vm1060, 1, 0
  %v1062 = vadd.s32 %v1058, %v1054
  %v1063 = vadd.s32 %v1059, %v1061
  %v1064 = vadd.s32 %v1063, %v1053
  %v1065 = vadd.s32 %v1064, %v1055
  %v1066 = vand.u32 %v1043, 65535
  %v1067 = vshrl.u32 %v1043, 16
  %v1068 = vand.u32 %v1038, 65535
  %v1069 = vshrl.u32 %v1038, 16
  %v1070 = vmul.u32 %v1066, %v1068
  %v1071 = vmul.u32 %v1066, %v1069
  %v1072 = vmul.u32 %v1067, %v1068
  %v1073 = vmul.u32 %v1067, %v1069
  %v1074 = vshll.u32 %v1071, 16
  %v1075 = vshrl.u32 %v1071, 16
  %v1076 = vshll.u32 %v1072, 16
  %v1077 = vshrl.u32 %v1072, 16
  %vm1078 = vc.u32 %v1070, %v1074
  %v1079 = vsel %vm1078, 1, 0
  %v1080 = vadd.s32 %v1070, %v1074
  %v1081 = vadd.s32 %v1073, %v1079
  %vm1082 = vc.u32 %v1080, %v1076
  %v1083 = vsel %vm1082, 1, 0
  %v1084 = vadd.s32 %v1080, %v1076
  %v1085 = vadd.s32 %v1081, %v1083
  %v1086 = vadd.s32 %v1085, %v1075
  %v1087 = vadd.s32 %v1086, %v1077
  %v1088 = vmul.u32 %v1043, %v1034
  %v1089 = vadd.s32 %v1065, %v1084
  %vm1090 = vc.u32 %v1065, %v1084
  %v1091 = vadd.s32 %v1087, 1
  %v1092 = vsel %vm1090, %v1091, %v1087
  %v1093 = vadd.s32 %v1088, %v1092
  %v1094 = vadd.s32 %v1093, 536870912
  %v1095 = vshrl.u32 %v1094, 30
  %v1096 = vshll.u32 %v1095, 30
  %v1097 = vsub.s32 %v1093, %v1096
  %vm1098 = vcmp.lt.s32.totalorder %v1097, 0
  %v1099 = vsub.s32 0, %v1097
  %v1100 = vsel %vm1098, %v1099, %v1097
  %v1101 = vclz %v1100
  %v1102 = vsub.s32 %v1101, 2
  %vm1103 = vcmp.gt.s32.totalorder 0, %v1102
  %v1104 = vsel %vm1103, 0, %v1102
  %v1105 = vsub.s32 32, %v1104
  %v1106 = vshll.u32 %v1097, %v1104
  %v1107 = vshrl.u32 %v1089, %v1105
  %v1108 = vor.u32 %v1106, %v1107
  %v1109 = vsub.s32 4294967266, %v1104
  %v1110 = vadd.s32 %v1109, 127
  %v1111 = vshll.u32 %v1110, 23
  %v1112 = vor.u32 4788187, %v1111
  %v1113 = vand.u32 2147483647, %v1112
  %v1115 = vcvt.s32.f32 %v1108
  %v1116 = vmul.f32 %v1115, %v1113
  %v1117 = vxor.u32 %v1116, 2147483648
  %v1118 = vsel %vm997, %v1117, %v1116
  %v1119 = vsub.s32 4, %v1095
  %v1120 = vsel %vm997, %v1119, %v1095
  %v1121 = vsel %vm996, %v498, %v1118
  %v1122 = vsel %vm996, 0, %v1120
  %v1123 = vmul.f32 %v1121, %v1121
  %v1124 = vmul.f32 %v1123, -0.001358992
  %v1125 = vadd.f32 %v1124, 0.041655596
  %v1126 = vmul.f32 %v1123, %v1125
  %v1127 = vadd.f32 %v1126, -0.4999988
  %v1128 = vmul.f32 %v1123, %v1127
  %v1129 = vadd.f32 1.0, %v1128
  %v1130 = vmul.f32 %v1121, %v1121
  %v1131 = vmul.f32 %v1130, -0.00019511016
  %v1132 = vadd.f32 %v1131, 0.008332121
  %v1133 = vmul.f32 %v1130, %v1132
  %v1134 = vadd.f32 %v1133, -0.16666654
  %v1135 = vmul.f32 %v1130, %v1134
  %v1136 = vadd.f32 %v1135, 1.0
  %v1137 = vmul.f32 %v1136, %v1121
  %vm1138 = vweird.f32 %v498
  %v1139 = vadd.s32 %v1122, 3
  %v1140 = vand.u32 %v1139, 3
  %vm1141 = vcmp.lt.s32.totalorder %v1140, 2
  %vm1142 = vcmp.eq.s32.totalorder %v1140, 0
  %v1143 = vxor.u32 %v1137, 2147483648
  %v1144 = vsel %vm1142, %v1129, %v1143
  %vm1145 = vcmp.eq.s32.totalorder %v1140, 2
  %v1146 = vxor.u32 %v1129, 2147483648
  %v1147 = vsel %vm1145, %v1146, %v1137
  %v1148 = vsel %vm1141, %v1144, %v1147
  %v1149 = vsel %vm1138, nan, %v1148
  %v1150 = vand.u32 2147483647, %v499
  %vm1151 = vcmp.le.f32.partialorder %v1150, 0.7853982
  %vm1152 = vcmp.lt.s32.totalorder %v499, 0
  %v1153 = vand.u32 %v499, 2139095040
  %v1154 = vshrl.u32 %v1153, 23
  %v1155 = vsub.s32 %v1154, 127
  %v1156 = vand.u32 2147483647, %v499
  %v1157 = vand.u32 %v1156, 8388607
  %v1158 = vor.u32 %v1157, 8388608
  %v1159 = vsub.s32 0, %v1158
  %v1160 = vadd.s32 %v1155, 1
  %vm1161 = vcmp.gt.s32.totalorder %v1160, 0
  %v1162 = vsel %vm1161, %v1160, 0
  %v1163 = vshrl.u32 %v1162, 5
  %v1164 = vand.u32 %v1162, 31
  %v1165 = vsub.s32 32, %v1164
  %v1166 = vshrl.u32 683565275, %v1165
  %v1167 = vshll.u32 683565275, %v1164
  %v1168 = vshrl.u32 2475754826, %v1165
  %v1169 = vor.u32 %v1167, %v1168
  %v1170 = vshll.u32 2475754826, %v1164
  %v1171 = vshrl.u32 2131351028, %v1165
  %v1172 = vor.u32 %v1170, %v1171
  %v1173 = vshll.u32 2131351028, %v1164
  %v1174 = vshrl.u32 2102212464, %v1165
  %v1175 = vor.u32 %v1173, %v1174
  %v1176 = vshll.u32 2102212464, %v1164
  %v1177 = vshrl.u32 920167782, %v1165
  %v1178 = vor.u32 %v1176, %v1177
  %v1179 = vshll.u32 920167782, %v1164
  %v1180 = vshrl.u32 1326507024, %v1165
  %v1181 = vor.u32 %v1179, %v1180
  %vm1182 = vcmp.lt.s32.totalorder %v1163, 1
  %vm1183 = vcmp.lt.s32.totalorder %v1163, 2
  %vm1184 = vcmp.lt.s32.totalorder %v1163, 3
  %vm1185 = vcmp.lt.s32.totalorder %v1163, 4
  %v1186 = vsel %vm1182, %v1166, %v1169
  %v1187 = vsel %vm1185, %v1175, 2102212464
  %v1188 = vsel %vm1184, %v1172, %v1187
  %v1189 = vsel %vm1183, %v1186, %v1188
  %v1190 = vsel %vm1182, %v1169, %v1172
  %v1191 = vsel %vm1185, %v1178, 920167782
  %v1192 = vsel %vm1184, %v1175, %v1191
  %v1193 = vsel %vm1183, %v1190, %v1192
  %v1194 = vsel %vm1182, %v1172, %v1175
  %v1195 = vsel %vm1185, %v1181, 1326507024
  %v1196 = vsel %vm1184, %v1178, %v1195
  %v1197 = vsel %vm1183, %v1194, %v1196
  %v1198 = vshll.u32 %v1158, 8
  %v1199 = vand.u32 %v1198, 65535
  %v1200 = vshrl.u32 %v1198, 16
  %v1201 = vand.u32 %v1197, 65535
  %v1202 = vshrl.u32 %v1197, 16
  %v1203 = vmul.u32 %v1199, %v1201
  %v1204 = vmul.u32 %v1199, %v1202
  %v1205 = vmul.u32 %v1200, %v1201
  %v1206 = vmul.u32 %v1200, %v1202
  %v1207 = vshll.u32 %v1204, 16
  %v1208 = vshrl.u32 %v1204, 16
  %v1209 = vshll.u32 %v1205, 16
  %v1210 = vshrl.u32 %v1205, 16
  %vm1211 = vc.u32 %v1203, %v1207
  %v1212 = vsel %vm1211, 1, 0
  %v1213 = vadd.s32 %v1203, %v1207
  %v1214 = vadd.s32 %v1206, %v1212
  %vm1215 = vc.u32 %v1213, %v1209
  %v1216 = vsel %vm1215, 1, 0
  %v1217 = vadd.s32 %v1213, %v1209
  %v1218 = vadd.s32 %v1214, %v1216
  %v1219 = vadd.s32 %v1218, %v1208
  %v1220 = vadd.s32 %v1219, %v1210
  %v1221 = vand.u32 %v1198, 65535
  %v1222 = vshrl.u32 %v1198, 16
  %v1223 = vand.u32 %v1193, 65535
  %v1224 = vshrl.u32 %v1193, 16
  %v1225 = vmul.u32 %v1221, %v1223
  %v1226 = vmul.u32 %v1221, %v1224
  %v1227 = vmul.u32 %v1222, %v1223
  %v1228 = vmul.u32 %v1222, %v1224
  %v1229 = vshll.u32 %v1226, 16
  %v1230 = vshrl.u32 %v1226, 16
  %v1231 = vshll.u32 %v1227, 16
  %v1232 = vshrl.u32 %v1227, 16
  %vm1233 = vc.u32 %v1225, %v1229
  %v1234 = vsel %vm1233, 1, 0
  %v1235 = vadd.s32 %v1225, %v1229
  %v1236 = vadd.s32 %v1228, %v1234
  %vm1237 = vc.u32 %v1235, %v1231
  %v1238 = vsel %vm1237, 1, 0
  %v1239 = vadd.s32 %v1235, %v1231
  %v1240 = vadd.s32 %v1236, %v1238
  %v1241 = vadd.s32 %v1240, %v1230
  %v1242 = vadd.s32 %v1241, %v1232
  %v1243 = vmul.u32 %v1198, %v1189
  %v1244 = vadd.s32 %v1220, %v1239
  %vm1245 = vc.u32 %v1220, %v1239
  %v1246 = vadd.s32 %v1242, 1
  %v1247 = vsel %vm1245, %v1246, %v1242
  %v1248 = vadd.s32 %v1243, %v1247
  %v1249 = vadd.s32 %v1248, 536870912
  %v1250 = vshrl.u32 %v1249, 30
  %v1251 = vshll.u32 %v1250, 30
  %v1252 = vsub.s32 %v1248, %v1251
  %vm1253 = vcmp.lt.s32.totalorder %v1252, 0
  %v1254 = vsub.s32 0, %v1252
  %v1255 = vsel %vm1253, %v1254, %v1252
  %v1256 = vclz %v1255
  %v1257 = vsub.s32 %v1256, 2
  %vm1258 = vcmp.gt.s32.totalorder 0, %v1257
  %v1259 = vsel %vm1258, 0, %v1257
  %v1260 = vsub.s32 32, %v1259
  %v1261 = vshll.u32 %v1252, %v1259
  %v1262 = vshrl.u32 %v1244, %v1260
  %v1263 = vor.u32 %v1261, %v1262
  %v1264 = vsub.s32 4294967266, %v1259
  %v1265 = vadd.s32 %v1264, 127
  %v1266 = vshll.u32 %v1265, 23
  %v1267 = vor.u32 4788187, %v1266
  %v1268 = vand.u32 2147483647, %v1267
  %v1270 = vcvt.s32.f32 %v1263
  %v1271 = vmul.f32 %v1270, %v1268
  %v1272 = vxor.u32 %v1271, 2147483648
  %v1273 = vsel %vm1152, %v1272, %v1271
  %v1274 = vsub.s32 4, %v1250
  %v1275 = vsel %vm1152, %v1274, %v1250
  %v1276 = vsel %vm1151, %v499, %v1273
  %v1277 = vsel %vm1151, 0, %v1275
  %v1278 = vmul.f32 %v1276, %v1276
  %v1279 = vmul.f32 %v1278, -0.001358992
  %v1280 = vadd.f32 %v1279, 0.041655596
  %v1281 = vmul.f32 %v1278, %v1280
  %v1282 = vadd.f32 %v1281, -0.4999988
  %v1283 = vmul.f32 %v1278, %v1282
  %v1284 = vadd.f32 1.0, %v1283
  %v1285 = vmul.f32 %v1276, %v1276
  %v1286 = vmul.f32 %v1285, -0.00019511016
  %v1287 = vadd.f32 %v1286, 0.008332121
  %v1288 = vmul.f32 %v1285, %v1287
  %v1289 = vadd.f32 %v1288, -0.16666654
  %v1290 = vmul.f32 %v1285, %v1289
  %v1291 = vadd.f32 %v1290, 1.0
  %v1292 = vmul.f32 %v1291, %v1276
  %vm1293 = vweird.f32 %v499
  %v1294 = vadd.s32 %v1277, 3
  %v1295 = vand.u32 %v1294, 3
  %vm1296 = vcmp.lt.s32.totalorder %v1295, 2
  %vm1297 = vcmp.eq.s32.totalorder %v1295, 0
  %v1298 = vxor.u32 %v1292, 2147483648
  %v1299 = vsel %vm1297, %v1284, %v1298
  %vm1300 = vcmp.eq.s32.totalorder %v1295, 2
  %v1301 = vxor.u32 %v1284, 2147483648
  %v1302 = vsel %vm1300, %v1301, %v1292
  %v1303 = vsel %vm1296, %v1299, %v1302
  %v1304 = vsel %vm1293, nan, %v1303
  %v1305 = vand.u32 2147483647, %v500
  %vm1306 = vcmp.le.f32.partialorder %v1305, 0.7853982
  %vm1307 = vcmp.lt.s32.totalorder %v500, 0
  %v1308 = vand.u32 %v500, 2139095040
  %v1309 = vshrl.u32 %v1308, 23
  %v1310 = vsub.s32 %v1309, 127
  %v1311 = vand.u32 2147483647, %v500
  %v1312 = vand.u32 %v1311, 8388607
  %v1313 = vor.u32 %v1312, 8388608
  %v1314 = vsub.s32 0, %v1313
  %v1315 = vadd.s32 %v1310, 1
  %vm1316 = vcmp.gt.s32.totalorder %v1315, 0
  %v1317 = vsel %vm1316, %v1315, 0
  %v1318 = vshrl.u32 %v1317, 5
  %v1319 = vand.u32 %v1317, 31
  %v1320 = vsub.s32 32, %v1319
  %v1321 = vshrl.u32 683565275, %v1320
  %v1322 = vshll.u32 683565275, %v1319
  %v1323 = vshrl.u32 2475754826, %v1320
  %v1324 = vor.u32 %v1322, %v1323
  %v1325 = vshll.u32 2475754826, %v1319
  %v1326 = vshrl.u32 2131351028, %v1320
  %v1327 = vor.u32 %v1325, %v1326
  %v1328 = vshll.u32 2131351028, %v1319
  %v1329 = vshrl.u32 2102212464, %v1320
  %v1330 = vor.u32 %v1328, %v1329
  %v1331 = vshll.u32 2102212464, %v1319
  %v1332 = vshrl.u32 920167782, %v1320
  %v1333 = vor.u32 %v1331, %v1332
  %v1334 = vshll.u32 920167782, %v1319
  %v1335 = vshrl.u32 1326507024, %v1320
  %v1336 = vor.u32 %v1334, %v1335
  %vm1337 = vcmp.lt.s32.totalorder %v1318, 1
  %vm1338 = vcmp.lt.s32.totalorder %v1318, 2
  %vm1339 = vcmp.lt.s32.totalorder %v1318, 3
  %vm1340 = vcmp.lt.s32.totalorder %v1318, 4
  %v1341 = vsel %vm1337, %v1321, %v1324
  %v1342 = vsel %vm1340, %v1330, 2102212464
  %v1343 = vsel %vm1339, %v1327, %v1342
  %v1344 = vsel %vm1338, %v1341, %v1343
  %v1345 = vsel %vm1337, %v1324, %v1327
  %v1346 = vsel %vm1340, %v1333, 920167782
  %v1347 = vsel %vm1339, %v1330, %v1346
  %v1348 = vsel %vm1338, %v1345, %v1347
  %v1349 = vsel %vm1337, %v1327, %v1330
  %v1350 = vsel %vm1340, %v1336, 1326507024
  %v1351 = vsel %vm1339, %v1333, %v1350
  %v1352 = vsel %vm1338, %v1349, %v1351
  %v1353 = vshll.u32 %v1313, 8
  %v1354 = vand.u32 %v1353, 65535
  %v1355 = vshrl.u32 %v1353, 16
  %v1356 = vand.u32 %v1352, 65535
  %v1357 = vshrl.u32 %v1352, 16
  %v1358 = vmul.u32 %v1354, %v1356
  %v1359 = vmul.u32 %v1354, %v1357
  %v1360 = vmul.u32 %v1355, %v1356
  %v1361 = vmul.u32 %v1355, %v1357
  %v1362 = vshll.u32 %v1359, 16
  %v1363 = vshrl.u32 %v1359, 16
  %v1364 = vshll.u32 %v1360, 16
  %v1365 = vshrl.u32 %v1360, 16
  %vm1366 = vc.u32 %v1358, %v1362
  %v1367 = vsel %vm1366, 1, 0
  %v1368 = vadd.s32 %v1358, %v1362
  %v1369 = vadd.s32 %v1361, %v1367
  %vm1370 = vc.u32 %v1368, %v1364
  %v1371 = vsel %vm1370, 1, 0
  %v1372 = vadd.s32 %v1368, %v1364
  %v1373 = vadd.s32 %v1369, %v1371
  %v1374 = vadd.s32 %v1373, %v1363
  %v1375 = vadd.s32 %v1374, %v1365
  %v1376 = vand.u32 %v1353, 65535
  %v1377 = vshrl.u32 %v1353, 16
  %v1378 = vand.u32 %v1348, 65535
  %v1379 = vshrl.u32 %v1348, 16
  %v1380 = vmul.u32 %v1376, %v1378
  %v1381 = vmul.u32 %v1376, %v1379
  %v1382 = vmul.u32 %v1377, %v1378
  %v1383 = vmul.u32 %v1377, %v1379
  %v1384 = vshll.u32 %v1381, 16
  %v1385 = vshrl.u32 %v1381, 16
  %v1386 = vshll.u32 %v1382, 16
  %v1387 = vshrl.u32 %v1382, 16
  %vm1388 = vc.u32 %v1380, %v1384
  %v1389 = vsel %vm1388, 1, 0
  %v1390 = vadd.s32 %v1380, %v1384
  %v1391 = vadd.s32 %v1383, %v1389
  %vm1392 = vc.u32 %v1390, %v1386
  %v1393 = vsel %vm1392, 1, 0
  %v1394 = vadd.s32 %v1390, %v1386
  %v1395 = vadd.s32 %v1391, %v1393
  %v1396 = vadd.s32 %v1395, %v1385
  %v1397 = vadd.s32 %v1396, %v1387
  %v1398 = vmul.u32 %v1353, %v1344
  %v1399 = vadd.s32 %v1375, %v1394
  %vm1400 = vc.u32 %v1375, %v1394
  %v1401 = vadd.s32 %v1397, 1
  %v1402 = vsel %vm1400, %v1401, %v1397
  %v1403 = vadd.s32 %v1398, %v1402
  %v1404 = vadd.s32 %v1403, 536870912
  %v1405 = vshrl.u32 %v1404, 30
  %v1406 = vshll.u32 %v1405, 30
  %v1407 = vsub.s32 %v1403, %v1406
  %vm1408 = vcmp.lt.s32.totalorder %v1407, 0
  %v1409 = vsub.s32 0, %v1407
  %v1410 = vsel %vm1408, %v1409, %v1407
  %v1411 = vclz %v1410
  %v1412 = vsub.s32 %v1411, 2
  %vm1413 = vcmp.gt.s32.totalorder 0, %v1412
  %v1414 = vsel %vm1413, 0, %v1412
  %v1415 = vsub.s32 32, %v1414
  %v1416 = vshll.u32 %v1407, %v1414
  %v1417 = vshrl.u32 %v1399, %v1415
  %v1418 = vor.u32 %v1416, %v1417
  %v1419 = vsub.s32 4294967266, %v1414
  %v1420 = vadd.s32 %v1419, 127
  %v1421 = vshll.u32 %v1420, 23
  %v1422 = vor.u32 4788187, %v1421
  %v1423 = vand.u32 2147483647, %v1422
  %v1425 = vcvt.s32.f32 %v1418
  %v1426 = vmul.f32 %v1425, %v1423
  %v1427 = vxor.u32 %v1426, 2147483648
  %v1428 = vsel %vm1307, %v1427, %v1426
  %v1429 = vsub.s32 4, %v1405
  %v1430 = vsel %vm1307, %v1429, %v1405
  %v1431 = vsel %vm1306, %v500, %v1428
  %v1432 = vsel %vm1306, 0, %v1430
  %v1433 = vmul.f32 %v1431, %v1431
  %v1434 = vmul.f32 %v1433, -0.001358992
  %v1435 = vadd.f32 %v1434, 0.041655596
  %v1436 = vmul.f32 %v1433, %v1435
  %v1437 = vadd.f32 %v1436, -0.4999988
  %v1438 = vmul.f32 %v1433, %v1437
  %v1439 = vadd.f32 1.0, %v1438
  %v1440 = vmul.f32 %v1431, %v1431
  %v1441 = vmul.f32 %v1440, -0.00019511016
  %v1442 = vadd.f32 %v1441, 0.008332121
  %v1443 = vmul.f32 %v1440, %v1442
  %v1444 = vadd.f32 %v1443, -0.16666654
  %v1445 = vmul.f32 %v1440, %v1444
  %v1446 = vadd.f32 %v1445, 1.0
  %v1447 = vmul.f32 %v1446, %v1431
  %vm1448 = vweird.f32 %v500
  %v1449 = vadd.s32 %v1432, 3
  %v1450 = vand.u32 %v1449, 3
  %vm1451 = vcmp.lt.s32.totalorder %v1450, 2
  %vm1452 = vcmp.eq.s32.totalorder %v1450, 0
  %v1453 = vxor.u32 %v1447, 2147483648
  %v1454 = vsel %vm1452, %v1439, %v1453
  %vm1455 = vcmp.eq.s32.totalorder %v1450, 2
  %v1456 = vxor.u32 %v1439, 2147483648
  %v1457 = vsel %vm1455, %v1456, %v1447
  %v1458 = vsel %vm1451, %v1454, %v1457
  %v1459 = vsel %vm1448, nan, %v1458
  %v1460 = vand.u32 2147483647, %v501
  %vm1461 = vcmp.le.f32.partialorder %v1460, 0.7853982
  %vm1462 = vcmp.lt.s32.totalorder %v501, 0
  %v1463 = vand.u32 %v501, 2139095040
  %v1464 = vshrl.u32 %v1463, 23
  %v1465 = vsub.s32 %v1464, 127
  %v1466 = vand.u32 2147483647, %v501
  %v1467 = vand.u32 %v1466, 8388607
  %v1468 = vor.u32 %v1467, 8388608
  %v1469 = vsub.s32 0, %v1468
  %v1470 = vadd.s32 %v1465, 1
  %vm1471 = vcmp.gt.s32.totalorder %v1470, 0
  %v1472 = vsel %vm1471, %v1470, 0
  %v1473 = vshrl.u32 %v1472, 5
  %v1474 = vand.u32 %v1472, 31
  %v1475 = vsub.s32 32, %v1474
  %v1476 = vshrl.u32 683565275, %v1475
  %v1477 = vshll.u32 683565275, %v1474
  %v1478 = vshrl.u32 2475754826, %v1475
  %v1479 = vor.u32 %v1477, %v1478
  %v1480 = vshll.u32 2475754826, %v1474
  %v1481 = vshrl.u32 2131351028, %v1475
  %v1482 = vor.u32 %v1480, %v1481
  %v1483 = vshll.u32 2131351028, %v1474
  %v1484 = vshrl.u32 2102212464, %v1475
  %v1485 = vor.u32 %v1483, %v1484
  %v1486 = vshll.u32 2102212464, %v1474
  %v1487 = vshrl.u32 920167782, %v1475
  %v1488 = vor.u32 %v1486, %v1487
  %v1489 = vshll.u32 920167782, %v1474
  %v1490 = vshrl.u32 1326507024, %v1475
  %v1491 = vor.u32 %v1489, %v1490
  %vm1492 = vcmp.lt.s32.totalorder %v1473, 1
  %vm1493 = vcmp.lt.s32.totalorder %v1473, 2
  %vm1494 = vcmp.lt.s32.totalorder %v1473, 3
  %vm1495 = vcmp.lt.s32.totalorder %v1473, 4
  %v1496 = vsel %vm1492, %v1476, %v1479
  %v1497 = vsel %vm1495, %v1485, 2102212464
  %v1498 = vsel %vm1494, %v1482, %v1497
  %v1499 = vsel %vm1493, %v1496, %v1498
  %v1500 = vsel %vm1492, %v1479, %v1482
  %v1501 = vsel %vm1495, %v1488, 920167782
  %v1502 = vsel %vm1494, %v1485, %v1501
  %v1503 = vsel %vm1493, %v1500, %v1502
  %v1504 = vsel %vm1492, %v1482, %v1485
  %v1505 = vsel %vm1495, %v1491, 1326507024
  %v1506 = vsel %vm1494, %v1488, %v1505
  %v1507 = vsel %vm1493, %v1504, %v1506
  %v1508 = vshll.u32 %v1468, 8
  %v1509 = vand.u32 %v1508, 65535
  %v1510 = vshrl.u32 %v1508, 16
  %v1511 = vand.u32 %v1507, 65535
  %v1512 = vshrl.u32 %v1507, 16
  %v1513 = vmul.u32 %v1509, %v1511
  %v1514 = vmul.u32 %v1509, %v1512
  %v1515 = vmul.u32 %v1510, %v1511
  %v1516 = vmul.u32 %v1510, %v1512
  %v1517 = vshll.u32 %v1514, 16
  %v1518 = vshrl.u32 %v1514, 16
  %v1519 = vshll.u32 %v1515, 16
  %v1520 = vshrl.u32 %v1515, 16
  %vm1521 = vc.u32 %v1513, %v1517
  %v1522 = vsel %vm1521, 1, 0
  %v1523 = vadd.s32 %v1513, %v1517
  %v1524 = vadd.s32 %v1516, %v1522
  %vm1525 = vc.u32 %v1523, %v1519
  %v1526 = vsel %vm1525, 1, 0
  %v1527 = vadd.s32 %v1523, %v1519
  %v1528 = vadd.s32 %v1524, %v1526
  %v1529 = vadd.s32 %v1528, %v1518
  %v1530 = vadd.s32 %v1529, %v1520
  %v1531 = vand.u32 %v1508, 65535
  %v1532 = vshrl.u32 %v1508, 16
  %v1533 = vand.u32 %v1503, 65535
  %v1534 = vshrl.u32 %v1503, 16
  %v1535 = vmul.u32 %v1531, %v1533
  %v1536 = vmul.u32 %v1531, %v1534
  %v1537 = vmul.u32 %v1532, %v1533
  %v1538 = vmul.u32 %v1532, %v1534
  %v1539 = vshll.u32 %v1536, 16
  %v1540 = vshrl.u32 %v1536, 16
  %v1541 = vshll.u32 %v1537, 16
  %v1542 = vshrl.u32 %v1537, 16
  %vm1543 = vc.u32 %v1535, %v1539
  %v1544 = vsel %vm1543, 1, 0
  %v1545 = vadd.s32 %v1535, %v1539
  %v1546 = vadd.s32 %v1538, %v1544
  %vm1547 = vc.u32 %v1545, %v1541
  %v1548 = vsel %vm1547, 1, 0
  %v1549 = vadd.s32 %v1545, %v1541
  %v1550 = vadd.s32 %v1546, %v1548
  %v1551 = vadd.s32 %v1550, %v1540
  %v1552 = vadd.s32 %v1551, %v1542
  %v1553 = vmul.u32 %v1508, %v1499
  %v1554 = vadd.s32 %v1530, %v1549
  %vm1555 = vc.u32 %v1530, %v1549
  %v1556 = vadd.s32 %v1552, 1
  %v1557 = vsel %vm1555, %v1556, %v1552
  %v1558 = vadd.s32 %v1553, %v1557
  %v1559 = vadd.s32 %v1558, 536870912
  %v1560 = vshrl.u32 %v1559, 30
  %v1561 = vshll.u32 %v1560, 30
  %v1562 = vsub.s32 %v1558, %v1561
  %vm1563 = vcmp.lt.s32.totalorder %v1562, 0
  %v1564 = vsub.s32 0, %v1562
  %v1565 = vsel %vm1563, %v1564, %v1562
  %v1566 = vclz %v1565
  %v1567 = vsub.s32 %v1566, 2
  %vm1568 = vcmp.gt.s32.totalorder 0, %v1567
  %v1569 = vsel %vm1568, 0, %v1567
  %v1570 = vsub.s32 32, %v1569
  %v1571 = vshll.u32 %v1562, %v1569
  %v1572 = vshrl.u32 %v1554, %v1570
  %v1573 = vor.u32 %v1571, %v1572
  %v1574 = vsub.s32 4294967266, %v1569
  %v1575 = vadd.s32 %v1574, 127
  %v1576 = vshll.u32 %v1575, 23
  %v1577 = vor.u32 4788187, %v1576
  %v1578 = vand.u32 2147483647, %v1577
  %v1580 = vcvt.s32.f32 %v1573
  %v1581 = vmul.f32 %v1580, %v1578
  %v1582 = vxor.u32 %v1581, 2147483648
  %v1583 = vsel %vm1462, %v1582, %v1581
  %v1584 = vsub.s32 4, %v1560
  %v1585 = vsel %vm1462, %v1584, %v1560
  %v1586 = vsel %vm1461, %v501, %v1583
  %v1587 = vsel %vm1461, 0, %v1585
  %v1588 = vmul.f32 %v1586, %v1586
  %v1589 = vmul.f32 %v1588, -0.001358992
  %v1590 = vadd.f32 %v1589, 0.041655596
  %v1591 = vmul.f32 %v1588, %v1590
  %v1592 = vadd.f32 %v1591, -0.4999988
  %v1593 = vmul.f32 %v1588, %v1592
  %v1594 = vadd.f32 1.0, %v1593
  %v1595 = vmul.f32 %v1586, %v1586
  %v1596 = vmul.f32 %v1595, -0.00019511016
  %v1597 = vadd.f32 %v1596, 0.008332121
  %v1598 = vmul.f32 %v1595, %v1597
  %v1599 = vadd.f32 %v1598, -0.16666654
  %v1600 = vmul.f32 %v1595, %v1599
  %v1601 = vadd.f32 %v1600, 1.0
  %v1602 = vmul.f32 %v1601, %v1586
  %vm1603 = vweird.f32 %v501
  %v1604 = vadd.s32 %v1587, 3
  %v1605 = vand.u32 %v1604, 3
  %vm1606 = vcmp.lt.s32.totalorder %v1605, 2
  %vm1607 = vcmp.eq.s32.totalorder %v1605, 0
  %v1608 = vxor.u32 %v1602, 2147483648
  %v1609 = vsel %vm1607, %v1594, %v1608
  %vm1610 = vcmp.eq.s32.totalorder %v1605, 2
  %v1611 = vxor.u32 %v1594, 2147483648
  %v1612 = vsel %vm1610, %v1611, %v1602
  %v1613 = vsel %vm1606, %v1609, %v1612
  %v1614 = vsel %vm1603, nan, %v1613
  %v1615 = vand.u32 2147483647, %v502
  %vm1616 = vcmp.le.f32.partialorder %v1615, 0.7853982
  %vm1617 = vcmp.lt.s32.totalorder %v502, 0
  %v1618 = vand.u32 %v502, 2139095040
  %v1619 = vshrl.u32 %v1618, 23
  %v1620 = vsub.s32 %v1619, 127
  %v1621 = vand.u32 2147483647, %v502
  %v1622 = vand.u32 %v1621, 8388607
  %v1623 = vor.u32 %v1622, 8388608
  %v1624 = vsub.s32 0, %v1623
  %v1625 = vadd.s32 %v1620, 1
  %vm1626 = vcmp.gt.s32.totalorder %v1625, 0
  %v1627 = vsel %vm1626, %v1625, 0
  %v1628 = vshrl.u32 %v1627, 5
  %v1629 = vand.u32 %v1627, 31
  %v1630 = vsub.s32 32, %v1629
  %v1631 = vshrl.u32 683565275, %v1630
  %v1632 = vshll.u32 683565275, %v1629
  %v1633 = vshrl.u32 2475754826, %v1630
  %v1634 = vor.u32 %v1632, %v1633
  %v1635 = vshll.u32 2475754826, %v1629
  %v1636 = vshrl.u32 2131351028, %v1630
  %v1637 = vor.u32 %v1635, %v1636
  %v1638 = vshll.u32 2131351028, %v1629
  %v1639 = vshrl.u32 2102212464, %v1630
  %v1640 = vor.u32 %v1638, %v1639
  %v1641 = vshll.u32 2102212464, %v1629
  %v1642 = vshrl.u32 920167782, %v1630
  %v1643 = vor.u32 %v1641, %v1642
  %v1644 = vshll.u32 920167782, %v1629
  %v1645 = vshrl.u32 1326507024, %v1630
  %v1646 = vor.u32 %v1644, %v1645
  %vm1647 = vcmp.lt.s32.totalorder %v1628, 1
  %vm1648 = vcmp.lt.s32.totalorder %v1628, 2
  %vm1649 = vcmp.lt.s32.totalorder %v1628, 3
  %vm1650 = vcmp.lt.s32.totalorder %v1628, 4
  %v1651 = vsel %vm1647, %v1631, %v1634
  %v1652 = vsel %vm1650, %v1640, 2102212464
  %v1653 = vsel %vm1649, %v1637, %v1652
  %v1654 = vsel %vm1648, %v1651, %v1653
  %v1655 = vsel %vm1647, %v1634, %v1637
  %v1656 = vsel %vm1650, %v1643, 920167782
  %v1657 = vsel %vm1649, %v1640, %v1656
  %v1658 = vsel %vm1648, %v1655, %v1657
  %v1659 = vsel %vm1647, %v1637, %v1640
  %v1660 = vsel %vm1650, %v1646, 1326507024
  %v1661 = vsel %vm1649, %v1643, %v1660
  %v1662 = vsel %vm1648, %v1659, %v1661
  %v1663 = vshll.u32 %v1623, 8
  %v1664 = vand.u32 %v1663, 65535
  %v1665 = vshrl.u32 %v1663, 16
  %v1666 = vand.u32 %v1662, 65535
  %v1667 = vshrl.u32 %v1662, 16
  %v1668 = vmul.u32 %v1664, %v1666
  %v1669 = vmul.u32 %v1664, %v1667
  %v1670 = vmul.u32 %v1665, %v1666
  %v1671 = vmul.u32 %v1665, %v1667
  %v1672 = vshll.u32 %v1669, 16
  %v1673 = vshrl.u32 %v1669, 16
  %v1674 = vshll.u32 %v1670, 16
  %v1675 = vshrl.u32 %v1670, 16
  %vm1676 = vc.u32 %v1668, %v1672
  %v1677 = vsel %vm1676, 1, 0
  %v1678 = vadd.s32 %v1668, %v1672
  %v1679 = vadd.s32 %v1671, %v1677
  %vm1680 = vc.u32 %v1678, %v1674
  %v1681 = vsel %vm1680, 1, 0
  %v1682 = vadd.s32 %v1678, %v1674
  %v1683 = vadd.s32 %v1679, %v1681
  %v1684 = vadd.s32 %v1683, %v1673
  %v1685 = vadd.s32 %v1684, %v1675
  %v1686 = vand.u32 %v1663, 65535
  %v1687 = vshrl.u32 %v1663, 16
  %v1688 = vand.u32 %v1658, 65535
  %v1689 = vshrl.u32 %v1658, 16
  %v1690 = vmul.u32 %v1686, %v1688
  %v1691 = vmul.u32 %v1686, %v1689
  %v1692 = vmul.u32 %v1687, %v1688
  %v1693 = vmul.u32 %v1687, %v1689
  %v1694 = vshll.u32 %v1691, 16
  %v1695 = vshrl.u32 %v1691, 16
  %v1696 = vshll.u32 %v1692, 16
  %v1697 = vshrl.u32 %v1692, 16
  %vm1698 = vc.u32 %v1690, %v1694
  %v1699 = vsel %vm1698, 1, 0
  %v1700 = vadd.s32 %v1690, %v1694
  %v1701 = vadd.s32 %v1693, %v1699
  %vm1702 = vc.u32 %v1700, %v1696
  %v1703 = vsel %vm1702, 1, 0
  %v1704 = vadd.s32 %v1700, %v1696
  %v1705 = vadd.s32 %v1701, %v1703
  %v1706 = vadd.s32 %v1705, %v1695
  %v1707 = vadd.s32 %v1706, %v1697
  %v1708 = vmul.u32 %v1663, %v1654
  %v1709 = vadd.s32 %v1685, %v1704
  %vm1710 = vc.u32 %v1685, %v1704
  %v1711 = vadd.s32 %v1707, 1
  %v1712 = vsel %vm1710, %v1711, %v1707
  %v1713 = vadd.s32 %v1708, %v1712
  %v1714 = vadd.s32 %v1713, 536870912
  %v1715 = vshrl.u32 %v1714, 30
  %v1716 = vshll.u32 %v1715, 30
  %v1717 = vsub.s32 %v1713, %v1716
  %vm1718 = vcmp.lt.s32.totalorder %v1717, 0
  %v1719 = vsub.s32 0, %v1717
  %v1720 = vsel %vm1718, %v1719, %v1717
  %v1721 = vclz %v1720
  %v1722 = vsub.s32 %v1721, 2
  %vm1723 = vcmp.gt.s32.totalorder 0, %v1722
  %v1724 = vsel %vm1723, 0, %v1722
  %v1725 = vsub.s32 32, %v1724
  %v1726 = vshll.u32 %v1717, %v1724
  %v1727 = vshrl.u32 %v1709, %v1725
  %v1728 = vor.u32 %v1726, %v1727
  %v1729 = vsub.s32 4294967266, %v1724
  %v1730 = vadd.s32 %v1729, 127
  %v1731 = vshll.u32 %v1730, 23
  %v1732 = vor.u32 4788187, %v1731
  %v1733 = vand.u32 2147483647, %v1732
  %v1735 = vcvt.s32.f32 %v1728
  %v1736 = vmul.f32 %v1735, %v1733
  %v1737 = vxor.u32 %v1736, 2147483648
  %v1738 = vsel %vm1617, %v1737, %v1736
  %v1739 = vsub.s32 4, %v1715
  %v1740 = vsel %vm1617, %v1739, %v1715
  %v1741 = vsel %vm1616, %v502, %v1738
  %v1742 = vsel %vm1616, 0, %v1740
  %v1743 = vmul.f32 %v1741, %v1741
  %v1744 = vmul.f32 %v1743, -0.001358992
  %v1745 = vadd.f32 %v1744, 0.041655596
  %v1746 = vmul.f32 %v1743, %v1745
  %v1747 = vadd.f32 %v1746, -0.4999988
  %v1748 = vmul.f32 %v1743, %v1747
  %v1749 = vadd.f32 1.0, %v1748
  %v1750 = vmul.f32 %v1741, %v1741
  %v1751 = vmul.f32 %v1750, -0.00019511016
  %v1752 = vadd.f32 %v1751, 0.008332121
  %v1753 = vmul.f32 %v1750, %v1752
  %v1754 = vadd.f32 %v1753, -0.16666654
  %v1755 = vmul.f32 %v1750, %v1754
  %v1756 = vadd.f32 %v1755, 1.0
  %v1757 = vmul.f32 %v1756, %v1741
  %vm1758 = vweird.f32 %v502
  %v1759 = vadd.s32 %v1742, 3
  %v1760 = vand.u32 %v1759, 3
  %vm1761 = vcmp.lt.s32.totalorder %v1760, 2
  %vm1762 = vcmp.eq.s32.totalorder %v1760, 0
  %v1763 = vxor.u32 %v1757, 2147483648
  %v1764 = vsel %vm1762, %v1749, %v1763
  %vm1765 = vcmp.eq.s32.totalorder %v1760, 2
  %v1766 = vxor.u32 %v1749, 2147483648
  %v1767 = vsel %vm1765, %v1766, %v1757
  %v1768 = vsel %vm1761, %v1764, %v1767
  %v1769 = vsel %vm1758, nan, %v1768
  %v1770 = vand.u32 2147483647, %v503
  %vm1771 = vcmp.le.f32.partialorder %v1770, 0.7853982
  %vm1772 = vcmp.lt.s32.totalorder %v503, 0
  %v1773 = vand.u32 %v503, 2139095040
  %v1774 = vshrl.u32 %v1773, 23
  %v1775 = vsub.s32 %v1774, 127
  %v1776 = vand.u32 2147483647, %v503
  %v1777 = vand.u32 %v1776, 8388607
  %v1778 = vor.u32 %v1777, 8388608
  %v1779 = vsub.s32 0, %v1778
  %v1780 = vadd.s32 %v1775, 1
  %vm1781 = vcmp.gt.s32.totalorder %v1780, 0
  %v1782 = vsel %vm1781, %v1780, 0
  %v1783 = vshrl.u32 %v1782, 5
  %v1784 = vand.u32 %v1782, 31
  %v1785 = vsub.s32 32, %v1784
  %v1786 = vshrl.u32 683565275, %v1785
  %v1787 = vshll.u32 683565275, %v1784
  %v1788 = vshrl.u32 2475754826, %v1785
  %v1789 = vor.u32 %v1787, %v1788
  %v1790 = vshll.u32 2475754826, %v1784
  %v1791 = vshrl.u32 2131351028, %v1785
  %v1792 = vor.u32 %v1790, %v1791
  %v1793 = vshll.u32 2131351028, %v1784
  %v1794 = vshrl.u32 2102212464, %v1785
  %v1795 = vor.u32 %v1793, %v1794
  %v1796 = vshll.u32 2102212464, %v1784
  %v1797 = vshrl.u32 920167782, %v1785
  %v1798 = vor.u32 %v1796, %v1797
  %v1799 = vshll.u32 920167782, %v1784
  %v1800 = vshrl.u32 1326507024, %v1785
  %v1801 = vor.u32 %v1799, %v1800
  %vm1802 = vcmp.lt.s32.totalorder %v1783, 1
  %vm1803 = vcmp.lt.s32.totalorder %v1783, 2
  %vm1804 = vcmp.lt.s32.totalorder %v1783, 3
  %vm1805 = vcmp.lt.s32.totalorder %v1783, 4
  %v1806 = vsel %vm1802, %v1786, %v1789
  %v1807 = vsel %vm1805, %v1795, 2102212464
  %v1808 = vsel %vm1804, %v1792, %v1807
  %v1809 = vsel %vm1803, %v1806, %v1808
  %v1810 = vsel %vm1802, %v1789, %v1792
  %v1811 = vsel %vm1805, %v1798, 920167782
  %v1812 = vsel %vm1804, %v1795, %v1811
  %v1813 = vsel %vm1803, %v1810, %v1812
  %v1814 = vsel %vm1802, %v1792, %v1795
  %v1815 = vsel %vm1805, %v1801, 1326507024
  %v1816 = vsel %vm1804, %v1798, %v1815
  %v1817 = vsel %vm1803, %v1814, %v1816
  %v1818 = vshll.u32 %v1778, 8
  %v1819 = vand.u32 %v1818, 65535
  %v1820 = vshrl.u32 %v1818, 16
  %v1821 = vand.u32 %v1817, 65535
  %v1822 = vshrl.u32 %v1817, 16
  %v1823 = vmul.u32 %v1819, %v1821
  %v1824 = vmul.u32 %v1819, %v1822
  %v1825 = vmul.u32 %v1820, %v1821
  %v1826 = vmul.u32 %v1820, %v1822
  %v1827 = vshll.u32 %v1824, 16
  %v1828 = vshrl.u32 %v1824, 16
  %v1829 = vshll.u32 %v1825, 16
  %v1830 = vshrl.u32 %v1825, 16
  %vm1831 = vc.u32 %v1823, %v1827
  %v1832 = vsel %vm1831, 1, 0
  %v1833 = vadd.s32 %v1823, %v1827
  %v1834 = vadd.s32 %v1826, %v1832
  %vm1835 = vc.u32 %v1833, %v1829
  %v1836 = vsel %vm1835, 1, 0
  %v1837 = vadd.s32 %v1833, %v1829
  %v1838 = vadd.s32 %v1834, %v1836
  %v1839 = vadd.s32 %v1838, %v1828
  %v1840 = vadd.s32 %v1839, %v1830
  %v1841 = vand.u32 %v1818, 65535
  %v1842 = vshrl.u32 %v1818, 16
  %v1843 = vand.u32 %v1813, 65535
  %v1844 = vshrl.u32 %v1813, 16
  %v1845 = vmul.u32 %v1841, %v1843
  %v1846 = vmul.u32 %v1841, %v1844
  %v1847 = vmul.u32 %v1842, %v1843
  %v1848 = vmul.u32 %v1842, %v1844
  %v1849 = vshll.u32 %v1846, 16
  %v1850 = vshrl.u32 %v1846, 16
  %v1851 = vshll.u32 %v1847, 16
  %v1852 = vshrl.u32 %v1847, 16
  %vm1853 = vc.u32 %v1845, %v1849
  %v1854 = vsel %vm1853, 1, 0
  %v1855 = vadd.s32 %v1845, %v1849
  %v1856 = vadd.s32 %v1848, %v1854
  %vm1857 = vc.u32 %v1855, %v1851
  %v1858 = vsel %vm1857, 1, 0
  %v1859 = vadd.s32 %v1855, %v1851
  %v1860 = vadd.s32 %v1856, %v1858
  %v1861 = vadd.s32 %v1860, %v1850
  %v1862 = vadd.s32 %v1861, %v1852
  %v1863 = vmul.u32 %v1818, %v1809
  %v1864 = vadd.s32 %v1840, %v1859
  %vm1865 = vc.u32 %v1840, %v1859
  %v1866 = vadd.s32 %v1862, 1
  %v1867 = vsel %vm1865, %v1866, %v1862
  %v1868 = vadd.s32 %v1863, %v1867
  %v1869 = vadd.s32 %v1868, 536870912
  %v1870 = vshrl.u32 %v1869, 30
  %v1871 = vshll.u32 %v1870, 30
  %v1872 = vsub.s32 %v1868, %v1871
  %vm1873 = vcmp.lt.s32.totalorder %v1872, 0
  %v1874 = vsub.s32 0, %v1872
  %v1875 = vsel %vm1873, %v1874, %v1872
  %v1876 = vclz %v1875
  %v1877 = vsub.s32 %v1876, 2
  %vm1878 = vcmp.gt.s32.totalorder 0, %v1877
  %v1879 = vsel %vm1878, 0, %v1877
  %v1880 = vsub.s32 32, %v1879
  %v1881 = vshll.u32 %v1872, %v1879
  %v1882 = vshrl.u32 %v1864, %v1880
  %v1883 = vor.u32 %v1881, %v1882
  %v1884 = vsub.s32 4294967266, %v1879
  %v1885 = vadd.s32 %v1884, 127
  %v1886 = vshll.u32 %v1885, 23
  %v1887 = vor.u32 4788187, %v1886
  %v1888 = vand.u32 2147483647, %v1887
  %v1890 = vcvt.s32.f32 %v1883
  %v1891 = vmul.f32 %v1890, %v1888
  %v1892 = vxor.u32 %v1891, 2147483648
  %v1893 = vsel %vm1772, %v1892, %v1891
  %v1894 = vsub.s32 4, %v1870
  %v1895 = vsel %vm1772, %v1894, %v1870
  %v1896 = vsel %vm1771, %v503, %v1893
  %v1897 = vsel %vm1771, 0, %v1895
  %v1898 = vmul.f32 %v1896, %v1896
  %v1899 = vmul.f32 %v1898, -0.001358992
  %v1900 = vadd.f32 %v1899, 0.041655596
  %v1901 = vmul.f32 %v1898, %v1900
  %v1902 = vadd.f32 %v1901, -0.4999988
  %v1903 = vmul.f32 %v1898, %v1902
  %v1904 = vadd.f32 1.0, %v1903
  %v1905 = vmul.f32 %v1896, %v1896
  %v1906 = vmul.f32 %v1905, -0.00019511016
  %v1907 = vadd.f32 %v1906, 0.008332121
  %v1908 = vmul.f32 %v1905, %v1907
  %v1909 = vadd.f32 %v1908, -0.16666654
  %v1910 = vmul.f32 %v1905, %v1909
  %v1911 = vadd.f32 %v1910, 1.0
  %v1912 = vmul.f32 %v1911, %v1896
  %vm1913 = vweird.f32 %v503
  %v1914 = vadd.s32 %v1897, 3
  %v1915 = vand.u32 %v1914, 3
  %vm1916 = vcmp.lt.s32.totalorder %v1915, 2
  %vm1917 = vcmp.eq.s32.totalorder %v1915, 0
  %v1918 = vxor.u32 %v1912, 2147483648
  %v1919 = vsel %vm1917, %v1904, %v1918
  %vm1920 = vcmp.eq.s32.totalorder %v1915, 2
  %v1921 = vxor.u32 %v1904, 2147483648
  %v1922 = vsel %vm1920, %v1921, %v1912
  %v1923 = vsel %vm1916, %v1919, %v1922
  %v1924 = vsel %vm1913, nan, %v1923
  %v1925 = vand.u32 2147483647, %v504
  %vm1926 = vcmp.le.f32.partialorder %v1925, 0.7853982
  %vm1927 = vcmp.lt.s32.totalorder %v504, 0
  %v1928 = vand.u32 %v504, 2139095040
  %v1929 = vshrl.u32 %v1928, 23
  %v1930 = vsub.s32 %v1929, 127
  %v1931 = vand.u32 2147483647, %v504
  %v1932 = vand.u32 %v1931, 8388607
  %v1933 = vor.u32 %v1932, 8388608
  %v1934 = vsub.s32 0, %v1933
  %v1935 = vadd.s32 %v1930, 1
  %vm1936 = vcmp.gt.s32.totalorder %v1935, 0
  %v1937 = vsel %vm1936, %v1935, 0
  %v1938 = vshrl.u32 %v1937, 5
  %v1939 = vand.u32 %v1937, 31
  %v1940 = vsub.s32 32, %v1939
  %v1941 = vshrl.u32 683565275, %v1940
  %v1942 = vshll.u32 683565275, %v1939
  %v1943 = vshrl.u32 2475754826, %v1940
  %v1944 = vor.u32 %v1942, %v1943
  %v1945 = vshll.u32 2475754826, %v1939
  %v1946 = vshrl.u32 2131351028, %v1940
  %v1947 = vor.u32 %v1945, %v1946
  %v1948 = vshll.u32 2131351028, %v1939
  %v1949 = vshrl.u32 2102212464, %v1940
  %v1950 = vor.u32 %v1948, %v1949
  %v1951 = vshll.u32 2102212464, %v1939
  %v1952 = vshrl.u32 920167782, %v1940
  %v1953 = vor.u32 %v1951, %v1952
  %v1954 = vshll.u32 920167782, %v1939
  %v1955 = vshrl.u32 1326507024, %v1940
  %v1956 = vor.u32 %v1954, %v1955
  %vm1957 = vcmp.lt.s32.totalorder %v1938, 1
  %vm1958 = vcmp.lt.s32.totalorder %v1938, 2
  %vm1959 = vcmp.lt.s32.totalorder %v1938, 3
  %vm1960 = vcmp.lt.s32.totalorder %v1938, 4
  %v1961 = vsel %vm1957, %v1941, %v1944
  %v1962 = vsel %vm1960, %v1950, 2102212464
  %v1963 = vsel %vm1959, %v1947, %v1962
  %v1964 = vsel %vm1958, %v1961, %v1963
  %v1965 = vsel %vm1957, %v1944, %v1947
  %v1966 = vsel %vm1960, %v1953, 920167782
  %v1967 = vsel %vm1959, %v1950, %v1966
  %v1968 = vsel %vm1958, %v1965, %v1967
  %v1969 = vsel %vm1957, %v1947, %v1950
  %v1970 = vsel %vm1960, %v1956, 1326507024
  %v1971 = vsel %vm1959, %v1953, %v1970
  %v1972 = vsel %vm1958, %v1969, %v1971
  %v1973 = vshll.u32 %v1933, 8
  %v1974 = vand.u32 %v1973, 65535
  %v1975 = vshrl.u32 %v1973, 16
  %v1976 = vand.u32 %v1972, 65535
  %v1977 = vshrl.u32 %v1972, 16
  %v1978 = vmul.u32 %v1974, %v1976
  %v1979 = vmul.u32 %v1974, %v1977
  %v1980 = vmul.u32 %v1975, %v1976
  %v1981 = vmul.u32 %v1975, %v1977
  %v1982 = vshll.u32 %v1979, 16
  %v1983 = vshrl.u32 %v1979, 16
  %v1984 = vshll.u32 %v1980, 16
  %v1985 = vshrl.u32 %v1980, 16
  %vm1986 = vc.u32 %v1978, %v1982
  %v1987 = vsel %vm1986, 1, 0
  %v1988 = vadd.s32 %v1978, %v1982
  %v1989 = vadd.s32 %v1981, %v1987
  %vm1990 = vc.u32 %v1988, %v1984
  %v1991 = vsel %vm1990, 1, 0
  %v1992 = vadd.s32 %v1988, %v1984
  %v1993 = vadd.s32 %v1989, %v1991
  %v1994 = vadd.s32 %v1993, %v1983
  %v1995 = vadd.s32 %v1994, %v1985
  %v1996 = vand.u32 %v1973, 65535
  %v1997 = vshrl.u32 %v1973, 16
  %v1998 = vand.u32 %v1968, 65535
  %v1999 = vshrl.u32 %v1968, 16
  %v2000 = vmul.u32 %v1996, %v1998
  %v2001 = vmul.u32 %v1996, %v1999
  %v2002 = vmul.u32 %v1997, %v1998
  %v2003 = vmul.u32 %v1997, %v1999
  %v2004 = vshll.u32 %v2001, 16
  %v2005 = vshrl.u32 %v2001, 16
  %v2006 = vshll.u32 %v2002, 16
  %v2007 = vshrl.u32 %v2002, 16
  %vm2008 = vc.u32 %v2000, %v2004
  %v2009 = vsel %vm2008, 1, 0
  %v2010 = vadd.s32 %v2000, %v2004
  %v2011 = vadd.s32 %v2003, %v2009
  %vm2012 = vc.u32 %v2010, %v2006
  %v2013 = vsel %vm2012, 1, 0
  %v2014 = vadd.s32 %v2010, %v2006
  %v2015 = vadd.s32 %v2011, %v2013
  %v2016 = vadd.s32 %v2015, %v2005
  %v2017 = vadd.s32 %v2016, %v2007
  %v2018 = vmul.u32 %v1973, %v1964
  %v2019 = vadd.s32 %v1995, %v2014
  %vm2020 = vc.u32 %v1995, %v2014
  %v2021 = vadd.s32 %v2017, 1
  %v2022 = vsel %vm2020, %v2021, %v2017
  %v2023 = vadd.s32 %v2018, %v2022
  %v2024 = vadd.s32 %v2023, 536870912
  %v2025 = vshrl.u32 %v2024, 30
  %v2026 = vshll.u32 %v2025, 30
  %v2027 = vsub.s32 %v2023, %v2026
  %vm2028 = vcmp.lt.s32.totalorder %v2027, 0
  %v2029 = vsub.s32 0, %v2027
  %v2030 = vsel %vm2028, %v2029, %v2027
  %v2031 = vclz %v2030
  %v2032 = vsub.s32 %v2031, 2
  %vm2033 = vcmp.gt.s32.totalorder 0, %v2032
  %v2034 = vsel %vm2033, 0, %v2032
  %v2035 = vsub.s32 32, %v2034
  %v2036 = vshll.u32 %v2027, %v2034
  %v2037 = vshrl.u32 %v2019, %v2035
  %v2038 = vor.u32 %v2036, %v2037
  %v2039 = vsub.s32 4294967266, %v2034
  %v2040 = vadd.s32 %v2039, 127
  %v2041 = vshll.u32 %v2040, 23
  %v2042 = vor.u32 4788187, %v2041
  %v2043 = vand.u32 2147483647, %v2042
  %v2045 = vcvt.s32.f32 %v2038
  %v2046 = vmul.f32 %v2045, %v2043
  %v2047 = vxor.u32 %v2046, 2147483648
  %v2048 = vsel %vm1927, %v2047, %v2046
  %v2049 = vsub.s32 4, %v2025
  %v2050 = vsel %vm1927, %v2049, %v2025
  %v2051 = vsel %vm1926, %v504, %v2048
  %v2052 = vsel %vm1926, 0, %v2050
  %v2053 = vmul.f32 %v2051, %v2051
  %v2054 = vmul.f32 %v2053, -0.001358992
  %v2055 = vadd.f32 %v2054, 0.041655596
  %v2056 = vmul.f32 %v2053, %v2055
  %v2057 = vadd.f32 %v2056, -0.4999988
  %v2058 = vmul.f32 %v2053, %v2057
  %v2059 = vadd.f32 1.0, %v2058
  %v2060 = vmul.f32 %v2051, %v2051
  %v2061 = vmul.f32 %v2060, -0.00019511016
  %v2062 = vadd.f32 %v2061, 0.008332121
  %v2063 = vmul.f32 %v2060, %v2062
  %v2064 = vadd.f32 %v2063, -0.16666654
  %v2065 = vmul.f32 %v2060, %v2064
  %v2066 = vadd.f32 %v2065, 1.0
  %v2067 = vmul.f32 %v2066, %v2051
  %vm2068 = vweird.f32 %v504
  %v2069 = vadd.s32 %v2052, 3
  %v2070 = vand.u32 %v2069, 3
  %vm2071 = vcmp.lt.s32.totalorder %v2070, 2
  %vm2072 = vcmp.eq.s32.totalorder %v2070, 0
  %v2073 = vxor.u32 %v2067, 2147483648
  %v2074 = vsel %vm2072, %v2059, %v2073
  %vm2075 = vcmp.eq.s32.totalorder %v2070, 2
  %v2076 = vxor.u32 %v2059, 2147483648
  %v2077 = vsel %vm2075, %v2076, %v2067
  %v2078 = vsel %vm2071, %v2074, %v2077
  %v2079 = vsel %vm2068, nan, %v2078
  %v2080 = vand.u32 2147483647, %v505
  %vm2081 = vcmp.le.f32.partialorder %v2080, 0.7853982
  %vm2082 = vcmp.lt.s32.totalorder %v505, 0
  %v2083 = vand.u32 %v505, 2139095040
  %v2084 = vshrl.u32 %v2083, 23
  %v2085 = vsub.s32 %v2084, 127
  %v2086 = vand.u32 2147483647, %v505
  %v2087 = vand.u32 %v2086, 8388607
  %v2088 = vor.u32 %v2087, 8388608
  %v2089 = vsub.s32 0, %v2088
  %v2090 = vadd.s32 %v2085, 1
  %vm2091 = vcmp.gt.s32.totalorder %v2090, 0
  %v2092 = vsel %vm2091, %v2090, 0
  %v2093 = vshrl.u32 %v2092, 5
  %v2094 = vand.u32 %v2092, 31
  %v2095 = vsub.s32 32, %v2094
  %v2096 = vshrl.u32 683565275, %v2095
  %v2097 = vshll.u32 683565275, %v2094
  %v2098 = vshrl.u32 2475754826, %v2095
  %v2099 = vor.u32 %v2097, %v2098
  %v2100 = vshll.u32 2475754826, %v2094
  %v2101 = vshrl.u32 2131351028, %v2095
  %v2102 = vor.u32 %v2100, %v2101
  %v2103 = vshll.u32 2131351028, %v2094
  %v2104 = vshrl.u32 2102212464, %v2095
  %v2105 = vor.u32 %v2103, %v2104
  %v2106 = vshll.u32 2102212464, %v2094
  %v2107 = vshrl.u32 920167782, %v2095
  %v2108 = vor.u32 %v2106, %v2107
  %v2109 = vshll.u32 920167782, %v2094
  %v2110 = vshrl.u32 1326507024, %v2095
  %v2111 = vor.u32 %v2109, %v2110
  %vm2112 = vcmp.lt.s32.totalorder %v2093, 1
  %vm2113 = vcmp.lt.s32.totalorder %v2093, 2
  %vm2114 = vcmp.lt.s32.totalorder %v2093, 3
  %vm2115 = vcmp.lt.s32.totalorder %v2093, 4
  %v2116 = vsel %vm2112, %v2096, %v2099
  %v2117 = vsel %vm2115, %v2105, 2102212464
  %v2118 = vsel %vm2114, %v2102, %v2117
  %v2119 = vsel %vm2113, %v2116, %v2118
  %v2120 = vsel %vm2112, %v2099, %v2102
  %v2121 = vsel %vm2115, %v2108, 920167782
  %v2122 = vsel %vm2114, %v2105, %v2121
  %v2123 = vsel %vm2113, %v2120, %v2122
  %v2124 = vsel %vm2112, %v2102, %v2105
  %v2125 = vsel %vm2115, %v2111, 1326507024
  %v2126 = vsel %vm2114, %v2108, %v2125
  %v2127 = vsel %vm2113, %v2124, %v2126
  %v2128 = vshll.u32 %v2088, 8
  %v2129 = vand.u32 %v2128, 65535
  %v2130 = vshrl.u32 %v2128, 16
  %v2131 = vand.u32 %v2127, 65535
  %v2132 = vshrl.u32 %v2127, 16
  %v2133 = vmul.u32 %v2129, %v2131
  %v2134 = vmul.u32 %v2129, %v2132
  %v2135 = vmul.u32 %v2130, %v2131
  %v2136 = vmul.u32 %v2130, %v2132
  %v2137 = vshll.u32 %v2134, 16
  %v2138 = vshrl.u32 %v2134, 16
  %v2139 = vshll.u32 %v2135, 16
  %v2140 = vshrl.u32 %v2135, 16
  %vm2141 = vc.u32 %v2133, %v2137
  %v2142 = vsel %vm2141, 1, 0
  %v2143 = vadd.s32 %v2133, %v2137
  %v2144 = vadd.s32 %v2136, %v2142
  %vm2145 = vc.u32 %v2143, %v2139
  %v2146 = vsel %vm2145, 1, 0
  %v2147 = vadd.s32 %v2143, %v2139
  %v2148 = vadd.s32 %v2144, %v2146
  %v2149 = vadd.s32 %v2148, %v2138
  %v2150 = vadd.s32 %v2149, %v2140
  %v2151 = vand.u32 %v2128, 65535
  %v2152 = vshrl.u32 %v2128, 16
  %v2153 = vand.u32 %v2123, 65535
  %v2154 = vshrl.u32 %v2123, 16
  %v2155 = vmul.u32 %v2151, %v2153
  %v2156 = vmul.u32 %v2151, %v2154
  %v2157 = vmul.u32 %v2152, %v2153
  %v2158 = vmul.u32 %v2152, %v2154
  %v2159 = vshll.u32 %v2156, 16
  %v2160 = vshrl.u32 %v2156, 16
  %v2161 = vshll.u32 %v2157, 16
  %v2162 = vshrl.u32 %v2157, 16
  %vm2163 = vc.u32 %v2155, %v2159
  %v2164 = vsel %vm2163, 1, 0
  %v2165 = vadd.s32 %v2155, %v2159
  %v2166 = vadd.s32 %v2158, %v2164
  %vm2167 = vc.u32 %v2165, %v2161
  %v2168 = vsel %vm2167, 1, 0
  %v2169 = vadd.s32 %v2165, %v2161
  %v2170 = vadd.s32 %v2166, %v2168
  %v2171 = vadd.s32 %v2170, %v2160
  %v2172 = vadd.s32 %v2171, %v2162
  %v2173 = vmul.u32 %v2128, %v2119
  %v2174 = vadd.s32 %v2150, %v2169
  %vm2175 = vc.u32 %v2150, %v2169
  %v2176 = vadd.s32 %v2172, 1
  %v2177 = vsel %vm2175, %v2176, %v2172
  %v2178 = vadd.s32 %v2173, %v2177
  %v2179 = vadd.s32 %v2178, 536870912
  %v2180 = vshrl.u32 %v2179, 30
  %v2181 = vshll.u32 %v2180, 30
  %v2182 = vsub.s32 %v2178, %v2181
  %vm2183 = vcmp.lt.s32.totalorder %v2182, 0
  %v2184 = vsub.s32 0, %v2182
  %v2185 = vsel %vm2183, %v2184, %v2182
  %v2186 = vclz %v2185
  %v2187 = vsub.s32 %v2186, 2
  %vm2188 = vcmp.gt.s32.totalorder 0, %v2187
  %v2189 = vsel %vm2188, 0, %v2187
  %v2190 = vsub.s32 32, %v2189
  %v2191 = vshll.u32 %v2182, %v2189
  %v2192 = vshrl.u32 %v2174, %v2190
  %v2193 = vor.u32 %v2191, %v2192
  %v2194 = vsub.s32 4294967266, %v2189
  %v2195 = vadd.s32 %v2194, 127
  %v2196 = vshll.u32 %v2195, 23
  %v2197 = vor.u32 4788187, %v2196
  %v2198 = vand.u32 2147483647, %v2197
  %v2200 = vcvt.s32.f32 %v2193
  %v2201 = vmul.f32 %v2200, %v2198
  %v2202 = vxor.u32 %v2201, 2147483648
  %v2203 = vsel %vm2082, %v2202, %v2201
  %v2204 = vsub.s32 4, %v2180
  %v2205 = vsel %vm2082, %v2204, %v2180
  %v2206 = vsel %vm2081, %v505, %v2203
  %v2207 = vsel %vm2081, 0, %v2205
  %v2208 = vmul.f32 %v2206, %v2206
  %v2209 = vmul.f32 %v2208, -0.001358992
  %v2210 = vadd.f32 %v2209, 0.041655596
  %v2211 = vmul.f32 %v2208, %v2210
  %v2212 = vadd.f32 %v2211, -0.4999988
  %v2213 = vmul.f32 %v2208, %v2212
  %v2214 = vadd.f32 1.0, %v2213
  %v2215 = vmul.f32 %v2206, %v2206
  %v2216 = vmul.f32 %v2215, -0.00019511016
  %v2217 = vadd.f32 %v2216, 0.008332121
  %v2218 = vmul.f32 %v2215, %v2217
  %v2219 = vadd.f32 %v2218, -0.16666654
  %v2220 = vmul.f32 %v2215, %v2219
  %v2221 = vadd.f32 %v2220, 1.0
  %v2222 = vmul.f32 %v2221, %v2206
  %vm2223 = vweird.f32 %v505
  %v2224 = vadd.s32 %v2207, 3
  %v2225 = vand.u32 %v2224, 3
  %vm2226 = vcmp.lt.s32.totalorder %v2225, 2
  %vm2227 = vcmp.eq.s32.totalorder %v2225, 0
  %v2228 = vxor.u32 %v2222, 2147483648
  %v2229 = vsel %vm2227, %v2214, %v2228
  %vm2230 = vcmp.eq.s32.totalorder %v2225, 2
  %v2231 = vxor.u32 %v2214, 2147483648
  %v2232 = vsel %vm2230, %v2231, %v2222
  %v2233 = vsel %vm2226, %v2229, %v2232
  %v2234 = vsel %vm2223, nan, %v2233
  %v2235 = vand.u32 2147483647, %v506
  %vm2236 = vcmp.le.f32.partialorder %v2235, 0.7853982
  %vm2237 = vcmp.lt.s32.totalorder %v506, 0
  %v2238 = vand.u32 %v506, 2139095040
  %v2239 = vshrl.u32 %v2238, 23
  %v2240 = vsub.s32 %v2239, 127
  %v2241 = vand.u32 2147483647, %v506
  %v2242 = vand.u32 %v2241, 8388607
  %v2243 = vor.u32 %v2242, 8388608
  %v2244 = vsub.s32 0, %v2243
  %v2245 = vadd.s32 %v2240, 1
  %vm2246 = vcmp.gt.s32.totalorder %v2245, 0
  %v2247 = vsel %vm2246, %v2245, 0
  %v2248 = vshrl.u32 %v2247, 5
  %v2249 = vand.u32 %v2247, 31
  %v2250 = vsub.s32 32, %v2249
  %v2251 = vshrl.u32 683565275, %v2250
  %v2252 = vshll.u32 683565275, %v2249
  %v2253 = vshrl.u32 2475754826, %v2250
  %v2254 = vor.u32 %v2252, %v2253
  %v2255 = vshll.u32 2475754826, %v2249
  %v2256 = vshrl.u32 2131351028, %v2250
  %v2257 = vor.u32 %v2255, %v2256
  %v2258 = vshll.u32 2131351028, %v2249
  %v2259 = vshrl.u32 2102212464, %v2250
  %v2260 = vor.u32 %v2258, %v2259
  %v2261 = vshll.u32 2102212464, %v2249
  %v2262 = vshrl.u32 920167782, %v2250
  %v2263 = vor.u32 %v2261, %v2262
  %v2264 = vshll.u32 920167782, %v2249
  %v2265 = vshrl.u32 1326507024, %v2250
  %v2266 = vor.u32 %v2264, %v2265
  %vm2267 = vcmp.lt.s32.totalorder %v2248, 1
  %vm2268 = vcmp.lt.s32.totalorder %v2248, 2
  %vm2269 = vcmp.lt.s32.totalorder %v2248, 3
  %vm2270 = vcmp.lt.s32.totalorder %v2248, 4
  %v2271 = vsel %vm2267, %v2251, %v2254
  %v2272 = vsel %vm2270, %v2260, 2102212464
  %v2273 = vsel %vm2269, %v2257, %v2272
  %v2274 = vsel %vm2268, %v2271, %v2273
  %v2275 = vsel %vm2267, %v2254, %v2257
  %v2276 = vsel %vm2270, %v2263, 920167782
  %v2277 = vsel %vm2269, %v2260, %v2276
  %v2278 = vsel %vm2268, %v2275, %v2277
  %v2279 = vsel %vm2267, %v2257, %v2260
  %v2280 = vsel %vm2270, %v2266, 1326507024
  %v2281 = vsel %vm2269, %v2263, %v2280
  %v2282 = vsel %vm2268, %v2279, %v2281
  %v2283 = vshll.u32 %v2243, 8
  %v2284 = vand.u32 %v2283, 65535
  %v2285 = vshrl.u32 %v2283, 16
  %v2286 = vand.u32 %v2282, 65535
  %v2287 = vshrl.u32 %v2282, 16
  %v2288 = vmul.u32 %v2284, %v2286
  %v2289 = vmul.u32 %v2284, %v2287
  %v2290 = vmul.u32 %v2285, %v2286
  %v2291 = vmul.u32 %v2285, %v2287
  %v2292 = vshll.u32 %v2289, 16
  %v2293 = vshrl.u32 %v2289, 16
  %v2294 = vshll.u32 %v2290, 16
  %v2295 = vshrl.u32 %v2290, 16
  %vm2296 = vc.u32 %v2288, %v2292
  %v2297 = vsel %vm2296, 1, 0
  %v2298 = vadd.s32 %v2288, %v2292
  %v2299 = vadd.s32 %v2291, %v2297
  %vm2300 = vc.u32 %v2298, %v2294
  %v2301 = vsel %vm2300, 1, 0
  %v2302 = vadd.s32 %v2298, %v2294
  %v2303 = vadd.s32 %v2299, %v2301
  %v2304 = vadd.s32 %v2303, %v2293
  %v2305 = vadd.s32 %v2304, %v2295
  %v2306 = vand.u32 %v2283, 65535
  %v2307 = vshrl.u32 %v2283, 16
  %v2308 = vand.u32 %v2278, 65535
  %v2309 = vshrl.u32 %v2278, 16
  %v2310 = vmul.u32 %v2306, %v2308
  %v2311 = vmul.u32 %v2306, %v2309
  %v2312 = vmul.u32 %v2307, %v2308
  %v2313 = vmul.u32 %v2307, %v2309
  %v2314 = vshll.u32 %v2311, 16
  %v2315 = vshrl.u32 %v2311, 16
  %v2316 = vshll.u32 %v2312, 16
  %v2317 = vshrl.u32 %v2312, 16
  %vm2318 = vc.u32 %v2310, %v2314
  %v2319 = vsel %vm2318, 1, 0
  %v2320 = vadd.s32 %v2310, %v2314
  %v2321 = vadd.s32 %v2313, %v2319
  %vm2322 = vc.u32 %v2320, %v2316
  %v2323 = vsel %vm2322, 1, 0
  %v2324 = vadd.s32 %v2320, %v2316
  %v2325 = vadd.s32 %v2321, %v2323
  %v2326 = vadd.s32 %v2325, %v2315
  %v2327 = vadd.s32 %v2326, %v2317
  %v2328 = vmul.u32 %v2283, %v2274
  %v2329 = vadd.s32 %v2305, %v2324
  %vm2330 = vc.u32 %v2305, %v2324
  %v2331 = vadd.s32 %v2327, 1
  %v2332 = vsel %vm2330, %v2331, %v2327
  %v2333 = vadd.s32 %v2328, %v2332
  %v2334 = vadd.s32 %v2333, 536870912
  %v2335 = vshrl.u32 %v2334, 30
  %v2336 = vshll.u32 %v2335, 30
  %v2337 = vsub.s32 %v2333, %v2336
  %vm2338 = vcmp.lt.s32.totalorder %v2337, 0
  %v2339 = vsub.s32 0, %v2337
  %v2340 = vsel %vm2338, %v2339, %v2337
  %v2341 = vclz %v2340
  %v2342 = vsub.s32 %v2341, 2
  %vm2343 = vcmp.gt.s32.totalorder 0, %v2342
  %v2344 = vsel %vm2343, 0, %v2342
  %v2345 = vsub.s32 32, %v2344
  %v2346 = vshll.u32 %v2337, %v2344
  %v2347 = vshrl.u32 %v2329, %v2345
  %v2348 = vor.u32 %v2346, %v2347
  %v2349 = vsub.s32 4294967266, %v2344
  %v2350 = vadd.s32 %v2349, 127
  %v2351 = vshll.u32 %v2350, 23
  %v2352 = vor.u32 4788187, %v2351
  %v2353 = vand.u32 2147483647, %v2352
  %v2355 = vcvt.s32.f32 %v2348
  %v2356 = vmul.f32 %v2355, %v2353
  %v2357 = vxor.u32 %v2356, 2147483648
  %v2358 = vsel %vm2237, %v2357, %v2356
  %v2359 = vsub.s32 4, %v2335
  %v2360 = vsel %vm2237, %v2359, %v2335
  %v2361 = vsel %vm2236, %v506, %v2358
  %v2362 = vsel %vm2236, 0, %v2360
  %v2363 = vmul.f32 %v2361, %v2361
  %v2364 = vmul.f32 %v2363, -0.001358992
  %v2365 = vadd.f32 %v2364, 0.041655596
  %v2366 = vmul.f32 %v2363, %v2365
  %v2367 = vadd.f32 %v2366, -0.4999988
  %v2368 = vmul.f32 %v2363, %v2367
  %v2369 = vadd.f32 1.0, %v2368
  %v2370 = vmul.f32 %v2361, %v2361
  %v2371 = vmul.f32 %v2370, -0.00019511016
  %v2372 = vadd.f32 %v2371, 0.008332121
  %v2373 = vmul.f32 %v2370, %v2372
  %v2374 = vadd.f32 %v2373, -0.16666654
  %v2375 = vmul.f32 %v2370, %v2374
  %v2376 = vadd.f32 %v2375, 1.0
  %v2377 = vmul.f32 %v2376, %v2361
  %vm2378 = vweird.f32 %v506
  %v2379 = vadd.s32 %v2362, 3
  %v2380 = vand.u32 %v2379, 3
  %vm2381 = vcmp.lt.s32.totalorder %v2380, 2
  %vm2382 = vcmp.eq.s32.totalorder %v2380, 0
  %v2383 = vxor.u32 %v2377, 2147483648
  %v2384 = vsel %vm2382, %v2369, %v2383
  %vm2385 = vcmp.eq.s32.totalorder %v2380, 2
  %v2386 = vxor.u32 %v2369, 2147483648
  %v2387 = vsel %vm2385, %v2386, %v2377
  %v2388 = vsel %vm2381, %v2384, %v2387
  %v2389 = vsel %vm2378, nan, %v2388
  %v2390 = vand.u32 2147483647, %v507
  %vm2391 = vcmp.le.f32.partialorder %v2390, 0.7853982
  %vm2392 = vcmp.lt.s32.totalorder %v507, 0
  %v2393 = vand.u32 %v507, 2139095040
  %v2394 = vshrl.u32 %v2393, 23
  %v2395 = vsub.s32 %v2394, 127
  %v2396 = vand.u32 2147483647, %v507
  %v2397 = vand.u32 %v2396, 8388607
  %v2398 = vor.u32 %v2397, 8388608
  %v2399 = vsub.s32 0, %v2398
  %v2400 = vadd.s32 %v2395, 1
  %vm2401 = vcmp.gt.s32.totalorder %v2400, 0
  %v2402 = vsel %vm2401, %v2400, 0
  %v2403 = vshrl.u32 %v2402, 5
  %v2404 = vand.u32 %v2402, 31
  %v2405 = vsub.s32 32, %v2404
  %v2406 = vshrl.u32 683565275, %v2405
  %v2407 = vshll.u32 683565275, %v2404
  %v2408 = vshrl.u32 2475754826, %v2405
  %v2409 = vor.u32 %v2407, %v2408
  %v2410 = vshll.u32 2475754826, %v2404
  %v2411 = vshrl.u32 2131351028, %v2405
  %v2412 = vor.u32 %v2410, %v2411
  %v2413 = vshll.u32 2131351028, %v2404
  %v2414 = vshrl.u32 2102212464, %v2405
  %v2415 = vor.u32 %v2413, %v2414
  %v2416 = vshll.u32 2102212464, %v2404
  %v2417 = vshrl.u32 920167782, %v2405
  %v2418 = vor.u32 %v2416, %v2417
  %v2419 = vshll.u32 920167782, %v2404
  %v2420 = vshrl.u32 1326507024, %v2405
  %v2421 = vor.u32 %v2419, %v2420
  %vm2422 = vcmp.lt.s32.totalorder %v2403, 1
  %vm2423 = vcmp.lt.s32.totalorder %v2403, 2
  %vm2424 = vcmp.lt.s32.totalorder %v2403, 3
  %vm2425 = vcmp.lt.s32.totalorder %v2403, 4
  %v2426 = vsel %vm2422, %v2406, %v2409
  %v2427 = vsel %vm2425, %v2415, 2102212464
  %v2428 = vsel %vm2424, %v2412, %v2427
  %v2429 = vsel %vm2423, %v2426, %v2428
  %v2430 = vsel %vm2422, %v2409, %v2412
  %v2431 = vsel %vm2425, %v2418, 920167782
  %v2432 = vsel %vm2424, %v2415, %v2431
  %v2433 = vsel %vm2423, %v2430, %v2432
  %v2434 = vsel %vm2422, %v2412, %v2415
  %v2435 = vsel %vm2425, %v2421, 1326507024
  %v2436 = vsel %vm2424, %v2418, %v2435
  %v2437 = vsel %vm2423, %v2434, %v2436
  %v2438 = vshll.u32 %v2398, 8
  %v2439 = vand.u32 %v2438, 65535
  %v2440 = vshrl.u32 %v2438, 16
  %v2441 = vand.u32 %v2437, 65535
  %v2442 = vshrl.u32 %v2437, 16
  %v2443 = vmul.u32 %v2439, %v2441
  %v2444 = vmul.u32 %v2439, %v2442
  %v2445 = vmul.u32 %v2440, %v2441
  %v2446 = vmul.u32 %v2440, %v2442
  %v2447 = vshll.u32 %v2444, 16
  %v2448 = vshrl.u32 %v2444, 16
  %v2449 = vshll.u32 %v2445, 16
  %v2450 = vshrl.u32 %v2445, 16
  %vm2451 = vc.u32 %v2443, %v2447
  %v2452 = vsel %vm2451, 1, 0
  %v2453 = vadd.s32 %v2443, %v2447
  %v2454 = vadd.s32 %v2446, %v2452
  %vm2455 = vc.u32 %v2453, %v2449
  %v2456 = vsel %vm2455, 1, 0
  %v2457 = vadd.s32 %v2453, %v2449
  %v2458 = vadd.s32 %v2454, %v2456
  %v2459 = vadd.s32 %v2458, %v2448
  %v2460 = vadd.s32 %v2459, %v2450
  %v2461 = vand.u32 %v2438, 65535
  %v2462 = vshrl.u32 %v2438, 16
  %v2463 = vand.u32 %v2433, 65535
  %v2464 = vshrl.u32 %v2433, 16
  %v2465 = vmul.u32 %v2461, %v2463
  %v2466 = vmul.u32 %v2461, %v2464
  %v2467 = vmul.u32 %v2462, %v2463
  %v2468 = vmul.u32 %v2462, %v2464
  %v2469 = vshll.u32 %v2466, 16
  %v2470 = vshrl.u32 %v2466, 16
  %v2471 = vshll.u32 %v2467, 16
  %v2472 = vshrl.u32 %v2467, 16
  %vm2473 = vc.u32 %v2465, %v2469
  %v2474 = vsel %vm2473, 1, 0
  %v2475 = vadd.s32 %v2465, %v2469
  %v2476 = vadd.s32 %v2468, %v2474
  %vm2477 = vc.u32 %v2475, %v2471
  %v2478 = vsel %vm2477, 1, 0
  %v2479 = vadd.s32 %v2475, %v2471
  %v2480 = vadd.s32 %v2476, %v2478
  %v2481 = vadd.s32 %v2480, %v2470
  %v2482 = vadd.s32 %v2481, %v2472
  %v2483 = vmul.u32 %v2438, %v2429
  %v2484 = vadd.s32 %v2460, %v2479
  %vm2485 = vc.u32 %v2460, %v2479
  %v2486 = vadd.s32 %v2482, 1
  %v2487 = vsel %vm2485, %v2486, %v2482
  %v2488 = vadd.s32 %v2483, %v2487
  %v2489 = vadd.s32 %v2488, 536870912
  %v2490 = vshrl.u32 %v2489, 30
  %v2491 = vshll.u32 %v2490, 30
  %v2492 = vsub.s32 %v2488, %v2491
  %vm2493 = vcmp.lt.s32.totalorder %v2492, 0
  %v2494 = vsub.s32 0, %v2492
  %v2495 = vsel %vm2493, %v2494, %v2492
  %v2496 = vclz %v2495
  %v2497 = vsub.s32 %v2496, 2
  %vm2498 = vcmp.gt.s32.totalorder 0, %v2497
  %v2499 = vsel %vm2498, 0, %v2497
  %v2500 = vsub.s32 32, %v2499
  %v2501 = vshll.u32 %v2492, %v2499
  %v2502 = vshrl.u32 %v2484, %v2500
  %v2503 = vor.u32 %v2501, %v2502
  %v2504 = vsub.s32 4294967266, %v2499
  %v2505 = vadd.s32 %v2504, 127
  %v2506 = vshll.u32 %v2505, 23
  %v2507 = vor.u32 4788187, %v2506
  %v2508 = vand.u32 2147483647, %v2507
  %v2510 = vcvt.s32.f32 %v2503
  %v2511 = vmul.f32 %v2510, %v2508
  %v2512 = vxor.u32 %v2511, 2147483648
  %v2513 = vsel %vm2392, %v2512, %v2511
  %v2514 = vsub.s32 4, %v2490
  %v2515 = vsel %vm2392, %v2514, %v2490
  %v2516 = vsel %vm2391, %v507, %v2513
  %v2517 = vsel %vm2391, 0, %v2515
  %v2518 = vmul.f32 %v2516, %v2516
  %v2519 = vmul.f32 %v2518, -0.001358992
  %v2520 = vadd.f32 %v2519, 0.041655596
  %v2521 = vmul.f32 %v2518, %v2520
  %v2522 = vadd.f32 %v2521, -0.4999988
  %v2523 = vmul.f32 %v2518, %v2522
  %v2524 = vadd.f32 1.0, %v2523
  %v2525 = vmul.f32 %v2516, %v2516
  %v2526 = vmul.f32 %v2525, -0.00019511016
  %v2527 = vadd.f32 %v2526, 0.008332121
  %v2528 = vmul.f32 %v2525, %v2527
  %v2529 = vadd.f32 %v2528, -0.16666654
  %v2530 = vmul.f32 %v2525, %v2529
  %v2531 = vadd.f32 %v2530, 1.0
  %v2532 = vmul.f32 %v2531, %v2516
  %vm2533 = vweird.f32 %v507
  %v2534 = vadd.s32 %v2517, 3
  %v2535 = vand.u32 %v2534, 3
  %vm2536 = vcmp.lt.s32.totalorder %v2535, 2
  %vm2537 = vcmp.eq.s32.totalorder %v2535, 0
  %v2538 = vxor.u32 %v2532, 2147483648
  %v2539 = vsel %vm2537, %v2524, %v2538
  %vm2540 = vcmp.eq.s32.totalorder %v2535, 2
  %v2541 = vxor.u32 %v2524, 2147483648
  %v2542 = vsel %vm2540, %v2541, %v2532
  %v2543 = vsel %vm2536, %v2539, %v2542
  %v2544 = vsel %vm2533, nan, %v2543
  %v2545 = vand.u32 2147483647, %v508
  %vm2546 = vcmp.le.f32.partialorder %v2545, 0.7853982
  %vm2547 = vcmp.lt.s32.totalorder %v508, 0
  %v2548 = vand.u32 %v508, 2139095040
  %v2549 = vshrl.u32 %v2548, 23
  %v2550 = vsub.s32 %v2549, 127
  %v2551 = vand.u32 2147483647, %v508
  %v2552 = vand.u32 %v2551, 8388607
  %v2553 = vor.u32 %v2552, 8388608
  %v2554 = vsub.s32 0, %v2553
  %v2555 = vadd.s32 %v2550, 1
  %vm2556 = vcmp.gt.s32.totalorder %v2555, 0
  %v2557 = vsel %vm2556, %v2555, 0
  %v2558 = vshrl.u32 %v2557, 5
  %v2559 = vand.u32 %v2557, 31
  %v2560 = vsub.s32 32, %v2559
  %v2561 = vshrl.u32 683565275, %v2560
  %v2562 = vshll.u32 683565275, %v2559
  %v2563 = vshrl.u32 2475754826, %v2560
  %v2564 = vor.u32 %v2562, %v2563
  %v2565 = vshll.u32 2475754826, %v2559
  %v2566 = vshrl.u32 2131351028, %v2560
  %v2567 = vor.u32 %v2565, %v2566
  %v2568 = vshll.u32 2131351028, %v2559
  %v2569 = vshrl.u32 2102212464, %v2560
  %v2570 = vor.u32 %v2568, %v2569
  %v2571 = vshll.u32 2102212464, %v2559
  %v2572 = vshrl.u32 920167782, %v2560
  %v2573 = vor.u32 %v2571, %v2572
  %v2574 = vshll.u32 920167782, %v2559
  %v2575 = vshrl.u32 1326507024, %v2560
  %v2576 = vor.u32 %v2574, %v2575
  %vm2577 = vcmp.lt.s32.totalorder %v2558, 1
  %vm2578 = vcmp.lt.s32.totalorder %v2558, 2
  %vm2579 = vcmp.lt.s32.totalorder %v2558, 3
  %vm2580 = vcmp.lt.s32.totalorder %v2558, 4
  %v2581 = vsel %vm2577, %v2561, %v2564
  %v2582 = vsel %vm2580, %v2570, 2102212464
  %v2583 = vsel %vm2579, %v2567, %v2582
  %v2584 = vsel %vm2578, %v2581, %v2583
  %v2585 = vsel %vm2577, %v2564, %v2567
  %v2586 = vsel %vm2580, %v2573, 920167782
  %v2587 = vsel %vm2579, %v2570, %v2586
  %v2588 = vsel %vm2578, %v2585, %v2587
  %v2589 = vsel %vm2577, %v2567, %v2570
  %v2590 = vsel %vm2580, %v2576, 1326507024
  %v2591 = vsel %vm2579, %v2573, %v2590
  %v2592 = vsel %vm2578, %v2589, %v2591
  %v2593 = vshll.u32 %v2553, 8
  %v2594 = vand.u32 %v2593, 65535
  %v2595 = vshrl.u32 %v2593, 16
  %v2596 = vand.u32 %v2592, 65535
  %v2597 = vshrl.u32 %v2592, 16
  %v2598 = vmul.u32 %v2594, %v2596
  %v2599 = vmul.u32 %v2594, %v2597
  %v2600 = vmul.u32 %v2595, %v2596
  %v2601 = vmul.u32 %v2595, %v2597
  %v2602 = vshll.u32 %v2599, 16
  %v2603 = vshrl.u32 %v2599, 16
  %v2604 = vshll.u32 %v2600, 16
  %v2605 = vshrl.u32 %v2600, 16
  %vm2606 = vc.u32 %v2598, %v2602
  %v2607 = vsel %vm2606, 1, 0
  %v2608 = vadd.s32 %v2598, %v2602
  %v2609 = vadd.s32 %v2601, %v2607
  %vm2610 = vc.u32 %v2608, %v2604
  %v2611 = vsel %vm2610, 1, 0
  %v2612 = vadd.s32 %v2608, %v2604
  %v2613 = vadd.s32 %v2609, %v2611
  %v2614 = vadd.s32 %v2613, %v2603
  %v2615 = vadd.s32 %v2614, %v2605
  %v2616 = vand.u32 %v2593, 65535
  %v2617 = vshrl.u32 %v2593, 16
  %v2618 = vand.u32 %v2588, 65535
  %v2619 = vshrl.u32 %v2588, 16
  %v2620 = vmul.u32 %v2616, %v2618
  %v2621 = vmul.u32 %v2616, %v2619
  %v2622 = vmul.u32 %v2617, %v2618
  %v2623 = vmul.u32 %v2617, %v2619
  %v2624 = vshll.u32 %v2621, 16
  %v2625 = vshrl.u32 %v2621, 16
  %v2626 = vshll.u32 %v2622, 16
  %v2627 = vshrl.u32 %v2622, 16
  %vm2628 = vc.u32 %v2620, %v2624
  %v2629 = vsel %vm2628, 1, 0
  %v2630 = vadd.s32 %v2620, %v2624
  %v2631 = vadd.s32 %v2623, %v2629
  %vm2632 = vc.u32 %v2630, %v2626
  %v2633 = vsel %vm2632, 1, 0
  %v2634 = vadd.s32 %v2630, %v2626
  %v2635 = vadd.s32 %v2631, %v2633
  %v2636 = vadd.s32 %v2635, %v2625
  %v2637 = vadd.s32 %v2636, %v2627
  %v2638 = vmul.u32 %v2593, %v2584
  %v2639 = vadd.s32 %v2615, %v2634
  %vm2640 = vc.u32 %v2615, %v2634
  %v2641 = vadd.s32 %v2637, 1
  %v2642 = vsel %vm2640, %v2641, %v2637
  %v2643 = vadd.s32 %v2638, %v2642
  %v2644 = vadd.s32 %v2643, 536870912
  %v2645 = vshrl.u32 %v2644, 30
  %v2646 = vshll.u32 %v2645, 30
  %v2647 = vsub.s32 %v2643, %v2646
  %vm2648 = vcmp.lt.s32.totalorder %v2647, 0
  %v2649 = vsub.s32 0, %v2647
  %v2650 = vsel %vm2648, %v2649, %v2647
  %v2651 = vclz %v2650
  %v2652 = vsub.s32 %v2651, 2
  %vm2653 = vcmp.gt.s32.totalorder 0, %v2652
  %v2654 = vsel %vm2653, 0, %v2652
  %v2655 = vsub.s32 32, %v2654
  %v2656 = vshll.u32 %v2647, %v2654
  %v2657 = vshrl.u32 %v2639, %v2655
  %v2658 = vor.u32 %v2656, %v2657
  %v2659 = vsub.s32 4294967266, %v2654
  %v2660 = vadd.s32 %v2659, 127
  %v2661 = vshll.u32 %v2660, 23
  %v2662 = vor.u32 4788187, %v2661
  %v2663 = vand.u32 2147483647, %v2662
  %v2665 = vcvt.s32.f32 %v2658
  %v2666 = vmul.f32 %v2665, %v2663
  %v2667 = vxor.u32 %v2666, 2147483648
  %v2668 = vsel %vm2547, %v2667, %v2666
  %v2669 = vsub.s32 4, %v2645
  %v2670 = vsel %vm2547, %v2669, %v2645
  %v2671 = vsel %vm2546, %v508, %v2668
  %v2672 = vsel %vm2546, 0, %v2670
  %v2673 = vmul.f32 %v2671, %v2671
  %v2674 = vmul.f32 %v2673, -0.001358992
  %v2675 = vadd.f32 %v2674, 0.041655596
  %v2676 = vmul.f32 %v2673, %v2675
  %v2677 = vadd.f32 %v2676, -0.4999988
  %v2678 = vmul.f32 %v2673, %v2677
  %v2679 = vadd.f32 1.0, %v2678
  %v2680 = vmul.f32 %v2671, %v2671
  %v2681 = vmul.f32 %v2680, -0.00019511016
  %v2682 = vadd.f32 %v2681, 0.008332121
  %v2683 = vmul.f32 %v2680, %v2682
  %v2684 = vadd.f32 %v2683, -0.16666654
  %v2685 = vmul.f32 %v2680, %v2684
  %v2686 = vadd.f32 %v2685, 1.0
  %v2687 = vmul.f32 %v2686, %v2671
  %vm2688 = vweird.f32 %v508
  %v2689 = vadd.s32 %v2672, 3
  %v2690 = vand.u32 %v2689, 3
  %vm2691 = vcmp.lt.s32.totalorder %v2690, 2
  %vm2692 = vcmp.eq.s32.totalorder %v2690, 0
  %v2693 = vxor.u32 %v2687, 2147483648
  %v2694 = vsel %vm2692, %v2679, %v2693
  %vm2695 = vcmp.eq.s32.totalorder %v2690, 2
  %v2696 = vxor.u32 %v2679, 2147483648
  %v2697 = vsel %vm2695, %v2696, %v2687
  %v2698 = vsel %vm2691, %v2694, %v2697
  %v2699 = vsel %vm2688, nan, %v2698
  %v2700 = vand.u32 2147483647, %v509
  %vm2701 = vcmp.le.f32.partialorder %v2700, 0.7853982
  %vm2702 = vcmp.lt.s32.totalorder %v509, 0
  %v2703 = vand.u32 %v509, 2139095040
  %v2704 = vshrl.u32 %v2703, 23
  %v2705 = vsub.s32 %v2704, 127
  %v2706 = vand.u32 2147483647, %v509
  %v2707 = vand.u32 %v2706, 8388607
  %v2708 = vor.u32 %v2707, 8388608
  %v2709 = vsub.s32 0, %v2708
  %v2710 = vadd.s32 %v2705, 1
  %vm2711 = vcmp.gt.s32.totalorder %v2710, 0
  %v2712 = vsel %vm2711, %v2710, 0
  %v2713 = vshrl.u32 %v2712, 5
  %v2714 = vand.u32 %v2712, 31
  %v2715 = vsub.s32 32, %v2714
  %v2716 = vshrl.u32 683565275, %v2715
  %v2717 = vshll.u32 683565275, %v2714
  %v2718 = vshrl.u32 2475754826, %v2715
  %v2719 = vor.u32 %v2717, %v2718
  %v2720 = vshll.u32 2475754826, %v2714
  %v2721 = vshrl.u32 2131351028, %v2715
  %v2722 = vor.u32 %v2720, %v2721
  %v2723 = vshll.u32 2131351028, %v2714
  %v2724 = vshrl.u32 2102212464, %v2715
  %v2725 = vor.u32 %v2723, %v2724
  %v2726 = vshll.u32 2102212464, %v2714
  %v2727 = vshrl.u32 920167782, %v2715
  %v2728 = vor.u32 %v2726, %v2727
  %v2729 = vshll.u32 920167782, %v2714
  %v2730 = vshrl.u32 1326507024, %v2715
  %v2731 = vor.u32 %v2729, %v2730
  %vm2732 = vcmp.lt.s32.totalorder %v2713, 1
  %vm2733 = vcmp.lt.s32.totalorder %v2713, 2
  %vm2734 = vcmp.lt.s32.totalorder %v2713, 3
  %vm2735 = vcmp.lt.s32.totalorder %v2713, 4
  %v2736 = vsel %vm2732, %v2716, %v2719
  %v2737 = vsel %vm2735, %v2725, 2102212464
  %v2738 = vsel %vm2734, %v2722, %v2737
  %v2739 = vsel %vm2733, %v2736, %v2738
  %v2740 = vsel %vm2732, %v2719, %v2722
  %v2741 = vsel %vm2735, %v2728, 920167782
  %v2742 = vsel %vm2734, %v2725, %v2741
  %v2743 = vsel %vm2733, %v2740, %v2742
  %v2744 = vsel %vm2732, %v2722, %v2725
  %v2745 = vsel %vm2735, %v2731, 1326507024
  %v2746 = vsel %vm2734, %v2728, %v2745
  %v2747 = vsel %vm2733, %v2744, %v2746
  %v2748 = vshll.u32 %v2708, 8
  %v2749 = vand.u32 %v2748, 65535
  %v2750 = vshrl.u32 %v2748, 16
  %v2751 = vand.u32 %v2747, 65535
  %v2752 = vshrl.u32 %v2747, 16
  %v2753 = vmul.u32 %v2749, %v2751
  %v2754 = vmul.u32 %v2749, %v2752
  %v2755 = vmul.u32 %v2750, %v2751
  %v2756 = vmul.u32 %v2750, %v2752
  %v2757 = vshll.u32 %v2754, 16
  %v2758 = vshrl.u32 %v2754, 16
  %v2759 = vshll.u32 %v2755, 16
  %v2760 = vshrl.u32 %v2755, 16
  %vm2761 = vc.u32 %v2753, %v2757
  %v2762 = vsel %vm2761, 1, 0
  %v2763 = vadd.s32 %v2753, %v2757
  %v2764 = vadd.s32 %v2756, %v2762
  %vm2765 = vc.u32 %v2763, %v2759
  %v2766 = vsel %vm2765, 1, 0
  %v2767 = vadd.s32 %v2763, %v2759
  %v2768 = vadd.s32 %v2764, %v2766
  %v2769 = vadd.s32 %v2768, %v2758
  %v2770 = vadd.s32 %v2769, %v2760
  %v2771 = vand.u32 %v2748, 65535
  %v2772 = vshrl.u32 %v2748, 16
  %v2773 = vand.u32 %v2743, 65535
  %v2774 = vshrl.u32 %v2743, 16
  %v2775 = vmul.u32 %v2771, %v2773
  %v2776 = vmul.u32 %v2771, %v2774
  %v2777 = vmul.u32 %v2772, %v2773
  %v2778 = vmul.u32 %v2772, %v2774
  %v2779 = vshll.u32 %v2776, 16
  %v2780 = vshrl.u32 %v2776, 16
  %v2781 = vshll.u32 %v2777, 16
  %v2782 = vshrl.u32 %v2777, 16
  %vm2783 = vc.u32 %v2775, %v2779
  %v2784 = vsel %vm2783, 1, 0
  %v2785 = vadd.s32 %v2775, %v2779
  %v2786 = vadd.s32 %v2778, %v2784
  %vm2787 = vc.u32 %v2785, %v2781
  %v2788 = vsel %vm2787, 1, 0
  %v2789 = vadd.s32 %v2785, %v2781
  %v2790 = vadd.s32 %v2786, %v2788
  %v2791 = vadd.s32 %v2790, %v2780
  %v2792 = vadd.s32 %v2791, %v2782
  %v2793 = vmul.u32 %v2748, %v2739
  %v2794 = vadd.s32 %v2770, %v2789
  %vm2795 = vc.u32 %v2770, %v2789
  %v2796 = vadd.s32 %v2792, 1
  %v2797 = vsel %vm2795, %v2796, %v2792
  %v2798 = vadd.s32 %v2793, %v2797
  %v2799 = vadd.s32 %v2798, 536870912
  %v2800 = vshrl.u32 %v2799, 30
  %v2801 = vshll.u32 %v2800, 30
  %v2802 = vsub.s32 %v2798, %v2801
  %vm2803 = vcmp.lt.s32.totalorder %v2802, 0
  %v2804 = vsub.s32 0, %v2802
  %v2805 = vsel %vm2803, %v2804, %v2802
  %v2806 = vclz %v2805
  %v2807 = vsub.s32 %v2806, 2
  %vm2808 = vcmp.gt.s32.totalorder 0, %v2807
  %v2809 = vsel %vm2808, 0, %v2807
  %v2810 = vsub.s32 32, %v2809
  %v2811 = vshll.u32 %v2802, %v2809
  %v2812 = vshrl.u32 %v2794, %v2810
  %v2813 = vor.u32 %v2811, %v2812
  %v2814 = vsub.s32 4294967266, %v2809
  %v2815 = vadd.s32 %v2814, 127
  %v2816 = vshll.u32 %v2815, 23
  %v2817 = vor.u32 4788187, %v2816
  %v2818 = vand.u32 2147483647, %v2817
  %v2820 = vcvt.s32.f32 %v2813
  %v2821 = vmul.f32 %v2820, %v2818
  %v2822 = vxor.u32 %v2821, 2147483648
  %v2823 = vsel %vm2702, %v2822, %v2821
  %v2824 = vsub.s32 4, %v2800
  %v2825 = vsel %vm2702, %v2824, %v2800
  %v2826 = vsel %vm2701, %v509, %v2823
  %v2827 = vsel %vm2701, 0, %v2825
  %v2828 = vmul.f32 %v2826, %v2826
  %v2829 = vmul.f32 %v2828, -0.001358992
  %v2830 = vadd.f32 %v2829, 0.041655596
  %v2831 = vmul.f32 %v2828, %v2830
  %v2832 = vadd.f32 %v2831, -0.4999988
  %v2833 = vmul.f32 %v2828, %v2832
  %v2834 = vadd.f32 1.0, %v2833
  %v2835 = vmul.f32 %v2826, %v2826
  %v2836 = vmul.f32 %v2835, -0.00019511016
  %v2837 = vadd.f32 %v2836, 0.008332121
  %v2838 = vmul.f32 %v2835, %v2837
  %v2839 = vadd.f32 %v2838, -0.16666654
  %v2840 = vmul.f32 %v2835, %v2839
  %v2841 = vadd.f32 %v2840, 1.0
  %v2842 = vmul.f32 %v2841, %v2826
  %vm2843 = vweird.f32 %v509
  %v2844 = vadd.s32 %v2827, 3
  %v2845 = vand.u32 %v2844, 3
  %vm2846 = vcmp.lt.s32.totalorder %v2845, 2
  %vm2847 = vcmp.eq.s32.totalorder %v2845, 0
  %v2848 = vxor.u32 %v2842, 2147483648
  %v2849 = vsel %vm2847, %v2834, %v2848
  %vm2850 = vcmp.eq.s32.totalorder %v2845, 2
  %v2851 = vxor.u32 %v2834, 2147483648
  %v2852 = vsel %vm2850, %v2851, %v2842
  %v2853 = vsel %vm2846, %v2849, %v2852
  %v2854 = vsel %vm2843, nan, %v2853
  %v2855 = vand.u32 2147483647, %v510
  %vm2856 = vcmp.le.f32.partialorder %v2855, 0.7853982
  %vm2857 = vcmp.lt.s32.totalorder %v510, 0
  %v2858 = vand.u32 %v510, 2139095040
  %v2859 = vshrl.u32 %v2858, 23
  %v2860 = vsub.s32 %v2859, 127
  %v2861 = vand.u32 2147483647, %v510
  %v2862 = vand.u32 %v2861, 8388607
  %v2863 = vor.u32 %v2862, 8388608
  %v2864 = vsub.s32 0, %v2863
  %v2865 = vadd.s32 %v2860, 1
  %vm2866 = vcmp.gt.s32.totalorder %v2865, 0
  %v2867 = vsel %vm2866, %v2865, 0
  %v2868 = vshrl.u32 %v2867, 5
  %v2869 = vand.u32 %v2867, 31
  %v2870 = vsub.s32 32, %v2869
  %v2871 = vshrl.u32 683565275, %v2870
  %v2872 = vshll.u32 683565275, %v2869
  %v2873 = vshrl.u32 2475754826, %v2870
  %v2874 = vor.u32 %v2872, %v2873
  %v2875 = vshll.u32 2475754826, %v2869
  %v2876 = vshrl.u32 2131351028, %v2870
  %v2877 = vor.u32 %v2875, %v2876
  %v2878 = vshll.u32 2131351028, %v2869
  %v2879 = vshrl.u32 2102212464, %v2870
  %v2880 = vor.u32 %v2878, %v2879
  %v2881 = vshll.u32 2102212464, %v2869
  %v2882 = vshrl.u32 920167782, %v2870
  %v2883 = vor.u32 %v2881, %v2882
  %v2884 = vshll.u32 920167782, %v2869
  %v2885 = vshrl.u32 1326507024, %v2870
  %v2886 = vor.u32 %v2884, %v2885
  %vm2887 = vcmp.lt.s32.totalorder %v2868, 1
  %vm2888 = vcmp.lt.s32.totalorder %v2868, 2
  %vm2889 = vcmp.lt.s32.totalorder %v2868, 3
  %vm2890 = vcmp.lt.s32.totalorder %v2868, 4
  %v2891 = vsel %vm2887, %v2871, %v2874
  %v2892 = vsel %vm2890, %v2880, 2102212464
  %v2893 = vsel %vm2889, %v2877, %v2892
  %v2894 = vsel %vm2888, %v2891, %v2893
  %v2895 = vsel %vm2887, %v2874, %v2877
  %v2896 = vsel %vm2890, %v2883, 920167782
  %v2897 = vsel %vm2889, %v2880, %v2896
  %v2898 = vsel %vm2888, %v2895, %v2897
  %v2899 = vsel %vm2887, %v2877, %v2880
  %v2900 = vsel %vm2890, %v2886, 1326507024
  %v2901 = vsel %vm2889, %v2883, %v2900
  %v2902 = vsel %vm2888, %v2899, %v2901
  %v2903 = vshll.u32 %v2863, 8
  %v2904 = vand.u32 %v2903, 65535
  %v2905 = vshrl.u32 %v2903, 16
  %v2906 = vand.u32 %v2902, 65535
  %v2907 = vshrl.u32 %v2902, 16
  %v2908 = vmul.u32 %v2904, %v2906
  %v2909 = vmul.u32 %v2904, %v2907
  %v2910 = vmul.u32 %v2905, %v2906
  %v2911 = vmul.u32 %v2905, %v2907
  %v2912 = vshll.u32 %v2909, 16
  %v2913 = vshrl.u32 %v2909, 16
  %v2914 = vshll.u32 %v2910, 16
  %v2915 = vshrl.u32 %v2910, 16
  %vm2916 = vc.u32 %v2908, %v2912
  %v2917 = vsel %vm2916, 1, 0
  %v2918 = vadd.s32 %v2908, %v2912
  %v2919 = vadd.s32 %v2911, %v2917
  %vm2920 = vc.u32 %v2918, %v2914
  %v2921 = vsel %vm2920, 1, 0
  %v2922 = vadd.s32 %v2918, %v2914
  %v2923 = vadd.s32 %v2919, %v2921
  %v2924 = vadd.s32 %v2923, %v2913
  %v2925 = vadd.s32 %v2924, %v2915
  %v2926 = vand.u32 %v2903, 65535
  %v2927 = vshrl.u32 %v2903, 16
  %v2928 = vand.u32 %v2898, 65535
  %v2929 = vshrl.u32 %v2898, 16
  %v2930 = vmul.u32 %v2926, %v2928
  %v2931 = vmul.u32 %v2926, %v2929
  %v2932 = vmul.u32 %v2927, %v2928
  %v2933 = vmul.u32 %v2927, %v2929
  %v2934 = vshll.u32 %v2931, 16
  %v2935 = vshrl.u32 %v2931, 16
  %v2936 = vshll.u32 %v2932, 16
  %v2937 = vshrl.u32 %v2932, 16
  %vm2938 = vc.u32 %v2930, %v2934
  %v2939 = vsel %vm2938, 1, 0
  %v2940 = vadd.s32 %v2930, %v2934
  %v2941 = vadd.s32 %v2933, %v2939
  %vm2942 = vc.u32 %v2940, %v2936
  %v2943 = vsel %vm2942, 1, 0
  %v2944 = vadd.s32 %v2940, %v2936
  %v2945 = vadd.s32 %v2941, %v2943
  %v2946 = vadd.s32 %v2945, %v2935
  %v2947 = vadd.s32 %v2946, %v2937
  %v2948 = vmul.u32 %v2903, %v2894
  %v2949 = vadd.s32 %v2925, %v2944
  %vm2950 = vc.u32 %v2925, %v2944
  %v2951 = vadd.s32 %v2947, 1
  %v2952 = vsel %vm2950, %v2951, %v2947
  %v2953 = vadd.s32 %v2948, %v2952
  %v2954 = vadd.s32 %v2953, 536870912
  %v2955 = vshrl.u32 %v2954, 30
  %v2956 = vshll.u32 %v2955, 30
  %v2957 = vsub.s32 %v2953, %v2956
  %vm2958 = vcmp.lt.s32.totalorder %v2957, 0
  %v2959 = vsub.s32 0, %v2957
  %v2960 = vsel %vm2958, %v2959, %v2957
  %v2961 = vclz %v2960
  %v2962 = vsub.s32 %v2961, 2
  %vm2963 = vcmp.gt.s32.totalorder 0, %v2962
  %v2964 = vsel %vm2963, 0, %v2962
  %v2965 = vsub.s32 32, %v2964
  %v2966 = vshll.u32 %v2957, %v2964
  %v2967 = vshrl.u32 %v2949, %v2965
  %v2968 = vor.u32 %v2966, %v2967
  %v2969 = vsub.s32 4294967266, %v2964
  %v2970 = vadd.s32 %v2969, 127
  %v2971 = vshll.u32 %v2970, 23
  %v2972 = vor.u32 4788187, %v2971
  %v2973 = vand.u32 2147483647, %v2972
  %v2975 = vcvt.s32.f32 %v2968
  %v2976 = vmul.f32 %v2975, %v2973
  %v2977 = vxor.u32 %v2976, 2147483648
  %v2978 = vsel %vm2857, %v2977, %v2976
  %v2979 = vsub.s32 4, %v2955
  %v2980 = vsel %vm2857, %v2979, %v2955
  %v2981 = vsel %vm2856, %v510, %v2978
  %v2982 = vsel %vm2856, 0, %v2980
  %v2983 = vmul.f32 %v2981, %v2981
  %v2984 = vmul.f32 %v2983, -0.001358992
  %v2985 = vadd.f32 %v2984, 0.041655596
  %v2986 = vmul.f32 %v2983, %v2985
  %v2987 = vadd.f32 %v2986, -0.4999988
  %v2988 = vmul.f32 %v2983, %v2987
  %v2989 = vadd.f32 1.0, %v2988
  %v2990 = vmul.f32 %v2981, %v2981
  %v2991 = vmul.f32 %v2990, -0.00019511016
  %v2992 = vadd.f32 %v2991, 0.008332121
  %v2993 = vmul.f32 %v2990, %v2992
  %v2994 = vadd.f32 %v2993, -0.16666654
  %v2995 = vmul.f32 %v2990, %v2994
  %v2996 = vadd.f32 %v2995, 1.0
  %v2997 = vmul.f32 %v2996, %v2981
  %vm2998 = vweird.f32 %v510
  %v2999 = vadd.s32 %v2982, 3
  %v3000 = vand.u32 %v2999, 3
  %vm3001 = vcmp.lt.s32.totalorder %v3000, 2
  %vm3002 = vcmp.eq.s32.totalorder %v3000, 0
  %v3003 = vxor.u32 %v2997, 2147483648
  %v3004 = vsel %vm3002, %v2989, %v3003
  %vm3005 = vcmp.eq.s32.totalorder %v3000, 2
  %v3006 = vxor.u32 %v2989, 2147483648
  %v3007 = vsel %vm3005, %v3006, %v2997
  %v3008 = vsel %vm3001, %v3004, %v3007
  %v3009 = vsel %vm2998, nan, %v3008
  %v3010 = vand.u32 2147483647, %v511
  %vm3011 = vcmp.le.f32.partialorder %v3010, 0.7853982
  %vm3012 = vcmp.lt.s32.totalorder %v511, 0
  %v3013 = vand.u32 %v511, 2139095040
  %v3014 = vshrl.u32 %v3013, 23
  %v3015 = vsub.s32 %v3014, 127
  %v3016 = vand.u32 2147483647, %v511
  %v3017 = vand.u32 %v3016, 8388607
  %v3018 = vor.u32 %v3017, 8388608
  %v3019 = vsub.s32 0, %v3018
  %v3020 = vadd.s32 %v3015, 1
  %vm3021 = vcmp.gt.s32.totalorder %v3020, 0
  %v3022 = vsel %vm3021, %v3020, 0
  %v3023 = vshrl.u32 %v3022, 5
  %v3024 = vand.u32 %v3022, 31
  %v3025 = vsub.s32 32, %v3024
  %v3026 = vshrl.u32 683565275, %v3025
  %v3027 = vshll.u32 683565275, %v3024
  %v3028 = vshrl.u32 2475754826, %v3025
  %v3029 = vor.u32 %v3027, %v3028
  %v3030 = vshll.u32 2475754826, %v3024
  %v3031 = vshrl.u32 2131351028, %v3025
  %v3032 = vor.u32 %v3030, %v3031
  %v3033 = vshll.u32 2131351028, %v3024
  %v3034 = vshrl.u32 2102212464, %v3025
  %v3035 = vor.u32 %v3033, %v3034
  %v3036 = vshll.u32 2102212464, %v3024
  %v3037 = vshrl.u32 920167782, %v3025
  %v3038 = vor.u32 %v3036, %v3037
  %v3039 = vshll.u32 920167782, %v3024
  %v3040 = vshrl.u32 1326507024, %v3025
  %v3041 = vor.u32 %v3039, %v3040
  %vm3042 = vcmp.lt.s32.totalorder %v3023, 1
  %vm3043 = vcmp.lt.s32.totalorder %v3023, 2
  %vm3044 = vcmp.lt.s32.totalorder %v3023, 3
  %vm3045 = vcmp.lt.s32.totalorder %v3023, 4
  %v3046 = vsel %vm3042, %v3026, %v3029
  %v3047 = vsel %vm3045, %v3035, 2102212464
  %v3048 = vsel %vm3044, %v3032, %v3047
  %v3049 = vsel %vm3043, %v3046, %v3048
  %v3050 = vsel %vm3042, %v3029, %v3032
  %v3051 = vsel %vm3045, %v3038, 920167782
  %v3052 = vsel %vm3044, %v3035, %v3051
  %v3053 = vsel %vm3043, %v3050, %v3052
  %v3054 = vsel %vm3042, %v3032, %v3035
  %v3055 = vsel %vm3045, %v3041, 1326507024
  %v3056 = vsel %vm3044, %v3038, %v3055
  %v3057 = vsel %vm3043, %v3054, %v3056
  %v3058 = vshll.u32 %v3018, 8
  %v3059 = vand.u32 %v3058, 65535
  %v3060 = vshrl.u32 %v3058, 16
  %v3061 = vand.u32 %v3057, 65535
  %v3062 = vshrl.u32 %v3057, 16
  %v3063 = vmul.u32 %v3059, %v3061
  %v3064 = vmul.u32 %v3059, %v3062
  %v3065 = vmul.u32 %v3060, %v3061
  %v3066 = vmul.u32 %v3060, %v3062
  %v3067 = vshll.u32 %v3064, 16
  %v3068 = vshrl.u32 %v3064, 16
  %v3069 = vshll.u32 %v3065, 16
  %v3070 = vshrl.u32 %v3065, 16
  %vm3071 = vc.u32 %v3063, %v3067
  %v3072 = vsel %vm3071, 1, 0
  %v3073 = vadd.s32 %v3063, %v3067
  %v3074 = vadd.s32 %v3066, %v3072
  %vm3075 = vc.u32 %v3073, %v3069
  %v3076 = vsel %vm3075, 1, 0
  %v3077 = vadd.s32 %v3073, %v3069
  %v3078 = vadd.s32 %v3074, %v3076
  %v3079 = vadd.s32 %v3078, %v3068
  %v3080 = vadd.s32 %v3079, %v3070
  %v3081 = vand.u32 %v3058, 65535
  %v3082 = vshrl.u32 %v3058, 16
  %v3083 = vand.u32 %v3053, 65535
  %v3084 = vshrl.u32 %v3053, 16
  %v3085 = vmul.u32 %v3081, %v3083
  %v3086 = vmul.u32 %v3081, %v3084
  %v3087 = vmul.u32 %v3082, %v3083
  %v3088 = vmul.u32 %v3082, %v3084
  %v3089 = vshll.u32 %v3086, 16
  %v3090 = vshrl.u32 %v3086, 16
  %v3091 = vshll.u32 %v3087, 16
  %v3092 = vshrl.u32 %v3087, 16
  %vm3093 = vc.u32 %v3085, %v3089
  %v3094 = vsel %vm3093, 1, 0
  %v3095 = vadd.s32 %v3085, %v3089
  %v3096 = vadd.s32 %v3088, %v3094
  %vm3097 = vc.u32 %v3095, %v3091
  %v3098 = vsel %vm3097, 1, 0
  %v3099 = vadd.s32 %v3095, %v3091
  %v3100 = vadd.s32 %v3096, %v3098
  %v3101 = vadd.s32 %v3100, %v3090
  %v3102 = vadd.s32 %v3101, %v3092
  %v3103 = vmul.u32 %v3058, %v3049
  %v3104 = vadd.s32 %v3080, %v3099
  %vm3105 = vc.u32 %v3080, %v3099
  %v3106 = vadd.s32 %v3102, 1
  %v3107 = vsel %vm3105, %v3106, %v3102
  %v3108 = vadd.s32 %v3103, %v3107
  %v3109 = vadd.s32 %v3108, 536870912
  %v3110 = vshrl.u32 %v3109, 30
  %v3111 = vshll.u32 %v3110, 30
  %v3112 = vsub.s32 %v3108, %v3111
  %vm3113 = vcmp.lt.s32.totalorder %v3112, 0
  %v3114 = vsub.s32 0, %v3112
  %v3115 = vsel %vm3113, %v3114, %v3112
  %v3116 = vclz %v3115
  %v3117 = vsub.s32 %v3116, 2
  %vm3118 = vcmp.gt.s32.totalorder 0, %v3117
  %v3119 = vsel %vm3118, 0, %v3117
  %v3120 = vsub.s32 32, %v3119
  %v3121 = vshll.u32 %v3112, %v3119
  %v3122 = vshrl.u32 %v3104, %v3120
  %v3123 = vor.u32 %v3121, %v3122
  %v3124 = vsub.s32 4294967266, %v3119
  %v3125 = vadd.s32 %v3124, 127
  %v3126 = vshll.u32 %v3125, 23
  %v3127 = vor.u32 4788187, %v3126
  %v3128 = vand.u32 2147483647, %v3127
  %v3130 = vcvt.s32.f32 %v3123
  %v3131 = vmul.f32 %v3130, %v3128
  %v3132 = vxor.u32 %v3131, 2147483648
  %v3133 = vsel %vm3012, %v3132, %v3131
  %v3134 = vsub.s32 4, %v3110
  %v3135 = vsel %vm3012, %v3134, %v3110
  %v3136 = vsel %vm3011, %v511, %v3133
  %v3137 = vsel %vm3011, 0, %v3135
  %v3138 = vmul.f32 %v3136, %v3136
  %v3139 = vmul.f32 %v3138, -0.001358992
  %v3140 = vadd.f32 %v3139, 0.041655596
  %v3141 = vmul.f32 %v3138, %v3140
  %v3142 = vadd.f32 %v3141, -0.4999988
  %v3143 = vmul.f32 %v3138, %v3142
  %v3144 = vadd.f32 1.0, %v3143
  %v3145 = vmul.f32 %v3136, %v3136
  %v3146 = vmul.f32 %v3145, -0.00019511016
  %v3147 = vadd.f32 %v3146, 0.008332121
  %v3148 = vmul.f32 %v3145, %v3147
  %v3149 = vadd.f32 %v3148, -0.16666654
  %v3150 = vmul.f32 %v3145, %v3149
  %v3151 = vadd.f32 %v3150, 1.0
  %v3152 = vmul.f32 %v3151, %v3136
  %vm3153 = vweird.f32 %v511
  %v3154 = vadd.s32 %v3137, 3
  %v3155 = vand.u32 %v3154, 3
  %vm3156 = vcmp.lt.s32.totalorder %v3155, 2
  %vm3157 = vcmp.eq.s32.totalorder %v3155, 0
  %v3158 = vxor.u32 %v3152, 2147483648
  %v3159 = vsel %vm3157, %v3144, %v3158
  %vm3160 = vcmp.eq.s32.totalorder %v3155, 2
  %v3161 = vxor.u32 %v3144, 2147483648
  %v3162 = vsel %vm3160, %v3161, %v3152
  %v3163 = vsel %vm3156, %v3159, %v3162
  %v3164 = vsel %vm3153, nan, %v3163
  %v3165 = vand.u32 2147483647, %v512
  %vm3166 = vcmp.le.f32.partialorder %v3165, 0.7853982
  %vm3167 = vcmp.lt.s32.totalorder %v512, 0
  %v3168 = vand.u32 %v512, 2139095040
  %v3169 = vshrl.u32 %v3168, 23
  %v3170 = vsub.s32 %v3169, 127
  %v3171 = vand.u32 2147483647, %v512
  %v3172 = vand.u32 %v3171, 8388607
  %v3173 = vor.u32 %v3172, 8388608
  %v3174 = vsub.s32 0, %v3173
  %v3175 = vadd.s32 %v3170, 1
  %vm3176 = vcmp.gt.s32.totalorder %v3175, 0
  %v3177 = vsel %vm3176, %v3175, 0
  %v3178 = vshrl.u32 %v3177, 5
  %v3179 = vand.u32 %v3177, 31
  %v3180 = vsub.s32 32, %v3179
  %v3181 = vshrl.u32 683565275, %v3180
  %v3182 = vshll.u32 683565275, %v3179
  %v3183 = vshrl.u32 2475754826, %v3180
  %v3184 = vor.u32 %v3182, %v3183
  %v3185 = vshll.u32 2475754826, %v3179
  %v3186 = vshrl.u32 2131351028, %v3180
  %v3187 = vor.u32 %v3185, %v3186
  %v3188 = vshll.u32 2131351028, %v3179
  %v3189 = vshrl.u32 2102212464, %v3180
  %v3190 = vor.u32 %v3188, %v3189
  %v3191 = vshll.u32 2102212464, %v3179
  %v3192 = vshrl.u32 920167782, %v3180
  %v3193 = vor.u32 %v3191, %v3192
  %v3194 = vshll.u32 920167782, %v3179
  %v3195 = vshrl.u32 1326507024, %v3180
  %v3196 = vor.u32 %v3194, %v3195
  %vm3197 = vcmp.lt.s32.totalorder %v3178, 1
  %vm3198 = vcmp.lt.s32.totalorder %v3178, 2
  %vm3199 = vcmp.lt.s32.totalorder %v3178, 3
  %vm3200 = vcmp.lt.s32.totalorder %v3178, 4
  %v3201 = vsel %vm3197, %v3181, %v3184
  %v3202 = vsel %vm3200, %v3190, 2102212464
  %v3203 = vsel %vm3199, %v3187, %v3202
  %v3204 = vsel %vm3198, %v3201, %v3203
  %v3205 = vsel %vm3197, %v3184, %v3187
  %v3206 = vsel %vm3200, %v3193, 920167782
  %v3207 = vsel %vm3199, %v3190, %v3206
  %v3208 = vsel %vm3198, %v3205, %v3207
  %v3209 = vsel %vm3197, %v3187, %v3190
  %v3210 = vsel %vm3200, %v3196, 1326507024
  %v3211 = vsel %vm3199, %v3193, %v3210
  %v3212 = vsel %vm3198, %v3209, %v3211
  %v3213 = vshll.u32 %v3173, 8
  %v3214 = vand.u32 %v3213, 65535
  %v3215 = vshrl.u32 %v3213, 16
  %v3216 = vand.u32 %v3212, 65535
  %v3217 = vshrl.u32 %v3212, 16
  %v3218 = vmul.u32 %v3214, %v3216
  %v3219 = vmul.u32 %v3214, %v3217
  %v3220 = vmul.u32 %v3215, %v3216
  %v3221 = vmul.u32 %v3215, %v3217
  %v3222 = vshll.u32 %v3219, 16
  %v3223 = vshrl.u32 %v3219, 16
  %v3224 = vshll.u32 %v3220, 16
  %v3225 = vshrl.u32 %v3220, 16
  %vm3226 = vc.u32 %v3218, %v3222
  %v3227 = vsel %vm3226, 1, 0
  %v3228 = vadd.s32 %v3218, %v3222
  %v3229 = vadd.s32 %v3221, %v3227
  %vm3230 = vc.u32 %v3228, %v3224
  %v3231 = vsel %vm3230, 1, 0
  %v3232 = vadd.s32 %v3228, %v3224
  %v3233 = vadd.s32 %v3229, %v3231
  %v3234 = vadd.s32 %v3233, %v3223
  %v3235 = vadd.s32 %v3234, %v3225
  %v3236 = vand.u32 %v3213, 65535
  %v3237 = vshrl.u32 %v3213, 16
  %v3238 = vand.u32 %v3208, 65535
  %v3239 = vshrl.u32 %v3208, 16
  %v3240 = vmul.u32 %v3236, %v3238
  %v3241 = vmul.u32 %v3236, %v3239
  %v3242 = vmul.u32 %v3237, %v3238
  %v3243 = vmul.u32 %v3237, %v3239
  %v3244 = vshll.u32 %v3241, 16
  %v3245 = vshrl.u32 %v3241, 16
  %v3246 = vshll.u32 %v3242, 16
  %v3247 = vshrl.u32 %v3242, 16
  %vm3248 = vc.u32 %v3240, %v3244
  %v3249 = vsel %vm3248, 1, 0
  %v3250 = vadd.s32 %v3240, %v3244
  %v3251 = vadd.s32 %v3243, %v3249
  %vm3252 = vc.u32 %v3250, %v3246
  %v3253 = vsel %vm3252, 1, 0
  %v3254 = vadd.s32 %v3250, %v3246
  %v3255 = vadd.s32 %v3251, %v3253
  %v3256 = vadd.s32 %v3255, %v3245
  %v3257 = vadd.s32 %v3256, %v3247
  %v3258 = vmul.u32 %v3213, %v3204
  %v3259 = vadd.s32 %v3235, %v3254
  %vm3260 = vc.u32 %v3235, %v3254
  %v3261 = vadd.s32 %v3257, 1
  %v3262 = vsel %vm3260, %v3261, %v3257
  %v3263 = vadd.s32 %v3258, %v3262
  %v3264 = vadd.s32 %v3263, 536870912
  %v3265 = vshrl.u32 %v3264, 30
  %v3266 = vshll.u32 %v3265, 30
  %v3267 = vsub.s32 %v3263, %v3266
  %vm3268 = vcmp.lt.s32.totalorder %v3267, 0
  %v3269 = vsub.s32 0, %v3267
  %v3270 = vsel %vm3268, %v3269, %v3267
  %v3271 = vclz %v3270
  %v3272 = vsub.s32 %v3271, 2
  %vm3273 = vcmp.gt.s32.totalorder 0, %v3272
  %v3274 = vsel %vm3273, 0, %v3272
  %v3275 = vsub.s32 32, %v3274
  %v3276 = vshll.u32 %v3267, %v3274
  %v3277 = vshrl.u32 %v3259, %v3275
  %v3278 = vor.u32 %v3276, %v3277
  %v3279 = vsub.s32 4294967266, %v3274
  %v3280 = vadd.s32 %v3279, 127
  %v3281 = vshll.u32 %v3280, 23
  %v3282 = vor.u32 4788187, %v3281
  %v3283 = vand.u32 2147483647, %v3282
  %v3285 = vcvt.s32.f32 %v3278
  %v3286 = vmul.f32 %v3285, %v3283
  %v3287 = vxor.u32 %v3286, 2147483648
  %v3288 = vsel %vm3167, %v3287, %v3286
  %v3289 = vsub.s32 4, %v3265
  %v3290 = vsel %vm3167, %v3289, %v3265
  %v3291 = vsel %vm3166, %v512, %v3288
  %v3292 = vsel %vm3166, 0, %v3290
  %v3293 = vmul.f32 %v3291, %v3291
  %v3294 = vmul.f32 %v3293, -0.001358992
  %v3295 = vadd.f32 %v3294, 0.041655596
  %v3296 = vmul.f32 %v3293, %v3295
  %v3297 = vadd.f32 %v3296, -0.4999988
  %v3298 = vmul.f32 %v3293, %v3297
  %v3299 = vadd.f32 1.0, %v3298
  %v3300 = vmul.f32 %v3291, %v3291
  %v3301 = vmul.f32 %v3300, -0.00019511016
  %v3302 = vadd.f32 %v3301, 0.008332121
  %v3303 = vmul.f32 %v3300, %v3302
  %v3304 = vadd.f32 %v3303, -0.16666654
  %v3305 = vmul.f32 %v3300, %v3304
  %v3306 = vadd.f32 %v3305, 1.0
  %v3307 = vmul.f32 %v3306, %v3291
  %vm3308 = vweird.f32 %v512
  %v3309 = vadd.s32 %v3292, 3
  %v3310 = vand.u32 %v3309, 3
  %vm3311 = vcmp.lt.s32.totalorder %v3310, 2
  %vm3312 = vcmp.eq.s32.totalorder %v3310, 0
  %v3313 = vxor.u32 %v3307, 2147483648
  %v3314 = vsel %vm3312, %v3299, %v3313
  %vm3315 = vcmp.eq.s32.totalorder %v3310, 2
  %v3316 = vxor.u32 %v3299, 2147483648
  %v3317 = vsel %vm3315, %v3316, %v3307
  %v3318 = vsel %vm3311, %v3314, %v3317
  %v3319 = vsel %vm3308, nan, %v3318
  %v3320 = vand.u32 2147483647, %v513
  %vm3321 = vcmp.le.f32.partialorder %v3320, 0.7853982
  %vm3322 = vcmp.lt.s32.totalorder %v513, 0
  %v3323 = vand.u32 %v513, 2139095040
  %v3324 = vshrl.u32 %v3323, 23
  %v3325 = vsub.s32 %v3324, 127
  %v3326 = vand.u32 2147483647, %v513
  %v3327 = vand.u32 %v3326, 8388607
  %v3328 = vor.u32 %v3327, 8388608
  %v3329 = vsub.s32 0, %v3328
  %v3330 = vadd.s32 %v3325, 1
  %vm3331 = vcmp.gt.s32.totalorder %v3330, 0
  %v3332 = vsel %vm3331, %v3330, 0
  %v3333 = vshrl.u32 %v3332, 5
  %v3334 = vand.u32 %v3332, 31
  %v3335 = vsub.s32 32, %v3334
  %v3336 = vshrl.u32 683565275, %v3335
  %v3337 = vshll.u32 683565275, %v3334
  %v3338 = vshrl.u32 2475754826, %v3335
  %v3339 = vor.u32 %v3337, %v3338
  %v3340 = vshll.u32 2475754826, %v3334
  %v3341 = vshrl.u32 2131351028, %v3335
  %v3342 = vor.u32 %v3340, %v3341
  %v3343 = vshll.u32 2131351028, %v3334
  %v3344 = vshrl.u32 2102212464, %v3335
  %v3345 = vor.u32 %v3343, %v3344
  %v3346 = vshll.u32 2102212464, %v3334
  %v3347 = vshrl.u32 920167782, %v3335
  %v3348 = vor.u32 %v3346, %v3347
  %v3349 = vshll.u32 920167782, %v3334
  %v3350 = vshrl.u32 1326507024, %v3335
  %v3351 = vor.u32 %v3349, %v3350
  %vm3352 = vcmp.lt.s32.totalorder %v3333, 1
  %vm3353 = vcmp.lt.s32.totalorder %v3333, 2
  %vm3354 = vcmp.lt.s32.totalorder %v3333, 3
  %vm3355 = vcmp.lt.s32.totalorder %v3333, 4
  %v3356 = vsel %vm3352, %v3336, %v3339
  %v3357 = vsel %vm3355, %v3345, 2102212464
  %v3358 = vsel %vm3354, %v3342, %v3357
  %v3359 = vsel %vm3353, %v3356, %v3358
  %v3360 = vsel %vm3352, %v3339, %v3342
  %v3361 = vsel %vm3355, %v3348, 920167782
  %v3362 = vsel %vm3354, %v3345, %v3361
  %v3363 = vsel %vm3353, %v3360, %v3362
  %v3364 = vsel %vm3352, %v3342, %v3345
  %v3365 = vsel %vm3355, %v3351, 1326507024
  %v3366 = vsel %vm3354, %v3348, %v3365
  %v3367 = vsel %vm3353, %v3364, %v3366
  %v3368 = vshll.u32 %v3328, 8
  %v3369 = vand.u32 %v3368, 65535
  %v3370 = vshrl.u32 %v3368, 16
  %v3371 = vand.u32 %v3367, 65535
  %v3372 = vshrl.u32 %v3367, 16
  %v3373 = vmul.u32 %v3369, %v3371
  %v3374 = vmul.u32 %v3369, %v3372
  %v3375 = vmul.u32 %v3370, %v3371
  %v3376 = vmul.u32 %v3370, %v3372
  %v3377 = vshll.u32 %v3374, 16
  %v3378 = vshrl.u32 %v3374, 16
  %v3379 = vshll.u32 %v3375, 16
  %v3380 = vshrl.u32 %v3375, 16
  %vm3381 = vc.u32 %v3373, %v3377
  %v3382 = vsel %vm3381, 1, 0
  %v3383 = vadd.s32 %v3373, %v3377
  %v3384 = vadd.s32 %v3376, %v3382
  %vm3385 = vc.u32 %v3383, %v3379
  %v3386 = vsel %vm3385, 1, 0
  %v3387 = vadd.s32 %v3383, %v3379
  %v3388 = vadd.s32 %v3384, %v3386
  %v3389 = vadd.s32 %v3388, %v3378
  %v3390 = vadd.s32 %v3389, %v3380
  %v3391 = vand.u32 %v3368, 65535
  %v3392 = vshrl.u32 %v3368, 16
  %v3393 = vand.u32 %v3363, 65535
  %v3394 = vshrl.u32 %v3363, 16
  %v3395 = vmul.u32 %v3391, %v3393
  %v3396 = vmul.u32 %v3391, %v3394
  %v3397 = vmul.u32 %v3392, %v3393
  %v3398 = vmul.u32 %v3392, %v3394
  %v3399 = vshll.u32 %v3396, 16
  %v3400 = vshrl.u32 %v3396, 16
  %v3401 = vshll.u32 %v3397, 16
  %v3402 = vshrl.u32 %v3397, 16
  %vm3403 = vc.u32 %v3395, %v3399
  %v3404 = vsel %vm3403, 1, 0
  %v3405 = vadd.s32 %v3395, %v3399
  %v3406 = vadd.s32 %v3398, %v3404
  %vm3407 = vc.u32 %v3405, %v3401
  %v3408 = vsel %vm3407, 1, 0
  %v3409 = vadd.s32 %v3405, %v3401
  %v3410 = vadd.s32 %v3406, %v3408
  %v3411 = vadd.s32 %v3410, %v3400
  %v3412 = vadd.s32 %v3411, %v3402
  %v3413 = vmul.u32 %v3368, %v3359
  %v3414 = vadd.s32 %v3390, %v3409
  %vm3415 = vc.u32 %v3390, %v3409
  %v3416 = vadd.s32 %v3412, 1
  %v3417 = vsel %vm3415, %v3416, %v3412
  %v3418 = vadd.s32 %v3413, %v3417
  %v3419 = vadd.s32 %v3418, 536870912
  %v3420 = vshrl.u32 %v3419, 30
  %v3421 = vshll.u32 %v3420, 30
  %v3422 = vsub.s32 %v3418, %v3421
  %vm3423 = vcmp.lt.s32.totalorder %v3422, 0
  %v3424 = vsub.s32 0, %v3422
  %v3425 = vsel %vm3423, %v3424, %v3422
  %v3426 = vclz %v3425
  %v3427 = vsub.s32 %v3426, 2
  %vm3428 = vcmp.gt.s32.totalorder 0, %v3427
  %v3429 = vsel %vm3428, 0, %v3427
  %v3430 = vsub.s32 32, %v3429
  %v3431 = vshll.u32 %v3422, %v3429
  %v3432 = vshrl.u32 %v3414, %v3430
  %v3433 = vor.u32 %v3431, %v3432
  %v3434 = vsub.s32 4294967266, %v3429
  %v3435 = vadd.s32 %v3434, 127
  %v3436 = vshll.u32 %v3435, 23
  %v3437 = vor.u32 4788187, %v3436
  %v3438 = vand.u32 2147483647, %v3437
  %v3440 = vcvt.s32.f32 %v3433
  %v3441 = vmul.f32 %v3440, %v3438
  %v3442 = vxor.u32 %v3441, 2147483648
  %v3443 = vsel %vm3322, %v3442, %v3441
  %v3444 = vsub.s32 4, %v3420
  %v3445 = vsel %vm3322, %v3444, %v3420
  %v3446 = vsel %vm3321, %v513, %v3443
  %v3447 = vsel %vm3321, 0, %v3445
  %v3448 = vmul.f32 %v3446, %v3446
  %v3449 = vmul.f32 %v3448, -0.001358992
  %v3450 = vadd.f32 %v3449, 0.041655596
  %v3451 = vmul.f32 %v3448, %v3450
  %v3452 = vadd.f32 %v3451, -0.4999988
  %v3453 = vmul.f32 %v3448, %v3452
  %v3454 = vadd.f32 1.0, %v3453
  %v3455 = vmul.f32 %v3446, %v3446
  %v3456 = vmul.f32 %v3455, -0.00019511016
  %v3457 = vadd.f32 %v3456, 0.008332121
  %v3458 = vmul.f32 %v3455, %v3457
  %v3459 = vadd.f32 %v3458, -0.16666654
  %v3460 = vmul.f32 %v3455, %v3459
  %v3461 = vadd.f32 %v3460, 1.0
  %v3462 = vmul.f32 %v3461, %v3446
  %vm3463 = vweird.f32 %v513
  %v3464 = vadd.s32 %v3447, 3
  %v3465 = vand.u32 %v3464, 3
  %vm3466 = vcmp.lt.s32.totalorder %v3465, 2
  %vm3467 = vcmp.eq.s32.totalorder %v3465, 0
  %v3468 = vxor.u32 %v3462, 2147483648
  %v3469 = vsel %vm3467, %v3454, %v3468
  %vm3470 = vcmp.eq.s32.totalorder %v3465, 2
  %v3471 = vxor.u32 %v3454, 2147483648
  %v3472 = vsel %vm3470, %v3471, %v3462
  %v3473 = vsel %vm3466, %v3469, %v3472
  %v3474 = vsel %vm3463, nan, %v3473
  %v3475 = vand.u32 2147483647, %v514
  %vm3476 = vcmp.le.f32.partialorder %v3475, 0.7853982
  %vm3477 = vcmp.lt.s32.totalorder %v514, 0
  %v3478 = vand.u32 %v514, 2139095040
  %v3479 = vshrl.u32 %v3478, 23
  %v3480 = vsub.s32 %v3479, 127
  %v3481 = vand.u32 2147483647, %v514
  %v3482 = vand.u32 %v3481, 8388607
  %v3483 = vor.u32 %v3482, 8388608
  %v3484 = vsub.s32 0, %v3483
  %v3485 = vadd.s32 %v3480, 1
  %vm3486 = vcmp.gt.s32.totalorder %v3485, 0
  %v3487 = vsel %vm3486, %v3485, 0
  %v3488 = vshrl.u32 %v3487, 5
  %v3489 = vand.u32 %v3487, 31
  %v3490 = vsub.s32 32, %v3489
  %v3491 = vshrl.u32 683565275, %v3490
  %v3492 = vshll.u32 683565275, %v3489
  %v3493 = vshrl.u32 2475754826, %v3490
  %v3494 = vor.u32 %v3492, %v3493
  %v3495 = vshll.u32 2475754826, %v3489
  %v3496 = vshrl.u32 2131351028, %v3490
  %v3497 = vor.u32 %v3495, %v3496
  %v3498 = vshll.u32 2131351028, %v3489
  %v3499 = vshrl.u32 2102212464, %v3490
  %v3500 = vor.u32 %v3498, %v3499
  %v3501 = vshll.u32 2102212464, %v3489
  %v3502 = vshrl.u32 920167782, %v3490
  %v3503 = vor.u32 %v3501, %v3502
  %v3504 = vshll.u32 920167782, %v3489
  %v3505 = vshrl.u32 1326507024, %v3490
  %v3506 = vor.u32 %v3504, %v3505
  %vm3507 = vcmp.lt.s32.totalorder %v3488, 1
  %vm3508 = vcmp.lt.s32.totalorder %v3488, 2
  %vm3509 = vcmp.lt.s32.totalorder %v3488, 3
  %vm3510 = vcmp.lt.s32.totalorder %v3488, 4
  %v3511 = vsel %vm3507, %v3491, %v3494
  %v3512 = vsel %vm3510, %v3500, 2102212464
  %v3513 = vsel %vm3509, %v3497, %v3512
  %v3514 = vsel %vm3508, %v3511, %v3513
  %v3515 = vsel %vm3507, %v3494, %v3497
  %v3516 = vsel %vm3510, %v3503, 920167782
  %v3517 = vsel %vm3509, %v3500, %v3516
  %v3518 = vsel %vm3508, %v3515, %v3517
  %v3519 = vsel %vm3507, %v3497, %v3500
  %v3520 = vsel %vm3510, %v3506, 1326507024
  %v3521 = vsel %vm3509, %v3503, %v3520
  %v3522 = vsel %vm3508, %v3519, %v3521
  %v3523 = vshll.u32 %v3483, 8
  %v3524 = vand.u32 %v3523, 65535
  %v3525 = vshrl.u32 %v3523, 16
  %v3526 = vand.u32 %v3522, 65535
  %v3527 = vshrl.u32 %v3522, 16
  %v3528 = vmul.u32 %v3524, %v3526
  %v3529 = vmul.u32 %v3524, %v3527
  %v3530 = vmul.u32 %v3525, %v3526
  %v3531 = vmul.u32 %v3525, %v3527
  %v3532 = vshll.u32 %v3529, 16
  %v3533 = vshrl.u32 %v3529, 16
  %v3534 = vshll.u32 %v3530, 16
  %v3535 = vshrl.u32 %v3530, 16
  %vm3536 = vc.u32 %v3528, %v3532
  %v3537 = vsel %vm3536, 1, 0
  %v3538 = vadd.s32 %v3528, %v3532
  %v3539 = vadd.s32 %v3531, %v3537
  %vm3540 = vc.u32 %v3538, %v3534
  %v3541 = vsel %vm3540, 1, 0
  %v3542 = vadd.s32 %v3538, %v3534
  %v3543 = vadd.s32 %v3539, %v3541
  %v3544 = vadd.s32 %v3543, %v3533
  %v3545 = vadd.s32 %v3544, %v3535
  %v3546 = vand.u32 %v3523, 65535
  %v3547 = vshrl.u32 %v3523, 16
  %v3548 = vand.u32 %v3518, 65535
  %v3549 = vshrl.u32 %v3518, 16
  %v3550 = vmul.u32 %v3546, %v3548
  %v3551 = vmul.u32 %v3546, %v3549
  %v3552 = vmul.u32 %v3547, %v3548
  %v3553 = vmul.u32 %v3547, %v3549
  %v3554 = vshll.u32 %v3551, 16
  %v3555 = vshrl.u32 %v3551, 16
  %v3556 = vshll.u32 %v3552, 16
  %v3557 = vshrl.u32 %v3552, 16
  %vm3558 = vc.u32 %v3550, %v3554
  %v3559 = vsel %vm3558, 1, 0
  %v3560 = vadd.s32 %v3550, %v3554
  %v3561 = vadd.s32 %v3553, %v3559
  %vm3562 = vc.u32 %v3560, %v3556
  %v3563 = vsel %vm3562, 1, 0
  %v3564 = vadd.s32 %v3560, %v3556
  %v3565 = vadd.s32 %v3561, %v3563
  %v3566 = vadd.s32 %v3565, %v3555
  %v3567 = vadd.s32 %v3566, %v3557
  %v3568 = vmul.u32 %v3523, %v3514
  %v3569 = vadd.s32 %v3545, %v3564
  %vm3570 = vc.u32 %v3545, %v3564
  %v3571 = vadd.s32 %v3567, 1
  %v3572 = vsel %vm3570, %v3571, %v3567
  %v3573 = vadd.s32 %v3568, %v3572
  %v3574 = vadd.s32 %v3573, 536870912
  %v3575 = vshrl.u32 %v3574, 30
  %v3576 = vshll.u32 %v3575, 30
  %v3577 = vsub.s32 %v3573, %v3576
  %vm3578 = vcmp.lt.s32.totalorder %v3577, 0
  %v3579 = vsub.s32 0, %v3577
  %v3580 = vsel %vm3578, %v3579, %v3577
  %v3581 = vclz %v3580
  %v3582 = vsub.s32 %v3581, 2
  %vm3583 = vcmp.gt.s32.totalorder 0, %v3582
  %v3584 = vsel %vm3583, 0, %v3582
  %v3585 = vsub.s32 32, %v3584
  %v3586 = vshll.u32 %v3577, %v3584
  %v3587 = vshrl.u32 %v3569, %v3585
  %v3588 = vor.u32 %v3586, %v3587
  %v3589 = vsub.s32 4294967266, %v3584
  %v3590 = vadd.s32 %v3589, 127
  %v3591 = vshll.u32 %v3590, 23
  %v3592 = vor.u32 4788187, %v3591
  %v3593 = vand.u32 2147483647, %v3592
  %v3595 = vcvt.s32.f32 %v3588
  %v3596 = vmul.f32 %v3595, %v3593
  %v3597 = vxor.u32 %v3596, 2147483648
  %v3598 = vsel %vm3477, %v3597, %v3596
  %v3599 = vsub.s32 4, %v3575
  %v3600 = vsel %vm3477, %v3599, %v3575
  %v3601 = vsel %vm3476, %v514, %v3598
  %v3602 = vsel %vm3476, 0, %v3600
  %v3603 = vmul.f32 %v3601, %v3601
  %v3604 = vmul.f32 %v3603, -0.001358992
  %v3605 = vadd.f32 %v3604, 0.041655596
  %v3606 = vmul.f32 %v3603, %v3605
  %v3607 = vadd.f32 %v3606, -0.4999988
  %v3608 = vmul.f32 %v3603, %v3607
  %v3609 = vadd.f32 1.0, %v3608
  %v3610 = vmul.f32 %v3601, %v3601
  %v3611 = vmul.f32 %v3610, -0.00019511016
  %v3612 = vadd.f32 %v3611, 0.008332121
  %v3613 = vmul.f32 %v3610, %v3612
  %v3614 = vadd.f32 %v3613, -0.16666654
  %v3615 = vmul.f32 %v3610, %v3614
  %v3616 = vadd.f32 %v3615, 1.0
  %v3617 = vmul.f32 %v3616, %v3601
  %vm3618 = vweird.f32 %v514
  %v3619 = vadd.s32 %v3602, 3
  %v3620 = vand.u32 %v3619, 3
  %vm3621 = vcmp.lt.s32.totalorder %v3620, 2
  %vm3622 = vcmp.eq.s32.totalorder %v3620, 0
  %v3623 = vxor.u32 %v3617, 2147483648
  %v3624 = vsel %vm3622, %v3609, %v3623
  %vm3625 = vcmp.eq.s32.totalorder %v3620, 2
  %v3626 = vxor.u32 %v3609, 2147483648
  %v3627 = vsel %vm3625, %v3626, %v3617
  %v3628 = vsel %vm3621, %v3624, %v3627
  %v3629 = vsel %vm3618, nan, %v3628
  %v3630 = vand.u32 2147483647, %v515
  %vm3631 = vcmp.le.f32.partialorder %v3630, 0.7853982
  %vm3632 = vcmp.lt.s32.totalorder %v515, 0
  %v3633 = vand.u32 %v515, 2139095040
  %v3634 = vshrl.u32 %v3633, 23
  %v3635 = vsub.s32 %v3634, 127
  %v3636 = vand.u32 2147483647, %v515
  %v3637 = vand.u32 %v3636, 8388607
  %v3638 = vor.u32 %v3637, 8388608
  %v3639 = vsub.s32 0, %v3638
  %v3640 = vadd.s32 %v3635, 1
  %vm3641 = vcmp.gt.s32.totalorder %v3640, 0
  %v3642 = vsel %vm3641, %v3640, 0
  %v3643 = vshrl.u32 %v3642, 5
  %v3644 = vand.u32 %v3642, 31
  %v3645 = vsub.s32 32, %v3644
  %v3646 = vshrl.u32 683565275, %v3645
  %v3647 = vshll.u32 683565275, %v3644
  %v3648 = vshrl.u32 2475754826, %v3645
  %v3649 = vor.u32 %v3647, %v3648
  %v3650 = vshll.u32 2475754826, %v3644
  %v3651 = vshrl.u32 2131351028, %v3645
  %v3652 = vor.u32 %v3650, %v3651
  %v3653 = vshll.u32 2131351028, %v3644
  %v3654 = vshrl.u32 2102212464, %v3645
  %v3655 = vor.u32 %v3653, %v3654
  %v3656 = vshll.u32 2102212464, %v3644
  %v3657 = vshrl.u32 920167782, %v3645
  %v3658 = vor.u32 %v3656, %v3657
  %v3659 = vshll.u32 920167782, %v3644
  %v3660 = vshrl.u32 1326507024, %v3645
  %v3661 = vor.u32 %v3659, %v3660
  %vm3662 = vcmp.lt.s32.totalorder %v3643, 1
  %vm3663 = vcmp.lt.s32.totalorder %v3643, 2
  %vm3664 = vcmp.lt.s32.totalorder %v3643, 3
  %vm3665 = vcmp.lt.s32.totalorder %v3643, 4
  %v3666 = vsel %vm3662, %v3646, %v3649
  %v3667 = vsel %vm3665, %v3655, 2102212464
  %v3668 = vsel %vm3664, %v3652, %v3667
  %v3669 = vsel %vm3663, %v3666, %v3668
  %v3670 = vsel %vm3662, %v3649, %v3652
  %v3671 = vsel %vm3665, %v3658, 920167782
  %v3672 = vsel %vm3664, %v3655, %v3671
  %v3673 = vsel %vm3663, %v3670, %v3672
  %v3674 = vsel %vm3662, %v3652, %v3655
  %v3675 = vsel %vm3665, %v3661, 1326507024
  %v3676 = vsel %vm3664, %v3658, %v3675
  %v3677 = vsel %vm3663, %v3674, %v3676
  %v3678 = vshll.u32 %v3638, 8
  %v3679 = vand.u32 %v3678, 65535
  %v3680 = vshrl.u32 %v3678, 16
  %v3681 = vand.u32 %v3677, 65535
  %v3682 = vshrl.u32 %v3677, 16
  %v3683 = vmul.u32 %v3679, %v3681
  %v3684 = vmul.u32 %v3679, %v3682
  %v3685 = vmul.u32 %v3680, %v3681
  %v3686 = vmul.u32 %v3680, %v3682
  %v3687 = vshll.u32 %v3684, 16
  %v3688 = vshrl.u32 %v3684, 16
  %v3689 = vshll.u32 %v3685, 16
  %v3690 = vshrl.u32 %v3685, 16
  %vm3691 = vc.u32 %v3683, %v3687
  %v3692 = vsel %vm3691, 1, 0
  %v3693 = vadd.s32 %v3683, %v3687
  %v3694 = vadd.s32 %v3686, %v3692
  %vm3695 = vc.u32 %v3693, %v3689
  %v3696 = vsel %vm3695, 1, 0
  %v3697 = vadd.s32 %v3693, %v3689
  %v3698 = vadd.s32 %v3694, %v3696
  %v3699 = vadd.s32 %v3698, %v3688
  %v3700 = vadd.s32 %v3699, %v3690
  %v3701 = vand.u32 %v3678, 65535
  %v3702 = vshrl.u32 %v3678, 16
  %v3703 = vand.u32 %v3673, 65535
  %v3704 = vshrl.u32 %v3673, 16
  %v3705 = vmul.u32 %v3701, %v3703
  %v3706 = vmul.u32 %v3701, %v3704
  %v3707 = vmul.u32 %v3702, %v3703
  %v3708 = vmul.u32 %v3702, %v3704
  %v3709 = vshll.u32 %v3706, 16
  %v3710 = vshrl.u32 %v3706, 16
  %v3711 = vshll.u32 %v3707, 16
  %v3712 = vshrl.u32 %v3707, 16
  %vm3713 = vc.u32 %v3705, %v3709
  %v3714 = vsel %vm3713, 1, 0
  %v3715 = vadd.s32 %v3705, %v3709
  %v3716 = vadd.s32 %v3708, %v3714
  %vm3717 = vc.u32 %v3715, %v3711
  %v3718 = vsel %vm3717, 1, 0
  %v3719 = vadd.s32 %v3715, %v3711
  %v3720 = vadd.s32 %v3716, %v3718
  %v3721 = vadd.s32 %v3720, %v3710
  %v3722 = vadd.s32 %v3721, %v3712
  %v3723 = vmul.u32 %v3678, %v3669
  %v3724 = vadd.s32 %v3700, %v3719
  %vm3725 = vc.u32 %v3700, %v3719
  %v3726 = vadd.s32 %v3722, 1
  %v3727 = vsel %vm3725, %v3726, %v3722
  %v3728 = vadd.s32 %v3723, %v3727
  %v3729 = vadd.s32 %v3728, 536870912
  %v3730 = vshrl.u32 %v3729, 30
  %v3731 = vshll.u32 %v3730, 30
  %v3732 = vsub.s32 %v3728, %v3731
  %vm3733 = vcmp.lt.s32.totalorder %v3732, 0
  %v3734 = vsub.s32 0, %v3732
  %v3735 = vsel %vm3733, %v3734, %v3732
  %v3736 = vclz %v3735
  %v3737 = vsub.s32 %v3736, 2
  %vm3738 = vcmp.gt.s32.totalorder 0, %v3737
  %v3739 = vsel %vm3738, 0, %v3737
  %v3740 = vsub.s32 32, %v3739
  %v3741 = vshll.u32 %v3732, %v3739
  %v3742 = vshrl.u32 %v3724, %v3740
  %v3743 = vor.u32 %v3741, %v3742
  %v3744 = vsub.s32 4294967266, %v3739
  %v3745 = vadd.s32 %v3744, 127
  %v3746 = vshll.u32 %v3745, 23
  %v3747 = vor.u32 4788187, %v3746
  %v3748 = vand.u32 2147483647, %v3747
  %v3750 = vcvt.s32.f32 %v3743
  %v3751 = vmul.f32 %v3750, %v3748
  %v3752 = vxor.u32 %v3751, 2147483648
  %v3753 = vsel %vm3632, %v3752, %v3751
  %v3754 = vsub.s32 4, %v3730
  %v3755 = vsel %vm3632, %v3754, %v3730
  %v3756 = vsel %vm3631, %v515, %v3753
  %v3757 = vsel %vm3631, 0, %v3755
  %v3758 = vmul.f32 %v3756, %v3756
  %v3759 = vmul.f32 %v3758, -0.001358992
  %v3760 = vadd.f32 %v3759, 0.041655596
  %v3761 = vmul.f32 %v3758, %v3760
  %v3762 = vadd.f32 %v3761, -0.4999988
  %v3763 = vmul.f32 %v3758, %v3762
  %v3764 = vadd.f32 1.0, %v3763
  %v3765 = vmul.f32 %v3756, %v3756
  %v3766 = vmul.f32 %v3765, -0.00019511016
  %v3767 = vadd.f32 %v3766, 0.008332121
  %v3768 = vmul.f32 %v3765, %v3767
  %v3769 = vadd.f32 %v3768, -0.16666654
  %v3770 = vmul.f32 %v3765, %v3769
  %v3771 = vadd.f32 %v3770, 1.0
  %v3772 = vmul.f32 %v3771, %v3756
  %vm3773 = vweird.f32 %v515
  %v3774 = vadd.s32 %v3757, 3
  %v3775 = vand.u32 %v3774, 3
  %vm3776 = vcmp.lt.s32.totalorder %v3775, 2
  %vm3777 = vcmp.eq.s32.totalorder %v3775, 0
  %v3778 = vxor.u32 %v3772, 2147483648
  %v3779 = vsel %vm3777, %v3764, %v3778
  %vm3780 = vcmp.eq.s32.totalorder %v3775, 2
  %v3781 = vxor.u32 %v3764, 2147483648
  %v3782 = vsel %vm3780, %v3781, %v3772
  %v3783 = vsel %vm3776, %v3779, %v3782
  %v3784 = vsel %vm3773, nan, %v3783
  %v3785 = vand.u32 2147483647, %v516
  %vm3786 = vcmp.le.f32.partialorder %v3785, 0.7853982
  %vm3787 = vcmp.lt.s32.totalorder %v516, 0
  %v3788 = vand.u32 %v516, 2139095040
  %v3789 = vshrl.u32 %v3788, 23
  %v3790 = vsub.s32 %v3789, 127
  %v3791 = vand.u32 2147483647, %v516
  %v3792 = vand.u32 %v3791, 8388607
  %v3793 = vor.u32 %v3792, 8388608
  %v3794 = vsub.s32 0, %v3793
  %v3795 = vadd.s32 %v3790, 1
  %vm3796 = vcmp.gt.s32.totalorder %v3795, 0
  %v3797 = vsel %vm3796, %v3795, 0
  %v3798 = vshrl.u32 %v3797, 5
  %v3799 = vand.u32 %v3797, 31
  %v3800 = vsub.s32 32, %v3799
  %v3801 = vshrl.u32 683565275, %v3800
  %v3802 = vshll.u32 683565275, %v3799
  %v3803 = vshrl.u32 2475754826, %v3800
  %v3804 = vor.u32 %v3802, %v3803
  %v3805 = vshll.u32 2475754826, %v3799
  %v3806 = vshrl.u32 2131351028, %v3800
  %v3807 = vor.u32 %v3805, %v3806
  %v3808 = vshll.u32 2131351028, %v3799
  %v3809 = vshrl.u32 2102212464, %v3800
  %v3810 = vor.u32 %v3808, %v3809
  %v3811 = vshll.u32 2102212464, %v3799
  %v3812 = vshrl.u32 920167782, %v3800
  %v3813 = vor.u32 %v3811, %v3812
  %v3814 = vshll.u32 920167782, %v3799
  %v3815 = vshrl.u32 1326507024, %v3800
  %v3816 = vor.u32 %v3814, %v3815
  %vm3817 = vcmp.lt.s32.totalorder %v3798, 1
  %vm3818 = vcmp.lt.s32.totalorder %v3798, 2
  %vm3819 = vcmp.lt.s32.totalorder %v3798, 3
  %vm3820 = vcmp.lt.s32.totalorder %v3798, 4
  %v3821 = vsel %vm3817, %v3801, %v3804
  %v3822 = vsel %vm3820, %v3810, 2102212464
  %v3823 = vsel %vm3819, %v3807, %v3822
  %v3824 = vsel %vm3818, %v3821, %v3823
  %v3825 = vsel %vm3817, %v3804, %v3807
  %v3826 = vsel %vm3820, %v3813, 920167782
  %v3827 = vsel %vm3819, %v3810, %v3826
  %v3828 = vsel %vm3818, %v3825, %v3827
  %v3829 = vsel %vm3817, %v3807, %v3810
  %v3830 = vsel %vm3820, %v3816, 1326507024
  %v3831 = vsel %vm3819, %v3813, %v3830
  %v3832 = vsel %vm3818, %v3829, %v3831
  %v3833 = vshll.u32 %v3793, 8
  %v3834 = vand.u32 %v3833, 65535
  %v3835 = vshrl.u32 %v3833, 16
  %v3836 = vand.u32 %v3832, 65535
  %v3837 = vshrl.u32 %v3832, 16
  %v3838 = vmul.u32 %v3834, %v3836
  %v3839 = vmul.u32 %v3834, %v3837
  %v3840 = vmul.u32 %v3835, %v3836
  %v3841 = vmul.u32 %v3835, %v3837
  %v3842 = vshll.u32 %v3839, 16
  %v3843 = vshrl.u32 %v3839, 16
  %v3844 = vshll.u32 %v3840, 16
  %v3845 = vshrl.u32 %v3840, 16
  %vm3846 = vc.u32 %v3838, %v3842
  %v3847 = vsel %vm3846, 1, 0
  %v3848 = vadd.s32 %v3838, %v3842
  %v3849 = vadd.s32 %v3841, %v3847
  %vm3850 = vc.u32 %v3848, %v3844
  %v3851 = vsel %vm3850, 1, 0
  %v3852 = vadd.s32 %v3848, %v3844
  %v3853 = vadd.s32 %v3849, %v3851
  %v3854 = vadd.s32 %v3853, %v3843
  %v3855 = vadd.s32 %v3854, %v3845
  %v3856 = vand.u32 %v3833, 65535
  %v3857 = vshrl.u32 %v3833, 16
  %v3858 = vand.u32 %v3828, 65535
  %v3859 = vshrl.u32 %v3828, 16
  %v3860 = vmul.u32 %v3856, %v3858
  %v3861 = vmul.u32 %v3856, %v3859
  %v3862 = vmul.u32 %v3857, %v3858
  %v3863 = vmul.u32 %v3857, %v3859
  %v3864 = vshll.u32 %v3861, 16
  %v3865 = vshrl.u32 %v3861, 16
  %v3866 = vshll.u32 %v3862, 16
  %v3867 = vshrl.u32 %v3862, 16
  %vm3868 = vc.u32 %v3860, %v3864
  %v3869 = vsel %vm3868, 1, 0
  %v3870 = vadd.s32 %v3860, %v3864
  %v3871 = vadd.s32 %v3863, %v3869
  %vm3872 = vc.u32 %v3870, %v3866
  %v3873 = vsel %vm3872, 1, 0
  %v3874 = vadd.s32 %v3870, %v3866
  %v3875 = vadd.s32 %v3871, %v3873
  %v3876 = vadd.s32 %v3875, %v3865
  %v3877 = vadd.s32 %v3876, %v3867
  %v3878 = vmul.u32 %v3833, %v3824
  %v3879 = vadd.s32 %v3855, %v3874
  %vm3880 = vc.u32 %v3855, %v3874
  %v3881 = vadd.s32 %v3877, 1
  %v3882 = vsel %vm3880, %v3881, %v3877
  %v3883 = vadd.s32 %v3878, %v3882
  %v3884 = vadd.s32 %v3883, 536870912
  %v3885 = vshrl.u32 %v3884, 30
  %v3886 = vshll.u32 %v3885, 30
  %v3887 = vsub.s32 %v3883, %v3886
  %vm3888 = vcmp.lt.s32.totalorder %v3887, 0
  %v3889 = vsub.s32 0, %v3887
  %v3890 = vsel %vm3888, %v3889, %v3887
  %v3891 = vclz %v3890
  %v3892 = vsub.s32 %v3891, 2
  %vm3893 = vcmp.gt.s32.totalorder 0, %v3892
  %v3894 = vsel %vm3893, 0, %v3892
  %v3895 = vsub.s32 32, %v3894
  %v3896 = vshll.u32 %v3887, %v3894
  %v3897 = vshrl.u32 %v3879, %v3895
  %v3898 = vor.u32 %v3896, %v3897
  %v3899 = vsub.s32 4294967266, %v3894
  %v3900 = vadd.s32 %v3899, 127
  %v3901 = vshll.u32 %v3900, 23
  %v3902 = vor.u32 4788187, %v3901
  %v3903 = vand.u32 2147483647, %v3902
  %v3905 = vcvt.s32.f32 %v3898
  %v3906 = vmul.f32 %v3905, %v3903
  %v3907 = vxor.u32 %v3906, 2147483648
  %v3908 = vsel %vm3787, %v3907, %v3906
  %v3909 = vsub.s32 4, %v3885
  %v3910 = vsel %vm3787, %v3909, %v3885
  %v3911 = vsel %vm3786, %v516, %v3908
  %v3912 = vsel %vm3786, 0, %v3910
  %v3913 = vmul.f32 %v3911, %v3911
  %v3914 = vmul.f32 %v3913, -0.001358992
  %v3915 = vadd.f32 %v3914, 0.041655596
  %v3916 = vmul.f32 %v3913, %v3915
  %v3917 = vadd.f32 %v3916, -0.4999988
  %v3918 = vmul.f32 %v3913, %v3917
  %v3919 = vadd.f32 1.0, %v3918
  %v3920 = vmul.f32 %v3911, %v3911
  %v3921 = vmul.f32 %v3920, -0.00019511016
  %v3922 = vadd.f32 %v3921, 0.008332121
  %v3923 = vmul.f32 %v3920, %v3922
  %v3924 = vadd.f32 %v3923, -0.16666654
  %v3925 = vmul.f32 %v3920, %v3924
  %v3926 = vadd.f32 %v3925, 1.0
  %v3927 = vmul.f32 %v3926, %v3911
  %vm3928 = vweird.f32 %v516
  %v3929 = vadd.s32 %v3912, 3
  %v3930 = vand.u32 %v3929, 3
  %vm3931 = vcmp.lt.s32.totalorder %v3930, 2
  %vm3932 = vcmp.eq.s32.totalorder %v3930, 0
  %v3933 = vxor.u32 %v3927, 2147483648
  %v3934 = vsel %vm3932, %v3919, %v3933
  %vm3935 = vcmp.eq.s32.totalorder %v3930, 2
  %v3936 = vxor.u32 %v3919, 2147483648
  %v3937 = vsel %vm3935, %v3936, %v3927
  %v3938 = vsel %vm3931, %v3934, %v3937
  %v3939 = vsel %vm3928, nan, %v3938
  %v3940 = vand.u32 2147483647, %v517
  %vm3941 = vcmp.le.f32.partialorder %v3940, 0.7853982
  %vm3942 = vcmp.lt.s32.totalorder %v517, 0
  %v3943 = vand.u32 %v517, 2139095040
  %v3944 = vshrl.u32 %v3943, 23
  %v3945 = vsub.s32 %v3944, 127
  %v3946 = vand.u32 2147483647, %v517
  %v3947 = vand.u32 %v3946, 8388607
  %v3948 = vor.u32 %v3947, 8388608
  %v3949 = vsub.s32 0, %v3948
  %v3950 = vadd.s32 %v3945, 1
  %vm3951 = vcmp.gt.s32.totalorder %v3950, 0
  %v3952 = vsel %vm3951, %v3950, 0
  %v3953 = vshrl.u32 %v3952, 5
  %v3954 = vand.u32 %v3952, 31
  %v3955 = vsub.s32 32, %v3954
  %v3956 = vshrl.u32 683565275, %v3955
  %v3957 = vshll.u32 683565275, %v3954
  %v3958 = vshrl.u32 2475754826, %v3955
  %v3959 = vor.u32 %v3957, %v3958
  %v3960 = vshll.u32 2475754826, %v3954
  %v3961 = vshrl.u32 2131351028, %v3955
  %v3962 = vor.u32 %v3960, %v3961
  %v3963 = vshll.u32 2131351028, %v3954
  %v3964 = vshrl.u32 2102212464, %v3955
  %v3965 = vor.u32 %v3963, %v3964
  %v3966 = vshll.u32 2102212464, %v3954
  %v3967 = vshrl.u32 920167782, %v3955
  %v3968 = vor.u32 %v3966, %v3967
  %v3969 = vshll.u32 920167782, %v3954
  %v3970 = vshrl.u32 1326507024, %v3955
  %v3971 = vor.u32 %v3969, %v3970
  %vm3972 = vcmp.lt.s32.totalorder %v3953, 1
  %vm3973 = vcmp.lt.s32.totalorder %v3953, 2
  %vm3974 = vcmp.lt.s32.totalorder %v3953, 3
  %vm3975 = vcmp.lt.s32.totalorder %v3953, 4
  %v3976 = vsel %vm3972, %v3956, %v3959
  %v3977 = vsel %vm3975, %v3965, 2102212464
  %v3978 = vsel %vm3974, %v3962, %v3977
  %v3979 = vsel %vm3973, %v3976, %v3978
  %v3980 = vsel %vm3972, %v3959, %v3962
  %v3981 = vsel %vm3975, %v3968, 920167782
  %v3982 = vsel %vm3974, %v3965, %v3981
  %v3983 = vsel %vm3973, %v3980, %v3982
  %v3984 = vsel %vm3972, %v3962, %v3965
  %v3985 = vsel %vm3975, %v3971, 1326507024
  %v3986 = vsel %vm3974, %v3968, %v3985
  %v3987 = vsel %vm3973, %v3984, %v3986
  %v3988 = vshll.u32 %v3948, 8
  %v3989 = vand.u32 %v3988, 65535
  %v3990 = vshrl.u32 %v3988, 16
  %v3991 = vand.u32 %v3987, 65535
  %v3992 = vshrl.u32 %v3987, 16
  %v3993 = vmul.u32 %v3989, %v3991
  %v3994 = vmul.u32 %v3989, %v3992
  %v3995 = vmul.u32 %v3990, %v3991
  %v3996 = vmul.u32 %v3990, %v3992
  %v3997 = vshll.u32 %v3994, 16
  %v3998 = vshrl.u32 %v3994, 16
  %v3999 = vshll.u32 %v3995, 16
  %v4000 = vshrl.u32 %v3995, 16
  %vm4001 = vc.u32 %v3993, %v3997
  %v4002 = vsel %vm4001, 1, 0
  %v4003 = vadd.s32 %v3993, %v3997
  %v4004 = vadd.s32 %v3996, %v4002
  %vm4005 = vc.u32 %v4003, %v3999
  %v4006 = vsel %vm4005, 1, 0
  %v4007 = vadd.s32 %v4003, %v3999
  %v4008 = vadd.s32 %v4004, %v4006
  %v4009 = vadd.s32 %v4008, %v3998
  %v4010 = vadd.s32 %v4009, %v4000
  %v4011 = vand.u32 %v3988, 65535
  %v4012 = vshrl.u32 %v3988, 16
  %v4013 = vand.u32 %v3983, 65535
  %v4014 = vshrl.u32 %v3983, 16
  %v4015 = vmul.u32 %v4011, %v4013
  %v4016 = vmul.u32 %v4011, %v4014
  %v4017 = vmul.u32 %v4012, %v4013
  %v4018 = vmul.u32 %v4012, %v4014
  %v4019 = vshll.u32 %v4016, 16
  %v4020 = vshrl.u32 %v4016, 16
  %v4021 = vshll.u32 %v4017, 16
  %v4022 = vshrl.u32 %v4017, 16
  %vm4023 = vc.u32 %v4015, %v4019
  %v4024 = vsel %vm4023, 1, 0
  %v4025 = vadd.s32 %v4015, %v4019
  %v4026 = vadd.s32 %v4018, %v4024
  %vm4027 = vc.u32 %v4025, %v4021
  %v4028 = vsel %vm4027, 1, 0
  %v4029 = vadd.s32 %v4025, %v4021
  %v4030 = vadd.s32 %v4026, %v4028
  %v4031 = vadd.s32 %v4030, %v4020
  %v4032 = vadd.s32 %v4031, %v4022
  %v4033 = vmul.u32 %v3988, %v3979
  %v4034 = vadd.s32 %v4010, %v4029
  %vm4035 = vc.u32 %v4010, %v4029
  %v4036 = vadd.s32 %v4032, 1
  %v4037 = vsel %vm4035, %v4036, %v4032
  %v4038 = vadd.s32 %v4033, %v4037
  %v4039 = vadd.s32 %v4038, 536870912
  %v4040 = vshrl.u32 %v4039, 30
  %v4041 = vshll.u32 %v4040, 30
  %v4042 = vsub.s32 %v4038, %v4041
  %vm4043 = vcmp.lt.s32.totalorder %v4042, 0
  %v4044 = vsub.s32 0, %v4042
  %v4045 = vsel %vm4043, %v4044, %v4042
  %v4046 = vclz %v4045
  %v4047 = vsub.s32 %v4046, 2
  %vm4048 = vcmp.gt.s32.totalorder 0, %v4047
  %v4049 = vsel %vm4048, 0, %v4047
  %v4050 = vsub.s32 32, %v4049
  %v4051 = vshll.u32 %v4042, %v4049
  %v4052 = vshrl.u32 %v4034, %v4050
  %v4053 = vor.u32 %v4051, %v4052
  %v4054 = vsub.s32 4294967266, %v4049
  %v4055 = vadd.s32 %v4054, 127
  %v4056 = vshll.u32 %v4055, 23
  %v4057 = vor.u32 4788187, %v4056
  %v4058 = vand.u32 2147483647, %v4057
  %v4060 = vcvt.s32.f32 %v4053
  %v4061 = vmul.f32 %v4060, %v4058
  %v4062 = vxor.u32 %v4061, 2147483648
  %v4063 = vsel %vm3942, %v4062, %v4061
  %v4064 = vsub.s32 4, %v4040
  %v4065 = vsel %vm3942, %v4064, %v4040
  %v4066 = vsel %vm3941, %v517, %v4063
  %v4067 = vsel %vm3941, 0, %v4065
  %v4068 = vmul.f32 %v4066, %v4066
  %v4069 = vmul.f32 %v4068, -0.001358992
  %v4070 = vadd.f32 %v4069, 0.041655596
  %v4071 = vmul.f32 %v4068, %v4070
  %v4072 = vadd.f32 %v4071, -0.4999988
  %v4073 = vmul.f32 %v4068, %v4072
  %v4074 = vadd.f32 1.0, %v4073
  %v4075 = vmul.f32 %v4066, %v4066
  %v4076 = vmul.f32 %v4075, -0.00019511016
  %v4077 = vadd.f32 %v4076, 0.008332121
  %v4078 = vmul.f32 %v4075, %v4077
  %v4079 = vadd.f32 %v4078, -0.16666654
  %v4080 = vmul.f32 %v4075, %v4079
  %v4081 = vadd.f32 %v4080, 1.0
  %v4082 = vmul.f32 %v4081, %v4066
  %vm4083 = vweird.f32 %v517
  %v4084 = vadd.s32 %v4067, 3
  %v4085 = vand.u32 %v4084, 3
  %vm4086 = vcmp.lt.s32.totalorder %v4085, 2
  %vm4087 = vcmp.eq.s32.totalorder %v4085, 0
  %v4088 = vxor.u32 %v4082, 2147483648
  %v4089 = vsel %vm4087, %v4074, %v4088
  %vm4090 = vcmp.eq.s32.totalorder %v4085, 2
  %v4091 = vxor.u32 %v4074, 2147483648
  %v4092 = vsel %vm4090, %v4091, %v4082
  %v4093 = vsel %vm4086, %v4089, %v4092
  %v4094 = vsel %vm4083, nan, %v4093
  %v4095 = vand.u32 2147483647, %v518
  %vm4096 = vcmp.le.f32.partialorder %v4095, 0.7853982
  %vm4097 = vcmp.lt.s32.totalorder %v518, 0
  %v4098 = vand.u32 %v518, 2139095040
  %v4099 = vshrl.u32 %v4098, 23
  %v4100 = vsub.s32 %v4099, 127
  %v4101 = vand.u32 2147483647, %v518
  %v4102 = vand.u32 %v4101, 8388607
  %v4103 = vor.u32 %v4102, 8388608
  %v4104 = vsub.s32 0, %v4103
  %v4105 = vadd.s32 %v4100, 1
  %vm4106 = vcmp.gt.s32.totalorder %v4105, 0
  %v4107 = vsel %vm4106, %v4105, 0
  %v4108 = vshrl.u32 %v4107, 5
  %v4109 = vand.u32 %v4107, 31
  %v4110 = vsub.s32 32, %v4109
  %v4111 = vshrl.u32 683565275, %v4110
  %v4112 = vshll.u32 683565275, %v4109
  %v4113 = vshrl.u32 2475754826, %v4110
  %v4114 = vor.u32 %v4112, %v4113
  %v4115 = vshll.u32 2475754826, %v4109
  %v4116 = vshrl.u32 2131351028, %v4110
  %v4117 = vor.u32 %v4115, %v4116
  %v4118 = vshll.u32 2131351028, %v4109
  %v4119 = vshrl.u32 2102212464, %v4110
  %v4120 = vor.u32 %v4118, %v4119
  %v4121 = vshll.u32 2102212464, %v4109
  %v4122 = vshrl.u32 920167782, %v4110
  %v4123 = vor.u32 %v4121, %v4122
  %v4124 = vshll.u32 920167782, %v4109
  %v4125 = vshrl.u32 1326507024, %v4110
  %v4126 = vor.u32 %v4124, %v4125
  %vm4127 = vcmp.lt.s32.totalorder %v4108, 1
  %vm4128 = vcmp.lt.s32.totalorder %v4108, 2
  %vm4129 = vcmp.lt.s32.totalorder %v4108, 3
  %vm4130 = vcmp.lt.s32.totalorder %v4108, 4
  %v4131 = vsel %vm4127, %v4111, %v4114
  %v4132 = vsel %vm4130, %v4120, 2102212464
  %v4133 = vsel %vm4129, %v4117, %v4132
  %v4134 = vsel %vm4128, %v4131, %v4133
  %v4135 = vsel %vm4127, %v4114, %v4117
  %v4136 = vsel %vm4130, %v4123, 920167782
  %v4137 = vsel %vm4129, %v4120, %v4136
  %v4138 = vsel %vm4128, %v4135, %v4137
  %v4139 = vsel %vm4127, %v4117, %v4120
  %v4140 = vsel %vm4130, %v4126, 1326507024
  %v4141 = vsel %vm4129, %v4123, %v4140
  %v4142 = vsel %vm4128, %v4139, %v4141
  %v4143 = vshll.u32 %v4103, 8
  %v4144 = vand.u32 %v4143, 65535
  %v4145 = vshrl.u32 %v4143, 16
  %v4146 = vand.u32 %v4142, 65535
  %v4147 = vshrl.u32 %v4142, 16
  %v4148 = vmul.u32 %v4144, %v4146
  %v4149 = vmul.u32 %v4144, %v4147
  %v4150 = vmul.u32 %v4145, %v4146
  %v4151 = vmul.u32 %v4145, %v4147
  %v4152 = vshll.u32 %v4149, 16
  %v4153 = vshrl.u32 %v4149, 16
  %v4154 = vshll.u32 %v4150, 16
  %v4155 = vshrl.u32 %v4150, 16
  %vm4156 = vc.u32 %v4148, %v4152
  %v4157 = vsel %vm4156, 1, 0
  %v4158 = vadd.s32 %v4148, %v4152
  %v4159 = vadd.s32 %v4151, %v4157
  %vm4160 = vc.u32 %v4158, %v4154
  %v4161 = vsel %vm4160, 1, 0
  %v4162 = vadd.s32 %v4158, %v4154
  %v4163 = vadd.s32 %v4159, %v4161
  %v4164 = vadd.s32 %v4163, %v4153
  %v4165 = vadd.s32 %v4164, %v4155
  %v4166 = vand.u32 %v4143, 65535
  %v4167 = vshrl.u32 %v4143, 16
  %v4168 = vand.u32 %v4138, 65535
  %v4169 = vshrl.u32 %v4138, 16
  %v4170 = vmul.u32 %v4166, %v4168
  %v4171 = vmul.u32 %v4166, %v4169
  %v4172 = vmul.u32 %v4167, %v4168
  %v4173 = vmul.u32 %v4167, %v4169
  %v4174 = vshll.u32 %v4171, 16
  %v4175 = vshrl.u32 %v4171, 16
  %v4176 = vshll.u32 %v4172, 16
  %v4177 = vshrl.u32 %v4172, 16
  %vm4178 = vc.u32 %v4170, %v4174
  %v4179 = vsel %vm4178, 1, 0
  %v4180 = vadd.s32 %v4170, %v4174
  %v4181 = vadd.s32 %v4173, %v4179
  %vm4182 = vc.u32 %v4180, %v4176
  %v4183 = vsel %vm4182, 1, 0
  %v4184 = vadd.s32 %v4180, %v4176
  %v4185 = vadd.s32 %v4181, %v4183
  %v4186 = vadd.s32 %v4185, %v4175
  %v4187 = vadd.s32 %v4186, %v4177
  %v4188 = vmul.u32 %v4143, %v4134
  %v4189 = vadd.s32 %v4165, %v4184
  %vm4190 = vc.u32 %v4165, %v4184
  %v4191 = vadd.s32 %v4187, 1
  %v4192 = vsel %vm4190, %v4191, %v4187
  %v4193 = vadd.s32 %v4188, %v4192
  %v4194 = vadd.s32 %v4193, 536870912
  %v4195 = vshrl.u32 %v4194, 30
  %v4196 = vshll.u32 %v4195, 30
  %v4197 = vsub.s32 %v4193, %v4196
  %vm4198 = vcmp.lt.s32.totalorder %v4197, 0
  %v4199 = vsub.s32 0, %v4197
  %v4200 = vsel %vm4198, %v4199, %v4197
  %v4201 = vclz %v4200
  %v4202 = vsub.s32 %v4201, 2
  %vm4203 = vcmp.gt.s32.totalorder 0, %v4202
  %v4204 = vsel %vm4203, 0, %v4202
  %v4205 = vsub.s32 32, %v4204
  %v4206 = vshll.u32 %v4197, %v4204
  %v4207 = vshrl.u32 %v4189, %v4205
  %v4208 = vor.u32 %v4206, %v4207
  %v4209 = vsub.s32 4294967266, %v4204
  %v4210 = vadd.s32 %v4209, 127
  %v4211 = vshll.u32 %v4210, 23
  %v4212 = vor.u32 4788187, %v4211
  %v4213 = vand.u32 2147483647, %v4212
  %v4215 = vcvt.s32.f32 %v4208
  %v4216 = vmul.f32 %v4215, %v4213
  %v4217 = vxor.u32 %v4216, 2147483648
  %v4218 = vsel %vm4097, %v4217, %v4216
  %v4219 = vsub.s32 4, %v4195
  %v4220 = vsel %vm4097, %v4219, %v4195
  %v4221 = vsel %vm4096, %v518, %v4218
  %v4222 = vsel %vm4096, 0, %v4220
  %v4223 = vmul.f32 %v4221, %v4221
  %v4224 = vmul.f32 %v4223, -0.001358992
  %v4225 = vadd.f32 %v4224, 0.041655596
  %v4226 = vmul.f32 %v4223, %v4225
  %v4227 = vadd.f32 %v4226, -0.4999988
  %v4228 = vmul.f32 %v4223, %v4227
  %v4229 = vadd.f32 1.0, %v4228
  %v4230 = vmul.f32 %v4221, %v4221
  %v4231 = vmul.f32 %v4230, -0.00019511016
  %v4232 = vadd.f32 %v4231, 0.008332121
  %v4233 = vmul.f32 %v4230, %v4232
  %v4234 = vadd.f32 %v4233, -0.16666654
  %v4235 = vmul.f32 %v4230, %v4234
  %v4236 = vadd.f32 %v4235, 1.0
  %v4237 = vmul.f32 %v4236, %v4221
  %vm4238 = vweird.f32 %v518
  %v4239 = vadd.s32 %v4222, 3
  %v4240 = vand.u32 %v4239, 3
  %vm4241 = vcmp.lt.s32.totalorder %v4240, 2
  %vm4242 = vcmp.eq.s32.totalorder %v4240, 0
  %v4243 = vxor.u32 %v4237, 2147483648
  %v4244 = vsel %vm4242, %v4229, %v4243
  %vm4245 = vcmp.eq.s32.totalorder %v4240, 2
  %v4246 = vxor.u32 %v4229, 2147483648
  %v4247 = vsel %vm4245, %v4246, %v4237
  %v4248 = vsel %vm4241, %v4244, %v4247
  %v4249 = vsel %vm4238, nan, %v4248
  %v4250 = vand.u32 2147483647, %v519
  %vm4251 = vcmp.le.f32.partialorder %v4250, 0.7853982
  %vm4252 = vcmp.lt.s32.totalorder %v519, 0
  %v4253 = vand.u32 %v519, 2139095040
  %v4254 = vshrl.u32 %v4253, 23
  %v4255 = vsub.s32 %v4254, 127
  %v4256 = vand.u32 2147483647, %v519
  %v4257 = vand.u32 %v4256, 8388607
  %v4258 = vor.u32 %v4257, 8388608
  %v4259 = vsub.s32 0, %v4258
  %v4260 = vadd.s32 %v4255, 1
  %vm4261 = vcmp.gt.s32.totalorder %v4260, 0
  %v4262 = vsel %vm4261, %v4260, 0
  %v4263 = vshrl.u32 %v4262, 5
  %v4264 = vand.u32 %v4262, 31
  %v4265 = vsub.s32 32, %v4264
  %v4266 = vshrl.u32 683565275, %v4265
  %v4267 = vshll.u32 683565275, %v4264
  %v4268 = vshrl.u32 2475754826, %v4265
  %v4269 = vor.u32 %v4267, %v4268
  %v4270 = vshll.u32 2475754826, %v4264
  %v4271 = vshrl.u32 2131351028, %v4265
  %v4272 = vor.u32 %v4270, %v4271
  %v4273 = vshll.u32 2131351028, %v4264
  %v4274 = vshrl.u32 2102212464, %v4265
  %v4275 = vor.u32 %v4273, %v4274
  %v4276 = vshll.u32 2102212464, %v4264
  %v4277 = vshrl.u32 920167782, %v4265
  %v4278 = vor.u32 %v4276, %v4277
  %v4279 = vshll.u32 920167782, %v4264
  %v4280 = vshrl.u32 1326507024, %v4265
  %v4281 = vor.u32 %v4279, %v4280
  %vm4282 = vcmp.lt.s32.totalorder %v4263, 1
  %vm4283 = vcmp.lt.s32.totalorder %v4263, 2
  %vm4284 = vcmp.lt.s32.totalorder %v4263, 3
  %vm4285 = vcmp.lt.s32.totalorder %v4263, 4
  %v4286 = vsel %vm4282, %v4266, %v4269
  %v4287 = vsel %vm4285, %v4275, 2102212464
  %v4288 = vsel %vm4284, %v4272, %v4287
  %v4289 = vsel %vm4283, %v4286, %v4288
  %v4290 = vsel %vm4282, %v4269, %v4272
  %v4291 = vsel %vm4285, %v4278, 920167782
  %v4292 = vsel %vm4284, %v4275, %v4291
  %v4293 = vsel %vm4283, %v4290, %v4292
  %v4294 = vsel %vm4282, %v4272, %v4275
  %v4295 = vsel %vm4285, %v4281, 1326507024
  %v4296 = vsel %vm4284, %v4278, %v4295
  %v4297 = vsel %vm4283, %v4294, %v4296
  %v4298 = vshll.u32 %v4258, 8
  %v4299 = vand.u32 %v4298, 65535
  %v4300 = vshrl.u32 %v4298, 16
  %v4301 = vand.u32 %v4297, 65535
  %v4302 = vshrl.u32 %v4297, 16
  %v4303 = vmul.u32 %v4299, %v4301
  %v4304 = vmul.u32 %v4299, %v4302
  %v4305 = vmul.u32 %v4300, %v4301
  %v4306 = vmul.u32 %v4300, %v4302
  %v4307 = vshll.u32 %v4304, 16
  %v4308 = vshrl.u32 %v4304, 16
  %v4309 = vshll.u32 %v4305, 16
  %v4310 = vshrl.u32 %v4305, 16
  %vm4311 = vc.u32 %v4303, %v4307
  %v4312 = vsel %vm4311, 1, 0
  %v4313 = vadd.s32 %v4303, %v4307
  %v4314 = vadd.s32 %v4306, %v4312
  %vm4315 = vc.u32 %v4313, %v4309
  %v4316 = vsel %vm4315, 1, 0
  %v4317 = vadd.s32 %v4313, %v4309
  %v4318 = vadd.s32 %v4314, %v4316
  %v4319 = vadd.s32 %v4318, %v4308
  %v4320 = vadd.s32 %v4319, %v4310
  %v4321 = vand.u32 %v4298, 65535
  %v4322 = vshrl.u32 %v4298, 16
  %v4323 = vand.u32 %v4293, 65535
  %v4324 = vshrl.u32 %v4293, 16
  %v4325 = vmul.u32 %v4321, %v4323
  %v4326 = vmul.u32 %v4321, %v4324
  %v4327 = vmul.u32 %v4322, %v4323
  %v4328 = vmul.u32 %v4322, %v4324
  %v4329 = vshll.u32 %v4326, 16
  %v4330 = vshrl.u32 %v4326, 16
  %v4331 = vshll.u32 %v4327, 16
  %v4332 = vshrl.u32 %v4327, 16
  %vm4333 = vc.u32 %v4325, %v4329
  %v4334 = vsel %vm4333, 1, 0
  %v4335 = vadd.s32 %v4325, %v4329
  %v4336 = vadd.s32 %v4328, %v4334
  %vm4337 = vc.u32 %v4335, %v4331
  %v4338 = vsel %vm4337, 1, 0
  %v4339 = vadd.s32 %v4335, %v4331
  %v4340 = vadd.s32 %v4336, %v4338
  %v4341 = vadd.s32 %v4340, %v4330
  %v4342 = vadd.s32 %v4341, %v4332
  %v4343 = vmul.u32 %v4298, %v4289
  %v4344 = vadd.s32 %v4320, %v4339
  %vm4345 = vc.u32 %v4320, %v4339
  %v4346 = vadd.s32 %v4342, 1
  %v4347 = vsel %vm4345, %v4346, %v4342
  %v4348 = vadd.s32 %v4343, %v4347
  %v4349 = vadd.s32 %v4348, 536870912
  %v4350 = vshrl.u32 %v4349, 30
  %v4351 = vshll.u32 %v4350, 30
  %v4352 = vsub.s32 %v4348, %v4351
  %vm4353 = vcmp.lt.s32.totalorder %v4352, 0
  %v4354 = vsub.s32 0, %v4352
  %v4355 = vsel %vm4353, %v4354, %v4352
  %v4356 = vclz %v4355
  %v4357 = vsub.s32 %v4356, 2
  %vm4358 = vcmp.gt.s32.totalorder 0, %v4357
  %v4359 = vsel %vm4358, 0, %v4357
  %v4360 = vsub.s32 32, %v4359
  %v4361 = vshll.u32 %v4352, %v4359
  %v4362 = vshrl.u32 %v4344, %v4360
  %v4363 = vor.u32 %v4361, %v4362
  %v4364 = vsub.s32 4294967266, %v4359
  %v4365 = vadd.s32 %v4364, 127
  %v4366 = vshll.u32 %v4365, 23
  %v4367 = vor.u32 4788187, %v4366
  %v4368 = vand.u32 2147483647, %v4367
  %v4370 = vcvt.s32.f32 %v4363
  %v4371 = vmul.f32 %v4370, %v4368
  %v4372 = vxor.u32 %v4371, 2147483648
  %v4373 = vsel %vm4252, %v4372, %v4371
  %v4374 = vsub.s32 4, %v4350
  %v4375 = vsel %vm4252, %v4374, %v4350
  %v4376 = vsel %vm4251, %v519, %v4373
  %v4377 = vsel %vm4251, 0, %v4375
  %v4378 = vmul.f32 %v4376, %v4376
  %v4379 = vmul.f32 %v4378, -0.001358992
  %v4380 = vadd.f32 %v4379, 0.041655596
  %v4381 = vmul.f32 %v4378, %v4380
  %v4382 = vadd.f32 %v4381, -0.4999988
  %v4383 = vmul.f32 %v4378, %v4382
  %v4384 = vadd.f32 1.0, %v4383
  %v4385 = vmul.f32 %v4376, %v4376
  %v4386 = vmul.f32 %v4385, -0.00019511016
  %v4387 = vadd.f32 %v4386, 0.008332121
  %v4388 = vmul.f32 %v4385, %v4387
  %v4389 = vadd.f32 %v4388, -0.16666654
  %v4390 = vmul.f32 %v4385, %v4389
  %v4391 = vadd.f32 %v4390, 1.0
  %v4392 = vmul.f32 %v4391, %v4376
  %vm4393 = vweird.f32 %v519
  %v4394 = vadd.s32 %v4377, 3
  %v4395 = vand.u32 %v4394, 3
  %vm4396 = vcmp.lt.s32.totalorder %v4395, 2
  %vm4397 = vcmp.eq.s32.totalorder %v4395, 0
  %v4398 = vxor.u32 %v4392, 2147483648
  %v4399 = vsel %vm4397, %v4384, %v4398
  %vm4400 = vcmp.eq.s32.totalorder %v4395, 2
  %v4401 = vxor.u32 %v4384, 2147483648
  %v4402 = vsel %vm4400, %v4401, %v4392
  %v4403 = vsel %vm4396, %v4399, %v4402
  %v4404 = vsel %vm4393, nan, %v4403
  %v4405 = vand.u32 2147483647, %v520
  %vm4406 = vcmp.le.f32.partialorder %v4405, 0.7853982
  %vm4407 = vcmp.lt.s32.totalorder %v520, 0
  %v4408 = vand.u32 %v520, 2139095040
  %v4409 = vshrl.u32 %v4408, 23
  %v4410 = vsub.s32 %v4409, 127
  %v4411 = vand.u32 2147483647, %v520
  %v4412 = vand.u32 %v4411, 8388607
  %v4413 = vor.u32 %v4412, 8388608
  %v4414 = vsub.s32 0, %v4413
  %v4415 = vadd.s32 %v4410, 1
  %vm4416 = vcmp.gt.s32.totalorder %v4415, 0
  %v4417 = vsel %vm4416, %v4415, 0
  %v4418 = vshrl.u32 %v4417, 5
  %v4419 = vand.u32 %v4417, 31
  %v4420 = vsub.s32 32, %v4419
  %v4421 = vshrl.u32 683565275, %v4420
  %v4422 = vshll.u32 683565275, %v4419
  %v4423 = vshrl.u32 2475754826, %v4420
  %v4424 = vor.u32 %v4422, %v4423
  %v4425 = vshll.u32 2475754826, %v4419
  %v4426 = vshrl.u32 2131351028, %v4420
  %v4427 = vor.u32 %v4425, %v4426
  %v4428 = vshll.u32 2131351028, %v4419
  %v4429 = vshrl.u32 2102212464, %v4420
  %v4430 = vor.u32 %v4428, %v4429
  %v4431 = vshll.u32 2102212464, %v4419
  %v4432 = vshrl.u32 920167782, %v4420
  %v4433 = vor.u32 %v4431, %v4432
  %v4434 = vshll.u32 920167782, %v4419
  %v4435 = vshrl.u32 1326507024, %v4420
  %v4436 = vor.u32 %v4434, %v4435
  %vm4437 = vcmp.lt.s32.totalorder %v4418, 1
  %vm4438 = vcmp.lt.s32.totalorder %v4418, 2
  %vm4439 = vcmp.lt.s32.totalorder %v4418, 3
  %vm4440 = vcmp.lt.s32.totalorder %v4418, 4
  %v4441 = vsel %vm4437, %v4421, %v4424
  %v4442 = vsel %vm4440, %v4430, 2102212464
  %v4443 = vsel %vm4439, %v4427, %v4442
  %v4444 = vsel %vm4438, %v4441, %v4443
  %v4445 = vsel %vm4437, %v4424, %v4427
  %v4446 = vsel %vm4440, %v4433, 920167782
  %v4447 = vsel %vm4439, %v4430, %v4446
  %v4448 = vsel %vm4438, %v4445, %v4447
  %v4449 = vsel %vm4437, %v4427, %v4430
  %v4450 = vsel %vm4440, %v4436, 1326507024
  %v4451 = vsel %vm4439, %v4433, %v4450
  %v4452 = vsel %vm4438, %v4449, %v4451
  %v4453 = vshll.u32 %v4413, 8
  %v4454 = vand.u32 %v4453, 65535
  %v4455 = vshrl.u32 %v4453, 16
  %v4456 = vand.u32 %v4452, 65535
  %v4457 = vshrl.u32 %v4452, 16
  %v4458 = vmul.u32 %v4454, %v4456
  %v4459 = vmul.u32 %v4454, %v4457
  %v4460 = vmul.u32 %v4455, %v4456
  %v4461 = vmul.u32 %v4455, %v4457
  %v4462 = vshll.u32 %v4459, 16
  %v4463 = vshrl.u32 %v4459, 16
  %v4464 = vshll.u32 %v4460, 16
  %v4465 = vshrl.u32 %v4460, 16
  %vm4466 = vc.u32 %v4458, %v4462
  %v4467 = vsel %vm4466, 1, 0
  %v4468 = vadd.s32 %v4458, %v4462
  %v4469 = vadd.s32 %v4461, %v4467
  %vm4470 = vc.u32 %v4468, %v4464
  %v4471 = vsel %vm4470, 1, 0
  %v4472 = vadd.s32 %v4468, %v4464
  %v4473 = vadd.s32 %v4469, %v4471
  %v4474 = vadd.s32 %v4473, %v4463
  %v4475 = vadd.s32 %v4474, %v4465
  %v4476 = vand.u32 %v4453, 65535
  %v4477 = vshrl.u32 %v4453, 16
  %v4478 = vand.u32 %v4448, 65535
  %v4479 = vshrl.u32 %v4448, 16
  %v4480 = vmul.u32 %v4476, %v4478
  %v4481 = vmul.u32 %v4476, %v4479
  %v4482 = vmul.u32 %v4477, %v4478
  %v4483 = vmul.u32 %v4477, %v4479
  %v4484 = vshll.u32 %v4481, 16
  %v4485 = vshrl.u32 %v4481, 16
  %v4486 = vshll.u32 %v4482, 16
  %v4487 = vshrl.u32 %v4482, 16
  %vm4488 = vc.u32 %v4480, %v4484
  %v4489 = vsel %vm4488, 1, 0
  %v4490 = vadd.s32 %v4480, %v4484
  %v4491 = vadd.s32 %v4483, %v4489
  %vm4492 = vc.u32 %v4490, %v4486
  %v4493 = vsel %vm4492, 1, 0
  %v4494 = vadd.s32 %v4490, %v4486
  %v4495 = vadd.s32 %v4491, %v4493
  %v4496 = vadd.s32 %v4495, %v4485
  %v4497 = vadd.s32 %v4496, %v4487
  %v4498 = vmul.u32 %v4453, %v4444
  %v4499 = vadd.s32 %v4475, %v4494
  %vm4500 = vc.u32 %v4475, %v4494
  %v4501 = vadd.s32 %v4497, 1
  %v4502 = vsel %vm4500, %v4501, %v4497
  %v4503 = vadd.s32 %v4498, %v4502
  %v4504 = vadd.s32 %v4503, 536870912
  %v4505 = vshrl.u32 %v4504, 30
  %v4506 = vshll.u32 %v4505, 30
  %v4507 = vsub.s32 %v4503, %v4506
  %vm4508 = vcmp.lt.s32.totalorder %v4507, 0
  %v4509 = vsub.s32 0, %v4507
  %v4510 = vsel %vm4508, %v4509, %v4507
  %v4511 = vclz %v4510
  %v4512 = vsub.s32 %v4511, 2
  %vm4513 = vcmp.gt.s32.totalorder 0, %v4512
  %v4514 = vsel %vm4513, 0, %v4512
  %v4515 = vsub.s32 32, %v4514
  %v4516 = vshll.u32 %v4507, %v4514
  %v4517 = vshrl.u32 %v4499, %v4515
  %v4518 = vor.u32 %v4516, %v4517
  %v4519 = vsub.s32 4294967266, %v4514
  %v4520 = vadd.s32 %v4519, 127
  %v4521 = vshll.u32 %v4520, 23
  %v4522 = vor.u32 4788187, %v4521
  %v4523 = vand.u32 2147483647, %v4522
  %v4525 = vcvt.s32.f32 %v4518
  %v4526 = vmul.f32 %v4525, %v4523
  %v4527 = vxor.u32 %v4526, 2147483648
  %v4528 = vsel %vm4407, %v4527, %v4526
  %v4529 = vsub.s32 4, %v4505
  %v4530 = vsel %vm4407, %v4529, %v4505
  %v4531 = vsel %vm4406, %v520, %v4528
  %v4532 = vsel %vm4406, 0, %v4530
  %v4533 = vmul.f32 %v4531, %v4531
  %v4534 = vmul.f32 %v4533, -0.001358992
  %v4535 = vadd.f32 %v4534, 0.041655596
  %v4536 = vmul.f32 %v4533, %v4535
  %v4537 = vadd.f32 %v4536, -0.4999988
  %v4538 = vmul.f32 %v4533, %v4537
  %v4539 = vadd.f32 1.0, %v4538
  %v4540 = vmul.f32 %v4531, %v4531
  %v4541 = vmul.f32 %v4540, -0.00019511016
  %v4542 = vadd.f32 %v4541, 0.008332121
  %v4543 = vmul.f32 %v4540, %v4542
  %v4544 = vadd.f32 %v4543, -0.16666654
  %v4545 = vmul.f32 %v4540, %v4544
  %v4546 = vadd.f32 %v4545, 1.0
  %v4547 = vmul.f32 %v4546, %v4531
  %vm4548 = vweird.f32 %v520
  %v4549 = vadd.s32 %v4532, 3
  %v4550 = vand.u32 %v4549, 3
  %vm4551 = vcmp.lt.s32.totalorder %v4550, 2
  %vm4552 = vcmp.eq.s32.totalorder %v4550, 0
  %v4553 = vxor.u32 %v4547, 2147483648
  %v4554 = vsel %vm4552, %v4539, %v4553
  %vm4555 = vcmp.eq.s32.totalorder %v4550, 2
  %v4556 = vxor.u32 %v4539, 2147483648
  %v4557 = vsel %vm4555, %v4556, %v4547
  %v4558 = vsel %vm4551, %v4554, %v4557
  %v4559 = vsel %vm4548, nan, %v4558
  %v4560 = vand.u32 2147483647, %v521
  %vm4561 = vcmp.le.f32.partialorder %v4560, 0.7853982
  %vm4562 = vcmp.lt.s32.totalorder %v521, 0
  %v4563 = vand.u32 %v521, 2139095040
  %v4564 = vshrl.u32 %v4563, 23
  %v4565 = vsub.s32 %v4564, 127
  %v4566 = vand.u32 2147483647, %v521
  %v4567 = vand.u32 %v4566, 8388607
  %v4568 = vor.u32 %v4567, 8388608
  %v4569 = vsub.s32 0, %v4568
  %v4570 = vadd.s32 %v4565, 1
  %vm4571 = vcmp.gt.s32.totalorder %v4570, 0
  %v4572 = vsel %vm4571, %v4570, 0
  %v4573 = vshrl.u32 %v4572, 5
  %v4574 = vand.u32 %v4572, 31
  %v4575 = vsub.s32 32, %v4574
  %v4576 = vshrl.u32 683565275, %v4575
  %v4577 = vshll.u32 683565275, %v4574
  %v4578 = vshrl.u32 2475754826, %v4575
  %v4579 = vor.u32 %v4577, %v4578
  %v4580 = vshll.u32 2475754826, %v4574
  %v4581 = vshrl.u32 2131351028, %v4575
  %v4582 = vor.u32 %v4580, %v4581
  %v4583 = vshll.u32 2131351028, %v4574
  %v4584 = vshrl.u32 2102212464, %v4575
  %v4585 = vor.u32 %v4583, %v4584
  %v4586 = vshll.u32 2102212464, %v4574
  %v4587 = vshrl.u32 920167782, %v4575
  %v4588 = vor.u32 %v4586, %v4587
  %v4589 = vshll.u32 920167782, %v4574
  %v4590 = vshrl.u32 1326507024, %v4575
  %v4591 = vor.u32 %v4589, %v4590
  %vm4592 = vcmp.lt.s32.totalorder %v4573, 1
  %vm4593 = vcmp.lt.s32.totalorder %v4573, 2
  %vm4594 = vcmp.lt.s32.totalorder %v4573, 3
  %vm4595 = vcmp.lt.s32.totalorder %v4573, 4
  %v4596 = vsel %vm4592, %v4576, %v4579
  %v4597 = vsel %vm4595, %v4585, 2102212464
  %v4598 = vsel %vm4594, %v4582, %v4597
  %v4599 = vsel %vm4593, %v4596, %v4598
  %v4600 = vsel %vm4592, %v4579, %v4582
  %v4601 = vsel %vm4595, %v4588, 920167782
  %v4602 = vsel %vm4594, %v4585, %v4601
  %v4603 = vsel %vm4593, %v4600, %v4602
  %v4604 = vsel %vm4592, %v4582, %v4585
  %v4605 = vsel %vm4595, %v4591, 1326507024
  %v4606 = vsel %vm4594, %v4588, %v4605
  %v4607 = vsel %vm4593, %v4604, %v4606
  %v4608 = vshll.u32 %v4568, 8
  %v4609 = vand.u32 %v4608, 65535
  %v4610 = vshrl.u32 %v4608, 16
  %v4611 = vand.u32 %v4607, 65535
  %v4612 = vshrl.u32 %v4607, 16
  %v4613 = vmul.u32 %v4609, %v4611
  %v4614 = vmul.u32 %v4609, %v4612
  %v4615 = vmul.u32 %v4610, %v4611
  %v4616 = vmul.u32 %v4610, %v4612
  %v4617 = vshll.u32 %v4614, 16
  %v4618 = vshrl.u32 %v4614, 16
  %v4619 = vshll.u32 %v4615, 16
  %v4620 = vshrl.u32 %v4615, 16
  %vm4621 = vc.u32 %v4613, %v4617
  %v4622 = vsel %vm4621, 1, 0
  %v4623 = vadd.s32 %v4613, %v4617
  %v4624 = vadd.s32 %v4616, %v4622
  %vm4625 = vc.u32 %v4623, %v4619
  %v4626 = vsel %vm4625, 1, 0
  %v4627 = vadd.s32 %v4623, %v4619
  %v4628 = vadd.s32 %v4624, %v4626
  %v4629 = vadd.s32 %v4628, %v4618
  %v4630 = vadd.s32 %v4629, %v4620
  %v4631 = vand.u32 %v4608, 65535
  %v4632 = vshrl.u32 %v4608, 16
  %v4633 = vand.u32 %v4603, 65535
  %v4634 = vshrl.u32 %v4603, 16
  %v4635 = vmul.u32 %v4631, %v4633
  %v4636 = vmul.u32 %v4631, %v4634
  %v4637 = vmul.u32 %v4632, %v4633
  %v4638 = vmul.u32 %v4632, %v4634
  %v4639 = vshll.u32 %v4636, 16
  %v4640 = vshrl.u32 %v4636, 16
  %v4641 = vshll.u32 %v4637, 16
  %v4642 = vshrl.u32 %v4637, 16
  %vm4643 = vc.u32 %v4635, %v4639
  %v4644 = vsel %vm4643, 1, 0
  %v4645 = vadd.s32 %v4635, %v4639
  %v4646 = vadd.s32 %v4638, %v4644
  %vm4647 = vc.u32 %v4645, %v4641
  %v4648 = vsel %vm4647, 1, 0
  %v4649 = vadd.s32 %v4645, %v4641
  %v4650 = vadd.s32 %v4646, %v4648
  %v4651 = vadd.s32 %v4650, %v4640
  %v4652 = vadd.s32 %v4651, %v4642
  %v4653 = vmul.u32 %v4608, %v4599
  %v4654 = vadd.s32 %v4630, %v4649
  %vm4655 = vc.u32 %v4630, %v4649
  %v4656 = vadd.s32 %v4652, 1
  %v4657 = vsel %vm4655, %v4656, %v4652
  %v4658 = vadd.s32 %v4653, %v4657
  %v4659 = vadd.s32 %v4658, 536870912
  %v4660 = vshrl.u32 %v4659, 30
  %v4661 = vshll.u32 %v4660, 30
  %v4662 = vsub.s32 %v4658, %v4661
  %vm4663 = vcmp.lt.s32.totalorder %v4662, 0
  %v4664 = vsub.s32 0, %v4662
  %v4665 = vsel %vm4663, %v4664, %v4662
  %v4666 = vclz %v4665
  %v4667 = vsub.s32 %v4666, 2
  %vm4668 = vcmp.gt.s32.totalorder 0, %v4667
  %v4669 = vsel %vm4668, 0, %v4667
  %v4670 = vsub.s32 32, %v4669
  %v4671 = vshll.u32 %v4662, %v4669
  %v4672 = vshrl.u32 %v4654, %v4670
  %v4673 = vor.u32 %v4671, %v4672
  %v4674 = vsub.s32 4294967266, %v4669
  %v4675 = vadd.s32 %v4674, 127
  %v4676 = vshll.u32 %v4675, 23
  %v4677 = vor.u32 4788187, %v4676
  %v4678 = vand.u32 2147483647, %v4677
  %v4680 = vcvt.s32.f32 %v4673
  %v4681 = vmul.f32 %v4680, %v4678
  %v4682 = vxor.u32 %v4681, 2147483648
  %v4683 = vsel %vm4562, %v4682, %v4681
  %v4684 = vsub.s32 4, %v4660
  %v4685 = vsel %vm4562, %v4684, %v4660
  %v4686 = vsel %vm4561, %v521, %v4683
  %v4687 = vsel %vm4561, 0, %v4685
  %v4688 = vmul.f32 %v4686, %v4686
  %v4689 = vmul.f32 %v4688, -0.001358992
  %v4690 = vadd.f32 %v4689, 0.041655596
  %v4691 = vmul.f32 %v4688, %v4690
  %v4692 = vadd.f32 %v4691, -0.4999988
  %v4693 = vmul.f32 %v4688, %v4692
  %v4694 = vadd.f32 1.0, %v4693
  %v4695 = vmul.f32 %v4686, %v4686
  %v4696 = vmul.f32 %v4695, -0.00019511016
  %v4697 = vadd.f32 %v4696, 0.008332121
  %v4698 = vmul.f32 %v4695, %v4697
  %v4699 = vadd.f32 %v4698, -0.16666654
  %v4700 = vmul.f32 %v4695, %v4699
  %v4701 = vadd.f32 %v4700, 1.0
  %v4702 = vmul.f32 %v4701, %v4686
  %vm4703 = vweird.f32 %v521
  %v4704 = vadd.s32 %v4687, 3
  %v4705 = vand.u32 %v4704, 3
  %vm4706 = vcmp.lt.s32.totalorder %v4705, 2
  %vm4707 = vcmp.eq.s32.totalorder %v4705, 0
  %v4708 = vxor.u32 %v4702, 2147483648
  %v4709 = vsel %vm4707, %v4694, %v4708
  %vm4710 = vcmp.eq.s32.totalorder %v4705, 2
  %v4711 = vxor.u32 %v4694, 2147483648
  %v4712 = vsel %vm4710, %v4711, %v4702
  %v4713 = vsel %vm4706, %v4709, %v4712
  %v4714 = vsel %vm4703, nan, %v4713
  %v4715 = vand.u32 2147483647, %v522
  %vm4716 = vcmp.le.f32.partialorder %v4715, 0.7853982
  %vm4717 = vcmp.lt.s32.totalorder %v522, 0
  %v4718 = vand.u32 %v522, 2139095040
  %v4719 = vshrl.u32 %v4718, 23
  %v4720 = vsub.s32 %v4719, 127
  %v4721 = vand.u32 2147483647, %v522
  %v4722 = vand.u32 %v4721, 8388607
  %v4723 = vor.u32 %v4722, 8388608
  %v4724 = vsub.s32 0, %v4723
  %v4725 = vadd.s32 %v4720, 1
  %vm4726 = vcmp.gt.s32.totalorder %v4725, 0
  %v4727 = vsel %vm4726, %v4725, 0
  %v4728 = vshrl.u32 %v4727, 5
  %v4729 = vand.u32 %v4727, 31
  %v4730 = vsub.s32 32, %v4729
  %v4731 = vshrl.u32 683565275, %v4730
  %v4732 = vshll.u32 683565275, %v4729
  %v4733 = vshrl.u32 2475754826, %v4730
  %v4734 = vor.u32 %v4732, %v4733
  %v4735 = vshll.u32 2475754826, %v4729
  %v4736 = vshrl.u32 2131351028, %v4730
  %v4737 = vor.u32 %v4735, %v4736
  %v4738 = vshll.u32 2131351028, %v4729
  %v4739 = vshrl.u32 2102212464, %v4730
  %v4740 = vor.u32 %v4738, %v4739
  %v4741 = vshll.u32 2102212464, %v4729
  %v4742 = vshrl.u32 920167782, %v4730
  %v4743 = vor.u32 %v4741, %v4742
  %v4744 = vshll.u32 920167782, %v4729
  %v4745 = vshrl.u32 1326507024, %v4730
  %v4746 = vor.u32 %v4744, %v4745
  %vm4747 = vcmp.lt.s32.totalorder %v4728, 1
  %vm4748 = vcmp.lt.s32.totalorder %v4728, 2
  %vm4749 = vcmp.lt.s32.totalorder %v4728, 3
  %vm4750 = vcmp.lt.s32.totalorder %v4728, 4
  %v4751 = vsel %vm4747, %v4731, %v4734
  %v4752 = vsel %vm4750, %v4740, 2102212464
  %v4753 = vsel %vm4749, %v4737, %v4752
  %v4754 = vsel %vm4748, %v4751, %v4753
  %v4755 = vsel %vm4747, %v4734, %v4737
  %v4756 = vsel %vm4750, %v4743, 920167782
  %v4757 = vsel %vm4749, %v4740, %v4756
  %v4758 = vsel %vm4748, %v4755, %v4757
  %v4759 = vsel %vm4747, %v4737, %v4740
  %v4760 = vsel %vm4750, %v4746, 1326507024
  %v4761 = vsel %vm4749, %v4743, %v4760
  %v4762 = vsel %vm4748, %v4759, %v4761
  %v4763 = vshll.u32 %v4723, 8
  %v4764 = vand.u32 %v4763, 65535
  %v4765 = vshrl.u32 %v4763, 16
  %v4766 = vand.u32 %v4762, 65535
  %v4767 = vshrl.u32 %v4762, 16
  %v4768 = vmul.u32 %v4764, %v4766
  %v4769 = vmul.u32 %v4764, %v4767
  %v4770 = vmul.u32 %v4765, %v4766
  %v4771 = vmul.u32 %v4765, %v4767
  %v4772 = vshll.u32 %v4769, 16
  %v4773 = vshrl.u32 %v4769, 16
  %v4774 = vshll.u32 %v4770, 16
  %v4775 = vshrl.u32 %v4770, 16
  %vm4776 = vc.u32 %v4768, %v4772
  %v4777 = vsel %vm4776, 1, 0
  %v4778 = vadd.s32 %v4768, %v4772
  %v4779 = vadd.s32 %v4771, %v4777
  %vm4780 = vc.u32 %v4778, %v4774
  %v4781 = vsel %vm4780, 1, 0
  %v4782 = vadd.s32 %v4778, %v4774
  %v4783 = vadd.s32 %v4779, %v4781
  %v4784 = vadd.s32 %v4783, %v4773
  %v4785 = vadd.s32 %v4784, %v4775
  %v4786 = vand.u32 %v4763, 65535
  %v4787 = vshrl.u32 %v4763, 16
  %v4788 = vand.u32 %v4758, 65535
  %v4789 = vshrl.u32 %v4758, 16
  %v4790 = vmul.u32 %v4786, %v4788
  %v4791 = vmul.u32 %v4786, %v4789
  %v4792 = vmul.u32 %v4787, %v4788
  %v4793 = vmul.u32 %v4787, %v4789
  %v4794 = vshll.u32 %v4791, 16
  %v4795 = vshrl.u32 %v4791, 16
  %v4796 = vshll.u32 %v4792, 16
  %v4797 = vshrl.u32 %v4792, 16
  %vm4798 = vc.u32 %v4790, %v4794
  %v4799 = vsel %vm4798, 1, 0
  %v4800 = vadd.s32 %v4790, %v4794
  %v4801 = vadd.s32 %v4793, %v4799
  %vm4802 = vc.u32 %v4800, %v4796
  %v4803 = vsel %vm4802, 1, 0
  %v4804 = vadd.s32 %v4800, %v4796
  %v4805 = vadd.s32 %v4801, %v4803
  %v4806 = vadd.s32 %v4805, %v4795
  %v4807 = vadd.s32 %v4806, %v4797
  %v4808 = vmul.u32 %v4763, %v4754
  %v4809 = vadd.s32 %v4785, %v4804
  %vm4810 = vc.u32 %v4785, %v4804
  %v4811 = vadd.s32 %v4807, 1
  %v4812 = vsel %vm4810, %v4811, %v4807
  %v4813 = vadd.s32 %v4808, %v4812
  %v4814 = vadd.s32 %v4813, 536870912
  %v4815 = vshrl.u32 %v4814, 30
  %v4816 = vshll.u32 %v4815, 30
  %v4817 = vsub.s32 %v4813, %v4816
  %vm4818 = vcmp.lt.s32.totalorder %v4817, 0
  %v4819 = vsub.s32 0, %v4817
  %v4820 = vsel %vm4818, %v4819, %v4817
  %v4821 = vclz %v4820
  %v4822 = vsub.s32 %v4821, 2
  %vm4823 = vcmp.gt.s32.totalorder 0, %v4822
  %v4824 = vsel %vm4823, 0, %v4822
  %v4825 = vsub.s32 32, %v4824
  %v4826 = vshll.u32 %v4817, %v4824
  %v4827 = vshrl.u32 %v4809, %v4825
  %v4828 = vor.u32 %v4826, %v4827
  %v4829 = vsub.s32 4294967266, %v4824
  %v4830 = vadd.s32 %v4829, 127
  %v4831 = vshll.u32 %v4830, 23
  %v4832 = vor.u32 4788187, %v4831
  %v4833 = vand.u32 2147483647, %v4832
  %v4835 = vcvt.s32.f32 %v4828
  %v4836 = vmul.f32 %v4835, %v4833
  %v4837 = vxor.u32 %v4836, 2147483648
  %v4838 = vsel %vm4717, %v4837, %v4836
  %v4839 = vsub.s32 4, %v4815
  %v4840 = vsel %vm4717, %v4839, %v4815
  %v4841 = vsel %vm4716, %v522, %v4838
  %v4842 = vsel %vm4716, 0, %v4840
  %v4843 = vmul.f32 %v4841, %v4841
  %v4844 = vmul.f32 %v4843, -0.001358992
  %v4845 = vadd.f32 %v4844, 0.041655596
  %v4846 = vmul.f32 %v4843, %v4845
  %v4847 = vadd.f32 %v4846, -0.4999988
  %v4848 = vmul.f32 %v4843, %v4847
  %v4849 = vadd.f32 1.0, %v4848
  %v4850 = vmul.f32 %v4841, %v4841
  %v4851 = vmul.f32 %v4850, -0.00019511016
  %v4852 = vadd.f32 %v4851, 0.008332121
  %v4853 = vmul.f32 %v4850, %v4852
  %v4854 = vadd.f32 %v4853, -0.16666654
  %v4855 = vmul.f32 %v4850, %v4854
  %v4856 = vadd.f32 %v4855, 1.0
  %v4857 = vmul.f32 %v4856, %v4841
  %vm4858 = vweird.f32 %v522
  %v4859 = vadd.s32 %v4842, 3
  %v4860 = vand.u32 %v4859, 3
  %vm4861 = vcmp.lt.s32.totalorder %v4860, 2
  %vm4862 = vcmp.eq.s32.totalorder %v4860, 0
  %v4863 = vxor.u32 %v4857, 2147483648
  %v4864 = vsel %vm4862, %v4849, %v4863
  %vm4865 = vcmp.eq.s32.totalorder %v4860, 2
  %v4866 = vxor.u32 %v4849, 2147483648
  %v4867 = vsel %vm4865, %v4866, %v4857
  %v4868 = vsel %vm4861, %v4864, %v4867
  %v4869 = vsel %vm4858, nan, %v4868
  %v4870 = vand.u32 2147483647, %v523
  %vm4871 = vcmp.le.f32.partialorder %v4870, 0.7853982
  %vm4872 = vcmp.lt.s32.totalorder %v523, 0
  %v4873 = vand.u32 %v523, 2139095040
  %v4874 = vshrl.u32 %v4873, 23
  %v4875 = vsub.s32 %v4874, 127
  %v4876 = vand.u32 2147483647, %v523
  %v4877 = vand.u32 %v4876, 8388607
  %v4878 = vor.u32 %v4877, 8388608
  %v4879 = vsub.s32 0, %v4878
  %v4880 = vadd.s32 %v4875, 1
  %vm4881 = vcmp.gt.s32.totalorder %v4880, 0
  %v4882 = vsel %vm4881, %v4880, 0
  %v4883 = vshrl.u32 %v4882, 5
  %v4884 = vand.u32 %v4882, 31
  %v4885 = vsub.s32 32, %v4884
  %v4886 = vshrl.u32 683565275, %v4885
  %v4887 = vshll.u32 683565275, %v4884
  %v4888 = vshrl.u32 2475754826, %v4885
  %v4889 = vor.u32 %v4887, %v4888
  %v4890 = vshll.u32 2475754826, %v4884
  %v4891 = vshrl.u32 2131351028, %v4885
  %v4892 = vor.u32 %v4890, %v4891
  %v4893 = vshll.u32 2131351028, %v4884
  %v4894 = vshrl.u32 2102212464, %v4885
  %v4895 = vor.u32 %v4893, %v4894
  %v4896 = vshll.u32 2102212464, %v4884
  %v4897 = vshrl.u32 920167782, %v4885
  %v4898 = vor.u32 %v4896, %v4897
  %v4899 = vshll.u32 920167782, %v4884
  %v4900 = vshrl.u32 1326507024, %v4885
  %v4901 = vor.u32 %v4899, %v4900
  %vm4902 = vcmp.lt.s32.totalorder %v4883, 1
  %vm4903 = vcmp.lt.s32.totalorder %v4883, 2
  %vm4904 = vcmp.lt.s32.totalorder %v4883, 3
  %vm4905 = vcmp.lt.s32.totalorder %v4883, 4
  %v4906 = vsel %vm4902, %v4886, %v4889
  %v4907 = vsel %vm4905, %v4895, 2102212464
  %v4908 = vsel %vm4904, %v4892, %v4907
  %v4909 = vsel %vm4903, %v4906, %v4908
  %v4910 = vsel %vm4902, %v4889, %v4892
  %v4911 = vsel %vm4905, %v4898, 920167782
  %v4912 = vsel %vm4904, %v4895, %v4911
  %v4913 = vsel %vm4903, %v4910, %v4912
  %v4914 = vsel %vm4902, %v4892, %v4895
  %v4915 = vsel %vm4905, %v4901, 1326507024
  %v4916 = vsel %vm4904, %v4898, %v4915
  %v4917 = vsel %vm4903, %v4914, %v4916
  %v4918 = vshll.u32 %v4878, 8
  %v4919 = vand.u32 %v4918, 65535
  %v4920 = vshrl.u32 %v4918, 16
  %v4921 = vand.u32 %v4917, 65535
  %v4922 = vshrl.u32 %v4917, 16
  %v4923 = vmul.u32 %v4919, %v4921
  %v4924 = vmul.u32 %v4919, %v4922
  %v4925 = vmul.u32 %v4920, %v4921
  %v4926 = vmul.u32 %v4920, %v4922
  %v4927 = vshll.u32 %v4924, 16
  %v4928 = vshrl.u32 %v4924, 16
  %v4929 = vshll.u32 %v4925, 16
  %v4930 = vshrl.u32 %v4925, 16
  %vm4931 = vc.u32 %v4923, %v4927
  %v4932 = vsel %vm4931, 1, 0
  %v4933 = vadd.s32 %v4923, %v4927
  %v4934 = vadd.s32 %v4926, %v4932
  %vm4935 = vc.u32 %v4933, %v4929
  %v4936 = vsel %vm4935, 1, 0
  %v4937 = vadd.s32 %v4933, %v4929
  %v4938 = vadd.s32 %v4934, %v4936
  %v4939 = vadd.s32 %v4938, %v4928
  %v4940 = vadd.s32 %v4939, %v4930
  %v4941 = vand.u32 %v4918, 65535
  %v4942 = vshrl.u32 %v4918, 16
  %v4943 = vand.u32 %v4913, 65535
  %v4944 = vshrl.u32 %v4913, 16
  %v4945 = vmul.u32 %v4941, %v4943
  %v4946 = vmul.u32 %v4941, %v4944
  %v4947 = vmul.u32 %v4942, %v4943
  %v4948 = vmul.u32 %v4942, %v4944
  %v4949 = vshll.u32 %v4946, 16
  %v4950 = vshrl.u32 %v4946, 16
  %v4951 = vshll.u32 %v4947, 16
  %v4952 = vshrl.u32 %v4947, 16
  %vm4953 = vc.u32 %v4945, %v4949
  %v4954 = vsel %vm4953, 1, 0
  %v4955 = vadd.s32 %v4945, %v4949
  %v4956 = vadd.s32 %v4948, %v4954
  %vm4957 = vc.u32 %v4955, %v4951
  %v4958 = vsel %vm4957, 1, 0
  %v4959 = vadd.s32 %v4955, %v4951
  %v4960 = vadd.s32 %v4956, %v4958
  %v4961 = vadd.s32 %v4960, %v4950
  %v4962 = vadd.s32 %v4961, %v4952
  %v4963 = vmul.u32 %v4918, %v4909
  %v4964 = vadd.s32 %v4940, %v4959
  %vm4965 = vc.u32 %v4940, %v4959
  %v4966 = vadd.s32 %v4962, 1
  %v4967 = vsel %vm4965, %v4966, %v4962
  %v4968 = vadd.s32 %v4963, %v4967
  %v4969 = vadd.s32 %v4968, 536870912
  %v4970 = vshrl.u32 %v4969, 30
  %v4971 = vshll.u32 %v4970, 30
  %v4972 = vsub.s32 %v4968, %v4971
  %vm4973 = vcmp.lt.s32.totalorder %v4972, 0
  %v4974 = vsub.s32 0, %v4972
  %v4975 = vsel %vm4973, %v4974, %v4972
  %v4976 = vclz %v4975
  %v4977 = vsub.s32 %v4976, 2
  %vm4978 = vcmp.gt.s32.totalorder 0, %v4977
  %v4979 = vsel %vm4978, 0, %v4977
  %v4980 = vsub.s32 32, %v4979
  %v4981 = vshll.u32 %v4972, %v4979
  %v4982 = vshrl.u32 %v4964, %v4980
  %v4983 = vor.u32 %v4981, %v4982
  %v4984 = vsub.s32 4294967266, %v4979
  %v4985 = vadd.s32 %v4984, 127
  %v4986 = vshll.u32 %v4985, 23
  %v4987 = vor.u32 4788187, %v4986
  %v4988 = vand.u32 2147483647, %v4987
  %v4990 = vcvt.s32.f32 %v4983
  %v4991 = vmul.f32 %v4990, %v4988
  %v4992 = vxor.u32 %v4991, 2147483648
  %v4993 = vsel %vm4872, %v4992, %v4991
  %v4994 = vsub.s32 4, %v4970
  %v4995 = vsel %vm4872, %v4994, %v4970
  %v4996 = vsel %vm4871, %v523, %v4993
  %v4997 = vsel %vm4871, 0, %v4995
  %v4998 = vmul.f32 %v4996, %v4996
  %v4999 = vmul.f32 %v4998, -0.001358992
  %v5000 = vadd.f32 %v4999, 0.041655596
  %v5001 = vmul.f32 %v4998, %v5000
  %v5002 = vadd.f32 %v5001, -0.4999988
  %v5003 = vmul.f32 %v4998, %v5002
  %v5004 = vadd.f32 1.0, %v5003
  %v5005 = vmul.f32 %v4996, %v4996
  %v5006 = vmul.f32 %v5005, -0.00019511016
  %v5007 = vadd.f32 %v5006, 0.008332121
  %v5008 = vmul.f32 %v5005, %v5007
  %v5009 = vadd.f32 %v5008, -0.16666654
  %v5010 = vmul.f32 %v5005, %v5009
  %v5011 = vadd.f32 %v5010, 1.0
  %v5012 = vmul.f32 %v5011, %v4996
  %vm5013 = vweird.f32 %v523
  %v5014 = vadd.s32 %v4997, 3
  %v5015 = vand.u32 %v5014, 3
  %vm5016 = vcmp.lt.s32.totalorder %v5015, 2
  %vm5017 = vcmp.eq.s32.totalorder %v5015, 0
  %v5018 = vxor.u32 %v5012, 2147483648
  %v5019 = vsel %vm5017, %v5004, %v5018
  %vm5020 = vcmp.eq.s32.totalorder %v5015, 2
  %v5021 = vxor.u32 %v5004, 2147483648
  %v5022 = vsel %vm5020, %v5021, %v5012
  %v5023 = vsel %vm5016, %v5019, %v5022
  %v5024 = vsel %vm5013, nan, %v5023
  %v5025 = vand.u32 2147483647, %v524
  %vm5026 = vcmp.le.f32.partialorder %v5025, 0.7853982
  %vm5027 = vcmp.lt.s32.totalorder %v524, 0
  %v5028 = vand.u32 %v524, 2139095040
  %v5029 = vshrl.u32 %v5028, 23
  %v5030 = vsub.s32 %v5029, 127
  %v5031 = vand.u32 2147483647, %v524
  %v5032 = vand.u32 %v5031, 8388607
  %v5033 = vor.u32 %v5032, 8388608
  %v5034 = vsub.s32 0, %v5033
  %v5035 = vadd.s32 %v5030, 1
  %vm5036 = vcmp.gt.s32.totalorder %v5035, 0
  %v5037 = vsel %vm5036, %v5035, 0
  %v5038 = vshrl.u32 %v5037, 5
  %v5039 = vand.u32 %v5037, 31
  %v5040 = vsub.s32 32, %v5039
  %v5041 = vshrl.u32 683565275, %v5040
  %v5042 = vshll.u32 683565275, %v5039
  %v5043 = vshrl.u32 2475754826, %v5040
  %v5044 = vor.u32 %v5042, %v5043
  %v5045 = vshll.u32 2475754826, %v5039
  %v5046 = vshrl.u32 2131351028, %v5040
  %v5047 = vor.u32 %v5045, %v5046
  %v5048 = vshll.u32 2131351028, %v5039
  %v5049 = vshrl.u32 2102212464, %v5040
  %v5050 = vor.u32 %v5048, %v5049
  %v5051 = vshll.u32 2102212464, %v5039
  %v5052 = vshrl.u32 920167782, %v5040
  %v5053 = vor.u32 %v5051, %v5052
  %v5054 = vshll.u32 920167782, %v5039
  %v5055 = vshrl.u32 1326507024, %v5040
  %v5056 = vor.u32 %v5054, %v5055
  %vm5057 = vcmp.lt.s32.totalorder %v5038, 1
  %vm5058 = vcmp.lt.s32.totalorder %v5038, 2
  %vm5059 = vcmp.lt.s32.totalorder %v5038, 3
  %vm5060 = vcmp.lt.s32.totalorder %v5038, 4
  %v5061 = vsel %vm5057, %v5041, %v5044
  %v5062 = vsel %vm5060, %v5050, 2102212464
  %v5063 = vsel %vm5059, %v5047, %v5062
  %v5064 = vsel %vm5058, %v5061, %v5063
  %v5065 = vsel %vm5057, %v5044, %v5047
  %v5066 = vsel %vm5060, %v5053, 920167782
  %v5067 = vsel %vm5059, %v5050, %v5066
  %v5068 = vsel %vm5058, %v5065, %v5067
  %v5069 = vsel %vm5057, %v5047, %v5050
  %v5070 = vsel %vm5060, %v5056, 1326507024
  %v5071 = vsel %vm5059, %v5053, %v5070
  %v5072 = vsel %vm5058, %v5069, %v5071
  %v5073 = vshll.u32 %v5033, 8
  %v5074 = vand.u32 %v5073, 65535
  %v5075 = vshrl.u32 %v5073, 16
  %v5076 = vand.u32 %v5072, 65535
  %v5077 = vshrl.u32 %v5072, 16
  %v5078 = vmul.u32 %v5074, %v5076
  %v5079 = vmul.u32 %v5074, %v5077
  %v5080 = vmul.u32 %v5075, %v5076
  %v5081 = vmul.u32 %v5075, %v5077
  %v5082 = vshll.u32 %v5079, 16
  %v5083 = vshrl.u32 %v5079, 16
  %v5084 = vshll.u32 %v5080, 16
  %v5085 = vshrl.u32 %v5080, 16
  %vm5086 = vc.u32 %v5078, %v5082
  %v5087 = vsel %vm5086, 1, 0
  %v5088 = vadd.s32 %v5078, %v5082
  %v5089 = vadd.s32 %v5081, %v5087
  %vm5090 = vc.u32 %v5088, %v5084
  %v5091 = vsel %vm5090, 1, 0
  %v5092 = vadd.s32 %v5088, %v5084
  %v5093 = vadd.s32 %v5089, %v5091
  %v5094 = vadd.s32 %v5093, %v5083
  %v5095 = vadd.s32 %v5094, %v5085
  %v5096 = vand.u32 %v5073, 65535
  %v5097 = vshrl.u32 %v5073, 16
  %v5098 = vand.u32 %v5068, 65535
  %v5099 = vshrl.u32 %v5068, 16
  %v5100 = vmul.u32 %v5096, %v5098
  %v5101 = vmul.u32 %v5096, %v5099
  %v5102 = vmul.u32 %v5097, %v5098
  %v5103 = vmul.u32 %v5097, %v5099
  %v5104 = vshll.u32 %v5101, 16
  %v5105 = vshrl.u32 %v5101, 16
  %v5106 = vshll.u32 %v5102, 16
  %v5107 = vshrl.u32 %v5102, 16
  %vm5108 = vc.u32 %v5100, %v5104
  %v5109 = vsel %vm5108, 1, 0
  %v5110 = vadd.s32 %v5100, %v5104
  %v5111 = vadd.s32 %v5103, %v5109
  %vm5112 = vc.u32 %v5110, %v5106
  %v5113 = vsel %vm5112, 1, 0
  %v5114 = vadd.s32 %v5110, %v5106
  %v5115 = vadd.s32 %v5111, %v5113
  %v5116 = vadd.s32 %v5115, %v5105
  %v5117 = vadd.s32 %v5116, %v5107
  %v5118 = vmul.u32 %v5073, %v5064
  %v5119 = vadd.s32 %v5095, %v5114
  %vm5120 = vc.u32 %v5095, %v5114
  %v5121 = vadd.s32 %v5117, 1
  %v5122 = vsel %vm5120, %v5121, %v5117
  %v5123 = vadd.s32 %v5118, %v5122
  %v5124 = vadd.s32 %v5123, 536870912
  %v5125 = vshrl.u32 %v5124, 30
  %v5126 = vshll.u32 %v5125, 30
  %v5127 = vsub.s32 %v5123, %v5126
  %vm5128 = vcmp.lt.s32.totalorder %v5127, 0
  %v5129 = vsub.s32 0, %v5127
  %v5130 = vsel %vm5128, %v5129, %v5127
  %v5131 = vclz %v5130
  %v5132 = vsub.s32 %v5131, 2
  %vm5133 = vcmp.gt.s32.totalorder 0, %v5132
  %v5134 = vsel %vm5133, 0, %v5132
  %v5135 = vsub.s32 32, %v5134
  %v5136 = vshll.u32 %v5127, %v5134
  %v5137 = vshrl.u32 %v5119, %v5135
  %v5138 = vor.u32 %v5136, %v5137
  %v5139 = vsub.s32 4294967266, %v5134
  %v5140 = vadd.s32 %v5139, 127
  %v5141 = vshll.u32 %v5140, 23
  %v5142 = vor.u32 4788187, %v5141
  %v5143 = vand.u32 2147483647, %v5142
  %v5145 = vcvt.s32.f32 %v5138
  %v5146 = vmul.f32 %v5145, %v5143
  %v5147 = vxor.u32 %v5146, 2147483648
  %v5148 = vsel %vm5027, %v5147, %v5146
  %v5149 = vsub.s32 4, %v5125
  %v5150 = vsel %vm5027, %v5149, %v5125
  %v5151 = vsel %vm5026, %v524, %v5148
  %v5152 = vsel %vm5026, 0, %v5150
  %v5153 = vmul.f32 %v5151, %v5151
  %v5154 = vmul.f32 %v5153, -0.001358992
  %v5155 = vadd.f32 %v5154, 0.041655596
  %v5156 = vmul.f32 %v5153, %v5155
  %v5157 = vadd.f32 %v5156, -0.4999988
  %v5158 = vmul.f32 %v5153, %v5157
  %v5159 = vadd.f32 1.0, %v5158
  %v5160 = vmul.f32 %v5151, %v5151
  %v5161 = vmul.f32 %v5160, -0.00019511016
  %v5162 = vadd.f32 %v5161, 0.008332121
  %v5163 = vmul.f32 %v5160, %v5162
  %v5164 = vadd.f32 %v5163, -0.16666654
  %v5165 = vmul.f32 %v5160, %v5164
  %v5166 = vadd.f32 %v5165, 1.0
  %v5167 = vmul.f32 %v5166, %v5151
  %vm5168 = vweird.f32 %v524
  %v5169 = vadd.s32 %v5152, 3
  %v5170 = vand.u32 %v5169, 3
  %vm5171 = vcmp.lt.s32.totalorder %v5170, 2
  %vm5172 = vcmp.eq.s32.totalorder %v5170, 0
  %v5173 = vxor.u32 %v5167, 2147483648
  %v5174 = vsel %vm5172, %v5159, %v5173
  %vm5175 = vcmp.eq.s32.totalorder %v5170, 2
  %v5176 = vxor.u32 %v5159, 2147483648
  %v5177 = vsel %vm5175, %v5176, %v5167
  %v5178 = vsel %vm5171, %v5174, %v5177
  %v5179 = vsel %vm5168, nan, %v5178
  %v5180 = vand.u32 2147483647, %v525
  %vm5181 = vcmp.le.f32.partialorder %v5180, 0.7853982
  %vm5182 = vcmp.lt.s32.totalorder %v525, 0
  %v5183 = vand.u32 %v525, 2139095040
  %v5184 = vshrl.u32 %v5183, 23
  %v5185 = vsub.s32 %v5184, 127
  %v5186 = vand.u32 2147483647, %v525
  %v5187 = vand.u32 %v5186, 8388607
  %v5188 = vor.u32 %v5187, 8388608
  %v5189 = vsub.s32 0, %v5188
  %v5190 = vadd.s32 %v5185, 1
  %vm5191 = vcmp.gt.s32.totalorder %v5190, 0
  %v5192 = vsel %vm5191, %v5190, 0
  %v5193 = vshrl.u32 %v5192, 5
  %v5194 = vand.u32 %v5192, 31
  %v5195 = vsub.s32 32, %v5194
  %v5196 = vshrl.u32 683565275, %v5195
  %v5197 = vshll.u32 683565275, %v5194
  %v5198 = vshrl.u32 2475754826, %v5195
  %v5199 = vor.u32 %v5197, %v5198
  %v5200 = vshll.u32 2475754826, %v5194
  %v5201 = vshrl.u32 2131351028, %v5195
  %v5202 = vor.u32 %v5200, %v5201
  %v5203 = vshll.u32 2131351028, %v5194
  %v5204 = vshrl.u32 2102212464, %v5195
  %v5205 = vor.u32 %v5203, %v5204
  %v5206 = vshll.u32 2102212464, %v5194
  %v5207 = vshrl.u32 920167782, %v5195
  %v5208 = vor.u32 %v5206, %v5207
  %v5209 = vshll.u32 920167782, %v5194
  %v5210 = vshrl.u32 1326507024, %v5195
  %v5211 = vor.u32 %v5209, %v5210
  %vm5212 = vcmp.lt.s32.totalorder %v5193, 1
  %vm5213 = vcmp.lt.s32.totalorder %v5193, 2
  %vm5214 = vcmp.lt.s32.totalorder %v5193, 3
  %vm5215 = vcmp.lt.s32.totalorder %v5193, 4
  %v5216 = vsel %vm5212, %v5196, %v5199
  %v5217 = vsel %vm5215, %v5205, 2102212464
  %v5218 = vsel %vm5214, %v5202, %v5217
  %v5219 = vsel %vm5213, %v5216, %v5218
  %v5220 = vsel %vm5212, %v5199, %v5202
  %v5221 = vsel %vm5215, %v5208, 920167782
  %v5222 = vsel %vm5214, %v5205, %v5221
  %v5223 = vsel %vm5213, %v5220, %v5222
  %v5224 = vsel %vm5212, %v5202, %v5205
  %v5225 = vsel %vm5215, %v5211, 1326507024
  %v5226 = vsel %vm5214, %v5208, %v5225
  %v5227 = vsel %vm5213, %v5224, %v5226
  %v5228 = vshll.u32 %v5188, 8
  %v5229 = vand.u32 %v5228, 65535
  %v5230 = vshrl.u32 %v5228, 16
  %v5231 = vand.u32 %v5227, 65535
  %v5232 = vshrl.u32 %v5227, 16
  %v5233 = vmul.u32 %v5229, %v5231
  %v5234 = vmul.u32 %v5229, %v5232
  %v5235 = vmul.u32 %v5230, %v5231
  %v5236 = vmul.u32 %v5230, %v5232
  %v5237 = vshll.u32 %v5234, 16
  %v5238 = vshrl.u32 %v5234, 16
  %v5239 = vshll.u32 %v5235, 16
  %v5240 = vshrl.u32 %v5235, 16
  %vm5241 = vc.u32 %v5233, %v5237
  %v5242 = vsel %vm5241, 1, 0
  %v5243 = vadd.s32 %v5233, %v5237
  %v5244 = vadd.s32 %v5236, %v5242
  %vm5245 = vc.u32 %v5243, %v5239
  %v5246 = vsel %vm5245, 1, 0
  %v5247 = vadd.s32 %v5243, %v5239
  %v5248 = vadd.s32 %v5244, %v5246
  %v5249 = vadd.s32 %v5248, %v5238
  %v5250 = vadd.s32 %v5249, %v5240
  %v5251 = vand.u32 %v5228, 65535
  %v5252 = vshrl.u32 %v5228, 16
  %v5253 = vand.u32 %v5223, 65535
  %v5254 = vshrl.u32 %v5223, 16
  %v5255 = vmul.u32 %v5251, %v5253
  %v5256 = vmul.u32 %v5251, %v5254
  %v5257 = vmul.u32 %v5252, %v5253
  %v5258 = vmul.u32 %v5252, %v5254
  %v5259 = vshll.u32 %v5256, 16
  %v5260 = vshrl.u32 %v5256, 16
  %v5261 = vshll.u32 %v5257, 16
  %v5262 = vshrl.u32 %v5257, 16
  %vm5263 = vc.u32 %v5255, %v5259
  %v5264 = vsel %vm5263, 1, 0
  %v5265 = vadd.s32 %v5255, %v5259
  %v5266 = vadd.s32 %v5258, %v5264
  %vm5267 = vc.u32 %v5265, %v5261
  %v5268 = vsel %vm5267, 1, 0
  %v5269 = vadd.s32 %v5265, %v5261
  %v5270 = vadd.s32 %v5266, %v5268
  %v5271 = vadd.s32 %v5270, %v5260
  %v5272 = vadd.s32 %v5271, %v5262
  %v5273 = vmul.u32 %v5228, %v5219
  %v5274 = vadd.s32 %v5250, %v5269
  %vm5275 = vc.u32 %v5250, %v5269
  %v5276 = vadd.s32 %v5272, 1
  %v5277 = vsel %vm5275, %v5276, %v5272
  %v5278 = vadd.s32 %v5273, %v5277
  %v5279 = vadd.s32 %v5278, 536870912
  %v5280 = vshrl.u32 %v5279, 30
  %v5281 = vshll.u32 %v5280, 30
  %v5282 = vsub.s32 %v5278, %v5281
  %vm5283 = vcmp.lt.s32.totalorder %v5282, 0
  %v5284 = vsub.s32 0, %v5282
  %v5285 = vsel %vm5283, %v5284, %v5282
  %v5286 = vclz %v5285
  %v5287 = vsub.s32 %v5286, 2
  %vm5288 = vcmp.gt.s32.totalorder 0, %v5287
  %v5289 = vsel %vm5288, 0, %v5287
  %v5290 = vsub.s32 32, %v5289
  %v5291 = vshll.u32 %v5282, %v5289
  %v5292 = vshrl.u32 %v5274, %v5290
  %v5293 = vor.u32 %v5291, %v5292
  %v5294 = vsub.s32 4294967266, %v5289
  %v5295 = vadd.s32 %v5294, 127
  %v5296 = vshll.u32 %v5295, 23
  %v5297 = vor.u32 4788187, %v5296
  %v5298 = vand.u32 2147483647, %v5297
  %v5300 = vcvt.s32.f32 %v5293
  %v5301 = vmul.f32 %v5300, %v5298
  %v5302 = vxor.u32 %v5301, 2147483648
  %v5303 = vsel %vm5182, %v5302, %v5301
  %v5304 = vsub.s32 4, %v5280
  %v5305 = vsel %vm5182, %v5304, %v5280
  %v5306 = vsel %vm5181, %v525, %v5303
  %v5307 = vsel %vm5181, 0, %v5305
  %v5308 = vmul.f32 %v5306, %v5306
  %v5309 = vmul.f32 %v5308, -0.001358992
  %v5310 = vadd.f32 %v5309, 0.041655596
  %v5311 = vmul.f32 %v5308, %v5310
  %v5312 = vadd.f32 %v5311, -0.4999988
  %v5313 = vmul.f32 %v5308, %v5312
  %v5314 = vadd.f32 1.0, %v5313
  %v5315 = vmul.f32 %v5306, %v5306
  %v5316 = vmul.f32 %v5315, -0.00019511016
  %v5317 = vadd.f32 %v5316, 0.008332121
  %v5318 = vmul.f32 %v5315, %v5317
  %v5319 = vadd.f32 %v5318, -0.16666654
  %v5320 = vmul.f32 %v5315, %v5319
  %v5321 = vadd.f32 %v5320, 1.0
  %v5322 = vmul.f32 %v5321, %v5306
  %vm5323 = vweird.f32 %v525
  %v5324 = vadd.s32 %v5307, 3
  %v5325 = vand.u32 %v5324, 3
  %vm5326 = vcmp.lt.s32.totalorder %v5325, 2
  %vm5327 = vcmp.eq.s32.totalorder %v5325, 0
  %v5328 = vxor.u32 %v5322, 2147483648
  %v5329 = vsel %vm5327, %v5314, %v5328
  %vm5330 = vcmp.eq.s32.totalorder %v5325, 2
  %v5331 = vxor.u32 %v5314, 2147483648
  %v5332 = vsel %vm5330, %v5331, %v5322
  %v5333 = vsel %vm5326, %v5329, %v5332
  %v5334 = vsel %vm5323, nan, %v5333
  %v5335 = vand.u32 2147483647, %v526
  %vm5336 = vcmp.le.f32.partialorder %v5335, 0.7853982
  %vm5337 = vcmp.lt.s32.totalorder %v526, 0
  %v5338 = vand.u32 %v526, 2139095040
  %v5339 = vshrl.u32 %v5338, 23
  %v5340 = vsub.s32 %v5339, 127
  %v5341 = vand.u32 2147483647, %v526
  %v5342 = vand.u32 %v5341, 8388607
  %v5343 = vor.u32 %v5342, 8388608
  %v5344 = vsub.s32 0, %v5343
  %v5345 = vadd.s32 %v5340, 1
  %vm5346 = vcmp.gt.s32.totalorder %v5345, 0
  %v5347 = vsel %vm5346, %v5345, 0
  %v5348 = vshrl.u32 %v5347, 5
  %v5349 = vand.u32 %v5347, 31
  %v5350 = vsub.s32 32, %v5349
  %v5351 = vshrl.u32 683565275, %v5350
  %v5352 = vshll.u32 683565275, %v5349
  %v5353 = vshrl.u32 2475754826, %v5350
  %v5354 = vor.u32 %v5352, %v5353
  %v5355 = vshll.u32 2475754826, %v5349
  %v5356 = vshrl.u32 2131351028, %v5350
  %v5357 = vor.u32 %v5355, %v5356
  %v5358 = vshll.u32 2131351028, %v5349
  %v5359 = vshrl.u32 2102212464, %v5350
  %v5360 = vor.u32 %v5358, %v5359
  %v5361 = vshll.u32 2102212464, %v5349
  %v5362 = vshrl.u32 920167782, %v5350
  %v5363 = vor.u32 %v5361, %v5362
  %v5364 = vshll.u32 920167782, %v5349
  %v5365 = vshrl.u32 1326507024, %v5350
  %v5366 = vor.u32 %v5364, %v5365
  %vm5367 = vcmp.lt.s32.totalorder %v5348, 1
  %vm5368 = vcmp.lt.s32.totalorder %v5348, 2
  %vm5369 = vcmp.lt.s32.totalorder %v5348, 3
  %vm5370 = vcmp.lt.s32.totalorder %v5348, 4
  %v5371 = vsel %vm5367, %v5351, %v5354
  %v5372 = vsel %vm5370, %v5360, 2102212464
  %v5373 = vsel %vm5369, %v5357, %v5372
  %v5374 = vsel %vm5368, %v5371, %v5373
  %v5375 = vsel %vm5367, %v5354, %v5357
  %v5376 = vsel %vm5370, %v5363, 920167782
  %v5377 = vsel %vm5369, %v5360, %v5376
  %v5378 = vsel %vm5368, %v5375, %v5377
  %v5379 = vsel %vm5367, %v5357, %v5360
  %v5380 = vsel %vm5370, %v5366, 1326507024
  %v5381 = vsel %vm5369, %v5363, %v5380
  %v5382 = vsel %vm5368, %v5379, %v5381
  %v5383 = vshll.u32 %v5343, 8
  %v5384 = vand.u32 %v5383, 65535
  %v5385 = vshrl.u32 %v5383, 16
  %v5386 = vand.u32 %v5382, 65535
  %v5387 = vshrl.u32 %v5382, 16
  %v5388 = vmul.u32 %v5384, %v5386
  %v5389 = vmul.u32 %v5384, %v5387
  %v5390 = vmul.u32 %v5385, %v5386
  %v5391 = vmul.u32 %v5385, %v5387
  %v5392 = vshll.u32 %v5389, 16
  %v5393 = vshrl.u32 %v5389, 16
  %v5394 = vshll.u32 %v5390, 16
  %v5395 = vshrl.u32 %v5390, 16
  %vm5396 = vc.u32 %v5388, %v5392
  %v5397 = vsel %vm5396, 1, 0
  %v5398 = vadd.s32 %v5388, %v5392
  %v5399 = vadd.s32 %v5391, %v5397
  %vm5400 = vc.u32 %v5398, %v5394
  %v5401 = vsel %vm5400, 1, 0
  %v5402 = vadd.s32 %v5398, %v5394
  %v5403 = vadd.s32 %v5399, %v5401
  %v5404 = vadd.s32 %v5403, %v5393
  %v5405 = vadd.s32 %v5404, %v5395
  %v5406 = vand.u32 %v5383, 65535
  %v5407 = vshrl.u32 %v5383, 16
  %v5408 = vand.u32 %v5378, 65535
  %v5409 = vshrl.u32 %v5378, 16
  %v5410 = vmul.u32 %v5406, %v5408
  %v5411 = vmul.u32 %v5406, %v5409
  %v5412 = vmul.u32 %v5407, %v5408
  %v5413 = vmul.u32 %v5407, %v5409
  %v5414 = vshll.u32 %v5411, 16
  %v5415 = vshrl.u32 %v5411, 16
  %v5416 = vshll.u32 %v5412, 16
  %v5417 = vshrl.u32 %v5412, 16
  %vm5418 = vc.u32 %v5410, %v5414
  %v5419 = vsel %vm5418, 1, 0
  %v5420 = vadd.s32 %v5410, %v5414
  %v5421 = vadd.s32 %v5413, %v5419
  %vm5422 = vc.u32 %v5420, %v5416
  %v5423 = vsel %vm5422, 1, 0
  %v5424 = vadd.s32 %v5420, %v5416
  %v5425 = vadd.s32 %v5421, %v5423
  %v5426 = vadd.s32 %v5425, %v5415
  %v5427 = vadd.s32 %v5426, %v5417
  %v5428 = vmul.u32 %v5383, %v5374
  %v5429 = vadd.s32 %v5405, %v5424
  %vm5430 = vc.u32 %v5405, %v5424
  %v5431 = vadd.s32 %v5427, 1
  %v5432 = vsel %vm5430, %v5431, %v5427
  %v5433 = vadd.s32 %v5428, %v5432
  %v5434 = vadd.s32 %v5433, 536870912
  %v5435 = vshrl.u32 %v5434, 30
  %v5436 = vshll.u32 %v5435, 30
  %v5437 = vsub.s32 %v5433, %v5436
  %vm5438 = vcmp.lt.s32.totalorder %v5437, 0
  %v5439 = vsub.s32 0, %v5437
  %v5440 = vsel %vm5438, %v5439, %v5437
  %v5441 = vclz %v5440
  %v5442 = vsub.s32 %v5441, 2
  %vm5443 = vcmp.gt.s32.totalorder 0, %v5442
  %v5444 = vsel %vm5443, 0, %v5442
  %v5445 = vsub.s32 32, %v5444
  %v5446 = vshll.u32 %v5437, %v5444
  %v5447 = vshrl.u32 %v5429, %v5445
  %v5448 = vor.u32 %v5446, %v5447
  %v5449 = vsub.s32 4294967266, %v5444
  %v5450 = vadd.s32 %v5449, 127
  %v5451 = vshll.u32 %v5450, 23
  %v5452 = vor.u32 4788187, %v5451
  %v5453 = vand.u32 2147483647, %v5452
  %v5455 = vcvt.s32.f32 %v5448
  %v5456 = vmul.f32 %v5455, %v5453
  %v5457 = vxor.u32 %v5456, 2147483648
  %v5458 = vsel %vm5337, %v5457, %v5456
  %v5459 = vsub.s32 4, %v5435
  %v5460 = vsel %vm5337, %v5459, %v5435
  %v5461 = vsel %vm5336, %v526, %v5458
  %v5462 = vsel %vm5336, 0, %v5460
  %v5463 = vmul.f32 %v5461, %v5461
  %v5464 = vmul.f32 %v5463, -0.001358992
  %v5465 = vadd.f32 %v5464, 0.041655596
  %v5466 = vmul.f32 %v5463, %v5465
  %v5467 = vadd.f32 %v5466, -0.4999988
  %v5468 = vmul.f32 %v5463, %v5467
  %v5469 = vadd.f32 1.0, %v5468
  %v5470 = vmul.f32 %v5461, %v5461
  %v5471 = vmul.f32 %v5470, -0.00019511016
  %v5472 = vadd.f32 %v5471, 0.008332121
  %v5473 = vmul.f32 %v5470, %v5472
  %v5474 = vadd.f32 %v5473, -0.16666654
  %v5475 = vmul.f32 %v5470, %v5474
  %v5476 = vadd.f32 %v5475, 1.0
  %v5477 = vmul.f32 %v5476, %v5461
  %vm5478 = vweird.f32 %v526
  %v5479 = vadd.s32 %v5462, 3
  %v5480 = vand.u32 %v5479, 3
  %vm5481 = vcmp.lt.s32.totalorder %v5480, 2
  %vm5482 = vcmp.eq.s32.totalorder %v5480, 0
  %v5483 = vxor.u32 %v5477, 2147483648
  %v5484 = vsel %vm5482, %v5469, %v5483
  %vm5485 = vcmp.eq.s32.totalorder %v5480, 2
  %v5486 = vxor.u32 %v5469, 2147483648
  %v5487 = vsel %vm5485, %v5486, %v5477
  %v5488 = vsel %vm5481, %v5484, %v5487
  %v5489 = vsel %vm5478, nan, %v5488
  %v5490 = vand.u32 2147483647, %v495
  %vm5491 = vcmp.le.f32.partialorder %v5490, 0.7853982
  %vm5492 = vcmp.lt.s32.totalorder %v495, 0
  %v5493 = vand.u32 %v495, 2139095040
  %v5494 = vshrl.u32 %v5493, 23
  %v5495 = vsub.s32 %v5494, 127
  %v5496 = vand.u32 2147483647, %v495
  %v5497 = vand.u32 %v5496, 8388607
  %v5498 = vor.u32 %v5497, 8388608
  %v5499 = vsub.s32 0, %v5498
  %v5500 = vadd.s32 %v5495, 1
  %vm5501 = vcmp.gt.s32.totalorder %v5500, 0
  %v5502 = vsel %vm5501, %v5500, 0
  %v5503 = vshrl.u32 %v5502, 5
  %v5504 = vand.u32 %v5502, 31
  %v5505 = vsub.s32 32, %v5504
  %v5506 = vshrl.u32 683565275, %v5505
  %v5507 = vshll.u32 683565275, %v5504
  %v5508 = vshrl.u32 2475754826, %v5505
  %v5509 = vor.u32 %v5507, %v5508
  %v5510 = vshll.u32 2475754826, %v5504
  %v5511 = vshrl.u32 2131351028, %v5505
  %v5512 = vor.u32 %v5510, %v5511
  %v5513 = vshll.u32 2131351028, %v5504
  %v5514 = vshrl.u32 2102212464, %v5505
  %v5515 = vor.u32 %v5513, %v5514
  %v5516 = vshll.u32 2102212464, %v5504
  %v5517 = vshrl.u32 920167782, %v5505
  %v5518 = vor.u32 %v5516, %v5517
  %v5519 = vshll.u32 920167782, %v5504
  %v5520 = vshrl.u32 1326507024, %v5505
  %v5521 = vor.u32 %v5519, %v5520
  %vm5522 = vcmp.lt.s32.totalorder %v5503, 1
  %vm5523 = vcmp.lt.s32.totalorder %v5503, 2
  %vm5524 = vcmp.lt.s32.totalorder %v5503, 3
  %vm5525 = vcmp.lt.s32.totalorder %v5503, 4
  %v5526 = vsel %vm5522, %v5506, %v5509
  %v5527 = vsel %vm5525, %v5515, 2102212464
  %v5528 = vsel %vm5524, %v5512, %v5527
  %v5529 = vsel %vm5523, %v5526, %v5528
  %v5530 = vsel %vm5522, %v5509, %v5512
  %v5531 = vsel %vm5525, %v5518, 920167782
  %v5532 = vsel %vm5524, %v5515, %v5531
  %v5533 = vsel %vm5523, %v5530, %v5532
  %v5534 = vsel %vm5522, %v5512, %v5515
  %v5535 = vsel %vm5525, %v5521, 1326507024
  %v5536 = vsel %vm5524, %v5518, %v5535
  %v5537 = vsel %vm5523, %v5534, %v5536
  %v5538 = vshll.u32 %v5498, 8
  %v5539 = vand.u32 %v5538, 65535
  %v5540 = vshrl.u32 %v5538, 16
  %v5541 = vand.u32 %v5537, 65535
  %v5542 = vshrl.u32 %v5537, 16
  %v5543 = vmul.u32 %v5539, %v5541
  %v5544 = vmul.u32 %v5539, %v5542
  %v5545 = vmul.u32 %v5540, %v5541
  %v5546 = vmul.u32 %v5540, %v5542
  %v5547 = vshll.u32 %v5544, 16
  %v5548 = vshrl.u32 %v5544, 16
  %v5549 = vshll.u32 %v5545, 16
  %v5550 = vshrl.u32 %v5545, 16
  %vm5551 = vc.u32 %v5543, %v5547
  %v5552 = vsel %vm5551, 1, 0
  %v5553 = vadd.s32 %v5543, %v5547
  %v5554 = vadd.s32 %v5546, %v5552
  %vm5555 = vc.u32 %v5553, %v5549
  %v5556 = vsel %vm5555, 1, 0
  %v5557 = vadd.s32 %v5553, %v5549
  %v5558 = vadd.s32 %v5554, %v5556
  %v5559 = vadd.s32 %v5558, %v5548
  %v5560 = vadd.s32 %v5559, %v5550
  %v5561 = vand.u32 %v5538, 65535
  %v5562 = vshrl.u32 %v5538, 16
  %v5563 = vand.u32 %v5533, 65535
  %v5564 = vshrl.u32 %v5533, 16
  %v5565 = vmul.u32 %v5561, %v5563
  %v5566 = vmul.u32 %v5561, %v5564
  %v5567 = vmul.u32 %v5562, %v5563
  %v5568 = vmul.u32 %v5562, %v5564
  %v5569 = vshll.u32 %v5566, 16
  %v5570 = vshrl.u32 %v5566, 16
  %v5571 = vshll.u32 %v5567, 16
  %v5572 = vshrl.u32 %v5567, 16
  %vm5573 = vc.u32 %v5565, %v5569
  %v5574 = vsel %vm5573, 1, 0
  %v5575 = vadd.s32 %v5565, %v5569
  %v5576 = vadd.s32 %v5568, %v5574
  %vm5577 = vc.u32 %v5575, %v5571
  %v5578 = vsel %vm5577, 1, 0
  %v5579 = vadd.s32 %v5575, %v5571
  %v5580 = vadd.s32 %v5576, %v5578
  %v5581 = vadd.s32 %v5580, %v5570
  %v5582 = vadd.s32 %v5581, %v5572
  %v5583 = vmul.u32 %v5538, %v5529
  %v5584 = vadd.s32 %v5560, %v5579
  %vm5585 = vc.u32 %v5560, %v5579
  %v5586 = vadd.s32 %v5582, 1
  %v5587 = vsel %vm5585, %v5586, %v5582
  %v5588 = vadd.s32 %v5583, %v5587
  %v5589 = vadd.s32 %v5588, 536870912
  %v5590 = vshrl.u32 %v5589, 30
  %v5591 = vshll.u32 %v5590, 30
  %v5592 = vsub.s32 %v5588, %v5591
  %vm5593 = vcmp.lt.s32.totalorder %v5592, 0
  %v5594 = vsub.s32 0, %v5592
  %v5595 = vsel %vm5593, %v5594, %v5592
  %v5596 = vclz %v5595
  %v5597 = vsub.s32 %v5596, 2
  %vm5598 = vcmp.gt.s32.totalorder 0, %v5597
  %v5599 = vsel %vm5598, 0, %v5597
  %v5600 = vsub.s32 32, %v5599
  %v5601 = vshll.u32 %v5592, %v5599
  %v5602 = vshrl.u32 %v5584, %v5600
  %v5603 = vor.u32 %v5601, %v5602
  %v5604 = vsub.s32 4294967266, %v5599
  %v5605 = vadd.s32 %v5604, 127
  %v5606 = vshll.u32 %v5605, 23
  %v5607 = vor.u32 4788187, %v5606
  %v5608 = vand.u32 2147483647, %v5607
  %v5610 = vcvt.s32.f32 %v5603
  %v5611 = vmul.f32 %v5610, %v5608
  %v5612 = vxor.u32 %v5611, 2147483648
  %v5613 = vsel %vm5492, %v5612, %v5611
  %v5614 = vsub.s32 4, %v5590
  %v5615 = vsel %vm5492, %v5614, %v5590
  %v5616 = vsel %vm5491, %v495, %v5613
  %v5617 = vsel %vm5491, 0, %v5615
  %v5618 = vmul.f32 %v5616, %v5616
  %v5619 = vmul.f32 %v5618, -0.001358992
  %v5620 = vadd.f32 %v5619, 0.041655596
  %v5621 = vmul.f32 %v5618, %v5620
  %v5622 = vadd.f32 %v5621, -0.4999988
  %v5623 = vmul.f32 %v5618, %v5622
  %v5624 = vadd.f32 1.0, %v5623
  %v5625 = vmul.f32 %v5616, %v5616
  %v5626 = vmul.f32 %v5625, -0.00019511016
  %v5627 = vadd.f32 %v5626, 0.008332121
  %v5628 = vmul.f32 %v5625, %v5627
  %v5629 = vadd.f32 %v5628, -0.16666654
  %v5630 = vmul.f32 %v5625, %v5629
  %v5631 = vadd.f32 %v5630, 1.0
  %v5632 = vmul.f32 %v5631, %v5616
  %vm5633 = vweird.f32 %v495
  %v5634 = vand.u32 %v5617, 3
  %vm5635 = vcmp.lt.s32.totalorder %v5634, 2
  %vm5636 = vcmp.eq.s32.totalorder %v5634, 0
  %v5637 = vxor.u32 %v5632, 2147483648
  %v5638 = vsel %vm5636, %v5624, %v5637
  %vm5639 = vcmp.eq.s32.totalorder %v5634, 2
  %v5640 = vxor.u32 %v5624, 2147483648
  %v5641 = vsel %vm5639, %v5640, %v5632
  %v5642 = vsel %vm5635, %v5638, %v5641
  %v5643 = vsel %vm5633, nan, %v5642
  %v5644 = vand.u32 2147483647, %v496
  %vm5645 = vcmp.le.f32.partialorder %v5644, 0.7853982
  %vm5646 = vcmp.lt.s32.totalorder %v496, 0
  %v5647 = vand.u32 %v496, 2139095040
  %v5648 = vshrl.u32 %v5647, 23
  %v5649 = vsub.s32 %v5648, 127
  %v5650 = vand.u32 2147483647, %v496
  %v5651 = vand.u32 %v5650, 8388607
  %v5652 = vor.u32 %v5651, 8388608
  %v5653 = vsub.s32 0, %v5652
  %v5654 = vadd.s32 %v5649, 1
  %vm5655 = vcmp.gt.s32.totalorder %v5654, 0
  %v5656 = vsel %vm5655, %v5654, 0
  %v5657 = vshrl.u32 %v5656, 5
  %v5658 = vand.u32 %v5656, 31
  %v5659 = vsub.s32 32, %v5658
  %v5660 = vshrl.u32 683565275, %v5659
  %v5661 = vshll.u32 683565275, %v5658
  %v5662 = vshrl.u32 2475754826, %v5659
  %v5663 = vor.u32 %v5661, %v5662
  %v5664 = vshll.u32 2475754826, %v5658
  %v5665 = vshrl.u32 2131351028, %v5659
  %v5666 = vor.u32 %v5664, %v5665
  %v5667 = vshll.u32 2131351028, %v5658
  %v5668 = vshrl.u32 2102212464, %v5659
  %v5669 = vor.u32 %v5667, %v5668
  %v5670 = vshll.u32 2102212464, %v5658
  %v5671 = vshrl.u32 920167782, %v5659
  %v5672 = vor.u32 %v5670, %v5671
  %v5673 = vshll.u32 920167782, %v5658
  %v5674 = vshrl.u32 1326507024, %v5659
  %v5675 = vor.u32 %v5673, %v5674
  %vm5676 = vcmp.lt.s32.totalorder %v5657, 1
  %vm5677 = vcmp.lt.s32.totalorder %v5657, 2
  %vm5678 = vcmp.lt.s32.totalorder %v5657, 3
  %vm5679 = vcmp.lt.s32.totalorder %v5657, 4
  %v5680 = vsel %vm5676, %v5660, %v5663
  %v5681 = vsel %vm5679, %v5669, 2102212464
  %v5682 = vsel %vm5678, %v5666, %v5681
  %v5683 = vsel %vm5677, %v5680, %v5682
  %v5684 = vsel %vm5676, %v5663, %v5666
  %v5685 = vsel %vm5679, %v5672, 920167782
  %v5686 = vsel %vm5678, %v5669, %v5685
  %v5687 = vsel %vm5677, %v5684, %v5686
  %v5688 = vsel %vm5676, %v5666, %v5669
  %v5689 = vsel %vm5679, %v5675, 1326507024
  %v5690 = vsel %vm5678, %v5672, %v5689
  %v5691 = vsel %vm5677, %v5688, %v5690
  %v5692 = vshll.u32 %v5652, 8
  %v5693 = vand.u32 %v5692, 65535
  %v5694 = vshrl.u32 %v5692, 16
  %v5695 = vand.u32 %v5691, 65535
  %v5696 = vshrl.u32 %v5691, 16
  %v5697 = vmul.u32 %v5693, %v5695
  %v5698 = vmul.u32 %v5693, %v5696
  %v5699 = vmul.u32 %v5694, %v5695
  %v5700 = vmul.u32 %v5694, %v5696
  %v5701 = vshll.u32 %v5698, 16
  %v5702 = vshrl.u32 %v5698, 16
  %v5703 = vshll.u32 %v5699, 16
  %v5704 = vshrl.u32 %v5699, 16
  %vm5705 = vc.u32 %v5697, %v5701
  %v5706 = vsel %vm5705, 1, 0
  %v5707 = vadd.s32 %v5697, %v5701
  %v5708 = vadd.s32 %v5700, %v5706
  %vm5709 = vc.u32 %v5707, %v5703
  %v5710 = vsel %vm5709, 1, 0
  %v5711 = vadd.s32 %v5707, %v5703
  %v5712 = vadd.s32 %v5708, %v5710
  %v5713 = vadd.s32 %v5712, %v5702
  %v5714 = vadd.s32 %v5713, %v5704
  %v5715 = vand.u32 %v5692, 65535
  %v5716 = vshrl.u32 %v5692, 16
  %v5717 = vand.u32 %v5687, 65535
  %v5718 = vshrl.u32 %v5687, 16
  %v5719 = vmul.u32 %v5715, %v5717
  %v5720 = vmul.u32 %v5715, %v5718
  %v5721 = vmul.u32 %v5716, %v5717
  %v5722 = vmul.u32 %v5716, %v5718
  %v5723 = vshll.u32 %v5720, 16
  %v5724 = vshrl.u32 %v5720, 16
  %v5725 = vshll.u32 %v5721, 16
  %v5726 = vshrl.u32 %v5721, 16
  %vm5727 = vc.u32 %v5719, %v5723
  %v5728 = vsel %vm5727, 1, 0
  %v5729 = vadd.s32 %v5719, %v5723
  %v5730 = vadd.s32 %v5722, %v5728
  %vm5731 = vc.u32 %v5729, %v5725
  %v5732 = vsel %vm5731, 1, 0
  %v5733 = vadd.s32 %v5729, %v5725
  %v5734 = vadd.s32 %v5730, %v5732
  %v5735 = vadd.s32 %v5734, %v5724
  %v5736 = vadd.s32 %v5735, %v5726
  %v5737 = vmul.u32 %v5692, %v5683
  %v5738 = vadd.s32 %v5714, %v5733
  %vm5739 = vc.u32 %v5714, %v5733
  %v5740 = vadd.s32 %v5736, 1
  %v5741 = vsel %vm5739, %v5740, %v5736
  %v5742 = vadd.s32 %v5737, %v5741
  %v5743 = vadd.s32 %v5742, 536870912
  %v5744 = vshrl.u32 %v5743, 30
  %v5745 = vshll.u32 %v5744, 30
  %v5746 = vsub.s32 %v5742, %v5745
  %vm5747 = vcmp.lt.s32.totalorder %v5746, 0
  %v5748 = vsub.s32 0, %v5746
  %v5749 = vsel %vm5747, %v5748, %v5746
  %v5750 = vclz %v5749
  %v5751 = vsub.s32 %v5750, 2
  %vm5752 = vcmp.gt.s32.totalorder 0, %v5751
  %v5753 = vsel %vm5752, 0, %v5751
  %v5754 = vsub.s32 32, %v5753
  %v5755 = vshll.u32 %v5746, %v5753
  %v5756 = vshrl.u32 %v5738, %v5754
  %v5757 = vor.u32 %v5755, %v5756
  %v5758 = vsub.s32 4294967266, %v5753
  %v5759 = vadd.s32 %v5758, 127
  %v5760 = vshll.u32 %v5759, 23
  %v5761 = vor.u32 4788187, %v5760
  %v5762 = vand.u32 2147483647, %v5761
  %v5764 = vcvt.s32.f32 %v5757
  %v5765 = vmul.f32 %v5764, %v5762
  %v5766 = vxor.u32 %v5765, 2147483648
  %v5767 = vsel %vm5646, %v5766, %v5765
  %v5768 = vsub.s32 4, %v5744
  %v5769 = vsel %vm5646, %v5768, %v5744
  %v5770 = vsel %vm5645, %v496, %v5767
  %v5771 = vsel %vm5645, 0, %v5769
  %v5772 = vmul.f32 %v5770, %v5770
  %v5773 = vmul.f32 %v5772, -0.001358992
  %v5774 = vadd.f32 %v5773, 0.041655596
  %v5775 = vmul.f32 %v5772, %v5774
  %v5776 = vadd.f32 %v5775, -0.4999988
  %v5777 = vmul.f32 %v5772, %v5776
  %v5778 = vadd.f32 1.0, %v5777
  %v5779 = vmul.f32 %v5770, %v5770
  %v5780 = vmul.f32 %v5779, -0.00019511016
  %v5781 = vadd.f32 %v5780, 0.008332121
  %v5782 = vmul.f32 %v5779, %v5781
  %v5783 = vadd.f32 %v5782, -0.16666654
  %v5784 = vmul.f32 %v5779, %v5783
  %v5785 = vadd.f32 %v5784, 1.0
  %v5786 = vmul.f32 %v5785, %v5770
  %vm5787 = vweird.f32 %v496
  %v5788 = vand.u32 %v5771, 3
  %vm5789 = vcmp.lt.s32.totalorder %v5788, 2
  %vm5790 = vcmp.eq.s32.totalorder %v5788, 0
  %v5791 = vxor.u32 %v5786, 2147483648
  %v5792 = vsel %vm5790, %v5778, %v5791
  %vm5793 = vcmp.eq.s32.totalorder %v5788, 2
  %v5794 = vxor.u32 %v5778, 2147483648
  %v5795 = vsel %vm5793, %v5794, %v5786
  %v5796 = vsel %vm5789, %v5792, %v5795
  %v5797 = vsel %vm5787, nan, %v5796
  %v5798 = vand.u32 2147483647, %v497
  %vm5799 = vcmp.le.f32.partialorder %v5798, 0.7853982
  %vm5800 = vcmp.lt.s32.totalorder %v497, 0
  %v5801 = vand.u32 %v497, 2139095040
  %v5802 = vshrl.u32 %v5801, 23
  %v5803 = vsub.s32 %v5802, 127
  %v5804 = vand.u32 2147483647, %v497
  %v5805 = vand.u32 %v5804, 8388607
  %v5806 = vor.u32 %v5805, 8388608
  %v5807 = vsub.s32 0, %v5806
  %v5808 = vadd.s32 %v5803, 1
  %vm5809 = vcmp.gt.s32.totalorder %v5808, 0
  %v5810 = vsel %vm5809, %v5808, 0
  %v5811 = vshrl.u32 %v5810, 5
  %v5812 = vand.u32 %v5810, 31
  %v5813 = vsub.s32 32, %v5812
  %v5814 = vshrl.u32 683565275, %v5813
  %v5815 = vshll.u32 683565275, %v5812
  %v5816 = vshrl.u32 2475754826, %v5813
  %v5817 = vor.u32 %v5815, %v5816
  %v5818 = vshll.u32 2475754826, %v5812
  %v5819 = vshrl.u32 2131351028, %v5813
  %v5820 = vor.u32 %v5818, %v5819
  %v5821 = vshll.u32 2131351028, %v5812
  %v5822 = vshrl.u32 2102212464, %v5813
  %v5823 = vor.u32 %v5821, %v5822
  %v5824 = vshll.u32 2102212464, %v5812
  %v5825 = vshrl.u32 920167782, %v5813
  %v5826 = vor.u32 %v5824, %v5825
  %v5827 = vshll.u32 920167782, %v5812
  %v5828 = vshrl.u32 1326507024, %v5813
  %v5829 = vor.u32 %v5827, %v5828
  %vm5830 = vcmp.lt.s32.totalorder %v5811, 1
  %vm5831 = vcmp.lt.s32.totalorder %v5811, 2
  %vm5832 = vcmp.lt.s32.totalorder %v5811, 3
  %vm5833 = vcmp.lt.s32.totalorder %v5811, 4
  %v5834 = vsel %vm5830, %v5814, %v5817
  %v5835 = vsel %vm5833, %v5823, 2102212464
  %v5836 = vsel %vm5832, %v5820, %v5835
  %v5837 = vsel %vm5831, %v5834, %v5836
  %v5838 = vsel %vm5830, %v5817, %v5820
  %v5839 = vsel %vm5833, %v5826, 920167782
  %v5840 = vsel %vm5832, %v5823, %v5839
  %v5841 = vsel %vm5831, %v5838, %v5840
  %v5842 = vsel %vm5830, %v5820, %v5823
  %v5843 = vsel %vm5833, %v5829, 1326507024
  %v5844 = vsel %vm5832, %v5826, %v5843
  %v5845 = vsel %vm5831, %v5842, %v5844
  %v5846 = vshll.u32 %v5806, 8
  %v5847 = vand.u32 %v5846, 65535
  %v5848 = vshrl.u32 %v5846, 16
  %v5849 = vand.u32 %v5845, 65535
  %v5850 = vshrl.u32 %v5845, 16
  %v5851 = vmul.u32 %v5847, %v5849
  %v5852 = vmul.u32 %v5847, %v5850
  %v5853 = vmul.u32 %v5848, %v5849
  %v5854 = vmul.u32 %v5848, %v5850
  %v5855 = vshll.u32 %v5852, 16
  %v5856 = vshrl.u32 %v5852, 16
  %v5857 = vshll.u32 %v5853, 16
  %v5858 = vshrl.u32 %v5853, 16
  %vm5859 = vc.u32 %v5851, %v5855
  %v5860 = vsel %vm5859, 1, 0
  %v5861 = vadd.s32 %v5851, %v5855
  %v5862 = vadd.s32 %v5854, %v5860
  %vm5863 = vc.u32 %v5861, %v5857
  %v5864 = vsel %vm5863, 1, 0
  %v5865 = vadd.s32 %v5861, %v5857
  %v5866 = vadd.s32 %v5862, %v5864
  %v5867 = vadd.s32 %v5866, %v5856
  %v5868 = vadd.s32 %v5867, %v5858
  %v5869 = vand.u32 %v5846, 65535
  %v5870 = vshrl.u32 %v5846, 16
  %v5871 = vand.u32 %v5841, 65535
  %v5872 = vshrl.u32 %v5841, 16
  %v5873 = vmul.u32 %v5869, %v5871
  %v5874 = vmul.u32 %v5869, %v5872
  %v5875 = vmul.u32 %v5870, %v5871
  %v5876 = vmul.u32 %v5870, %v5872
  %v5877 = vshll.u32 %v5874, 16
  %v5878 = vshrl.u32 %v5874, 16
  %v5879 = vshll.u32 %v5875, 16
  %v5880 = vshrl.u32 %v5875, 16
  %vm5881 = vc.u32 %v5873, %v5877
  %v5882 = vsel %vm5881, 1, 0
  %v5883 = vadd.s32 %v5873, %v5877
  %v5884 = vadd.s32 %v5876, %v5882
  %vm5885 = vc.u32 %v5883, %v5879
  %v5886 = vsel %vm5885, 1, 0
  %v5887 = vadd.s32 %v5883, %v5879
  %v5888 = vadd.s32 %v5884, %v5886
  %v5889 = vadd.s32 %v5888, %v5878
  %v5890 = vadd.s32 %v5889, %v5880
  %v5891 = vmul.u32 %v5846, %v5837
  %v5892 = vadd.s32 %v5868, %v5887
  %vm5893 = vc.u32 %v5868, %v5887
  %v5894 = vadd.s32 %v5890, 1
  %v5895 = vsel %vm5893, %v5894, %v5890
  %v5896 = vadd.s32 %v5891, %v5895
  %v5897 = vadd.s32 %v5896, 536870912
  %v5898 = vshrl.u32 %v5897, 30
  %v5899 = vshll.u32 %v5898, 30
  %v5900 = vsub.s32 %v5896, %v5899
  %vm5901 = vcmp.lt.s32.totalorder %v5900, 0
  %v5902 = vsub.s32 0, %v5900
  %v5903 = vsel %vm5901, %v5902, %v5900
  %v5904 = vclz %v5903
  %v5905 = vsub.s32 %v5904, 2
  %vm5906 = vcmp.gt.s32.totalorder 0, %v5905
  %v5907 = vsel %vm5906, 0, %v5905
  %v5908 = vsub.s32 32, %v5907
  %v5909 = vshll.u32 %v5900, %v5907
  %v5910 = vshrl.u32 %v5892, %v5908
  %v5911 = vor.u32 %v5909, %v5910
  %v5912 = vsub.s32 4294967266, %v5907
  %v5913 = vadd.s32 %v5912, 127
  %v5914 = vshll.u32 %v5913, 23
  %v5915 = vor.u32 4788187, %v5914
  %v5916 = vand.u32 2147483647, %v5915
  %v5918 = vcvt.s32.f32 %v5911
  %v5919 = vmul.f32 %v5918, %v5916
  %v5920 = vxor.u32 %v5919, 2147483648
  %v5921 = vsel %vm5800, %v5920, %v5919
  %v5922 = vsub.s32 4, %v5898
  %v5923 = vsel %vm5800, %v5922, %v5898
  %v5924 = vsel %vm5799, %v497, %v5921
  %v5925 = vsel %vm5799, 0, %v5923
  %v5926 = vmul.f32 %v5924, %v5924
  %v5927 = vmul.f32 %v5926, -0.001358992
  %v5928 = vadd.f32 %v5927, 0.041655596
  %v5929 = vmul.f32 %v5926, %v5928
  %v5930 = vadd.f32 %v5929, -0.4999988
  %v5931 = vmul.f32 %v5926, %v5930
  %v5932 = vadd.f32 1.0, %v5931
  %v5933 = vmul.f32 %v5924, %v5924
  %v5934 = vmul.f32 %v5933, -0.00019511016
  %v5935 = vadd.f32 %v5934, 0.008332121
  %v5936 = vmul.f32 %v5933, %v5935
  %v5937 = vadd.f32 %v5936, -0.16666654
  %v5938 = vmul.f32 %v5933, %v5937
  %v5939 = vadd.f32 %v5938, 1.0
  %v5940 = vmul.f32 %v5939, %v5924
  %vm5941 = vweird.f32 %v497
  %v5942 = vand.u32 %v5925, 3
  %vm5943 = vcmp.lt.s32.totalorder %v5942, 2
  %vm5944 = vcmp.eq.s32.totalorder %v5942, 0
  %v5945 = vxor.u32 %v5940, 2147483648
  %v5946 = vsel %vm5944, %v5932, %v5945
  %vm5947 = vcmp.eq.s32.totalorder %v5942, 2
  %v5948 = vxor.u32 %v5932, 2147483648
  %v5949 = vsel %vm5947, %v5948, %v5940
  %v5950 = vsel %vm5943, %v5946, %v5949
  %v5951 = vsel %vm5941, nan, %v5950
  %v5952 = vand.u32 2147483647, %v498
  %vm5953 = vcmp.le.f32.partialorder %v5952, 0.7853982
  %vm5954 = vcmp.lt.s32.totalorder %v498, 0
  %v5955 = vand.u32 %v498, 2139095040
  %v5956 = vshrl.u32 %v5955, 23
  %v5957 = vsub.s32 %v5956, 127
  %v5958 = vand.u32 2147483647, %v498
  %v5959 = vand.u32 %v5958, 8388607
  %v5960 = vor.u32 %v5959, 8388608
  %v5961 = vsub.s32 0, %v5960
  %v5962 = vadd.s32 %v5957, 1
  %vm5963 = vcmp.gt.s32.totalorder %v5962, 0
  %v5964 = vsel %vm5963, %v5962, 0
  %v5965 = vshrl.u32 %v5964, 5
  %v5966 = vand.u32 %v5964, 31
  %v5967 = vsub.s32 32, %v5966
  %v5968 = vshrl.u32 683565275, %v5967
  %v5969 = vshll.u32 683565275, %v5966
  %v5970 = vshrl.u32 2475754826, %v5967
  %v5971 = vor.u32 %v5969, %v5970
  %v5972 = vshll.u32 2475754826, %v5966
  %v5973 = vshrl.u32 2131351028, %v5967
  %v5974 = vor.u32 %v5972, %v5973
  %v5975 = vshll.u32 2131351028, %v5966
  %v5976 = vshrl.u32 2102212464, %v5967
  %v5977 = vor.u32 %v5975, %v5976
  %v5978 = vshll.u32 2102212464, %v5966
  %v5979 = vshrl.u32 920167782, %v5967
  %v5980 = vor.u32 %v5978, %v5979
  %v5981 = vshll.u32 920167782, %v5966
  %v5982 = vshrl.u32 1326507024, %v5967
  %v5983 = vor.u32 %v5981, %v5982
  %vm5984 = vcmp.lt.s32.totalorder %v5965, 1
  %vm5985 = vcmp.lt.s32.totalorder %v5965, 2
  %vm5986 = vcmp.lt.s32.totalorder %v5965, 3
  %vm5987 = vcmp.lt.s32.totalorder %v5965, 4
  %v5988 = vsel %vm5984, %v5968, %v5971
  %v5989 = vsel %vm5987, %v5977, 2102212464
  %v5990 = vsel %vm5986, %v5974, %v5989
  %v5991 = vsel %vm5985, %v5988, %v5990
  %v5992 = vsel %vm5984, %v5971, %v5974
  %v5993 = vsel %vm5987, %v5980, 920167782
  %v5994 = vsel %vm5986, %v5977, %v5993
  %v5995 = vsel %vm5985, %v5992, %v5994
  %v5996 = vsel %vm5984, %v5974, %v5977
  %v5997 = vsel %vm5987, %v5983, 1326507024
  %v5998 = vsel %vm5986, %v5980, %v5997
  %v5999 = vsel %vm5985, %v5996, %v5998
  %v6000 = vshll.u32 %v5960, 8
  %v6001 = vand.u32 %v6000, 65535
  %v6002 = vshrl.u32 %v6000, 16
  %v6003 = vand.u32 %v5999, 65535
  %v6004 = vshrl.u32 %v5999, 16
  %v6005 = vmul.u32 %v6001, %v6003
  %v6006 = vmul.u32 %v6001, %v6004
  %v6007 = vmul.u32 %v6002, %v6003
  %v6008 = vmul.u32 %v6002, %v6004
  %v6009 = vshll.u32 %v6006, 16
  %v6010 = vshrl.u32 %v6006, 16
  %v6011 = vshll.u32 %v6007, 16
  %v6012 = vshrl.u32 %v6007, 16
  %vm6013 = vc.u32 %v6005, %v6009
  %v6014 = vsel %vm6013, 1, 0
  %v6015 = vadd.s32 %v6005, %v6009
  %v6016 = vadd.s32 %v6008, %v6014
  %vm6017 = vc.u32 %v6015, %v6011
  %v6018 = vsel %vm6017, 1, 0
  %v6019 = vadd.s32 %v6015, %v6011
  %v6020 = vadd.s32 %v6016, %v6018
  %v6021 = vadd.s32 %v6020, %v6010
  %v6022 = vadd.s32 %v6021, %v6012
  %v6023 = vand.u32 %v6000, 65535
  %v6024 = vshrl.u32 %v6000, 16
  %v6025 = vand.u32 %v5995, 65535
  %v6026 = vshrl.u32 %v5995, 16
  %v6027 = vmul.u32 %v6023, %v6025
  %v6028 = vmul.u32 %v6023, %v6026
  %v6029 = vmul.u32 %v6024, %v6025
  %v6030 = vmul.u32 %v6024, %v6026
  %v6031 = vshll.u32 %v6028, 16
  %v6032 = vshrl.u32 %v6028, 16
  %v6033 = vshll.u32 %v6029, 16
  %v6034 = vshrl.u32 %v6029, 16
  %vm6035 = vc.u32 %v6027, %v6031
  %v6036 = vsel %vm6035, 1, 0
  %v6037 = vadd.s32 %v6027, %v6031
  %v6038 = vadd.s32 %v6030, %v6036
  %vm6039 = vc.u32 %v6037, %v6033
  %v6040 = vsel %vm6039, 1, 0
  %v6041 = vadd.s32 %v6037, %v6033
  %v6042 = vadd.s32 %v6038, %v6040
  %v6043 = vadd.s32 %v6042, %v6032
  %v6044 = vadd.s32 %v6043, %v6034
  %v6045 = vmul.u32 %v6000, %v5991
  %v6046 = vadd.s32 %v6022, %v6041
  %vm6047 = vc.u32 %v6022, %v6041
  %v6048 = vadd.s32 %v6044, 1
  %v6049 = vsel %vm6047, %v6048, %v6044
  %v6050 = vadd.s32 %v6045, %v6049
  %v6051 = vadd.s32 %v6050, 536870912
  %v6052 = vshrl.u32 %v6051, 30
  %v6053 = vshll.u32 %v6052, 30
  %v6054 = vsub.s32 %v6050, %v6053
  %vm6055 = vcmp.lt.s32.totalorder %v6054, 0
  %v6056 = vsub.s32 0, %v6054
  %v6057 = vsel %vm6055, %v6056, %v6054
  %v6058 = vclz %v6057
  %v6059 = vsub.s32 %v6058, 2
  %vm6060 = vcmp.gt.s32.totalorder 0, %v6059
  %v6061 = vsel %vm6060, 0, %v6059
  %v6062 = vsub.s32 32, %v6061
  %v6063 = vshll.u32 %v6054, %v6061
  %v6064 = vshrl.u32 %v6046, %v6062
  %v6065 = vor.u32 %v6063, %v6064
  %v6066 = vsub.s32 4294967266, %v6061
  %v6067 = vadd.s32 %v6066, 127
  %v6068 = vshll.u32 %v6067, 23
  %v6069 = vor.u32 4788187, %v6068
  %v6070 = vand.u32 2147483647, %v6069
  %v6072 = vcvt.s32.f32 %v6065
  %v6073 = vmul.f32 %v6072, %v6070
  %v6074 = vxor.u32 %v6073, 2147483648
  %v6075 = vsel %vm5954, %v6074, %v6073
  %v6076 = vsub.s32 4, %v6052
  %v6077 = vsel %vm5954, %v6076, %v6052
  %v6078 = vsel %vm5953, %v498, %v6075
  %v6079 = vsel %vm5953, 0, %v6077
  %v6080 = vmul.f32 %v6078, %v6078
  %v6081 = vmul.f32 %v6080, -0.001358992
  %v6082 = vadd.f32 %v6081, 0.041655596
  %v6083 = vmul.f32 %v6080, %v6082
  %v6084 = vadd.f32 %v6083, -0.4999988
  %v6085 = vmul.f32 %v6080, %v6084
  %v6086 = vadd.f32 1.0, %v6085
  %v6087 = vmul.f32 %v6078, %v6078
  %v6088 = vmul.f32 %v6087, -0.00019511016
  %v6089 = vadd.f32 %v6088, 0.008332121
  %v6090 = vmul.f32 %v6087, %v6089
  %v6091 = vadd.f32 %v6090, -0.16666654
  %v6092 = vmul.f32 %v6087, %v6091
  %v6093 = vadd.f32 %v6092, 1.0
  %v6094 = vmul.f32 %v6093, %v6078
  %vm6095 = vweird.f32 %v498
  %v6096 = vand.u32 %v6079, 3
  %vm6097 = vcmp.lt.s32.totalorder %v6096, 2
  %vm6098 = vcmp.eq.s32.totalorder %v6096, 0
  %v6099 = vxor.u32 %v6094, 2147483648
  %v6100 = vsel %vm6098, %v6086, %v6099
  %vm6101 = vcmp.eq.s32.totalorder %v6096, 2
  %v6102 = vxor.u32 %v6086, 2147483648
  %v6103 = vsel %vm6101, %v6102, %v6094
  %v6104 = vsel %vm6097, %v6100, %v6103
  %v6105 = vsel %vm6095, nan, %v6104
  %v6106 = vand.u32 2147483647, %v499
  %vm6107 = vcmp.le.f32.partialorder %v6106, 0.7853982
  %vm6108 = vcmp.lt.s32.totalorder %v499, 0
  %v6109 = vand.u32 %v499, 2139095040
  %v6110 = vshrl.u32 %v6109, 23
  %v6111 = vsub.s32 %v6110, 127
  %v6112 = vand.u32 2147483647, %v499
  %v6113 = vand.u32 %v6112, 8388607
  %v6114 = vor.u32 %v6113, 8388608
  %v6115 = vsub.s32 0, %v6114
  %v6116 = vadd.s32 %v6111, 1
  %vm6117 = vcmp.gt.s32.totalorder %v6116, 0
  %v6118 = vsel %vm6117, %v6116, 0
  %v6119 = vshrl.u32 %v6118, 5
  %v6120 = vand.u32 %v6118, 31
  %v6121 = vsub.s32 32, %v6120
  %v6122 = vshrl.u32 683565275, %v6121
  %v6123 = vshll.u32 683565275, %v6120
  %v6124 = vshrl.u32 2475754826, %v6121
  %v6125 = vor.u32 %v6123, %v6124
  %v6126 = vshll.u32 2475754826, %v6120
  %v6127 = vshrl.u32 2131351028, %v6121
  %v6128 = vor.u32 %v6126, %v6127
  %v6129 = vshll.u32 2131351028, %v6120
  %v6130 = vshrl.u32 2102212464, %v6121
  %v6131 = vor.u32 %v6129, %v6130
  %v6132 = vshll.u32 2102212464, %v6120
  %v6133 = vshrl.u32 920167782, %v6121
  %v6134 = vor.u32 %v6132, %v6133
  %v6135 = vshll.u32 920167782, %v6120
  %v6136 = vshrl.u32 1326507024, %v6121
  %v6137 = vor.u32 %v6135, %v6136
  %vm6138 = vcmp.lt.s32.totalorder %v6119, 1
  %vm6139 = vcmp.lt.s32.totalorder %v6119, 2
  %vm6140 = vcmp.lt.s32.totalorder %v6119, 3
  %vm6141 = vcmp.lt.s32.totalorder %v6119, 4
  %v6142 = vsel %vm6138, %v6122, %v6125
  %v6143 = vsel %vm6141, %v6131, 2102212464
  %v6144 = vsel %vm6140, %v6128, %v6143
  %v6145 = vsel %vm6139, %v6142, %v6144
  %v6146 = vsel %vm6138, %v6125, %v6128
  %v6147 = vsel %vm6141, %v6134, 920167782
  %v6148 = vsel %vm6140, %v6131, %v6147
  %v6149 = vsel %vm6139, %v6146, %v6148
  %v6150 = vsel %vm6138, %v6128, %v6131
  %v6151 = vsel %vm6141, %v6137, 1326507024
  %v6152 = vsel %vm6140, %v6134, %v6151
  %v6153 = vsel %vm6139, %v6150, %v6152
  %v6154 = vshll.u32 %v6114, 8
  %v6155 = vand.u32 %v6154, 65535
  %v6156 = vshrl.u32 %v6154, 16
  %v6157 = vand.u32 %v6153, 65535
  %v6158 = vshrl.u32 %v6153, 16
  %v6159 = vmul.u32 %v6155, %v6157
  %v6160 = vmul.u32 %v6155, %v6158
  %v6161 = vmul.u32 %v6156, %v6157
  %v6162 = vmul.u32 %v6156, %v6158
  %v6163 = vshll.u32 %v6160, 16
  %v6164 = vshrl.u32 %v6160, 16
  %v6165 = vshll.u32 %v6161, 16
  %v6166 = vshrl.u32 %v6161, 16
  %vm6167 = vc.u32 %v6159, %v6163
  %v6168 = vsel %vm6167, 1, 0
  %v6169 = vadd.s32 %v6159, %v6163
  %v6170 = vadd.s32 %v6162, %v6168
  %vm6171 = vc.u32 %v6169, %v6165
  %v6172 = vsel %vm6171, 1, 0
  %v6173 = vadd.s32 %v6169, %v6165
  %v6174 = vadd.s32 %v6170, %v6172
  %v6175 = vadd.s32 %v6174, %v6164
  %v6176 = vadd.s32 %v6175, %v6166
  %v6177 = vand.u32 %v6154, 65535
  %v6178 = vshrl.u32 %v6154, 16
  %v6179 = vand.u32 %v6149, 65535
  %v6180 = vshrl.u32 %v6149, 16
  %v6181 = vmul.u32 %v6177, %v6179
  %v6182 = vmul.u32 %v6177, %v6180
  %v6183 = vmul.u32 %v6178, %v6179
  %v6184 = vmul.u32 %v6178, %v6180
  %v6185 = vshll.u32 %v6182, 16
  %v6186 = vshrl.u32 %v6182, 16
  %v6187 = vshll.u32 %v6183, 16
  %v6188 = vshrl.u32 %v6183, 16
  %vm6189 = vc.u32 %v6181, %v6185
  %v6190 = vsel %vm6189, 1, 0
  %v6191 = vadd.s32 %v6181, %v6185
  %v6192 = vadd.s32 %v6184, %v6190
  %vm6193 = vc.u32 %v6191, %v6187
  %v6194 = vsel %vm6193, 1, 0
  %v6195 = vadd.s32 %v6191, %v6187
  %v6196 = vadd.s32 %v6192, %v6194
  %v6197 = vadd.s32 %v6196, %v6186
  %v6198 = vadd.s32 %v6197, %v6188
  %v6199 = vmul.u32 %v6154, %v6145
  %v6200 = vadd.s32 %v6176, %v6195
  %vm6201 = vc.u32 %v6176, %v6195
  %v6202 = vadd.s32 %v6198, 1
  %v6203 = vsel %vm6201, %v6202, %v6198
  %v6204 = vadd.s32 %v6199, %v6203
  %v6205 = vadd.s32 %v6204, 536870912
  %v6206 = vshrl.u32 %v6205, 30
  %v6207 = vshll.u32 %v6206, 30
  %v6208 = vsub.s32 %v6204, %v6207
  %vm6209 = vcmp.lt.s32.totalorder %v6208, 0
  %v6210 = vsub.s32 0, %v6208
  %v6211 = vsel %vm6209, %v6210, %v6208
  %v6212 = vclz %v6211
  %v6213 = vsub.s32 %v6212, 2
  %vm6214 = vcmp.gt.s32.totalorder 0, %v6213
  %v6215 = vsel %vm6214, 0, %v6213
  %v6216 = vsub.s32 32, %v6215
  %v6217 = vshll.u32 %v6208, %v6215
  %v6218 = vshrl.u32 %v6200, %v6216
  %v6219 = vor.u32 %v6217, %v6218
  %v6220 = vsub.s32 4294967266, %v6215
  %v6221 = vadd.s32 %v6220, 127
  %v6222 = vshll.u32 %v6221, 23
  %v6223 = vor.u32 4788187, %v6222
  %v6224 = vand.u32 2147483647, %v6223
  %v6226 = vcvt.s32.f32 %v6219
  %v6227 = vmul.f32 %v6226, %v6224
  %v6228 = vxor.u32 %v6227, 2147483648
  %v6229 = vsel %vm6108, %v6228, %v6227
  %v6230 = vsub.s32 4, %v6206
  %v6231 = vsel %vm6108, %v6230, %v6206
  %v6232 = vsel %vm6107, %v499, %v6229
  %v6233 = vsel %vm6107, 0, %v6231
  %v6234 = vmul.f32 %v6232, %v6232
  %v6235 = vmul.f32 %v6234, -0.001358992
  %v6236 = vadd.f32 %v6235, 0.041655596
  %v6237 = vmul.f32 %v6234, %v6236
  %v6238 = vadd.f32 %v6237, -0.4999988
  %v6239 = vmul.f32 %v6234, %v6238
  %v6240 = vadd.f32 1.0, %v6239
  %v6241 = vmul.f32 %v6232, %v6232
  %v6242 = vmul.f32 %v6241, -0.00019511016
  %v6243 = vadd.f32 %v6242, 0.008332121
  %v6244 = vmul.f32 %v6241, %v6243
  %v6245 = vadd.f32 %v6244, -0.16666654
  %v6246 = vmul.f32 %v6241, %v6245
  %v6247 = vadd.f32 %v6246, 1.0
  %v6248 = vmul.f32 %v6247, %v6232
  %vm6249 = vweird.f32 %v499
  %v6250 = vand.u32 %v6233, 3
  %vm6251 = vcmp.lt.s32.totalorder %v6250, 2
  %vm6252 = vcmp.eq.s32.totalorder %v6250, 0
  %v6253 = vxor.u32 %v6248, 2147483648
  %v6254 = vsel %vm6252, %v6240, %v6253
  %vm6255 = vcmp.eq.s32.totalorder %v6250, 2
  %v6256 = vxor.u32 %v6240, 2147483648
  %v6257 = vsel %vm6255, %v6256, %v6248
  %v6258 = vsel %vm6251, %v6254, %v6257
  %v6259 = vsel %vm6249, nan, %v6258
  %v6260 = vand.u32 2147483647, %v500
  %vm6261 = vcmp.le.f32.partialorder %v6260, 0.7853982
  %vm6262 = vcmp.lt.s32.totalorder %v500, 0
  %v6263 = vand.u32 %v500, 2139095040
  %v6264 = vshrl.u32 %v6263, 23
  %v6265 = vsub.s32 %v6264, 127
  %v6266 = vand.u32 2147483647, %v500
  %v6267 = vand.u32 %v6266, 8388607
  %v6268 = vor.u32 %v6267, 8388608
  %v6269 = vsub.s32 0, %v6268
  %v6270 = vadd.s32 %v6265, 1
  %vm6271 = vcmp.gt.s32.totalorder %v6270, 0
  %v6272 = vsel %vm6271, %v6270, 0
  %v6273 = vshrl.u32 %v6272, 5
  %v6274 = vand.u32 %v6272, 31
  %v6275 = vsub.s32 32, %v6274
  %v6276 = vshrl.u32 683565275, %v6275
  %v6277 = vshll.u32 683565275, %v6274
  %v6278 = vshrl.u32 2475754826, %v6275
  %v6279 = vor.u32 %v6277, %v6278
  %v6280 = vshll.u32 2475754826, %v6274
  %v6281 = vshrl.u32 2131351028, %v6275
  %v6282 = vor.u32 %v6280, %v6281
  %v6283 = vshll.u32 2131351028, %v6274
  %v6284 = vshrl.u32 2102212464, %v6275
  %v6285 = vor.u32 %v6283, %v6284
  %v6286 = vshll.u32 2102212464, %v6274
  %v6287 = vshrl.u32 920167782, %v6275
  %v6288 = vor.u32 %v6286, %v6287
  %v6289 = vshll.u32 920167782, %v6274
  %v6290 = vshrl.u32 1326507024, %v6275
  %v6291 = vor.u32 %v6289, %v6290
  %vm6292 = vcmp.lt.s32.totalorder %v6273, 1
  %vm6293 = vcmp.lt.s32.totalorder %v6273, 2
  %vm6294 = vcmp.lt.s32.totalorder %v6273, 3
  %vm6295 = vcmp.lt.s32.totalorder %v6273, 4
  %v6296 = vsel %vm6292, %v6276, %v6279
  %v6297 = vsel %vm6295, %v6285, 2102212464
  %v6298 = vsel %vm6294, %v6282, %v6297
  %v6299 = vsel %vm6293, %v6296, %v6298
  %v6300 = vsel %vm6292, %v6279, %v6282
  %v6301 = vsel %vm6295, %v6288, 920167782
  %v6302 = vsel %vm6294, %v6285, %v6301
  %v6303 = vsel %vm6293, %v6300, %v6302
  %v6304 = vsel %vm6292, %v6282, %v6285
  %v6305 = vsel %vm6295, %v6291, 1326507024
  %v6306 = vsel %vm6294, %v6288, %v6305
  %v6307 = vsel %vm6293, %v6304, %v6306
  %v6308 = vshll.u32 %v6268, 8
  %v6309 = vand.u32 %v6308, 65535
  %v6310 = vshrl.u32 %v6308, 16
  %v6311 = vand.u32 %v6307, 65535
  %v6312 = vshrl.u32 %v6307, 16
  %v6313 = vmul.u32 %v6309, %v6311
  %v6314 = vmul.u32 %v6309, %v6312
  %v6315 = vmul.u32 %v6310, %v6311
  %v6316 = vmul.u32 %v6310, %v6312
  %v6317 = vshll.u32 %v6314, 16
  %v6318 = vshrl.u32 %v6314, 16
  %v6319 = vshll.u32 %v6315, 16
  %v6320 = vshrl.u32 %v6315, 16
  %vm6321 = vc.u32 %v6313, %v6317
  %v6322 = vsel %vm6321, 1, 0
  %v6323 = vadd.s32 %v6313, %v6317
  %v6324 = vadd.s32 %v6316, %v6322
  %vm6325 = vc.u32 %v6323, %v6319
  %v6326 = vsel %vm6325, 1, 0
  %v6327 = vadd.s32 %v6323, %v6319
  %v6328 = vadd.s32 %v6324, %v6326
  %v6329 = vadd.s32 %v6328, %v6318
  %v6330 = vadd.s32 %v6329, %v6320
  %v6331 = vand.u32 %v6308, 65535
  %v6332 = vshrl.u32 %v6308, 16
  %v6333 = vand.u32 %v6303, 65535
  %v6334 = vshrl.u32 %v6303, 16
  %v6335 = vmul.u32 %v6331, %v6333
  %v6336 = vmul.u32 %v6331, %v6334
  %v6337 = vmul.u32 %v6332, %v6333
  %v6338 = vmul.u32 %v6332, %v6334
  %v6339 = vshll.u32 %v6336, 16
  %v6340 = vshrl.u32 %v6336, 16
  %v6341 = vshll.u32 %v6337, 16
  %v6342 = vshrl.u32 %v6337, 16
  %vm6343 = vc.u32 %v6335, %v6339
  %v6344 = vsel %vm6343, 1, 0
  %v6345 = vadd.s32 %v6335, %v6339
  %v6346 = vadd.s32 %v6338, %v6344
  %vm6347 = vc.u32 %v6345, %v6341
  %v6348 = vsel %vm6347, 1, 0
  %v6349 = vadd.s32 %v6345, %v6341
  %v6350 = vadd.s32 %v6346, %v6348
  %v6351 = vadd.s32 %v6350, %v6340
  %v6352 = vadd.s32 %v6351, %v6342
  %v6353 = vmul.u32 %v6308, %v6299
  %v6354 = vadd.s32 %v6330, %v6349
  %vm6355 = vc.u32 %v6330, %v6349
  %v6356 = vadd.s32 %v6352, 1
  %v6357 = vsel %vm6355, %v6356, %v6352
  %v6358 = vadd.s32 %v6353, %v6357
  %v6359 = vadd.s32 %v6358, 536870912
  %v6360 = vshrl.u32 %v6359, 30
  %v6361 = vshll.u32 %v6360, 30
  %v6362 = vsub.s32 %v6358, %v6361
  %vm6363 = vcmp.lt.s32.totalorder %v6362, 0
  %v6364 = vsub.s32 0, %v6362
  %v6365 = vsel %vm6363, %v6364, %v6362
  %v6366 = vclz %v6365
  %v6367 = vsub.s32 %v6366, 2
  %vm6368 = vcmp.gt.s32.totalorder 0, %v6367
  %v6369 = vsel %vm6368, 0, %v6367
  %v6370 = vsub.s32 32, %v6369
  %v6371 = vshll.u32 %v6362, %v6369
  %v6372 = vshrl.u32 %v6354, %v6370
  %v6373 = vor.u32 %v6371, %v6372
  %v6374 = vsub.s32 4294967266, %v6369
  %v6375 = vadd.s32 %v6374, 127
  %v6376 = vshll.u32 %v6375, 23
  %v6377 = vor.u32 4788187, %v6376
  %v6378 = vand.u32 2147483647, %v6377
  %v6380 = vcvt.s32.f32 %v6373
  %v6381 = vmul.f32 %v6380, %v6378
  %v6382 = vxor.u32 %v6381, 2147483648
  %v6383 = vsel %vm6262, %v6382, %v6381
  %v6384 = vsub.s32 4, %v6360
  %v6385 = vsel %vm6262, %v6384, %v6360
  %v6386 = vsel %vm6261, %v500, %v6383
  %v6387 = vsel %vm6261, 0, %v6385
  %v6388 = vmul.f32 %v6386, %v6386
  %v6389 = vmul.f32 %v6388, -0.001358992
  %v6390 = vadd.f32 %v6389, 0.041655596
  %v6391 = vmul.f32 %v6388, %v6390
  %v6392 = vadd.f32 %v6391, -0.4999988
  %v6393 = vmul.f32 %v6388, %v6392
  %v6394 = vadd.f32 1.0, %v6393
  %v6395 = vmul.f32 %v6386, %v6386
  %v6396 = vmul.f32 %v6395, -0.00019511016
  %v6397 = vadd.f32 %v6396, 0.008332121
  %v6398 = vmul.f32 %v6395, %v6397
  %v6399 = vadd.f32 %v6398, -0.16666654
  %v6400 = vmul.f32 %v6395, %v6399
  %v6401 = vadd.f32 %v6400, 1.0
  %v6402 = vmul.f32 %v6401, %v6386
  %vm6403 = vweird.f32 %v500
  %v6404 = vand.u32 %v6387, 3
  %vm6405 = vcmp.lt.s32.totalorder %v6404, 2
  %vm6406 = vcmp.eq.s32.totalorder %v6404, 0
  %v6407 = vxor.u32 %v6402, 2147483648
  %v6408 = vsel %vm6406, %v6394, %v6407
  %vm6409 = vcmp.eq.s32.totalorder %v6404, 2
  %v6410 = vxor.u32 %v6394, 2147483648
  %v6411 = vsel %vm6409, %v6410, %v6402
  %v6412 = vsel %vm6405, %v6408, %v6411
  %v6413 = vsel %vm6403, nan, %v6412
  %v6414 = vand.u32 2147483647, %v501
  %vm6415 = vcmp.le.f32.partialorder %v6414, 0.7853982
  %vm6416 = vcmp.lt.s32.totalorder %v501, 0
  %v6417 = vand.u32 %v501, 2139095040
  %v6418 = vshrl.u32 %v6417, 23
  %v6419 = vsub.s32 %v6418, 127
  %v6420 = vand.u32 2147483647, %v501
  %v6421 = vand.u32 %v6420, 8388607
  %v6422 = vor.u32 %v6421, 8388608
  %v6423 = vsub.s32 0, %v6422
  %v6424 = vadd.s32 %v6419, 1
  %vm6425 = vcmp.gt.s32.totalorder %v6424, 0
  %v6426 = vsel %vm6425, %v6424, 0
  %v6427 = vshrl.u32 %v6426, 5
  %v6428 = vand.u32 %v6426, 31
  %v6429 = vsub.s32 32, %v6428
  %v6430 = vshrl.u32 683565275, %v6429
  %v6431 = vshll.u32 683565275, %v6428
  %v6432 = vshrl.u32 2475754826, %v6429
  %v6433 = vor.u32 %v6431, %v6432
  %v6434 = vshll.u32 2475754826, %v6428
  %v6435 = vshrl.u32 2131351028, %v6429
  %v6436 = vor.u32 %v6434, %v6435
  %v6437 = vshll.u32 2131351028, %v6428
  %v6438 = vshrl.u32 2102212464, %v6429
  %v6439 = vor.u32 %v6437, %v6438
  %v6440 = vshll.u32 2102212464, %v6428
  %v6441 = vshrl.u32 920167782, %v6429
  %v6442 = vor.u32 %v6440, %v6441
  %v6443 = vshll.u32 920167782, %v6428
  %v6444 = vshrl.u32 1326507024, %v6429
  %v6445 = vor.u32 %v6443, %v6444
  %vm6446 = vcmp.lt.s32.totalorder %v6427, 1
  %vm6447 = vcmp.lt.s32.totalorder %v6427, 2
  %vm6448 = vcmp.lt.s32.totalorder %v6427, 3
  %vm6449 = vcmp.lt.s32.totalorder %v6427, 4
  %v6450 = vsel %vm6446, %v6430, %v6433
  %v6451 = vsel %vm6449, %v6439, 2102212464
  %v6452 = vsel %vm6448, %v6436, %v6451
  %v6453 = vsel %vm6447, %v6450, %v6452
  %v6454 = vsel %vm6446, %v6433, %v6436
  %v6455 = vsel %vm6449, %v6442, 920167782
  %v6456 = vsel %vm6448, %v6439, %v6455
  %v6457 = vsel %vm6447, %v6454, %v6456
  %v6458 = vsel %vm6446, %v6436, %v6439
  %v6459 = vsel %vm6449, %v6445, 1326507024
  %v6460 = vsel %vm6448, %v6442, %v6459
  %v6461 = vsel %vm6447, %v6458, %v6460
  %v6462 = vshll.u32 %v6422, 8
  %v6463 = vand.u32 %v6462, 65535
  %v6464 = vshrl.u32 %v6462, 16
  %v6465 = vand.u32 %v6461, 65535
  %v6466 = vshrl.u32 %v6461, 16
  %v6467 = vmul.u32 %v6463, %v6465
  %v6468 = vmul.u32 %v6463, %v6466
  %v6469 = vmul.u32 %v6464, %v6465
  %v6470 = vmul.u32 %v6464, %v6466
  %v6471 = vshll.u32 %v6468, 16
  %v6472 = vshrl.u32 %v6468, 16
  %v6473 = vshll.u32 %v6469, 16
  %v6474 = vshrl.u32 %v6469, 16
  %vm6475 = vc.u32 %v6467, %v6471
  %v6476 = vsel %vm6475, 1, 0
  %v6477 = vadd.s32 %v6467, %v6471
  %v6478 = vadd.s32 %v6470, %v6476
  %vm6479 = vc.u32 %v6477, %v6473
  %v6480 = vsel %vm6479, 1, 0
  %v6481 = vadd.s32 %v6477, %v6473
  %v6482 = vadd.s32 %v6478, %v6480
  %v6483 = vadd.s32 %v6482, %v6472
  %v6484 = vadd.s32 %v6483, %v6474
  %v6485 = vand.u32 %v6462, 65535
  %v6486 = vshrl.u32 %v6462, 16
  %v6487 = vand.u32 %v6457, 65535
  %v6488 = vshrl.u32 %v6457, 16
  %v6489 = vmul.u32 %v6485, %v6487
  %v6490 = vmul.u32 %v6485, %v6488
  %v6491 = vmul.u32 %v6486, %v6487
  %v6492 = vmul.u32 %v6486, %v6488
  %v6493 = vshll.u32 %v6490, 16
  %v6494 = vshrl.u32 %v6490, 16
  %v6495 = vshll.u32 %v6491, 16
  %v6496 = vshrl.u32 %v6491, 16
  %vm6497 = vc.u32 %v6489, %v6493
  %v6498 = vsel %vm6497, 1, 0
  %v6499 = vadd.s32 %v6489, %v6493
  %v6500 = vadd.s32 %v6492, %v6498
  %vm6501 = vc.u32 %v6499, %v6495
  %v6502 = vsel %vm6501, 1, 0
  %v6503 = vadd.s32 %v6499, %v6495
  %v6504 = vadd.s32 %v6500, %v6502
  %v6505 = vadd.s32 %v6504, %v6494
  %v6506 = vadd.s32 %v6505, %v6496
  %v6507 = vmul.u32 %v6462, %v6453
  %v6508 = vadd.s32 %v6484, %v6503
  %vm6509 = vc.u32 %v6484, %v6503
  %v6510 = vadd.s32 %v6506, 1
  %v6511 = vsel %vm6509, %v6510, %v6506
  %v6512 = vadd.s32 %v6507, %v6511
  %v6513 = vadd.s32 %v6512, 536870912
  %v6514 = vshrl.u32 %v6513, 30
  %v6515 = vshll.u32 %v6514, 30
  %v6516 = vsub.s32 %v6512, %v6515
  %vm6517 = vcmp.lt.s32.totalorder %v6516, 0
  %v6518 = vsub.s32 0, %v6516
  %v6519 = vsel %vm6517, %v6518, %v6516
  %v6520 = vclz %v6519
  %v6521 = vsub.s32 %v6520, 2
  %vm6522 = vcmp.gt.s32.totalorder 0, %v6521
  %v6523 = vsel %vm6522, 0, %v6521
  %v6524 = vsub.s32 32, %v6523
  %v6525 = vshll.u32 %v6516, %v6523
  %v6526 = vshrl.u32 %v6508, %v6524
  %v6527 = vor.u32 %v6525, %v6526
  %v6528 = vsub.s32 4294967266, %v6523
  %v6529 = vadd.s32 %v6528, 127
  %v6530 = vshll.u32 %v6529, 23
  %v6531 = vor.u32 4788187, %v6530
  %v6532 = vand.u32 2147483647, %v6531
  %v6534 = vcvt.s32.f32 %v6527
  %v6535 = vmul.f32 %v6534, %v6532
  %v6536 = vxor.u32 %v6535, 2147483648
  %v6537 = vsel %vm6416, %v6536, %v6535
  %v6538 = vsub.s32 4, %v6514
  %v6539 = vsel %vm6416, %v6538, %v6514
  %v6540 = vsel %vm6415, %v501, %v6537
  %v6541 = vsel %vm6415, 0, %v6539
  %v6542 = vmul.f32 %v6540, %v6540
  %v6543 = vmul.f32 %v6542, -0.001358992
  %v6544 = vadd.f32 %v6543, 0.041655596
  %v6545 = vmul.f32 %v6542, %v6544
  %v6546 = vadd.f32 %v6545, -0.4999988
  %v6547 = vmul.f32 %v6542, %v6546
  %v6548 = vadd.f32 1.0, %v6547
  %v6549 = vmul.f32 %v6540, %v6540
  %v6550 = vmul.f32 %v6549, -0.00019511016
  %v6551 = vadd.f32 %v6550, 0.008332121
  %v6552 = vmul.f32 %v6549, %v6551
  %v6553 = vadd.f32 %v6552, -0.16666654
  %v6554 = vmul.f32 %v6549, %v6553
  %v6555 = vadd.f32 %v6554, 1.0
  %v6556 = vmul.f32 %v6555, %v6540
  %vm6557 = vweird.f32 %v501
  %v6558 = vand.u32 %v6541, 3
  %vm6559 = vcmp.lt.s32.totalorder %v6558, 2
  %vm6560 = vcmp.eq.s32.totalorder %v6558, 0
  %v6561 = vxor.u32 %v6556, 2147483648
  %v6562 = vsel %vm6560, %v6548, %v6561
  %vm6563 = vcmp.eq.s32.totalorder %v6558, 2
  %v6564 = vxor.u32 %v6548, 2147483648
  %v6565 = vsel %vm6563, %v6564, %v6556
  %v6566 = vsel %vm6559, %v6562, %v6565
  %v6567 = vsel %vm6557, nan, %v6566
  %v6568 = vand.u32 2147483647, %v502
  %vm6569 = vcmp.le.f32.partialorder %v6568, 0.7853982
  %vm6570 = vcmp.lt.s32.totalorder %v502, 0
  %v6571 = vand.u32 %v502, 2139095040
  %v6572 = vshrl.u32 %v6571, 23
  %v6573 = vsub.s32 %v6572, 127
  %v6574 = vand.u32 2147483647, %v502
  %v6575 = vand.u32 %v6574, 8388607
  %v6576 = vor.u32 %v6575, 8388608
  %v6577 = vsub.s32 0, %v6576
  %v6578 = vadd.s32 %v6573, 1
  %vm6579 = vcmp.gt.s32.totalorder %v6578, 0
  %v6580 = vsel %vm6579, %v6578, 0
  %v6581 = vshrl.u32 %v6580, 5
  %v6582 = vand.u32 %v6580, 31
  %v6583 = vsub.s32 32, %v6582
  %v6584 = vshrl.u32 683565275, %v6583
  %v6585 = vshll.u32 683565275, %v6582
  %v6586 = vshrl.u32 2475754826, %v6583
  %v6587 = vor.u32 %v6585, %v6586
  %v6588 = vshll.u32 2475754826, %v6582
  %v6589 = vshrl.u32 2131351028, %v6583
  %v6590 = vor.u32 %v6588, %v6589
  %v6591 = vshll.u32 2131351028, %v6582
  %v6592 = vshrl.u32 2102212464, %v6583
  %v6593 = vor.u32 %v6591, %v6592
  %v6594 = vshll.u32 2102212464, %v6582
  %v6595 = vshrl.u32 920167782, %v6583
  %v6596 = vor.u32 %v6594, %v6595
  %v6597 = vshll.u32 920167782, %v6582
  %v6598 = vshrl.u32 1326507024, %v6583
  %v6599 = vor.u32 %v6597, %v6598
  %vm6600 = vcmp.lt.s32.totalorder %v6581, 1
  %vm6601 = vcmp.lt.s32.totalorder %v6581, 2
  %vm6602 = vcmp.lt.s32.totalorder %v6581, 3
  %vm6603 = vcmp.lt.s32.totalorder %v6581, 4
  %v6604 = vsel %vm6600, %v6584, %v6587
  %v6605 = vsel %vm6603, %v6593, 2102212464
  %v6606 = vsel %vm6602, %v6590, %v6605
  %v6607 = vsel %vm6601, %v6604, %v6606
  %v6608 = vsel %vm6600, %v6587, %v6590
  %v6609 = vsel %vm6603, %v6596, 920167782
  %v6610 = vsel %vm6602, %v6593, %v6609
  %v6611 = vsel %vm6601, %v6608, %v6610
  %v6612 = vsel %vm6600, %v6590, %v6593
  %v6613 = vsel %vm6603, %v6599, 1326507024
  %v6614 = vsel %vm6602, %v6596, %v6613
  %v6615 = vsel %vm6601, %v6612, %v6614
  %v6616 = vshll.u32 %v6576, 8
  %v6617 = vand.u32 %v6616, 65535
  %v6618 = vshrl.u32 %v6616, 16
  %v6619 = vand.u32 %v6615, 65535
  %v6620 = vshrl.u32 %v6615, 16
  %v6621 = vmul.u32 %v6617, %v6619
  %v6622 = vmul.u32 %v6617, %v6620
  %v6623 = vmul.u32 %v6618, %v6619
  %v6624 = vmul.u32 %v6618, %v6620
  %v6625 = vshll.u32 %v6622, 16
  %v6626 = vshrl.u32 %v6622, 16
  %v6627 = vshll.u32 %v6623, 16
  %v6628 = vshrl.u32 %v6623, 16
  %vm6629 = vc.u32 %v6621, %v6625
  %v6630 = vsel %vm6629, 1, 0
  %v6631 = vadd.s32 %v6621, %v6625
  %v6632 = vadd.s32 %v6624, %v6630
  %vm6633 = vc.u32 %v6631, %v6627
  %v6634 = vsel %vm6633, 1, 0
  %v6635 = vadd.s32 %v6631, %v6627
  %v6636 = vadd.s32 %v6632, %v6634
  %v6637 = vadd.s32 %v6636, %v6626
  %v6638 = vadd.s32 %v6637, %v6628
  %v6639 = vand.u32 %v6616, 65535
  %v6640 = vshrl.u32 %v6616, 16
  %v6641 = vand.u32 %v6611, 65535
  %v6642 = vshrl.u32 %v6611, 16
  %v6643 = vmul.u32 %v6639, %v6641
  %v6644 = vmul.u32 %v6639, %v6642
  %v6645 = vmul.u32 %v6640, %v6641
  %v6646 = vmul.u32 %v6640, %v6642
  %v6647 = vshll.u32 %v6644, 16
  %v6648 = vshrl.u32 %v6644, 16
  %v6649 = vshll.u32 %v6645, 16
  %v6650 = vshrl.u32 %v6645, 16
  %vm6651 = vc.u32 %v6643, %v6647
  %v6652 = vsel %vm6651, 1, 0
  %v6653 = vadd.s32 %v6643, %v6647
  %v6654 = vadd.s32 %v6646, %v6652
  %vm6655 = vc.u32 %v6653, %v6649
  %v6656 = vsel %vm6655, 1, 0
  %v6657 = vadd.s32 %v6653, %v6649
  %v6658 = vadd.s32 %v6654, %v6656
  %v6659 = vadd.s32 %v6658, %v6648
  %v6660 = vadd.s32 %v6659, %v6650
  %v6661 = vmul.u32 %v6616, %v6607
  %v6662 = vadd.s32 %v6638, %v6657
  %vm6663 = vc.u32 %v6638, %v6657
  %v6664 = vadd.s32 %v6660, 1
  %v6665 = vsel %vm6663, %v6664, %v6660
  %v6666 = vadd.s32 %v6661, %v6665
  %v6667 = vadd.s32 %v6666, 536870912
  %v6668 = vshrl.u32 %v6667, 30
  %v6669 = vshll.u32 %v6668, 30
  %v6670 = vsub.s32 %v6666, %v6669
  %vm6671 = vcmp.lt.s32.totalorder %v6670, 0
  %v6672 = vsub.s32 0, %v6670
  %v6673 = vsel %vm6671, %v6672, %v6670
  %v6674 = vclz %v6673
  %v6675 = vsub.s32 %v6674, 2
  %vm6676 = vcmp.gt.s32.totalorder 0, %v6675
  %v6677 = vsel %vm6676, 0, %v6675
  %v6678 = vsub.s32 32, %v6677
  %v6679 = vshll.u32 %v6670, %v6677
  %v6680 = vshrl.u32 %v6662, %v6678
  %v6681 = vor.u32 %v6679, %v6680
  %v6682 = vsub.s32 4294967266, %v6677
  %v6683 = vadd.s32 %v6682, 127
  %v6684 = vshll.u32 %v6683, 23
  %v6685 = vor.u32 4788187, %v6684
  %v6686 = vand.u32 2147483647, %v6685
  %v6688 = vcvt.s32.f32 %v6681
  %v6689 = vmul.f32 %v6688, %v6686
  %v6690 = vxor.u32 %v6689, 2147483648
  %v6691 = vsel %vm6570, %v6690, %v6689
  %v6692 = vsub.s32 4, %v6668
  %v6693 = vsel %vm6570, %v6692, %v6668
  %v6694 = vsel %vm6569, %v502, %v6691
  %v6695 = vsel %vm6569, 0, %v6693
  %v6696 = vmul.f32 %v6694, %v6694
  %v6697 = vmul.f32 %v6696, -0.001358992
  %v6698 = vadd.f32 %v6697, 0.041655596
  %v6699 = vmul.f32 %v6696, %v6698
  %v6700 = vadd.f32 %v6699, -0.4999988
  %v6701 = vmul.f32 %v6696, %v6700
  %v6702 = vadd.f32 1.0, %v6701
  %v6703 = vmul.f32 %v6694, %v6694
  %v6704 = vmul.f32 %v6703, -0.00019511016
  %v6705 = vadd.f32 %v6704, 0.008332121
  %v6706 = vmul.f32 %v6703, %v6705
  %v6707 = vadd.f32 %v6706, -0.16666654
  %v6708 = vmul.f32 %v6703, %v6707
  %v6709 = vadd.f32 %v6708, 1.0
  %v6710 = vmul.f32 %v6709, %v6694
  %vm6711 = vweird.f32 %v502
  %v6712 = vand.u32 %v6695, 3
  %vm6713 = vcmp.lt.s32.totalorder %v6712, 2
  %vm6714 = vcmp.eq.s32.totalorder %v6712, 0
  %v6715 = vxor.u32 %v6710, 2147483648
  %v6716 = vsel %vm6714, %v6702, %v6715
  %vm6717 = vcmp.eq.s32.totalorder %v6712, 2
  %v6718 = vxor.u32 %v6702, 2147483648
  %v6719 = vsel %vm6717, %v6718, %v6710
  %v6720 = vsel %vm6713, %v6716, %v6719
  %v6721 = vsel %vm6711, nan, %v6720
  %v6722 = vand.u32 2147483647, %v503
  %vm6723 = vcmp.le.f32.partialorder %v6722, 0.7853982
  %vm6724 = vcmp.lt.s32.totalorder %v503, 0
  %v6725 = vand.u32 %v503, 2139095040
  %v6726 = vshrl.u32 %v6725, 23
  %v6727 = vsub.s32 %v6726, 127
  %v6728 = vand.u32 2147483647, %v503
  %v6729 = vand.u32 %v6728, 8388607
  %v6730 = vor.u32 %v6729, 8388608
  %v6731 = vsub.s32 0, %v6730
  %v6732 = vadd.s32 %v6727, 1
  %vm6733 = vcmp.gt.s32.totalorder %v6732, 0
  %v6734 = vsel %vm6733, %v6732, 0
  %v6735 = vshrl.u32 %v6734, 5
  %v6736 = vand.u32 %v6734, 31
  %v6737 = vsub.s32 32, %v6736
  %v6738 = vshrl.u32 683565275, %v6737
  %v6739 = vshll.u32 683565275, %v6736
  %v6740 = vshrl.u32 2475754826, %v6737
  %v6741 = vor.u32 %v6739, %v6740
  %v6742 = vshll.u32 2475754826, %v6736
  %v6743 = vshrl.u32 2131351028, %v6737
  %v6744 = vor.u32 %v6742, %v6743
  %v6745 = vshll.u32 2131351028, %v6736
  %v6746 = vshrl.u32 2102212464, %v6737
  %v6747 = vor.u32 %v6745, %v6746
  %v6748 = vshll.u32 2102212464, %v6736
  %v6749 = vshrl.u32 920167782, %v6737
  %v6750 = vor.u32 %v6748, %v6749
  %v6751 = vshll.u32 920167782, %v6736
  %v6752 = vshrl.u32 1326507024, %v6737
  %v6753 = vor.u32 %v6751, %v6752
  %vm6754 = vcmp.lt.s32.totalorder %v6735, 1
  %vm6755 = vcmp.lt.s32.totalorder %v6735, 2
  %vm6756 = vcmp.lt.s32.totalorder %v6735, 3
  %vm6757 = vcmp.lt.s32.totalorder %v6735, 4
  %v6758 = vsel %vm6754, %v6738, %v6741
  %v6759 = vsel %vm6757, %v6747, 2102212464
  %v6760 = vsel %vm6756, %v6744, %v6759
  %v6761 = vsel %vm6755, %v6758, %v6760
  %v6762 = vsel %vm6754, %v6741, %v6744
  %v6763 = vsel %vm6757, %v6750, 920167782
  %v6764 = vsel %vm6756, %v6747, %v6763
  %v6765 = vsel %vm6755, %v6762, %v6764
  %v6766 = vsel %vm6754, %v6744, %v6747
  %v6767 = vsel %vm6757, %v6753, 1326507024
  %v6768 = vsel %vm6756, %v6750, %v6767
  %v6769 = vsel %vm6755, %v6766, %v6768
  %v6770 = vshll.u32 %v6730, 8
  %v6771 = vand.u32 %v6770, 65535
  %v6772 = vshrl.u32 %v6770, 16
  %v6773 = vand.u32 %v6769, 65535
  %v6774 = vshrl.u32 %v6769, 16
  %v6775 = vmul.u32 %v6771, %v6773
  %v6776 = vmul.u32 %v6771, %v6774
  %v6777 = vmul.u32 %v6772, %v6773
  %v6778 = vmul.u32 %v6772, %v6774
  %v6779 = vshll.u32 %v6776, 16
  %v6780 = vshrl.u32 %v6776, 16
  %v6781 = vshll.u32 %v6777, 16
  %v6782 = vshrl.u32 %v6777, 16
  %vm6783 = vc.u32 %v6775, %v6779
  %v6784 = vsel %vm6783, 1, 0
  %v6785 = vadd.s32 %v6775, %v6779
  %v6786 = vadd.s32 %v6778, %v6784
  %vm6787 = vc.u32 %v6785, %v6781
  %v6788 = vsel %vm6787, 1, 0
  %v6789 = vadd.s32 %v6785, %v6781
  %v6790 = vadd.s32 %v6786, %v6788
  %v6791 = vadd.s32 %v6790, %v6780
  %v6792 = vadd.s32 %v6791, %v6782
  %v6793 = vand.u32 %v6770, 65535
  %v6794 = vshrl.u32 %v6770, 16
  %v6795 = vand.u32 %v6765, 65535
  %v6796 = vshrl.u32 %v6765, 16
  %v6797 = vmul.u32 %v6793, %v6795
  %v6798 = vmul.u32 %v6793, %v6796
  %v6799 = vmul.u32 %v6794, %v6795
  %v6800 = vmul.u32 %v6794, %v6796
  %v6801 = vshll.u32 %v6798, 16
  %v6802 = vshrl.u32 %v6798, 16
  %v6803 = vshll.u32 %v6799, 16
  %v6804 = vshrl.u32 %v6799, 16
  %vm6805 = vc.u32 %v6797, %v6801
  %v6806 = vsel %vm6805, 1, 0
  %v6807 = vadd.s32 %v6797, %v6801
  %v6808 = vadd.s32 %v6800, %v6806
  %vm6809 = vc.u32 %v6807, %v6803
  %v6810 = vsel %vm6809, 1, 0
  %v6811 = vadd.s32 %v6807, %v6803
  %v6812 = vadd.s32 %v6808, %v6810
  %v6813 = vadd.s32 %v6812, %v6802
  %v6814 = vadd.s32 %v6813, %v6804
  %v6815 = vmul.u32 %v6770, %v6761
  %v6816 = vadd.s32 %v6792, %v6811
  %vm6817 = vc.u32 %v6792, %v6811
  %v6818 = vadd.s32 %v6814, 1
  %v6819 = vsel %vm6817, %v6818, %v6814
  %v6820 = vadd.s32 %v6815, %v6819
  %v6821 = vadd.s32 %v6820, 536870912
  %v6822 = vshrl.u32 %v6821, 30
  %v6823 = vshll.u32 %v6822, 30
  %v6824 = vsub.s32 %v6820, %v6823
  %vm6825 = vcmp.lt.s32.totalorder %v6824, 0
  %v6826 = vsub.s32 0, %v6824
  %v6827 = vsel %vm6825, %v6826, %v6824
  %v6828 = vclz %v6827
  %v6829 = vsub.s32 %v6828, 2
  %vm6830 = vcmp.gt.s32.totalorder 0, %v6829
  %v6831 = vsel %vm6830, 0, %v6829
  %v6832 = vsub.s32 32, %v6831
  %v6833 = vshll.u32 %v6824, %v6831
  %v6834 = vshrl.u32 %v6816, %v6832
  %v6835 = vor.u32 %v6833, %v6834
  %v6836 = vsub.s32 4294967266, %v6831
  %v6837 = vadd.s32 %v6836, 127
  %v6838 = vshll.u32 %v6837, 23
  %v6839 = vor.u32 4788187, %v6838
  %v6840 = vand.u32 2147483647, %v6839
  %v6842 = vcvt.s32.f32 %v6835
  %v6843 = vmul.f32 %v6842, %v6840
  %v6844 = vxor.u32 %v6843, 2147483648
  %v6845 = vsel %vm6724, %v6844, %v6843
  %v6846 = vsub.s32 4, %v6822
  %v6847 = vsel %vm6724, %v6846, %v6822
  %v6848 = vsel %vm6723, %v503, %v6845
  %v6849 = vsel %vm6723, 0, %v6847
  %v6850 = vmul.f32 %v6848, %v6848
  %v6851 = vmul.f32 %v6850, -0.001358992
  %v6852 = vadd.f32 %v6851, 0.041655596
  %v6853 = vmul.f32 %v6850, %v6852
  %v6854 = vadd.f32 %v6853, -0.4999988
  %v6855 = vmul.f32 %v6850, %v6854
  %v6856 = vadd.f32 1.0, %v6855
  %v6857 = vmul.f32 %v6848, %v6848
  %v6858 = vmul.f32 %v6857, -0.00019511016
  %v6859 = vadd.f32 %v6858, 0.008332121
  %v6860 = vmul.f32 %v6857, %v6859
  %v6861 = vadd.f32 %v6860, -0.16666654
  %v6862 = vmul.f32 %v6857, %v6861
  %v6863 = vadd.f32 %v6862, 1.0
  %v6864 = vmul.f32 %v6863, %v6848
  %vm6865 = vweird.f32 %v503
  %v6866 = vand.u32 %v6849, 3
  %vm6867 = vcmp.lt.s32.totalorder %v6866, 2
  %vm6868 = vcmp.eq.s32.totalorder %v6866, 0
  %v6869 = vxor.u32 %v6864, 2147483648
  %v6870 = vsel %vm6868, %v6856, %v6869
  %vm6871 = vcmp.eq.s32.totalorder %v6866, 2
  %v6872 = vxor.u32 %v6856, 2147483648
  %v6873 = vsel %vm6871, %v6872, %v6864
  %v6874 = vsel %vm6867, %v6870, %v6873
  %v6875 = vsel %vm6865, nan, %v6874
  %v6876 = vand.u32 2147483647, %v504
  %vm6877 = vcmp.le.f32.partialorder %v6876, 0.7853982
  %vm6878 = vcmp.lt.s32.totalorder %v504, 0
  %v6879 = vand.u32 %v504, 2139095040
  %v6880 = vshrl.u32 %v6879, 23
  %v6881 = vsub.s32 %v6880, 127
  %v6882 = vand.u32 2147483647, %v504
  %v6883 = vand.u32 %v6882, 8388607
  %v6884 = vor.u32 %v6883, 8388608
  %v6885 = vsub.s32 0, %v6884
  %v6886 = vadd.s32 %v6881, 1
  %vm6887 = vcmp.gt.s32.totalorder %v6886, 0
  %v6888 = vsel %vm6887, %v6886, 0
  %v6889 = vshrl.u32 %v6888, 5
  %v6890 = vand.u32 %v6888, 31
  %v6891 = vsub.s32 32, %v6890
  %v6892 = vshrl.u32 683565275, %v6891
  %v6893 = vshll.u32 683565275, %v6890
  %v6894 = vshrl.u32 2475754826, %v6891
  %v6895 = vor.u32 %v6893, %v6894
  %v6896 = vshll.u32 2475754826, %v6890
  %v6897 = vshrl.u32 2131351028, %v6891
  %v6898 = vor.u32 %v6896, %v6897
  %v6899 = vshll.u32 2131351028, %v6890
  %v6900 = vshrl.u32 2102212464, %v6891
  %v6901 = vor.u32 %v6899, %v6900
  %v6902 = vshll.u32 2102212464, %v6890
  %v6903 = vshrl.u32 920167782, %v6891
  %v6904 = vor.u32 %v6902, %v6903
  %v6905 = vshll.u32 920167782, %v6890
  %v6906 = vshrl.u32 1326507024, %v6891
  %v6907 = vor.u32 %v6905, %v6906
  %vm6908 = vcmp.lt.s32.totalorder %v6889, 1
  %vm6909 = vcmp.lt.s32.totalorder %v6889, 2
  %vm6910 = vcmp.lt.s32.totalorder %v6889, 3
  %vm6911 = vcmp.lt.s32.totalorder %v6889, 4
  %v6912 = vsel %vm6908, %v6892, %v6895
  %v6913 = vsel %vm6911, %v6901, 2102212464
  %v6914 = vsel %vm6910, %v6898, %v6913
  %v6915 = vsel %vm6909, %v6912, %v6914
  %v6916 = vsel %vm6908, %v6895, %v6898
  %v6917 = vsel %vm6911, %v6904, 920167782
  %v6918 = vsel %vm6910, %v6901, %v6917
  %v6919 = vsel %vm6909, %v6916, %v6918
  %v6920 = vsel %vm6908, %v6898, %v6901
  %v6921 = vsel %vm6911, %v6907, 1326507024
  %v6922 = vsel %vm6910, %v6904, %v6921
  %v6923 = vsel %vm6909, %v6920, %v6922
  %v6924 = vshll.u32 %v6884, 8
  %v6925 = vand.u32 %v6924, 65535
  %v6926 = vshrl.u32 %v6924, 16
  %v6927 = vand.u32 %v6923, 65535
  %v6928 = vshrl.u32 %v6923, 16
  %v6929 = vmul.u32 %v6925, %v6927
  %v6930 = vmul.u32 %v6925, %v6928
  %v6931 = vmul.u32 %v6926, %v6927
  %v6932 = vmul.u32 %v6926, %v6928
  %v6933 = vshll.u32 %v6930, 16
  %v6934 = vshrl.u32 %v6930, 16
  %v6935 = vshll.u32 %v6931, 16
  %v6936 = vshrl.u32 %v6931, 16
  %vm6937 = vc.u32 %v6929, %v6933
  %v6938 = vsel %vm6937, 1, 0
  %v6939 = vadd.s32 %v6929, %v6933
  %v6940 = vadd.s32 %v6932, %v6938
  %vm6941 = vc.u32 %v6939, %v6935
  %v6942 = vsel %vm6941, 1, 0
  %v6943 = vadd.s32 %v6939, %v6935
  %v6944 = vadd.s32 %v6940, %v6942
  %v6945 = vadd.s32 %v6944, %v6934
  %v6946 = vadd.s32 %v6945, %v6936
  %v6947 = vand.u32 %v6924, 65535
  %v6948 = vshrl.u32 %v6924, 16
  %v6949 = vand.u32 %v6919, 65535
  %v6950 = vshrl.u32 %v6919, 16
  %v6951 = vmul.u32 %v6947, %v6949
  %v6952 = vmul.u32 %v6947, %v6950
  %v6953 = vmul.u32 %v6948, %v6949
  %v6954 = vmul.u32 %v6948, %v6950
  %v6955 = vshll.u32 %v6952, 16
  %v6956 = vshrl.u32 %v6952, 16
  %v6957 = vshll.u32 %v6953, 16
  %v6958 = vshrl.u32 %v6953, 16
  %vm6959 = vc.u32 %v6951, %v6955
  %v6960 = vsel %vm6959, 1, 0
  %v6961 = vadd.s32 %v6951, %v6955
  %v6962 = vadd.s32 %v6954, %v6960
  %vm6963 = vc.u32 %v6961, %v6957
  %v6964 = vsel %vm6963, 1, 0
  %v6965 = vadd.s32 %v6961, %v6957
  %v6966 = vadd.s32 %v6962, %v6964
  %v6967 = vadd.s32 %v6966, %v6956
  %v6968 = vadd.s32 %v6967, %v6958
  %v6969 = vmul.u32 %v6924, %v6915
  %v6970 = vadd.s32 %v6946, %v6965
  %vm6971 = vc.u32 %v6946, %v6965
  %v6972 = vadd.s32 %v6968, 1
  %v6973 = vsel %vm6971, %v6972, %v6968
  %v6974 = vadd.s32 %v6969, %v6973
  %v6975 = vadd.s32 %v6974, 536870912
  %v6976 = vshrl.u32 %v6975, 30
  %v6977 = vshll.u32 %v6976, 30
  %v6978 = vsub.s32 %v6974, %v6977
  %vm6979 = vcmp.lt.s32.totalorder %v6978, 0
  %v6980 = vsub.s32 0, %v6978
  %v6981 = vsel %vm6979, %v6980, %v6978
  %v6982 = vclz %v6981
  %v6983 = vsub.s32 %v6982, 2
  %vm6984 = vcmp.gt.s32.totalorder 0, %v6983
  %v6985 = vsel %vm6984, 0, %v6983
  %v6986 = vsub.s32 32, %v6985
  %v6987 = vshll.u32 %v6978, %v6985
  %v6988 = vshrl.u32 %v6970, %v6986
  %v6989 = vor.u32 %v6987, %v6988
  %v6990 = vsub.s32 4294967266, %v6985
  %v6991 = vadd.s32 %v6990, 127
  %v6992 = vshll.u32 %v6991, 23
  %v6993 = vor.u32 4788187, %v6992
  %v6994 = vand.u32 2147483647, %v6993
  %v6996 = vcvt.s32.f32 %v6989
  %v6997 = vmul.f32 %v6996, %v6994
  %v6998 = vxor.u32 %v6997, 2147483648
  %v6999 = vsel %vm6878, %v6998, %v6997
  %v7000 = vsub.s32 4, %v6976
  %v7001 = vsel %vm6878, %v7000, %v6976
  %v7002 = vsel %vm6877, %v504, %v6999
  %v7003 = vsel %vm6877, 0, %v7001
  %v7004 = vmul.f32 %v7002, %v7002
  %v7005 = vmul.f32 %v7004, -0.001358992
  %v7006 = vadd.f32 %v7005, 0.041655596
  %v7007 = vmul.f32 %v7004, %v7006
  %v7008 = vadd.f32 %v7007, -0.4999988
  %v7009 = vmul.f32 %v7004, %v7008
  %v7010 = vadd.f32 1.0, %v7009
  %v7011 = vmul.f32 %v7002, %v7002
  %v7012 = vmul.f32 %v7011, -0.00019511016
  %v7013 = vadd.f32 %v7012, 0.008332121
  %v7014 = vmul.f32 %v7011, %v7013
  %v7015 = vadd.f32 %v7014, -0.16666654
  %v7016 = vmul.f32 %v7011, %v7015
  %v7017 = vadd.f32 %v7016, 1.0
  %v7018 = vmul.f32 %v7017, %v7002
  %vm7019 = vweird.f32 %v504
  %v7020 = vand.u32 %v7003, 3
  %vm7021 = vcmp.lt.s32.totalorder %v7020, 2
  %vm7022 = vcmp.eq.s32.totalorder %v7020, 0
  %v7023 = vxor.u32 %v7018, 2147483648
  %v7024 = vsel %vm7022, %v7010, %v7023
  %vm7025 = vcmp.eq.s32.totalorder %v7020, 2
  %v7026 = vxor.u32 %v7010, 2147483648
  %v7027 = vsel %vm7025, %v7026, %v7018
  %v7028 = vsel %vm7021, %v7024, %v7027
  %v7029 = vsel %vm7019, nan, %v7028
  %v7030 = vand.u32 2147483647, %v505
  %vm7031 = vcmp.le.f32.partialorder %v7030, 0.7853982
  %vm7032 = vcmp.lt.s32.totalorder %v505, 0
  %v7033 = vand.u32 %v505, 2139095040
  %v7034 = vshrl.u32 %v7033, 23
  %v7035 = vsub.s32 %v7034, 127
  %v7036 = vand.u32 2147483647, %v505
  %v7037 = vand.u32 %v7036, 8388607
  %v7038 = vor.u32 %v7037, 8388608
  %v7039 = vsub.s32 0, %v7038
  %v7040 = vadd.s32 %v7035, 1
  %vm7041 = vcmp.gt.s32.totalorder %v7040, 0
  %v7042 = vsel %vm7041, %v7040, 0
  %v7043 = vshrl.u32 %v7042, 5
  %v7044 = vand.u32 %v7042, 31
  %v7045 = vsub.s32 32, %v7044
  %v7046 = vshrl.u32 683565275, %v7045
  %v7047 = vshll.u32 683565275, %v7044
  %v7048 = vshrl.u32 2475754826, %v7045
  %v7049 = vor.u32 %v7047, %v7048
  %v7050 = vshll.u32 2475754826, %v7044
  %v7051 = vshrl.u32 2131351028, %v7045
  %v7052 = vor.u32 %v7050, %v7051
  %v7053 = vshll.u32 2131351028, %v7044
  %v7054 = vshrl.u32 2102212464, %v7045
  %v7055 = vor.u32 %v7053, %v7054
  %v7056 = vshll.u32 2102212464, %v7044
  %v7057 = vshrl.u32 920167782, %v7045
  %v7058 = vor.u32 %v7056, %v7057
  %v7059 = vshll.u32 920167782, %v7044
  %v7060 = vshrl.u32 1326507024, %v7045
  %v7061 = vor.u32 %v7059, %v7060
  %vm7062 = vcmp.lt.s32.totalorder %v7043, 1
  %vm7063 = vcmp.lt.s32.totalorder %v7043, 2
  %vm7064 = vcmp.lt.s32.totalorder %v7043, 3
  %vm7065 = vcmp.lt.s32.totalorder %v7043, 4
  %v7066 = vsel %vm7062, %v7046, %v7049
  %v7067 = vsel %vm7065, %v7055, 2102212464
  %v7068 = vsel %vm7064, %v7052, %v7067
  %v7069 = vsel %vm7063, %v7066, %v7068
  %v7070 = vsel %vm7062, %v7049, %v7052
  %v7071 = vsel %vm7065, %v7058, 920167782
  %v7072 = vsel %vm7064, %v7055, %v7071
  %v7073 = vsel %vm7063, %v7070, %v7072
  %v7074 = vsel %vm7062, %v7052, %v7055
  %v7075 = vsel %vm7065, %v7061, 1326507024
  %v7076 = vsel %vm7064, %v7058, %v7075
  %v7077 = vsel %vm7063, %v7074, %v7076
  %v7078 = vshll.u32 %v7038, 8
  %v7079 = vand.u32 %v7078, 65535
  %v7080 = vshrl.u32 %v7078, 16
  %v7081 = vand.u32 %v7077, 65535
  %v7082 = vshrl.u32 %v7077, 16
  %v7083 = vmul.u32 %v7079, %v7081
  %v7084 = vmul.u32 %v7079, %v7082
  %v7085 = vmul.u32 %v7080, %v7081
  %v7086 = vmul.u32 %v7080, %v7082
  %v7087 = vshll.u32 %v7084, 16
  %v7088 = vshrl.u32 %v7084, 16
  %v7089 = vshll.u32 %v7085, 16
  %v7090 = vshrl.u32 %v7085, 16
  %vm7091 = vc.u32 %v7083, %v7087
  %v7092 = vsel %vm7091, 1, 0
  %v7093 = vadd.s32 %v7083, %v7087
  %v7094 = vadd.s32 %v7086, %v7092
  %vm7095 = vc.u32 %v7093, %v7089
  %v7096 = vsel %vm7095, 1, 0
  %v7097 = vadd.s32 %v7093, %v7089
  %v7098 = vadd.s32 %v7094, %v7096
  %v7099 = vadd.s32 %v7098, %v7088
  %v7100 = vadd.s32 %v7099, %v7090
  %v7101 = vand.u32 %v7078, 65535
  %v7102 = vshrl.u32 %v7078, 16
  %v7103 = vand.u32 %v7073, 65535
  %v7104 = vshrl.u32 %v7073, 16
  %v7105 = vmul.u32 %v7101, %v7103
  %v7106 = vmul.u32 %v7101, %v7104
  %v7107 = vmul.u32 %v7102, %v7103
  %v7108 = vmul.u32 %v7102, %v7104
  %v7109 = vshll.u32 %v7106, 16
  %v7110 = vshrl.u32 %v7106, 16
  %v7111 = vshll.u32 %v7107, 16
  %v7112 = vshrl.u32 %v7107, 16
  %vm7113 = vc.u32 %v7105, %v7109
  %v7114 = vsel %vm7113, 1, 0
  %v7115 = vadd.s32 %v7105, %v7109
  %v7116 = vadd.s32 %v7108, %v7114
  %vm7117 = vc.u32 %v7115, %v7111
  %v7118 = vsel %vm7117, 1, 0
  %v7119 = vadd.s32 %v7115, %v7111
  %v7120 = vadd.s32 %v7116, %v7118
  %v7121 = vadd.s32 %v7120, %v7110
  %v7122 = vadd.s32 %v7121, %v7112
  %v7123 = vmul.u32 %v7078, %v7069
  %v7124 = vadd.s32 %v7100, %v7119
  %vm7125 = vc.u32 %v7100, %v7119
  %v7126 = vadd.s32 %v7122, 1
  %v7127 = vsel %vm7125, %v7126, %v7122
  %v7128 = vadd.s32 %v7123, %v7127
  %v7129 = vadd.s32 %v7128, 536870912
  %v7130 = vshrl.u32 %v7129, 30
  %v7131 = vshll.u32 %v7130, 30
  %v7132 = vsub.s32 %v7128, %v7131
  %vm7133 = vcmp.lt.s32.totalorder %v7132, 0
  %v7134 = vsub.s32 0, %v7132
  %v7135 = vsel %vm7133, %v7134, %v7132
  %v7136 = vclz %v7135
  %v7137 = vsub.s32 %v7136, 2
  %vm7138 = vcmp.gt.s32.totalorder 0, %v7137
  %v7139 = vsel %vm7138, 0, %v7137
  %v7140 = vsub.s32 32, %v7139
  %v7141 = vshll.u32 %v7132, %v7139
  %v7142 = vshrl.u32 %v7124, %v7140
  %v7143 = vor.u32 %v7141, %v7142
  %v7144 = vsub.s32 4294967266, %v7139
  %v7145 = vadd.s32 %v7144, 127
  %v7146 = vshll.u32 %v7145, 23
  %v7147 = vor.u32 4788187, %v7146
  %v7148 = vand.u32 2147483647, %v7147
  %v7150 = vcvt.s32.f32 %v7143
  %v7151 = vmul.f32 %v7150, %v7148
  %v7152 = vxor.u32 %v7151, 2147483648
  %v7153 = vsel %vm7032, %v7152, %v7151
  %v7154 = vsub.s32 4, %v7130
  %v7155 = vsel %vm7032, %v7154, %v7130
  %v7156 = vsel %vm7031, %v505, %v7153
  %v7157 = vsel %vm7031, 0, %v7155
  %v7158 = vmul.f32 %v7156, %v7156
  %v7159 = vmul.f32 %v7158, -0.001358992
  %v7160 = vadd.f32 %v7159, 0.041655596
  %v7161 = vmul.f32 %v7158, %v7160
  %v7162 = vadd.f32 %v7161, -0.4999988
  %v7163 = vmul.f32 %v7158, %v7162
  %v7164 = vadd.f32 1.0, %v7163
  %v7165 = vmul.f32 %v7156, %v7156
  %v7166 = vmul.f32 %v7165, -0.00019511016
  %v7167 = vadd.f32 %v7166, 0.008332121
  %v7168 = vmul.f32 %v7165, %v7167
  %v7169 = vadd.f32 %v7168, -0.16666654
  %v7170 = vmul.f32 %v7165, %v7169
  %v7171 = vadd.f32 %v7170, 1.0
  %v7172 = vmul.f32 %v7171, %v7156
  %vm7173 = vweird.f32 %v505
  %v7174 = vand.u32 %v7157, 3
  %vm7175 = vcmp.lt.s32.totalorder %v7174, 2
  %vm7176 = vcmp.eq.s32.totalorder %v7174, 0
  %v7177 = vxor.u32 %v7172, 2147483648
  %v7178 = vsel %vm7176, %v7164, %v7177
  %vm7179 = vcmp.eq.s32.totalorder %v7174, 2
  %v7180 = vxor.u32 %v7164, 2147483648
  %v7181 = vsel %vm7179, %v7180, %v7172
  %v7182 = vsel %vm7175, %v7178, %v7181
  %v7183 = vsel %vm7173, nan, %v7182
  %v7184 = vand.u32 2147483647, %v506
  %vm7185 = vcmp.le.f32.partialorder %v7184, 0.7853982
  %vm7186 = vcmp.lt.s32.totalorder %v506, 0
  %v7187 = vand.u32 %v506, 2139095040
  %v7188 = vshrl.u32 %v7187, 23
  %v7189 = vsub.s32 %v7188, 127
  %v7190 = vand.u32 2147483647, %v506
  %v7191 = vand.u32 %v7190, 8388607
  %v7192 = vor.u32 %v7191, 8388608
  %v7193 = vsub.s32 0, %v7192
  %v7194 = vadd.s32 %v7189, 1
  %vm7195 = vcmp.gt.s32.totalorder %v7194, 0
  %v7196 = vsel %vm7195, %v7194, 0
  %v7197 = vshrl.u32 %v7196, 5
  %v7198 = vand.u32 %v7196, 31
  %v7199 = vsub.s32 32, %v7198
  %v7200 = vshrl.u32 683565275, %v7199
  %v7201 = vshll.u32 683565275, %v7198
  %v7202 = vshrl.u32 2475754826, %v7199
  %v7203 = vor.u32 %v7201, %v7202
  %v7204 = vshll.u32 2475754826, %v7198
  %v7205 = vshrl.u32 2131351028, %v7199
  %v7206 = vor.u32 %v7204, %v7205
  %v7207 = vshll.u32 2131351028, %v7198
  %v7208 = vshrl.u32 2102212464, %v7199
  %v7209 = vor.u32 %v7207, %v7208
  %v7210 = vshll.u32 2102212464, %v7198
  %v7211 = vshrl.u32 920167782, %v7199
  %v7212 = vor.u32 %v7210, %v7211
  %v7213 = vshll.u32 920167782, %v7198
  %v7214 = vshrl.u32 1326507024, %v7199
  %v7215 = vor.u32 %v7213, %v7214
  %vm7216 = vcmp.lt.s32.totalorder %v7197, 1
  %vm7217 = vcmp.lt.s32.totalorder %v7197, 2
  %vm7218 = vcmp.lt.s32.totalorder %v7197, 3
  %vm7219 = vcmp.lt.s32.totalorder %v7197, 4
  %v7220 = vsel %vm7216, %v7200, %v7203
  %v7221 = vsel %vm7219, %v7209, 2102212464
  %v7222 = vsel %vm7218, %v7206, %v7221
  %v7223 = vsel %vm7217, %v7220, %v7222
  %v7224 = vsel %vm7216, %v7203, %v7206
  %v7225 = vsel %vm7219, %v7212, 920167782
  %v7226 = vsel %vm7218, %v7209, %v7225
  %v7227 = vsel %vm7217, %v7224, %v7226
  %v7228 = vsel %vm7216, %v7206, %v7209
  %v7229 = vsel %vm7219, %v7215, 1326507024
  %v7230 = vsel %vm7218, %v7212, %v7229
  %v7231 = vsel %vm7217, %v7228, %v7230
  %v7232 = vshll.u32 %v7192, 8
  %v7233 = vand.u32 %v7232, 65535
  %v7234 = vshrl.u32 %v7232, 16
  %v7235 = vand.u32 %v7231, 65535
  %v7236 = vshrl.u32 %v7231, 16
  %v7237 = vmul.u32 %v7233, %v7235
  %v7238 = vmul.u32 %v7233, %v7236
  %v7239 = vmul.u32 %v7234, %v7235
  %v7240 = vmul.u32 %v7234, %v7236
  %v7241 = vshll.u32 %v7238, 16
  %v7242 = vshrl.u32 %v7238, 16
  %v7243 = vshll.u32 %v7239, 16
  %v7244 = vshrl.u32 %v7239, 16
  %vm7245 = vc.u32 %v7237, %v7241
  %v7246 = vsel %vm7245, 1, 0
  %v7247 = vadd.s32 %v7237, %v7241
  %v7248 = vadd.s32 %v7240, %v7246
  %vm7249 = vc.u32 %v7247, %v7243
  %v7250 = vsel %vm7249, 1, 0
  %v7251 = vadd.s32 %v7247, %v7243
  %v7252 = vadd.s32 %v7248, %v7250
  %v7253 = vadd.s32 %v7252, %v7242
  %v7254 = vadd.s32 %v7253, %v7244
  %v7255 = vand.u32 %v7232, 65535
  %v7256 = vshrl.u32 %v7232, 16
  %v7257 = vand.u32 %v7227, 65535
  %v7258 = vshrl.u32 %v7227, 16
  %v7259 = vmul.u32 %v7255, %v7257
  %v7260 = vmul.u32 %v7255, %v7258
  %v7261 = vmul.u32 %v7256, %v7257
  %v7262 = vmul.u32 %v7256, %v7258
  %v7263 = vshll.u32 %v7260, 16
  %v7264 = vshrl.u32 %v7260, 16
  %v7265 = vshll.u32 %v7261, 16
  %v7266 = vshrl.u32 %v7261, 16
  %vm7267 = vc.u32 %v7259, %v7263
  %v7268 = vsel %vm7267, 1, 0
  %v7269 = vadd.s32 %v7259, %v7263
  %v7270 = vadd.s32 %v7262, %v7268
  %vm7271 = vc.u32 %v7269, %v7265
  %v7272 = vsel %vm7271, 1, 0
  %v7273 = vadd.s32 %v7269, %v7265
  %v7274 = vadd.s32 %v7270, %v7272
  %v7275 = vadd.s32 %v7274, %v7264
  %v7276 = vadd.s32 %v7275, %v7266
  %v7277 = vmul.u32 %v7232, %v7223
  %v7278 = vadd.s32 %v7254, %v7273
  %vm7279 = vc.u32 %v7254, %v7273
  %v7280 = vadd.s32 %v7276, 1
  %v7281 = vsel %vm7279, %v7280, %v7276
  %v7282 = vadd.s32 %v7277, %v7281
  %v7283 = vadd.s32 %v7282, 536870912
  %v7284 = vshrl.u32 %v7283, 30
  %v7285 = vshll.u32 %v7284, 30
  %v7286 = vsub.s32 %v7282, %v7285
  %vm7287 = vcmp.lt.s32.totalorder %v7286, 0
  %v7288 = vsub.s32 0, %v7286
  %v7289 = vsel %vm7287, %v7288, %v7286
  %v7290 = vclz %v7289
  %v7291 = vsub.s32 %v7290, 2
  %vm7292 = vcmp.gt.s32.totalorder 0, %v7291
  %v7293 = vsel %vm7292, 0, %v7291
  %v7294 = vsub.s32 32, %v7293
  %v7295 = vshll.u32 %v7286, %v7293
  %v7296 = vshrl.u32 %v7278, %v7294
  %v7297 = vor.u32 %v7295, %v7296
  %v7298 = vsub.s32 4294967266, %v7293
  %v7299 = vadd.s32 %v7298, 127
  %v7300 = vshll.u32 %v7299, 23
  %v7301 = vor.u32 4788187, %v7300
  %v7302 = vand.u32 2147483647, %v7301
  %v7304 = vcvt.s32.f32 %v7297
  %v7305 = vmul.f32 %v7304, %v7302
  %v7306 = vxor.u32 %v7305, 2147483648
  %v7307 = vsel %vm7186, %v7306, %v7305
  %v7308 = vsub.s32 4, %v7284
  %v7309 = vsel %vm7186, %v7308, %v7284
  %v7310 = vsel %vm7185, %v506, %v7307
  %v7311 = vsel %vm7185, 0, %v7309
  %v7312 = vmul.f32 %v7310, %v7310
  %v7313 = vmul.f32 %v7312, -0.001358992
  %v7314 = vadd.f32 %v7313, 0.041655596
  %v7315 = vmul.f32 %v7312, %v7314
  %v7316 = vadd.f32 %v7315, -0.4999988
  %v7317 = vmul.f32 %v7312, %v7316
  %v7318 = vadd.f32 1.0, %v7317
  %v7319 = vmul.f32 %v7310, %v7310
  %v7320 = vmul.f32 %v7319, -0.00019511016
  %v7321 = vadd.f32 %v7320, 0.008332121
  %v7322 = vmul.f32 %v7319, %v7321
  %v7323 = vadd.f32 %v7322, -0.16666654
  %v7324 = vmul.f32 %v7319, %v7323
  %v7325 = vadd.f32 %v7324, 1.0
  %v7326 = vmul.f32 %v7325, %v7310
  %vm7327 = vweird.f32 %v506
  %v7328 = vand.u32 %v7311, 3
  %vm7329 = vcmp.lt.s32.totalorder %v7328, 2
  %vm7330 = vcmp.eq.s32.totalorder %v7328, 0
  %v7331 = vxor.u32 %v7326, 2147483648
  %v7332 = vsel %vm7330, %v7318, %v7331
  %vm7333 = vcmp.eq.s32.totalorder %v7328, 2
  %v7334 = vxor.u32 %v7318, 2147483648
  %v7335 = vsel %vm7333, %v7334, %v7326
  %v7336 = vsel %vm7329, %v7332, %v7335
  %v7337 = vsel %vm7327, nan, %v7336
  %v7338 = vand.u32 2147483647, %v507
  %vm7339 = vcmp.le.f32.partialorder %v7338, 0.7853982
  %vm7340 = vcmp.lt.s32.totalorder %v507, 0
  %v7341 = vand.u32 %v507, 2139095040
  %v7342 = vshrl.u32 %v7341, 23
  %v7343 = vsub.s32 %v7342, 127
  %v7344 = vand.u32 2147483647, %v507
  %v7345 = vand.u32 %v7344, 8388607
  %v7346 = vor.u32 %v7345, 8388608
  %v7347 = vsub.s32 0, %v7346
  %v7348 = vadd.s32 %v7343, 1
  %vm7349 = vcmp.gt.s32.totalorder %v7348, 0
  %v7350 = vsel %vm7349, %v7348, 0
  %v7351 = vshrl.u32 %v7350, 5
  %v7352 = vand.u32 %v7350, 31
  %v7353 = vsub.s32 32, %v7352
  %v7354 = vshrl.u32 683565275, %v7353
  %v7355 = vshll.u32 683565275, %v7352
  %v7356 = vshrl.u32 2475754826, %v7353
  %v7357 = vor.u32 %v7355, %v7356
  %v7358 = vshll.u32 2475754826, %v7352
  %v7359 = vshrl.u32 2131351028, %v7353
  %v7360 = vor.u32 %v7358, %v7359
  %v7361 = vshll.u32 2131351028, %v7352
  %v7362 = vshrl.u32 2102212464, %v7353
  %v7363 = vor.u32 %v7361, %v7362
  %v7364 = vshll.u32 2102212464, %v7352
  %v7365 = vshrl.u32 920167782, %v7353
  %v7366 = vor.u32 %v7364, %v7365
  %v7367 = vshll.u32 920167782, %v7352
  %v7368 = vshrl.u32 1326507024, %v7353
  %v7369 = vor.u32 %v7367, %v7368
  %vm7370 = vcmp.lt.s32.totalorder %v7351, 1
  %vm7371 = vcmp.lt.s32.totalorder %v7351, 2
  %vm7372 = vcmp.lt.s32.totalorder %v7351, 3
  %vm7373 = vcmp.lt.s32.totalorder %v7351, 4
  %v7374 = vsel %vm7370, %v7354, %v7357
  %v7375 = vsel %vm7373, %v7363, 2102212464
  %v7376 = vsel %vm7372, %v7360, %v7375
  %v7377 = vsel %vm7371, %v7374, %v7376
  %v7378 = vsel %vm7370, %v7357, %v7360
  %v7379 = vsel %vm7373, %v7366, 920167782
  %v7380 = vsel %vm7372, %v7363, %v7379
  %v7381 = vsel %vm7371, %v7378, %v7380
  %v7382 = vsel %vm7370, %v7360, %v7363
  %v7383 = vsel %vm7373, %v7369, 1326507024
  %v7384 = vsel %vm7372, %v7366, %v7383
  %v7385 = vsel %vm7371, %v7382, %v7384
  %v7386 = vshll.u32 %v7346, 8
  %v7387 = vand.u32 %v7386, 65535
  %v7388 = vshrl.u32 %v7386, 16
  %v7389 = vand.u32 %v7385, 65535
  %v7390 = vshrl.u32 %v7385, 16
  %v7391 = vmul.u32 %v7387, %v7389
  %v7392 = vmul.u32 %v7387, %v7390
  %v7393 = vmul.u32 %v7388, %v7389
  %v7394 = vmul.u32 %v7388, %v7390
  %v7395 = vshll.u32 %v7392, 16
  %v7396 = vshrl.u32 %v7392, 16
  %v7397 = vshll.u32 %v7393, 16
  %v7398 = vshrl.u32 %v7393, 16
  %vm7399 = vc.u32 %v7391, %v7395
  %v7400 = vsel %vm7399, 1, 0
  %v7401 = vadd.s32 %v7391, %v7395
  %v7402 = vadd.s32 %v7394, %v7400
  %vm7403 = vc.u32 %v7401, %v7397
  %v7404 = vsel %vm7403, 1, 0
  %v7405 = vadd.s32 %v7401, %v7397
  %v7406 = vadd.s32 %v7402, %v7404
  %v7407 = vadd.s32 %v7406, %v7396
  %v7408 = vadd.s32 %v7407, %v7398
  %v7409 = vand.u32 %v7386, 65535
  %v7410 = vshrl.u32 %v7386, 16
  %v7411 = vand.u32 %v7381, 65535
  %v7412 = vshrl.u32 %v7381, 16
  %v7413 = vmul.u32 %v7409, %v7411
  %v7414 = vmul.u32 %v7409, %v7412
  %v7415 = vmul.u32 %v7410, %v7411
  %v7416 = vmul.u32 %v7410, %v7412
  %v7417 = vshll.u32 %v7414, 16
  %v7418 = vshrl.u32 %v7414, 16
  %v7419 = vshll.u32 %v7415, 16
  %v7420 = vshrl.u32 %v7415, 16
  %vm7421 = vc.u32 %v7413, %v7417
  %v7422 = vsel %vm7421, 1, 0
  %v7423 = vadd.s32 %v7413, %v7417
  %v7424 = vadd.s32 %v7416, %v7422
  %vm7425 = vc.u32 %v7423, %v7419
  %v7426 = vsel %vm7425, 1, 0
  %v7427 = vadd.s32 %v7423, %v7419
  %v7428 = vadd.s32 %v7424, %v7426
  %v7429 = vadd.s32 %v7428, %v7418
  %v7430 = vadd.s32 %v7429, %v7420
  %v7431 = vmul.u32 %v7386, %v7377
  %v7432 = vadd.s32 %v7408, %v7427
  %vm7433 = vc.u32 %v7408, %v7427
  %v7434 = vadd.s32 %v7430, 1
  %v7435 = vsel %vm7433, %v7434, %v7430
  %v7436 = vadd.s32 %v7431, %v7435
  %v7437 = vadd.s32 %v7436, 536870912
  %v7438 = vshrl.u32 %v7437, 30
  %v7439 = vshll.u32 %v7438, 30
  %v7440 = vsub.s32 %v7436, %v7439
  %vm7441 = vcmp.lt.s32.totalorder %v7440, 0
  %v7442 = vsub.s32 0, %v7440
  %v7443 = vsel %vm7441, %v7442, %v7440
  %v7444 = vclz %v7443
  %v7445 = vsub.s32 %v7444, 2
  %vm7446 = vcmp.gt.s32.totalorder 0, %v7445
  %v7447 = vsel %vm7446, 0, %v7445
  %v7448 = vsub.s32 32, %v7447
  %v7449 = vshll.u32 %v7440, %v7447
  %v7450 = vshrl.u32 %v7432, %v7448
  %v7451 = vor.u32 %v7449, %v7450
  %v7452 = vsub.s32 4294967266, %v7447
  %v7453 = vadd.s32 %v7452, 127
  %v7454 = vshll.u32 %v7453, 23
  %v7455 = vor.u32 4788187, %v7454
  %v7456 = vand.u32 2147483647, %v7455
  %v7458 = vcvt.s32.f32 %v7451
  %v7459 = vmul.f32 %v7458, %v7456
  %v7460 = vxor.u32 %v7459, 2147483648
  %v7461 = vsel %vm7340, %v7460, %v7459
  %v7462 = vsub.s32 4, %v7438
  %v7463 = vsel %vm7340, %v7462, %v7438
  %v7464 = vsel %vm7339, %v507, %v7461
  %v7465 = vsel %vm7339, 0, %v7463
  %v7466 = vmul.f32 %v7464, %v7464
  %v7467 = vmul.f32 %v7466, -0.001358992
  %v7468 = vadd.f32 %v7467, 0.041655596
  %v7469 = vmul.f32 %v7466, %v7468
  %v7470 = vadd.f32 %v7469, -0.4999988
  %v7471 = vmul.f32 %v7466, %v7470
  %v7472 = vadd.f32 1.0, %v7471
  %v7473 = vmul.f32 %v7464, %v7464
  %v7474 = vmul.f32 %v7473, -0.00019511016
  %v7475 = vadd.f32 %v7474, 0.008332121
  %v7476 = vmul.f32 %v7473, %v7475
  %v7477 = vadd.f32 %v7476, -0.16666654
  %v7478 = vmul.f32 %v7473, %v7477
  %v7479 = vadd.f32 %v7478, 1.0
  %v7480 = vmul.f32 %v7479, %v7464
  %vm7481 = vweird.f32 %v507
  %v7482 = vand.u32 %v7465, 3
  %vm7483 = vcmp.lt.s32.totalorder %v7482, 2
  %vm7484 = vcmp.eq.s32.totalorder %v7482, 0
  %v7485 = vxor.u32 %v7480, 2147483648
  %v7486 = vsel %vm7484, %v7472, %v7485
  %vm7487 = vcmp.eq.s32.totalorder %v7482, 2
  %v7488 = vxor.u32 %v7472, 2147483648
  %v7489 = vsel %vm7487, %v7488, %v7480
  %v7490 = vsel %vm7483, %v7486, %v7489
  %v7491 = vsel %vm7481, nan, %v7490
  %v7492 = vand.u32 2147483647, %v508
  %vm7493 = vcmp.le.f32.partialorder %v7492, 0.7853982
  %vm7494 = vcmp.lt.s32.totalorder %v508, 0
  %v7495 = vand.u32 %v508, 2139095040
  %v7496 = vshrl.u32 %v7495, 23
  %v7497 = vsub.s32 %v7496, 127
  %v7498 = vand.u32 2147483647, %v508
  %v7499 = vand.u32 %v7498, 8388607
  %v7500 = vor.u32 %v7499, 8388608
  %v7501 = vsub.s32 0, %v7500
  %v7502 = vadd.s32 %v7497, 1
  %vm7503 = vcmp.gt.s32.totalorder %v7502, 0
  %v7504 = vsel %vm7503, %v7502, 0
  %v7505 = vshrl.u32 %v7504, 5
  %v7506 = vand.u32 %v7504, 31
  %v7507 = vsub.s32 32, %v7506
  %v7508 = vshrl.u32 683565275, %v7507
  %v7509 = vshll.u32 683565275, %v7506
  %v7510 = vshrl.u32 2475754826, %v7507
  %v7511 = vor.u32 %v7509, %v7510
  %v7512 = vshll.u32 2475754826, %v7506
  %v7513 = vshrl.u32 2131351028, %v7507
  %v7514 = vor.u32 %v7512, %v7513
  %v7515 = vshll.u32 2131351028, %v7506
  %v7516 = vshrl.u32 2102212464, %v7507
  %v7517 = vor.u32 %v7515, %v7516
  %v7518 = vshll.u32 2102212464, %v7506
  %v7519 = vshrl.u32 920167782, %v7507
  %v7520 = vor.u32 %v7518, %v7519
  %v7521 = vshll.u32 920167782, %v7506
  %v7522 = vshrl.u32 1326507024, %v7507
  %v7523 = vor.u32 %v7521, %v7522
  %vm7524 = vcmp.lt.s32.totalorder %v7505, 1
  %vm7525 = vcmp.lt.s32.totalorder %v7505, 2
  %vm7526 = vcmp.lt.s32.totalorder %v7505, 3
  %vm7527 = vcmp.lt.s32.totalorder %v7505, 4
  %v7528 = vsel %vm7524, %v7508, %v7511
  %v7529 = vsel %vm7527, %v7517, 2102212464
  %v7530 = vsel %vm7526, %v7514, %v7529
  %v7531 = vsel %vm7525, %v7528, %v7530
  %v7532 = vsel %vm7524, %v7511, %v7514
  %v7533 = vsel %vm7527, %v7520, 920167782
  %v7534 = vsel %vm7526, %v7517, %v7533
  %v7535 = vsel %vm7525, %v7532, %v7534
  %v7536 = vsel %vm7524, %v7514, %v7517
  %v7537 = vsel %vm7527, %v7523, 1326507024
  %v7538 = vsel %vm7526, %v7520, %v7537
  %v7539 = vsel %vm7525, %v7536, %v7538
  %v7540 = vshll.u32 %v7500, 8
  %v7541 = vand.u32 %v7540, 65535
  %v7542 = vshrl.u32 %v7540, 16
  %v7543 = vand.u32 %v7539, 65535
  %v7544 = vshrl.u32 %v7539, 16
  %v7545 = vmul.u32 %v7541, %v7543
  %v7546 = vmul.u32 %v7541, %v7544
  %v7547 = vmul.u32 %v7542, %v7543
  %v7548 = vmul.u32 %v7542, %v7544
  %v7549 = vshll.u32 %v7546, 16
  %v7550 = vshrl.u32 %v7546, 16
  %v7551 = vshll.u32 %v7547, 16
  %v7552 = vshrl.u32 %v7547, 16
  %vm7553 = vc.u32 %v7545, %v7549
  %v7554 = vsel %vm7553, 1, 0
  %v7555 = vadd.s32 %v7545, %v7549
  %v7556 = vadd.s32 %v7548, %v7554
  %vm7557 = vc.u32 %v7555, %v7551
  %v7558 = vsel %vm7557, 1, 0
  %v7559 = vadd.s32 %v7555, %v7551
  %v7560 = vadd.s32 %v7556, %v7558
  %v7561 = vadd.s32 %v7560, %v7550
  %v7562 = vadd.s32 %v7561, %v7552
  %v7563 = vand.u32 %v7540, 65535
  %v7564 = vshrl.u32 %v7540, 16
  %v7565 = vand.u32 %v7535, 65535
  %v7566 = vshrl.u32 %v7535, 16
  %v7567 = vmul.u32 %v7563, %v7565
  %v7568 = vmul.u32 %v7563, %v7566
  %v7569 = vmul.u32 %v7564, %v7565
  %v7570 = vmul.u32 %v7564, %v7566
  %v7571 = vshll.u32 %v7568, 16
  %v7572 = vshrl.u32 %v7568, 16
  %v7573 = vshll.u32 %v7569, 16
  %v7574 = vshrl.u32 %v7569, 16
  %vm7575 = vc.u32 %v7567, %v7571
  %v7576 = vsel %vm7575, 1, 0
  %v7577 = vadd.s32 %v7567, %v7571
  %v7578 = vadd.s32 %v7570, %v7576
  %vm7579 = vc.u32 %v7577, %v7573
  %v7580 = vsel %vm7579, 1, 0
  %v7581 = vadd.s32 %v7577, %v7573
  %v7582 = vadd.s32 %v7578, %v7580
  %v7583 = vadd.s32 %v7582, %v7572
  %v7584 = vadd.s32 %v7583, %v7574
  %v7585 = vmul.u32 %v7540, %v7531
  %v7586 = vadd.s32 %v7562, %v7581
  %vm7587 = vc.u32 %v7562, %v7581
  %v7588 = vadd.s32 %v7584, 1
  %v7589 = vsel %vm7587, %v7588, %v7584
  %v7590 = vadd.s32 %v7585, %v7589
  %v7591 = vadd.s32 %v7590, 536870912
  %v7592 = vshrl.u32 %v7591, 30
  %v7593 = vshll.u32 %v7592, 30
  %v7594 = vsub.s32 %v7590, %v7593
  %vm7595 = vcmp.lt.s32.totalorder %v7594, 0
  %v7596 = vsub.s32 0, %v7594
  %v7597 = vsel %vm7595, %v7596, %v7594
  %v7598 = vclz %v7597
  %v7599 = vsub.s32 %v7598, 2
  %vm7600 = vcmp.gt.s32.totalorder 0, %v7599
  %v7601 = vsel %vm7600, 0, %v7599
  %v7602 = vsub.s32 32, %v7601
  %v7603 = vshll.u32 %v7594, %v7601
  %v7604 = vshrl.u32 %v7586, %v7602
  %v7605 = vor.u32 %v7603, %v7604
  %v7606 = vsub.s32 4294967266, %v7601
  %v7607 = vadd.s32 %v7606, 127
  %v7608 = vshll.u32 %v7607, 23
  %v7609 = vor.u32 4788187, %v7608
  %v7610 = vand.u32 2147483647, %v7609
  %v7612 = vcvt.s32.f32 %v7605
  %v7613 = vmul.f32 %v7612, %v7610
  %v7614 = vxor.u32 %v7613, 2147483648
  %v7615 = vsel %vm7494, %v7614, %v7613
  %v7616 = vsub.s32 4, %v7592
  %v7617 = vsel %vm7494, %v7616, %v7592
  %v7618 = vsel %vm7493, %v508, %v7615
  %v7619 = vsel %vm7493, 0, %v7617
  %v7620 = vmul.f32 %v7618, %v7618
  %v7621 = vmul.f32 %v7620, -0.001358992
  %v7622 = vadd.f32 %v7621, 0.041655596
  %v7623 = vmul.f32 %v7620, %v7622
  %v7624 = vadd.f32 %v7623, -0.4999988
  %v7625 = vmul.f32 %v7620, %v7624
  %v7626 = vadd.f32 1.0, %v7625
  %v7627 = vmul.f32 %v7618, %v7618
  %v7628 = vmul.f32 %v7627, -0.00019511016
  %v7629 = vadd.f32 %v7628, 0.008332121
  %v7630 = vmul.f32 %v7627, %v7629
  %v7631 = vadd.f32 %v7630, -0.16666654
  %v7632 = vmul.f32 %v7627, %v7631
  %v7633 = vadd.f32 %v7632, 1.0
  %v7634 = vmul.f32 %v7633, %v7618
  %vm7635 = vweird.f32 %v508
  %v7636 = vand.u32 %v7619, 3
  %vm7637 = vcmp.lt.s32.totalorder %v7636, 2
  %vm7638 = vcmp.eq.s32.totalorder %v7636, 0
  %v7639 = vxor.u32 %v7634, 2147483648
  %v7640 = vsel %vm7638, %v7626, %v7639
  %vm7641 = vcmp.eq.s32.totalorder %v7636, 2
  %v7642 = vxor.u32 %v7626, 2147483648
  %v7643 = vsel %vm7641, %v7642, %v7634
  %v7644 = vsel %vm7637, %v7640, %v7643
  %v7645 = vsel %vm7635, nan, %v7644
  %v7646 = vand.u32 2147483647, %v509
  %vm7647 = vcmp.le.f32.partialorder %v7646, 0.7853982
  %vm7648 = vcmp.lt.s32.totalorder %v509, 0
  %v7649 = vand.u32 %v509, 2139095040
  %v7650 = vshrl.u32 %v7649, 23
  %v7651 = vsub.s32 %v7650, 127
  %v7652 = vand.u32 2147483647, %v509
  %v7653 = vand.u32 %v7652, 8388607
  %v7654 = vor.u32 %v7653, 8388608
  %v7655 = vsub.s32 0, %v7654
  %v7656 = vadd.s32 %v7651, 1
  %vm7657 = vcmp.gt.s32.totalorder %v7656, 0
  %v7658 = vsel %vm7657, %v7656, 0
  %v7659 = vshrl.u32 %v7658, 5
  %v7660 = vand.u32 %v7658, 31
  %v7661 = vsub.s32 32, %v7660
  %v7662 = vshrl.u32 683565275, %v7661
  %v7663 = vshll.u32 683565275, %v7660
  %v7664 = vshrl.u32 2475754826, %v7661
  %v7665 = vor.u32 %v7663, %v7664
  %v7666 = vshll.u32 2475754826, %v7660
  %v7667 = vshrl.u32 2131351028, %v7661
  %v7668 = vor.u32 %v7666, %v7667
  %v7669 = vshll.u32 2131351028, %v7660
  %v7670 = vshrl.u32 2102212464, %v7661
  %v7671 = vor.u32 %v7669, %v7670
  %v7672 = vshll.u32 2102212464, %v7660
  %v7673 = vshrl.u32 920167782, %v7661
  %v7674 = vor.u32 %v7672, %v7673
  %v7675 = vshll.u32 920167782, %v7660
  %v7676 = vshrl.u32 1326507024, %v7661
  %v7677 = vor.u32 %v7675, %v7676
  %vm7678 = vcmp.lt.s32.totalorder %v7659, 1
  %vm7679 = vcmp.lt.s32.totalorder %v7659, 2
  %vm7680 = vcmp.lt.s32.totalorder %v7659, 3
  %vm7681 = vcmp.lt.s32.totalorder %v7659, 4
  %v7682 = vsel %vm7678, %v7662, %v7665
  %v7683 = vsel %vm7681, %v7671, 2102212464
  %v7684 = vsel %vm7680, %v7668, %v7683
  %v7685 = vsel %vm7679, %v7682, %v7684
  %v7686 = vsel %vm7678, %v7665, %v7668
  %v7687 = vsel %vm7681, %v7674, 920167782
  %v7688 = vsel %vm7680, %v7671, %v7687
  %v7689 = vsel %vm7679, %v7686, %v7688
  %v7690 = vsel %vm7678, %v7668, %v7671
  %v7691 = vsel %vm7681, %v7677, 1326507024
  %v7692 = vsel %vm7680, %v7674, %v7691
  %v7693 = vsel %vm7679, %v7690, %v7692
  %v7694 = vshll.u32 %v7654, 8
  %v7695 = vand.u32 %v7694, 65535
  %v7696 = vshrl.u32 %v7694, 16
  %v7697 = vand.u32 %v7693, 65535
  %v7698 = vshrl.u32 %v7693, 16
  %v7699 = vmul.u32 %v7695, %v7697
  %v7700 = vmul.u32 %v7695, %v7698
  %v7701 = vmul.u32 %v7696, %v7697
  %v7702 = vmul.u32 %v7696, %v7698
  %v7703 = vshll.u32 %v7700, 16
  %v7704 = vshrl.u32 %v7700, 16
  %v7705 = vshll.u32 %v7701, 16
  %v7706 = vshrl.u32 %v7701, 16
  %vm7707 = vc.u32 %v7699, %v7703
  %v7708 = vsel %vm7707, 1, 0
  %v7709 = vadd.s32 %v7699, %v7703
  %v7710 = vadd.s32 %v7702, %v7708
  %vm7711 = vc.u32 %v7709, %v7705
  %v7712 = vsel %vm7711, 1, 0
  %v7713 = vadd.s32 %v7709, %v7705
  %v7714 = vadd.s32 %v7710, %v7712
  %v7715 = vadd.s32 %v7714, %v7704
  %v7716 = vadd.s32 %v7715, %v7706
  %v7717 = vand.u32 %v7694, 65535
  %v7718 = vshrl.u32 %v7694, 16
  %v7719 = vand.u32 %v7689, 65535
  %v7720 = vshrl.u32 %v7689, 16
  %v7721 = vmul.u32 %v7717, %v7719
  %v7722 = vmul.u32 %v7717, %v7720
  %v7723 = vmul.u32 %v7718, %v7719
  %v7724 = vmul.u32 %v7718, %v7720
  %v7725 = vshll.u32 %v7722, 16
  %v7726 = vshrl.u32 %v7722, 16
  %v7727 = vshll.u32 %v7723, 16
  %v7728 = vshrl.u32 %v7723, 16
  %vm7729 = vc.u32 %v7721, %v7725
  %v7730 = vsel %vm7729, 1, 0
  %v7731 = vadd.s32 %v7721, %v7725
  %v7732 = vadd.s32 %v7724, %v7730
  %vm7733 = vc.u32 %v7731, %v7727
  %v7734 = vsel %vm7733, 1, 0
  %v7735 = vadd.s32 %v7731, %v7727
  %v7736 = vadd.s32 %v7732, %v7734
  %v7737 = vadd.s32 %v7736, %v7726
  %v7738 = vadd.s32 %v7737, %v7728
  %v7739 = vmul.u32 %v7694, %v7685
  %v7740 = vadd.s32 %v7716, %v7735
  %vm7741 = vc.u32 %v7716, %v7735
  %v7742 = vadd.s32 %v7738, 1
  %v7743 = vsel %vm7741, %v7742, %v7738
  %v7744 = vadd.s32 %v7739, %v7743
  %v7745 = vadd.s32 %v7744, 536870912
  %v7746 = vshrl.u32 %v7745, 30
  %v7747 = vshll.u32 %v7746, 30
  %v7748 = vsub.s32 %v7744, %v7747
  %vm7749 = vcmp.lt.s32.totalorder %v7748, 0
  %v7750 = vsub.s32 0, %v7748
  %v7751 = vsel %vm7749, %v7750, %v7748
  %v7752 = vclz %v7751
  %v7753 = vsub.s32 %v7752, 2
  %vm7754 = vcmp.gt.s32.totalorder 0, %v7753
  %v7755 = vsel %vm7754, 0, %v7753
  %v7756 = vsub.s32 32, %v7755
  %v7757 = vshll.u32 %v7748, %v7755
  %v7758 = vshrl.u32 %v7740, %v7756
  %v7759 = vor.u32 %v7757, %v7758
  %v7760 = vsub.s32 4294967266, %v7755
  %v7761 = vadd.s32 %v7760, 127
  %v7762 = vshll.u32 %v7761, 23
  %v7763 = vor.u32 4788187, %v7762
  %v7764 = vand.u32 2147483647, %v7763
  %v7766 = vcvt.s32.f32 %v7759
  %v7767 = vmul.f32 %v7766, %v7764
  %v7768 = vxor.u32 %v7767, 2147483648
  %v7769 = vsel %vm7648, %v7768, %v7767
  %v7770 = vsub.s32 4, %v7746
  %v7771 = vsel %vm7648, %v7770, %v7746
  %v7772 = vsel %vm7647, %v509, %v7769
  %v7773 = vsel %vm7647, 0, %v7771
  %v7774 = vmul.f32 %v7772, %v7772
  %v7775 = vmul.f32 %v7774, -0.001358992
  %v7776 = vadd.f32 %v7775, 0.041655596
  %v7777 = vmul.f32 %v7774, %v7776
  %v7778 = vadd.f32 %v7777, -0.4999988
  %v7779 = vmul.f32 %v7774, %v7778
  %v7780 = vadd.f32 1.0, %v7779
  %v7781 = vmul.f32 %v7772, %v7772
  %v7782 = vmul.f32 %v7781, -0.00019511016
  %v7783 = vadd.f32 %v7782, 0.008332121
  %v7784 = vmul.f32 %v7781, %v7783
  %v7785 = vadd.f32 %v7784, -0.16666654
  %v7786 = vmul.f32 %v7781, %v7785
  %v7787 = vadd.f32 %v7786, 1.0
  %v7788 = vmul.f32 %v7787, %v7772
  %vm7789 = vweird.f32 %v509
  %v7790 = vand.u32 %v7773, 3
  %vm7791 = vcmp.lt.s32.totalorder %v7790, 2
  %vm7792 = vcmp.eq.s32.totalorder %v7790, 0
  %v7793 = vxor.u32 %v7788, 2147483648
  %v7794 = vsel %vm7792, %v7780, %v7793
  %vm7795 = vcmp.eq.s32.totalorder %v7790, 2
  %v7796 = vxor.u32 %v7780, 2147483648
  %v7797 = vsel %vm7795, %v7796, %v7788
  %v7798 = vsel %vm7791, %v7794, %v7797
  %v7799 = vsel %vm7789, nan, %v7798
  %v7800 = vand.u32 2147483647, %v510
  %vm7801 = vcmp.le.f32.partialorder %v7800, 0.7853982
  %vm7802 = vcmp.lt.s32.totalorder %v510, 0
  %v7803 = vand.u32 %v510, 2139095040
  %v7804 = vshrl.u32 %v7803, 23
  %v7805 = vsub.s32 %v7804, 127
  %v7806 = vand.u32 2147483647, %v510
  %v7807 = vand.u32 %v7806, 8388607
  %v7808 = vor.u32 %v7807, 8388608
  %v7809 = vsub.s32 0, %v7808
  %v7810 = vadd.s32 %v7805, 1
  %vm7811 = vcmp.gt.s32.totalorder %v7810, 0
  %v7812 = vsel %vm7811, %v7810, 0
  %v7813 = vshrl.u32 %v7812, 5
  %v7814 = vand.u32 %v7812, 31
  %v7815 = vsub.s32 32, %v7814
  %v7816 = vshrl.u32 683565275, %v7815
  %v7817 = vshll.u32 683565275, %v7814
  %v7818 = vshrl.u32 2475754826, %v7815
  %v7819 = vor.u32 %v7817, %v7818
  %v7820 = vshll.u32 2475754826, %v7814
  %v7821 = vshrl.u32 2131351028, %v7815
  %v7822 = vor.u32 %v7820, %v7821
  %v7823 = vshll.u32 2131351028, %v7814
  %v7824 = vshrl.u32 2102212464, %v7815
  %v7825 = vor.u32 %v7823, %v7824
  %v7826 = vshll.u32 2102212464, %v7814
  %v7827 = vshrl.u32 920167782, %v7815
  %v7828 = vor.u32 %v7826, %v7827
  %v7829 = vshll.u32 920167782, %v7814
  %v7830 = vshrl.u32 1326507024, %v7815
  %v7831 = vor.u32 %v7829, %v7830
  %vm7832 = vcmp.lt.s32.totalorder %v7813, 1
  %vm7833 = vcmp.lt.s32.totalorder %v7813, 2
  %vm7834 = vcmp.lt.s32.totalorder %v7813, 3
  %vm7835 = vcmp.lt.s32.totalorder %v7813, 4
  %v7836 = vsel %vm7832, %v7816, %v7819
  %v7837 = vsel %vm7835, %v7825, 2102212464
  %v7838 = vsel %vm7834, %v7822, %v7837
  %v7839 = vsel %vm7833, %v7836, %v7838
  %v7840 = vsel %vm7832, %v7819, %v7822
  %v7841 = vsel %vm7835, %v7828, 920167782
  %v7842 = vsel %vm7834, %v7825, %v7841
  %v7843 = vsel %vm7833, %v7840, %v7842
  %v7844 = vsel %vm7832, %v7822, %v7825
  %v7845 = vsel %vm7835, %v7831, 1326507024
  %v7846 = vsel %vm7834, %v7828, %v7845
  %v7847 = vsel %vm7833, %v7844, %v7846
  %v7848 = vshll.u32 %v7808, 8
  %v7849 = vand.u32 %v7848, 65535
  %v7850 = vshrl.u32 %v7848, 16
  %v7851 = vand.u32 %v7847, 65535
  %v7852 = vshrl.u32 %v7847, 16
  %v7853 = vmul.u32 %v7849, %v7851
  %v7854 = vmul.u32 %v7849, %v7852
  %v7855 = vmul.u32 %v7850, %v7851
  %v7856 = vmul.u32 %v7850, %v7852
  %v7857 = vshll.u32 %v7854, 16
  %v7858 = vshrl.u32 %v7854, 16
  %v7859 = vshll.u32 %v7855, 16
  %v7860 = vshrl.u32 %v7855, 16
  %vm7861 = vc.u32 %v7853, %v7857
  %v7862 = vsel %vm7861, 1, 0
  %v7863 = vadd.s32 %v7853, %v7857
  %v7864 = vadd.s32 %v7856, %v7862
  %vm7865 = vc.u32 %v7863, %v7859
  %v7866 = vsel %vm7865, 1, 0
  %v7867 = vadd.s32 %v7863, %v7859
  %v7868 = vadd.s32 %v7864, %v7866
  %v7869 = vadd.s32 %v7868, %v7858
  %v7870 = vadd.s32 %v7869, %v7860
  %v7871 = vand.u32 %v7848, 65535
  %v7872 = vshrl.u32 %v7848, 16
  %v7873 = vand.u32 %v7843, 65535
  %v7874 = vshrl.u32 %v7843, 16
  %v7875 = vmul.u32 %v7871, %v7873
  %v7876 = vmul.u32 %v7871, %v7874
  %v7877 = vmul.u32 %v7872, %v7873
  %v7878 = vmul.u32 %v7872, %v7874
  %v7879 = vshll.u32 %v7876, 16
  %v7880 = vshrl.u32 %v7876, 16
  %v7881 = vshll.u32 %v7877, 16
  %v7882 = vshrl.u32 %v7877, 16
  %vm7883 = vc.u32 %v7875, %v7879
  %v7884 = vsel %vm7883, 1, 0
  %v7885 = vadd.s32 %v7875, %v7879
  %v7886 = vadd.s32 %v7878, %v7884
  %vm7887 = vc.u32 %v7885, %v7881
  %v7888 = vsel %vm7887, 1, 0
  %v7889 = vadd.s32 %v7885, %v7881
  %v7890 = vadd.s32 %v7886, %v7888
  %v7891 = vadd.s32 %v7890, %v7880
  %v7892 = vadd.s32 %v7891, %v7882
  %v7893 = vmul.u32 %v7848, %v7839
  %v7894 = vadd.s32 %v7870, %v7889
  %vm7895 = vc.u32 %v7870, %v7889
  %v7896 = vadd.s32 %v7892, 1
  %v7897 = vsel %vm7895, %v7896, %v7892
  %v7898 = vadd.s32 %v7893, %v7897
  %v7899 = vadd.s32 %v7898, 536870912
  %v7900 = vshrl.u32 %v7899, 30
  %v7901 = vshll.u32 %v7900, 30
  %v7902 = vsub.s32 %v7898, %v7901
  %vm7903 = vcmp.lt.s32.totalorder %v7902, 0
  %v7904 = vsub.s32 0, %v7902
  %v7905 = vsel %vm7903, %v7904, %v7902
  %v7906 = vclz %v7905
  %v7907 = vsub.s32 %v7906, 2
  %vm7908 = vcmp.gt.s32.totalorder 0, %v7907
  %v7909 = vsel %vm7908, 0, %v7907
  %v7910 = vsub.s32 32, %v7909
  %v7911 = vshll.u32 %v7902, %v7909
  %v7912 = vshrl.u32 %v7894, %v7910
  %v7913 = vor.u32 %v7911, %v7912
  %v7914 = vsub.s32 4294967266, %v7909
  %v7915 = vadd.s32 %v7914, 127
  %v7916 = vshll.u32 %v7915, 23
  %v7917 = vor.u32 4788187, %v7916
  %v7918 = vand.u32 2147483647, %v7917
  %v7920 = vcvt.s32.f32 %v7913
  %v7921 = vmul.f32 %v7920, %v7918
  %v7922 = vxor.u32 %v7921, 2147483648
  %v7923 = vsel %vm7802, %v7922, %v7921
  %v7924 = vsub.s32 4, %v7900
  %v7925 = vsel %vm7802, %v7924, %v7900
  %v7926 = vsel %vm7801, %v510, %v7923
  %v7927 = vsel %vm7801, 0, %v7925
  %v7928 = vmul.f32 %v7926, %v7926
  %v7929 = vmul.f32 %v7928, -0.001358992
  %v7930 = vadd.f32 %v7929, 0.041655596
  %v7931 = vmul.f32 %v7928, %v7930
  %v7932 = vadd.f32 %v7931, -0.4999988
  %v7933 = vmul.f32 %v7928, %v7932
  %v7934 = vadd.f32 1.0, %v7933
  %v7935 = vmul.f32 %v7926, %v7926
  %v7936 = vmul.f32 %v7935, -0.00019511016
  %v7937 = vadd.f32 %v7936, 0.008332121
  %v7938 = vmul.f32 %v7935, %v7937
  %v7939 = vadd.f32 %v7938, -0.16666654
  %v7940 = vmul.f32 %v7935, %v7939
  %v7941 = vadd.f32 %v7940, 1.0
  %v7942 = vmul.f32 %v7941, %v7926
  %vm7943 = vweird.f32 %v510
  %v7944 = vand.u32 %v7927, 3
  %vm7945 = vcmp.lt.s32.totalorder %v7944, 2
  %vm7946 = vcmp.eq.s32.totalorder %v7944, 0
  %v7947 = vxor.u32 %v7942, 2147483648
  %v7948 = vsel %vm7946, %v7934, %v7947
  %vm7949 = vcmp.eq.s32.totalorder %v7944, 2
  %v7950 = vxor.u32 %v7934, 2147483648
  %v7951 = vsel %vm7949, %v7950, %v7942
  %v7952 = vsel %vm7945, %v7948, %v7951
  %v7953 = vsel %vm7943, nan, %v7952
  %v7954 = vand.u32 2147483647, %v511
  %vm7955 = vcmp.le.f32.partialorder %v7954, 0.7853982
  %vm7956 = vcmp.lt.s32.totalorder %v511, 0
  %v7957 = vand.u32 %v511, 2139095040
  %v7958 = vshrl.u32 %v7957, 23
  %v7959 = vsub.s32 %v7958, 127
  %v7960 = vand.u32 2147483647, %v511
  %v7961 = vand.u32 %v7960, 8388607
  %v7962 = vor.u32 %v7961, 8388608
  %v7963 = vsub.s32 0, %v7962
  %v7964 = vadd.s32 %v7959, 1
  %vm7965 = vcmp.gt.s32.totalorder %v7964, 0
  %v7966 = vsel %vm7965, %v7964, 0
  %v7967 = vshrl.u32 %v7966, 5
  %v7968 = vand.u32 %v7966, 31
  %v7969 = vsub.s32 32, %v7968
  %v7970 = vshrl.u32 683565275, %v7969
  %v7971 = vshll.u32 683565275, %v7968
  %v7972 = vshrl.u32 2475754826, %v7969
  %v7973 = vor.u32 %v7971, %v7972
  %v7974 = vshll.u32 2475754826, %v7968
  %v7975 = vshrl.u32 2131351028, %v7969
  %v7976 = vor.u32 %v7974, %v7975
  %v7977 = vshll.u32 2131351028, %v7968
  %v7978 = vshrl.u32 2102212464, %v7969
  %v7979 = vor.u32 %v7977, %v7978
  %v7980 = vshll.u32 2102212464, %v7968
  %v7981 = vshrl.u32 920167782, %v7969
  %v7982 = vor.u32 %v7980, %v7981
  %v7983 = vshll.u32 920167782, %v7968
  %v7984 = vshrl.u32 1326507024, %v7969
  %v7985 = vor.u32 %v7983, %v7984
  %vm7986 = vcmp.lt.s32.totalorder %v7967, 1
  %vm7987 = vcmp.lt.s32.totalorder %v7967, 2
  %vm7988 = vcmp.lt.s32.totalorder %v7967, 3
  %vm7989 = vcmp.lt.s32.totalorder %v7967, 4
  %v7990 = vsel %vm7986, %v7970, %v7973
  %v7991 = vsel %vm7989, %v7979, 2102212464
  %v7992 = vsel %vm7988, %v7976, %v7991
  %v7993 = vsel %vm7987, %v7990, %v7992
  %v7994 = vsel %vm7986, %v7973, %v7976
  %v7995 = vsel %vm7989, %v7982, 920167782
  %v7996 = vsel %vm7988, %v7979, %v7995
  %v7997 = vsel %vm7987, %v7994, %v7996
  %v7998 = vsel %vm7986, %v7976, %v7979
  %v7999 = vsel %vm7989, %v7985, 1326507024
  %v8000 = vsel %vm7988, %v7982, %v7999
  %v8001 = vsel %vm7987, %v7998, %v8000
  %v8002 = vshll.u32 %v7962, 8
  %v8003 = vand.u32 %v8002, 65535
  %v8004 = vshrl.u32 %v8002, 16
  %v8005 = vand.u32 %v8001, 65535
  %v8006 = vshrl.u32 %v8001, 16
  %v8007 = vmul.u32 %v8003, %v8005
  %v8008 = vmul.u32 %v8003, %v8006
  %v8009 = vmul.u32 %v8004, %v8005
  %v8010 = vmul.u32 %v8004, %v8006
  %v8011 = vshll.u32 %v8008, 16
  %v8012 = vshrl.u32 %v8008, 16
  %v8013 = vshll.u32 %v8009, 16
  %v8014 = vshrl.u32 %v8009, 16
  %vm8015 = vc.u32 %v8007, %v8011
  %v8016 = vsel %vm8015, 1, 0
  %v8017 = vadd.s32 %v8007, %v8011
  %v8018 = vadd.s32 %v8010, %v8016
  %vm8019 = vc.u32 %v8017, %v8013
  %v8020 = vsel %vm8019, 1, 0
  %v8021 = vadd.s32 %v8017, %v8013
  %v8022 = vadd.s32 %v8018, %v8020
  %v8023 = vadd.s32 %v8022, %v8012
  %v8024 = vadd.s32 %v8023, %v8014
  %v8025 = vand.u32 %v8002, 65535
  %v8026 = vshrl.u32 %v8002, 16
  %v8027 = vand.u32 %v7997, 65535
  %v8028 = vshrl.u32 %v7997, 16
  %v8029 = vmul.u32 %v8025, %v8027
  %v8030 = vmul.u32 %v8025, %v8028
  %v8031 = vmul.u32 %v8026, %v8027
  %v8032 = vmul.u32 %v8026, %v8028
  %v8033 = vshll.u32 %v8030, 16
  %v8034 = vshrl.u32 %v8030, 16
  %v8035 = vshll.u32 %v8031, 16
  %v8036 = vshrl.u32 %v8031, 16
  %vm8037 = vc.u32 %v8029, %v8033
  %v8038 = vsel %vm8037, 1, 0
  %v8039 = vadd.s32 %v8029, %v8033
  %v8040 = vadd.s32 %v8032, %v8038
  %vm8041 = vc.u32 %v8039, %v8035
  %v8042 = vsel %vm8041, 1, 0
  %v8043 = vadd.s32 %v8039, %v8035
  %v8044 = vadd.s32 %v8040, %v8042
  %v8045 = vadd.s32 %v8044, %v8034
  %v8046 = vadd.s32 %v8045, %v8036
  %v8047 = vmul.u32 %v8002, %v7993
  %v8048 = vadd.s32 %v8024, %v8043
  %vm8049 = vc.u32 %v8024, %v8043
  %v8050 = vadd.s32 %v8046, 1
  %v8051 = vsel %vm8049, %v8050, %v8046
  %v8052 = vadd.s32 %v8047, %v8051
  %v8053 = vadd.s32 %v8052, 536870912
  %v8054 = vshrl.u32 %v8053, 30
  %v8055 = vshll.u32 %v8054, 30
  %v8056 = vsub.s32 %v8052, %v8055
  %vm8057 = vcmp.lt.s32.totalorder %v8056, 0
  %v8058 = vsub.s32 0, %v8056
  %v8059 = vsel %vm8057, %v8058, %v8056
  %v8060 = vclz %v8059
  %v8061 = vsub.s32 %v8060, 2
  %vm8062 = vcmp.gt.s32.totalorder 0, %v8061
  %v8063 = vsel %vm8062, 0, %v8061
  %v8064 = vsub.s32 32, %v8063
  %v8065 = vshll.u32 %v8056, %v8063
  %v8066 = vshrl.u32 %v8048, %v8064
  %v8067 = vor.u32 %v8065, %v8066
  %v8068 = vsub.s32 4294967266, %v8063
  %v8069 = vadd.s32 %v8068, 127
  %v8070 = vshll.u32 %v8069, 23
  %v8071 = vor.u32 4788187, %v8070
  %v8072 = vand.u32 2147483647, %v8071
  %v8074 = vcvt.s32.f32 %v8067
  %v8075 = vmul.f32 %v8074, %v8072
  %v8076 = vxor.u32 %v8075, 2147483648
  %v8077 = vsel %vm7956, %v8076, %v8075
  %v8078 = vsub.s32 4, %v8054
  %v8079 = vsel %vm7956, %v8078, %v8054
  %v8080 = vsel %vm7955, %v511, %v8077
  %v8081 = vsel %vm7955, 0, %v8079
  %v8082 = vmul.f32 %v8080, %v8080
  %v8083 = vmul.f32 %v8082, -0.001358992
  %v8084 = vadd.f32 %v8083, 0.041655596
  %v8085 = vmul.f32 %v8082, %v8084
  %v8086 = vadd.f32 %v8085, -0.4999988
  %v8087 = vmul.f32 %v8082, %v8086
  %v8088 = vadd.f32 1.0, %v8087
  %v8089 = vmul.f32 %v8080, %v8080
  %v8090 = vmul.f32 %v8089, -0.00019511016
  %v8091 = vadd.f32 %v8090, 0.008332121
  %v8092 = vmul.f32 %v8089, %v8091
  %v8093 = vadd.f32 %v8092, -0.16666654
  %v8094 = vmul.f32 %v8089, %v8093
  %v8095 = vadd.f32 %v8094, 1.0
  %v8096 = vmul.f32 %v8095, %v8080
  %vm8097 = vweird.f32 %v511
  %v8098 = vand.u32 %v8081, 3
  %vm8099 = vcmp.lt.s32.totalorder %v8098, 2
  %vm8100 = vcmp.eq.s32.totalorder %v8098, 0
  %v8101 = vxor.u32 %v8096, 2147483648
  %v8102 = vsel %vm8100, %v8088, %v8101
  %vm8103 = vcmp.eq.s32.totalorder %v8098, 2
  %v8104 = vxor.u32 %v8088, 2147483648
  %v8105 = vsel %vm8103, %v8104, %v8096
  %v8106 = vsel %vm8099, %v8102, %v8105
  %v8107 = vsel %vm8097, nan, %v8106
  %v8108 = vand.u32 2147483647, %v512
  %vm8109 = vcmp.le.f32.partialorder %v8108, 0.7853982
  %vm8110 = vcmp.lt.s32.totalorder %v512, 0
  %v8111 = vand.u32 %v512, 2139095040
  %v8112 = vshrl.u32 %v8111, 23
  %v8113 = vsub.s32 %v8112, 127
  %v8114 = vand.u32 2147483647, %v512
  %v8115 = vand.u32 %v8114, 8388607
  %v8116 = vor.u32 %v8115, 8388608
  %v8117 = vsub.s32 0, %v8116
  %v8118 = vadd.s32 %v8113, 1
  %vm8119 = vcmp.gt.s32.totalorder %v8118, 0
  %v8120 = vsel %vm8119, %v8118, 0
  %v8121 = vshrl.u32 %v8120, 5
  %v8122 = vand.u32 %v8120, 31
  %v8123 = vsub.s32 32, %v8122
  %v8124 = vshrl.u32 683565275, %v8123
  %v8125 = vshll.u32 683565275, %v8122
  %v8126 = vshrl.u32 2475754826, %v8123
  %v8127 = vor.u32 %v8125, %v8126
  %v8128 = vshll.u32 2475754826, %v8122
  %v8129 = vshrl.u32 2131351028, %v8123
  %v8130 = vor.u32 %v8128, %v8129
  %v8131 = vshll.u32 2131351028, %v8122
  %v8132 = vshrl.u32 2102212464, %v8123
  %v8133 = vor.u32 %v8131, %v8132
  %v8134 = vshll.u32 2102212464, %v8122
  %v8135 = vshrl.u32 920167782, %v8123
  %v8136 = vor.u32 %v8134, %v8135
  %v8137 = vshll.u32 920167782, %v8122
  %v8138 = vshrl.u32 1326507024, %v8123
  %v8139 = vor.u32 %v8137, %v8138
  %vm8140 = vcmp.lt.s32.totalorder %v8121, 1
  %vm8141 = vcmp.lt.s32.totalorder %v8121, 2
  %vm8142 = vcmp.lt.s32.totalorder %v8121, 3
  %vm8143 = vcmp.lt.s32.totalorder %v8121, 4
  %v8144 = vsel %vm8140, %v8124, %v8127
  %v8145 = vsel %vm8143, %v8133, 2102212464
  %v8146 = vsel %vm8142, %v8130, %v8145
  %v8147 = vsel %vm8141, %v8144, %v8146
  %v8148 = vsel %vm8140, %v8127, %v8130
  %v8149 = vsel %vm8143, %v8136, 920167782
  %v8150 = vsel %vm8142, %v8133, %v8149
  %v8151 = vsel %vm8141, %v8148, %v8150
  %v8152 = vsel %vm8140, %v8130, %v8133
  %v8153 = vsel %vm8143, %v8139, 1326507024
  %v8154 = vsel %vm8142, %v8136, %v8153
  %v8155 = vsel %vm8141, %v8152, %v8154
  %v8156 = vshll.u32 %v8116, 8
  %v8157 = vand.u32 %v8156, 65535
  %v8158 = vshrl.u32 %v8156, 16
  %v8159 = vand.u32 %v8155, 65535
  %v8160 = vshrl.u32 %v8155, 16
  %v8161 = vmul.u32 %v8157, %v8159
  %v8162 = vmul.u32 %v8157, %v8160
  %v8163 = vmul.u32 %v8158, %v8159
  %v8164 = vmul.u32 %v8158, %v8160
  %v8165 = vshll.u32 %v8162, 16
  %v8166 = vshrl.u32 %v8162, 16
  %v8167 = vshll.u32 %v8163, 16
  %v8168 = vshrl.u32 %v8163, 16
  %vm8169 = vc.u32 %v8161, %v8165
  %v8170 = vsel %vm8169, 1, 0
  %v8171 = vadd.s32 %v8161, %v8165
  %v8172 = vadd.s32 %v8164, %v8170
  %vm8173 = vc.u32 %v8171, %v8167
  %v8174 = vsel %vm8173, 1, 0
  %v8175 = vadd.s32 %v8171, %v8167
  %v8176 = vadd.s32 %v8172, %v8174
  %v8177 = vadd.s32 %v8176, %v8166
  %v8178 = vadd.s32 %v8177, %v8168
  %v8179 = vand.u32 %v8156, 65535
  %v8180 = vshrl.u32 %v8156, 16
  %v8181 = vand.u32 %v8151, 65535
  %v8182 = vshrl.u32 %v8151, 16
  %v8183 = vmul.u32 %v8179, %v8181
  %v8184 = vmul.u32 %v8179, %v8182
  %v8185 = vmul.u32 %v8180, %v8181
  %v8186 = vmul.u32 %v8180, %v8182
  %v8187 = vshll.u32 %v8184, 16
  %v8188 = vshrl.u32 %v8184, 16
  %v8189 = vshll.u32 %v8185, 16
  %v8190 = vshrl.u32 %v8185, 16
  %vm8191 = vc.u32 %v8183, %v8187
  %v8192 = vsel %vm8191, 1, 0
  %v8193 = vadd.s32 %v8183, %v8187
  %v8194 = vadd.s32 %v8186, %v8192
  %vm8195 = vc.u32 %v8193, %v8189
  %v8196 = vsel %vm8195, 1, 0
  %v8197 = vadd.s32 %v8193, %v8189
  %v8198 = vadd.s32 %v8194, %v8196
  %v8199 = vadd.s32 %v8198, %v8188
  %v8200 = vadd.s32 %v8199, %v8190
  %v8201 = vmul.u32 %v8156, %v8147
  %v8202 = vadd.s32 %v8178, %v8197
  %vm8203 = vc.u32 %v8178, %v8197
  %v8204 = vadd.s32 %v8200, 1
  %v8205 = vsel %vm8203, %v8204, %v8200
  %v8206 = vadd.s32 %v8201, %v8205
  %v8207 = vadd.s32 %v8206, 536870912
  %v8208 = vshrl.u32 %v8207, 30
  %v8209 = vshll.u32 %v8208, 30
  %v8210 = vsub.s32 %v8206, %v8209
  %vm8211 = vcmp.lt.s32.totalorder %v8210, 0
  %v8212 = vsub.s32 0, %v8210
  %v8213 = vsel %vm8211, %v8212, %v8210
  %v8214 = vclz %v8213
  %v8215 = vsub.s32 %v8214, 2
  %vm8216 = vcmp.gt.s32.totalorder 0, %v8215
  %v8217 = vsel %vm8216, 0, %v8215
  %v8218 = vsub.s32 32, %v8217
  %v8219 = vshll.u32 %v8210, %v8217
  %v8220 = vshrl.u32 %v8202, %v8218
  %v8221 = vor.u32 %v8219, %v8220
  %v8222 = vsub.s32 4294967266, %v8217
  %v8223 = vadd.s32 %v8222, 127
  %v8224 = vshll.u32 %v8223, 23
  %v8225 = vor.u32 4788187, %v8224
  %v8226 = vand.u32 2147483647, %v8225
  %v8228 = vcvt.s32.f32 %v8221
  %v8229 = vmul.f32 %v8228, %v8226
  %v8230 = vxor.u32 %v8229, 2147483648
  %v8231 = vsel %vm8110, %v8230, %v8229
  %v8232 = vsub.s32 4, %v8208
  %v8233 = vsel %vm8110, %v8232, %v8208
  %v8234 = vsel %vm8109, %v512, %v8231
  %v8235 = vsel %vm8109, 0, %v8233
  %v8236 = vmul.f32 %v8234, %v8234
  %v8237 = vmul.f32 %v8236, -0.001358992
  %v8238 = vadd.f32 %v8237, 0.041655596
  %v8239 = vmul.f32 %v8236, %v8238
  %v8240 = vadd.f32 %v8239, -0.4999988
  %v8241 = vmul.f32 %v8236, %v8240
  %v8242 = vadd.f32 1.0, %v8241
  %v8243 = vmul.f32 %v8234, %v8234
  %v8244 = vmul.f32 %v8243, -0.00019511016
  %v8245 = vadd.f32 %v8244, 0.008332121
  %v8246 = vmul.f32 %v8243, %v8245
  %v8247 = vadd.f32 %v8246, -0.16666654
  %v8248 = vmul.f32 %v8243, %v8247
  %v8249 = vadd.f32 %v8248, 1.0
  %v8250 = vmul.f32 %v8249, %v8234
  %vm8251 = vweird.f32 %v512
  %v8252 = vand.u32 %v8235, 3
  %vm8253 = vcmp.lt.s32.totalorder %v8252, 2
  %vm8254 = vcmp.eq.s32.totalorder %v8252, 0
  %v8255 = vxor.u32 %v8250, 2147483648
  %v8256 = vsel %vm8254, %v8242, %v8255
  %vm8257 = vcmp.eq.s32.totalorder %v8252, 2
  %v8258 = vxor.u32 %v8242, 2147483648
  %v8259 = vsel %vm8257, %v8258, %v8250
  %v8260 = vsel %vm8253, %v8256, %v8259
  %v8261 = vsel %vm8251, nan, %v8260
  %v8262 = vand.u32 2147483647, %v513
  %vm8263 = vcmp.le.f32.partialorder %v8262, 0.7853982
  %vm8264 = vcmp.lt.s32.totalorder %v513, 0
  %v8265 = vand.u32 %v513, 2139095040
  %v8266 = vshrl.u32 %v8265, 23
  %v8267 = vsub.s32 %v8266, 127
  %v8268 = vand.u32 2147483647, %v513
  %v8269 = vand.u32 %v8268, 8388607
  %v8270 = vor.u32 %v8269, 8388608
  %v8271 = vsub.s32 0, %v8270
  %v8272 = vadd.s32 %v8267, 1
  %vm8273 = vcmp.gt.s32.totalorder %v8272, 0
  %v8274 = vsel %vm8273, %v8272, 0
  %v8275 = vshrl.u32 %v8274, 5
  %v8276 = vand.u32 %v8274, 31
  %v8277 = vsub.s32 32, %v8276
  %v8278 = vshrl.u32 683565275, %v8277
  %v8279 = vshll.u32 683565275, %v8276
  %v8280 = vshrl.u32 2475754826, %v8277
  %v8281 = vor.u32 %v8279, %v8280
  %v8282 = vshll.u32 2475754826, %v8276
  %v8283 = vshrl.u32 2131351028, %v8277
  %v8284 = vor.u32 %v8282, %v8283
  %v8285 = vshll.u32 2131351028, %v8276
  %v8286 = vshrl.u32 2102212464, %v8277
  %v8287 = vor.u32 %v8285, %v8286
  %v8288 = vshll.u32 2102212464, %v8276
  %v8289 = vshrl.u32 920167782, %v8277
  %v8290 = vor.u32 %v8288, %v8289
  %v8291 = vshll.u32 920167782, %v8276
  %v8292 = vshrl.u32 1326507024, %v8277
  %v8293 = vor.u32 %v8291, %v8292
  %vm8294 = vcmp.lt.s32.totalorder %v8275, 1
  %vm8295 = vcmp.lt.s32.totalorder %v8275, 2
  %vm8296 = vcmp.lt.s32.totalorder %v8275, 3
  %vm8297 = vcmp.lt.s32.totalorder %v8275, 4
  %v8298 = vsel %vm8294, %v8278, %v8281
  %v8299 = vsel %vm8297, %v8287, 2102212464
  %v8300 = vsel %vm8296, %v8284, %v8299
  %v8301 = vsel %vm8295, %v8298, %v8300
  %v8302 = vsel %vm8294, %v8281, %v8284
  %v8303 = vsel %vm8297, %v8290, 920167782
  %v8304 = vsel %vm8296, %v8287, %v8303
  %v8305 = vsel %vm8295, %v8302, %v8304
  %v8306 = vsel %vm8294, %v8284, %v8287
  %v8307 = vsel %vm8297, %v8293, 1326507024
  %v8308 = vsel %vm8296, %v8290, %v8307
  %v8309 = vsel %vm8295, %v8306, %v8308
  %v8310 = vshll.u32 %v8270, 8
  %v8311 = vand.u32 %v8310, 65535
  %v8312 = vshrl.u32 %v8310, 16
  %v8313 = vand.u32 %v8309, 65535
  %v8314 = vshrl.u32 %v8309, 16
  %v8315 = vmul.u32 %v8311, %v8313
  %v8316 = vmul.u32 %v8311, %v8314
  %v8317 = vmul.u32 %v8312, %v8313
  %v8318 = vmul.u32 %v8312, %v8314
  %v8319 = vshll.u32 %v8316, 16
  %v8320 = vshrl.u32 %v8316, 16
  %v8321 = vshll.u32 %v8317, 16
  %v8322 = vshrl.u32 %v8317, 16
  %vm8323 = vc.u32 %v8315, %v8319
  %v8324 = vsel %vm8323, 1, 0
  %v8325 = vadd.s32 %v8315, %v8319
  %v8326 = vadd.s32 %v8318, %v8324
  %vm8327 = vc.u32 %v8325, %v8321
  %v8328 = vsel %vm8327, 1, 0
  %v8329 = vadd.s32 %v8325, %v8321
  %v8330 = vadd.s32 %v8326, %v8328
  %v8331 = vadd.s32 %v8330, %v8320
  %v8332 = vadd.s32 %v8331, %v8322
  %v8333 = vand.u32 %v8310, 65535
  %v8334 = vshrl.u32 %v8310, 16
  %v8335 = vand.u32 %v8305, 65535
  %v8336 = vshrl.u32 %v8305, 16
  %v8337 = vmul.u32 %v8333, %v8335
  %v8338 = vmul.u32 %v8333, %v8336
  %v8339 = vmul.u32 %v8334, %v8335
  %v8340 = vmul.u32 %v8334, %v8336
  %v8341 = vshll.u32 %v8338, 16
  %v8342 = vshrl.u32 %v8338, 16
  %v8343 = vshll.u32 %v8339, 16
  %v8344 = vshrl.u32 %v8339, 16
  %vm8345 = vc.u32 %v8337, %v8341
  %v8346 = vsel %vm8345, 1, 0
  %v8347 = vadd.s32 %v8337, %v8341
  %v8348 = vadd.s32 %v8340, %v8346
  %vm8349 = vc.u32 %v8347, %v8343
  %v8350 = vsel %vm8349, 1, 0
  %v8351 = vadd.s32 %v8347, %v8343
  %v8352 = vadd.s32 %v8348, %v8350
  %v8353 = vadd.s32 %v8352, %v8342
  %v8354 = vadd.s32 %v8353, %v8344
  %v8355 = vmul.u32 %v8310, %v8301
  %v8356 = vadd.s32 %v8332, %v8351
  %vm8357 = vc.u32 %v8332, %v8351
  %v8358 = vadd.s32 %v8354, 1
  %v8359 = vsel %vm8357, %v8358, %v8354
  %v8360 = vadd.s32 %v8355, %v8359
  %v8361 = vadd.s32 %v8360, 536870912
  %v8362 = vshrl.u32 %v8361, 30
  %v8363 = vshll.u32 %v8362, 30
  %v8364 = vsub.s32 %v8360, %v8363
  %vm8365 = vcmp.lt.s32.totalorder %v8364, 0
  %v8366 = vsub.s32 0, %v8364
  %v8367 = vsel %vm8365, %v8366, %v8364
  %v8368 = vclz %v8367
  %v8369 = vsub.s32 %v8368, 2
  %vm8370 = vcmp.gt.s32.totalorder 0, %v8369
  %v8371 = vsel %vm8370, 0, %v8369
  %v8372 = vsub.s32 32, %v8371
  %v8373 = vshll.u32 %v8364, %v8371
  %v8374 = vshrl.u32 %v8356, %v8372
  %v8375 = vor.u32 %v8373, %v8374
  %v8376 = vsub.s32 4294967266, %v8371
  %v8377 = vadd.s32 %v8376, 127
  %v8378 = vshll.u32 %v8377, 23
  %v8379 = vor.u32 4788187, %v8378
  %v8380 = vand.u32 2147483647, %v8379
  %v8382 = vcvt.s32.f32 %v8375
  %v8383 = vmul.f32 %v8382, %v8380
  %v8384 = vxor.u32 %v8383, 2147483648
  %v8385 = vsel %vm8264, %v8384, %v8383
  %v8386 = vsub.s32 4, %v8362
  %v8387 = vsel %vm8264, %v8386, %v8362
  %v8388 = vsel %vm8263, %v513, %v8385
  %v8389 = vsel %vm8263, 0, %v8387
  %v8390 = vmul.f32 %v8388, %v8388
  %v8391 = vmul.f32 %v8390, -0.001358992
  %v8392 = vadd.f32 %v8391, 0.041655596
  %v8393 = vmul.f32 %v8390, %v8392
  %v8394 = vadd.f32 %v8393, -0.4999988
  %v8395 = vmul.f32 %v8390, %v8394
  %v8396 = vadd.f32 1.0, %v8395
  %v8397 = vmul.f32 %v8388, %v8388
  %v8398 = vmul.f32 %v8397, -0.00019511016
  %v8399 = vadd.f32 %v8398, 0.008332121
  %v8400 = vmul.f32 %v8397, %v8399
  %v8401 = vadd.f32 %v8400, -0.16666654
  %v8402 = vmul.f32 %v8397, %v8401
  %v8403 = vadd.f32 %v8402, 1.0
  %v8404 = vmul.f32 %v8403, %v8388
  %vm8405 = vweird.f32 %v513
  %v8406 = vand.u32 %v8389, 3
  %vm8407 = vcmp.lt.s32.totalorder %v8406, 2
  %vm8408 = vcmp.eq.s32.totalorder %v8406, 0
  %v8409 = vxor.u32 %v8404, 2147483648
  %v8410 = vsel %vm8408, %v8396, %v8409
  %vm8411 = vcmp.eq.s32.totalorder %v8406, 2
  %v8412 = vxor.u32 %v8396, 2147483648
  %v8413 = vsel %vm8411, %v8412, %v8404
  %v8414 = vsel %vm8407, %v8410, %v8413
  %v8415 = vsel %vm8405, nan, %v8414
  %v8416 = vand.u32 2147483647, %v514
  %vm8417 = vcmp.le.f32.partialorder %v8416, 0.7853982
  %vm8418 = vcmp.lt.s32.totalorder %v514, 0
  %v8419 = vand.u32 %v514, 2139095040
  %v8420 = vshrl.u32 %v8419, 23
  %v8421 = vsub.s32 %v8420, 127
  %v8422 = vand.u32 2147483647, %v514
  %v8423 = vand.u32 %v8422, 8388607
  %v8424 = vor.u32 %v8423, 8388608
  %v8425 = vsub.s32 0, %v8424
  %v8426 = vadd.s32 %v8421, 1
  %vm8427 = vcmp.gt.s32.totalorder %v8426, 0
  %v8428 = vsel %vm8427, %v8426, 0
  %v8429 = vshrl.u32 %v8428, 5
  %v8430 = vand.u32 %v8428, 31
  %v8431 = vsub.s32 32, %v8430
  %v8432 = vshrl.u32 683565275, %v8431
  %v8433 = vshll.u32 683565275, %v8430
  %v8434 = vshrl.u32 2475754826, %v8431
  %v8435 = vor.u32 %v8433, %v8434
  %v8436 = vshll.u32 2475754826, %v8430
  %v8437 = vshrl.u32 2131351028, %v8431
  %v8438 = vor.u32 %v8436, %v8437
  %v8439 = vshll.u32 2131351028, %v8430
  %v8440 = vshrl.u32 2102212464, %v8431
  %v8441 = vor.u32 %v8439, %v8440
  %v8442 = vshll.u32 2102212464, %v8430
  %v8443 = vshrl.u32 920167782, %v8431
  %v8444 = vor.u32 %v8442, %v8443
  %v8445 = vshll.u32 920167782, %v8430
  %v8446 = vshrl.u32 1326507024, %v8431
  %v8447 = vor.u32 %v8445, %v8446
  %vm8448 = vcmp.lt.s32.totalorder %v8429, 1
  %vm8449 = vcmp.lt.s32.totalorder %v8429, 2
  %vm8450 = vcmp.lt.s32.totalorder %v8429, 3
  %vm8451 = vcmp.lt.s32.totalorder %v8429, 4
  %v8452 = vsel %vm8448, %v8432, %v8435
  %v8453 = vsel %vm8451, %v8441, 2102212464
  %v8454 = vsel %vm8450, %v8438, %v8453
  %v8455 = vsel %vm8449, %v8452, %v8454
  %v8456 = vsel %vm8448, %v8435, %v8438
  %v8457 = vsel %vm8451, %v8444, 920167782
  %v8458 = vsel %vm8450, %v8441, %v8457
  %v8459 = vsel %vm8449, %v8456, %v8458
  %v8460 = vsel %vm8448, %v8438, %v8441
  %v8461 = vsel %vm8451, %v8447, 1326507024
  %v8462 = vsel %vm8450, %v8444, %v8461
  %v8463 = vsel %vm8449, %v8460, %v8462
  %v8464 = vshll.u32 %v8424, 8
  %v8465 = vand.u32 %v8464, 65535
  %v8466 = vshrl.u32 %v8464, 16
  %v8467 = vand.u32 %v8463, 65535
  %v8468 = vshrl.u32 %v8463, 16
  %v8469 = vmul.u32 %v8465, %v8467
  %v8470 = vmul.u32 %v8465, %v8468
  %v8471 = vmul.u32 %v8466, %v8467
  %v8472 = vmul.u32 %v8466, %v8468
  %v8473 = vshll.u32 %v8470, 16
  %v8474 = vshrl.u32 %v8470, 16
  %v8475 = vshll.u32 %v8471, 16
  %v8476 = vshrl.u32 %v8471, 16
  %vm8477 = vc.u32 %v8469, %v8473
  %v8478 = vsel %vm8477, 1, 0
  %v8479 = vadd.s32 %v8469, %v8473
  %v8480 = vadd.s32 %v8472, %v8478
  %vm8481 = vc.u32 %v8479, %v8475
  %v8482 = vsel %vm8481, 1, 0
  %v8483 = vadd.s32 %v8479, %v8475
  %v8484 = vadd.s32 %v8480, %v8482
  %v8485 = vadd.s32 %v8484, %v8474
  %v8486 = vadd.s32 %v8485, %v8476
  %v8487 = vand.u32 %v8464, 65535
  %v8488 = vshrl.u32 %v8464, 16
  %v8489 = vand.u32 %v8459, 65535
  %v8490 = vshrl.u32 %v8459, 16
  %v8491 = vmul.u32 %v8487, %v8489
  %v8492 = vmul.u32 %v8487, %v8490
  %v8493 = vmul.u32 %v8488, %v8489
  %v8494 = vmul.u32 %v8488, %v8490
  %v8495 = vshll.u32 %v8492, 16
  %v8496 = vshrl.u32 %v8492, 16
  %v8497 = vshll.u32 %v8493, 16
  %v8498 = vshrl.u32 %v8493, 16
  %vm8499 = vc.u32 %v8491, %v8495
  %v8500 = vsel %vm8499, 1, 0
  %v8501 = vadd.s32 %v8491, %v8495
  %v8502 = vadd.s32 %v8494, %v8500
  %vm8503 = vc.u32 %v8501, %v8497
  %v8504 = vsel %vm8503, 1, 0
  %v8505 = vadd.s32 %v8501, %v8497
  %v8506 = vadd.s32 %v8502, %v8504
  %v8507 = vadd.s32 %v8506, %v8496
  %v8508 = vadd.s32 %v8507, %v8498
  %v8509 = vmul.u32 %v8464, %v8455
  %v8510 = vadd.s32 %v8486, %v8505
  %vm8511 = vc.u32 %v8486, %v8505
  %v8512 = vadd.s32 %v8508, 1
  %v8513 = vsel %vm8511, %v8512, %v8508
  %v8514 = vadd.s32 %v8509, %v8513
  %v8515 = vadd.s32 %v8514, 536870912
  %v8516 = vshrl.u32 %v8515, 30
  %v8517 = vshll.u32 %v8516, 30
  %v8518 = vsub.s32 %v8514, %v8517
  %vm8519 = vcmp.lt.s32.totalorder %v8518, 0
  %v8520 = vsub.s32 0, %v8518
  %v8521 = vsel %vm8519, %v8520, %v8518
  %v8522 = vclz %v8521
  %v8523 = vsub.s32 %v8522, 2
  %vm8524 = vcmp.gt.s32.totalorder 0, %v8523
  %v8525 = vsel %vm8524, 0, %v8523
  %v8526 = vsub.s32 32, %v8525
  %v8527 = vshll.u32 %v8518, %v8525
  %v8528 = vshrl.u32 %v8510, %v8526
  %v8529 = vor.u32 %v8527, %v8528
  %v8530 = vsub.s32 4294967266, %v8525
  %v8531 = vadd.s32 %v8530, 127
  %v8532 = vshll.u32 %v8531, 23
  %v8533 = vor.u32 4788187, %v8532
  %v8534 = vand.u32 2147483647, %v8533
  %v8536 = vcvt.s32.f32 %v8529
  %v8537 = vmul.f32 %v8536, %v8534
  %v8538 = vxor.u32 %v8537, 2147483648
  %v8539 = vsel %vm8418, %v8538, %v8537
  %v8540 = vsub.s32 4, %v8516
  %v8541 = vsel %vm8418, %v8540, %v8516
  %v8542 = vsel %vm8417, %v514, %v8539
  %v8543 = vsel %vm8417, 0, %v8541
  %v8544 = vmul.f32 %v8542, %v8542
  %v8545 = vmul.f32 %v8544, -0.001358992
  %v8546 = vadd.f32 %v8545, 0.041655596
  %v8547 = vmul.f32 %v8544, %v8546
  %v8548 = vadd.f32 %v8547, -0.4999988
  %v8549 = vmul.f32 %v8544, %v8548
  %v8550 = vadd.f32 1.0, %v8549
  %v8551 = vmul.f32 %v8542, %v8542
  %v8552 = vmul.f32 %v8551, -0.00019511016
  %v8553 = vadd.f32 %v8552, 0.008332121
  %v8554 = vmul.f32 %v8551, %v8553
  %v8555 = vadd.f32 %v8554, -0.16666654
  %v8556 = vmul.f32 %v8551, %v8555
  %v8557 = vadd.f32 %v8556, 1.0
  %v8558 = vmul.f32 %v8557, %v8542
  %vm8559 = vweird.f32 %v514
  %v8560 = vand.u32 %v8543, 3
  %vm8561 = vcmp.lt.s32.totalorder %v8560, 2
  %vm8562 = vcmp.eq.s32.totalorder %v8560, 0
  %v8563 = vxor.u32 %v8558, 2147483648
  %v8564 = vsel %vm8562, %v8550, %v8563
  %vm8565 = vcmp.eq.s32.totalorder %v8560, 2
  %v8566 = vxor.u32 %v8550, 2147483648
  %v8567 = vsel %vm8565, %v8566, %v8558
  %v8568 = vsel %vm8561, %v8564, %v8567
  %v8569 = vsel %vm8559, nan, %v8568
  %v8570 = vand.u32 2147483647, %v515
  %vm8571 = vcmp.le.f32.partialorder %v8570, 0.7853982
  %vm8572 = vcmp.lt.s32.totalorder %v515, 0
  %v8573 = vand.u32 %v515, 2139095040
  %v8574 = vshrl.u32 %v8573, 23
  %v8575 = vsub.s32 %v8574, 127
  %v8576 = vand.u32 2147483647, %v515
  %v8577 = vand.u32 %v8576, 8388607
  %v8578 = vor.u32 %v8577, 8388608
  %v8579 = vsub.s32 0, %v8578
  %v8580 = vadd.s32 %v8575, 1
  %vm8581 = vcmp.gt.s32.totalorder %v8580, 0
  %v8582 = vsel %vm8581, %v8580, 0
  %v8583 = vshrl.u32 %v8582, 5
  %v8584 = vand.u32 %v8582, 31
  %v8585 = vsub.s32 32, %v8584
  %v8586 = vshrl.u32 683565275, %v8585
  %v8587 = vshll.u32 683565275, %v8584
  %v8588 = vshrl.u32 2475754826, %v8585
  %v8589 = vor.u32 %v8587, %v8588
  %v8590 = vshll.u32 2475754826, %v8584
  %v8591 = vshrl.u32 2131351028, %v8585
  %v8592 = vor.u32 %v8590, %v8591
  %v8593 = vshll.u32 2131351028, %v8584
  %v8594 = vshrl.u32 2102212464, %v8585
  %v8595 = vor.u32 %v8593, %v8594
  %v8596 = vshll.u32 2102212464, %v8584
  %v8597 = vshrl.u32 920167782, %v8585
  %v8598 = vor.u32 %v8596, %v8597
  %v8599 = vshll.u32 920167782, %v8584
  %v8600 = vshrl.u32 1326507024, %v8585
  %v8601 = vor.u32 %v8599, %v8600
  %vm8602 = vcmp.lt.s32.totalorder %v8583, 1
  %vm8603 = vcmp.lt.s32.totalorder %v8583, 2
  %vm8604 = vcmp.lt.s32.totalorder %v8583, 3
  %vm8605 = vcmp.lt.s32.totalorder %v8583, 4
  %v8606 = vsel %vm8602, %v8586, %v8589
  %v8607 = vsel %vm8605, %v8595, 2102212464
  %v8608 = vsel %vm8604, %v8592, %v8607
  %v8609 = vsel %vm8603, %v8606, %v8608
  %v8610 = vsel %vm8602, %v8589, %v8592
  %v8611 = vsel %vm8605, %v8598, 920167782
  %v8612 = vsel %vm8604, %v8595, %v8611
  %v8613 = vsel %vm8603, %v8610, %v8612
  %v8614 = vsel %vm8602, %v8592, %v8595
  %v8615 = vsel %vm8605, %v8601, 1326507024
  %v8616 = vsel %vm8604, %v8598, %v8615
  %v8617 = vsel %vm8603, %v8614, %v8616
  %v8618 = vshll.u32 %v8578, 8
  %v8619 = vand.u32 %v8618, 65535
  %v8620 = vshrl.u32 %v8618, 16
  %v8621 = vand.u32 %v8617, 65535
  %v8622 = vshrl.u32 %v8617, 16
  %v8623 = vmul.u32 %v8619, %v8621
  %v8624 = vmul.u32 %v8619, %v8622
  %v8625 = vmul.u32 %v8620, %v8621
  %v8626 = vmul.u32 %v8620, %v8622
  %v8627 = vshll.u32 %v8624, 16
  %v8628 = vshrl.u32 %v8624, 16
  %v8629 = vshll.u32 %v8625, 16
  %v8630 = vshrl.u32 %v8625, 16
  %vm8631 = vc.u32 %v8623, %v8627
  %v8632 = vsel %vm8631, 1, 0
  %v8633 = vadd.s32 %v8623, %v8627
  %v8634 = vadd.s32 %v8626, %v8632
  %vm8635 = vc.u32 %v8633, %v8629
  %v8636 = vsel %vm8635, 1, 0
  %v8637 = vadd.s32 %v8633, %v8629
  %v8638 = vadd.s32 %v8634, %v8636
  %v8639 = vadd.s32 %v8638, %v8628
  %v8640 = vadd.s32 %v8639, %v8630
  %v8641 = vand.u32 %v8618, 65535
  %v8642 = vshrl.u32 %v8618, 16
  %v8643 = vand.u32 %v8613, 65535
  %v8644 = vshrl.u32 %v8613, 16
  %v8645 = vmul.u32 %v8641, %v8643
  %v8646 = vmul.u32 %v8641, %v8644
  %v8647 = vmul.u32 %v8642, %v8643
  %v8648 = vmul.u32 %v8642, %v8644
  %v8649 = vshll.u32 %v8646, 16
  %v8650 = vshrl.u32 %v8646, 16
  %v8651 = vshll.u32 %v8647, 16
  %v8652 = vshrl.u32 %v8647, 16
  %vm8653 = vc.u32 %v8645, %v8649
  %v8654 = vsel %vm8653, 1, 0
  %v8655 = vadd.s32 %v8645, %v8649
  %v8656 = vadd.s32 %v8648, %v8654
  %vm8657 = vc.u32 %v8655, %v8651
  %v8658 = vsel %vm8657, 1, 0
  %v8659 = vadd.s32 %v8655, %v8651
  %v8660 = vadd.s32 %v8656, %v8658
  %v8661 = vadd.s32 %v8660, %v8650
  %v8662 = vadd.s32 %v8661, %v8652
  %v8663 = vmul.u32 %v8618, %v8609
  %v8664 = vadd.s32 %v8640, %v8659
  %vm8665 = vc.u32 %v8640, %v8659
  %v8666 = vadd.s32 %v8662, 1
  %v8667 = vsel %vm8665, %v8666, %v8662
  %v8668 = vadd.s32 %v8663, %v8667
  %v8669 = vadd.s32 %v8668, 536870912
  %v8670 = vshrl.u32 %v8669, 30
  %v8671 = vshll.u32 %v8670, 30
  %v8672 = vsub.s32 %v8668, %v8671
  %vm8673 = vcmp.lt.s32.totalorder %v8672, 0
  %v8674 = vsub.s32 0, %v8672
  %v8675 = vsel %vm8673, %v8674, %v8672
  %v8676 = vclz %v8675
  %v8677 = vsub.s32 %v8676, 2
  %vm8678 = vcmp.gt.s32.totalorder 0, %v8677
  %v8679 = vsel %vm8678, 0, %v8677
  %v8680 = vsub.s32 32, %v8679
  %v8681 = vshll.u32 %v8672, %v8679
  %v8682 = vshrl.u32 %v8664, %v8680
  %v8683 = vor.u32 %v8681, %v8682
  %v8684 = vsub.s32 4294967266, %v8679
  %v8685 = vadd.s32 %v8684, 127
  %v8686 = vshll.u32 %v8685, 23
  %v8687 = vor.u32 4788187, %v8686
  %v8688 = vand.u32 2147483647, %v8687
  %v8690 = vcvt.s32.f32 %v8683
  %v8691 = vmul.f32 %v8690, %v8688
  %v8692 = vxor.u32 %v8691, 2147483648
  %v8693 = vsel %vm8572, %v8692, %v8691
  %v8694 = vsub.s32 4, %v8670
  %v8695 = vsel %vm8572, %v8694, %v8670
  %v8696 = vsel %vm8571, %v515, %v8693
  %v8697 = vsel %vm8571, 0, %v8695
  %v8698 = vmul.f32 %v8696, %v8696
  %v8699 = vmul.f32 %v8698, -0.001358992
  %v8700 = vadd.f32 %v8699, 0.041655596
  %v8701 = vmul.f32 %v8698, %v8700
  %v8702 = vadd.f32 %v8701, -0.4999988
  %v8703 = vmul.f32 %v8698, %v8702
  %v8704 = vadd.f32 1.0, %v8703
  %v8705 = vmul.f32 %v8696, %v8696
  %v8706 = vmul.f32 %v8705, -0.00019511016
  %v8707 = vadd.f32 %v8706, 0.008332121
  %v8708 = vmul.f32 %v8705, %v8707
  %v8709 = vadd.f32 %v8708, -0.16666654
  %v8710 = vmul.f32 %v8705, %v8709
  %v8711 = vadd.f32 %v8710, 1.0
  %v8712 = vmul.f32 %v8711, %v8696
  %vm8713 = vweird.f32 %v515
  %v8714 = vand.u32 %v8697, 3
  %vm8715 = vcmp.lt.s32.totalorder %v8714, 2
  %vm8716 = vcmp.eq.s32.totalorder %v8714, 0
  %v8717 = vxor.u32 %v8712, 2147483648
  %v8718 = vsel %vm8716, %v8704, %v8717
  %vm8719 = vcmp.eq.s32.totalorder %v8714, 2
  %v8720 = vxor.u32 %v8704, 2147483648
  %v8721 = vsel %vm8719, %v8720, %v8712
  %v8722 = vsel %vm8715, %v8718, %v8721
  %v8723 = vsel %vm8713, nan, %v8722
  %v8724 = vand.u32 2147483647, %v516
  %vm8725 = vcmp.le.f32.partialorder %v8724, 0.7853982
  %vm8726 = vcmp.lt.s32.totalorder %v516, 0
  %v8727 = vand.u32 %v516, 2139095040
  %v8728 = vshrl.u32 %v8727, 23
  %v8729 = vsub.s32 %v8728, 127
  %v8730 = vand.u32 2147483647, %v516
  %v8731 = vand.u32 %v8730, 8388607
  %v8732 = vor.u32 %v8731, 8388608
  %v8733 = vsub.s32 0, %v8732
  %v8734 = vadd.s32 %v8729, 1
  %vm8735 = vcmp.gt.s32.totalorder %v8734, 0
  %v8736 = vsel %vm8735, %v8734, 0
  %v8737 = vshrl.u32 %v8736, 5
  %v8738 = vand.u32 %v8736, 31
  %v8739 = vsub.s32 32, %v8738
  %v8740 = vshrl.u32 683565275, %v8739
  %v8741 = vshll.u32 683565275, %v8738
  %v8742 = vshrl.u32 2475754826, %v8739
  %v8743 = vor.u32 %v8741, %v8742
  %v8744 = vshll.u32 2475754826, %v8738
  %v8745 = vshrl.u32 2131351028, %v8739
  %v8746 = vor.u32 %v8744, %v8745
  %v8747 = vshll.u32 2131351028, %v8738
  %v8748 = vshrl.u32 2102212464, %v8739
  %v8749 = vor.u32 %v8747, %v8748
  %v8750 = vshll.u32 2102212464, %v8738
  %v8751 = vshrl.u32 920167782, %v8739
  %v8752 = vor.u32 %v8750, %v8751
  %v8753 = vshll.u32 920167782, %v8738
  %v8754 = vshrl.u32 1326507024, %v8739
  %v8755 = vor.u32 %v8753, %v8754
  %vm8756 = vcmp.lt.s32.totalorder %v8737, 1
  %vm8757 = vcmp.lt.s32.totalorder %v8737, 2
  %vm8758 = vcmp.lt.s32.totalorder %v8737, 3
  %vm8759 = vcmp.lt.s32.totalorder %v8737, 4
  %v8760 = vsel %vm8756, %v8740, %v8743
  %v8761 = vsel %vm8759, %v8749, 2102212464
  %v8762 = vsel %vm8758, %v8746, %v8761
  %v8763 = vsel %vm8757, %v8760, %v8762
  %v8764 = vsel %vm8756, %v8743, %v8746
  %v8765 = vsel %vm8759, %v8752, 920167782
  %v8766 = vsel %vm8758, %v8749, %v8765
  %v8767 = vsel %vm8757, %v8764, %v8766
  %v8768 = vsel %vm8756, %v8746, %v8749
  %v8769 = vsel %vm8759, %v8755, 1326507024
  %v8770 = vsel %vm8758, %v8752, %v8769
  %v8771 = vsel %vm8757, %v8768, %v8770
  %v8772 = vshll.u32 %v8732, 8
  %v8773 = vand.u32 %v8772, 65535
  %v8774 = vshrl.u32 %v8772, 16
  %v8775 = vand.u32 %v8771, 65535
  %v8776 = vshrl.u32 %v8771, 16
  %v8777 = vmul.u32 %v8773, %v8775
  %v8778 = vmul.u32 %v8773, %v8776
  %v8779 = vmul.u32 %v8774, %v8775
  %v8780 = vmul.u32 %v8774, %v8776
  %v8781 = vshll.u32 %v8778, 16
  %v8782 = vshrl.u32 %v8778, 16
  %v8783 = vshll.u32 %v8779, 16
  %v8784 = vshrl.u32 %v8779, 16
  %vm8785 = vc.u32 %v8777, %v8781
  %v8786 = vsel %vm8785, 1, 0
  %v8787 = vadd.s32 %v8777, %v8781
  %v8788 = vadd.s32 %v8780, %v8786
  %vm8789 = vc.u32 %v8787, %v8783
  %v8790 = vsel %vm8789, 1, 0
  %v8791 = vadd.s32 %v8787, %v8783
  %v8792 = vadd.s32 %v8788, %v8790
  %v8793 = vadd.s32 %v8792, %v8782
  %v8794 = vadd.s32 %v8793, %v8784
  %v8795 = vand.u32 %v8772, 65535
  %v8796 = vshrl.u32 %v8772, 16
  %v8797 = vand.u32 %v8767, 65535
  %v8798 = vshrl.u32 %v8767, 16
  %v8799 = vmul.u32 %v8795, %v8797
  %v8800 = vmul.u32 %v8795, %v8798
  %v8801 = vmul.u32 %v8796, %v8797
  %v8802 = vmul.u32 %v8796, %v8798
  %v8803 = vshll.u32 %v8800, 16
  %v8804 = vshrl.u32 %v8800, 16
  %v8805 = vshll.u32 %v8801, 16
  %v8806 = vshrl.u32 %v8801, 16
  %vm8807 = vc.u32 %v8799, %v8803
  %v8808 = vsel %vm8807, 1, 0
  %v8809 = vadd.s32 %v8799, %v8803
  %v8810 = vadd.s32 %v8802, %v8808
  %vm8811 = vc.u32 %v8809, %v8805
  %v8812 = vsel %vm8811, 1, 0
  %v8813 = vadd.s32 %v8809, %v8805
  %v8814 = vadd.s32 %v8810, %v8812
  %v8815 = vadd.s32 %v8814, %v8804
  %v8816 = vadd.s32 %v8815, %v8806
  %v8817 = vmul.u32 %v8772, %v8763
  %v8818 = vadd.s32 %v8794, %v8813
  %vm8819 = vc.u32 %v8794, %v8813
  %v8820 = vadd.s32 %v8816, 1
  %v8821 = vsel %vm8819, %v8820, %v8816
  %v8822 = vadd.s32 %v8817, %v8821
  %v8823 = vadd.s32 %v8822, 536870912
  %v8824 = vshrl.u32 %v8823, 30
  %v8825 = vshll.u32 %v8824, 30
  %v8826 = vsub.s32 %v8822, %v8825
  %vm8827 = vcmp.lt.s32.totalorder %v8826, 0
  %v8828 = vsub.s32 0, %v8826
  %v8829 = vsel %vm8827, %v8828, %v8826
  %v8830 = vclz %v8829
  %v8831 = vsub.s32 %v8830, 2
  %vm8832 = vcmp.gt.s32.totalorder 0, %v8831
  %v8833 = vsel %vm8832, 0, %v8831
  %v8834 = vsub.s32 32, %v8833
  %v8835 = vshll.u32 %v8826, %v8833
  %v8836 = vshrl.u32 %v8818, %v8834
  %v8837 = vor.u32 %v8835, %v8836
  %v8838 = vsub.s32 4294967266, %v8833
  %v8839 = vadd.s32 %v8838, 127
  %v8840 = vshll.u32 %v8839, 23
  %v8841 = vor.u32 4788187, %v8840
  %v8842 = vand.u32 2147483647, %v8841
  %v8844 = vcvt.s32.f32 %v8837
  %v8845 = vmul.f32 %v8844, %v8842
  %v8846 = vxor.u32 %v8845, 2147483648
  %v8847 = vsel %vm8726, %v8846, %v8845
  %v8848 = vsub.s32 4, %v8824
  %v8849 = vsel %vm8726, %v8848, %v8824
  %v8850 = vsel %vm8725, %v516, %v8847
  %v8851 = vsel %vm8725, 0, %v8849
  %v8852 = vmul.f32 %v8850, %v8850
  %v8853 = vmul.f32 %v8852, -0.001358992
  %v8854 = vadd.f32 %v8853, 0.041655596
  %v8855 = vmul.f32 %v8852, %v8854
  %v8856 = vadd.f32 %v8855, -0.4999988
  %v8857 = vmul.f32 %v8852, %v8856
  %v8858 = vadd.f32 1.0, %v8857
  %v8859 = vmul.f32 %v8850, %v8850
  %v8860 = vmul.f32 %v8859, -0.00019511016
  %v8861 = vadd.f32 %v8860, 0.008332121
  %v8862 = vmul.f32 %v8859, %v8861
  %v8863 = vadd.f32 %v8862, -0.16666654
  %v8864 = vmul.f32 %v8859, %v8863
  %v8865 = vadd.f32 %v8864, 1.0
  %v8866 = vmul.f32 %v8865, %v8850
  %vm8867 = vweird.f32 %v516
  %v8868 = vand.u32 %v8851, 3
  %vm8869 = vcmp.lt.s32.totalorder %v8868, 2
  %vm8870 = vcmp.eq.s32.totalorder %v8868, 0
  %v8871 = vxor.u32 %v8866, 2147483648
  %v8872 = vsel %vm8870, %v8858, %v8871
  %vm8873 = vcmp.eq.s32.totalorder %v8868, 2
  %v8874 = vxor.u32 %v8858, 2147483648
  %v8875 = vsel %vm8873, %v8874, %v8866
  %v8876 = vsel %vm8869, %v8872, %v8875
  %v8877 = vsel %vm8867, nan, %v8876
  %v8878 = vand.u32 2147483647, %v517
  %vm8879 = vcmp.le.f32.partialorder %v8878, 0.7853982
  %vm8880 = vcmp.lt.s32.totalorder %v517, 0
  %v8881 = vand.u32 %v517, 2139095040
  %v8882 = vshrl.u32 %v8881, 23
  %v8883 = vsub.s32 %v8882, 127
  %v8884 = vand.u32 2147483647, %v517
  %v8885 = vand.u32 %v8884, 8388607
  %v8886 = vor.u32 %v8885, 8388608
  %v8887 = vsub.s32 0, %v8886
  %v8888 = vadd.s32 %v8883, 1
  %vm8889 = vcmp.gt.s32.totalorder %v8888, 0
  %v8890 = vsel %vm8889, %v8888, 0
  %v8891 = vshrl.u32 %v8890, 5
  %v8892 = vand.u32 %v8890, 31
  %v8893 = vsub.s32 32, %v8892
  %v8894 = vshrl.u32 683565275, %v8893
  %v8895 = vshll.u32 683565275, %v8892
  %v8896 = vshrl.u32 2475754826, %v8893
  %v8897 = vor.u32 %v8895, %v8896
  %v8898 = vshll.u32 2475754826, %v8892
  %v8899 = vshrl.u32 2131351028, %v8893
  %v8900 = vor.u32 %v8898, %v8899
  %v8901 = vshll.u32 2131351028, %v8892
  %v8902 = vshrl.u32 2102212464, %v8893
  %v8903 = vor.u32 %v8901, %v8902
  %v8904 = vshll.u32 2102212464, %v8892
  %v8905 = vshrl.u32 920167782, %v8893
  %v8906 = vor.u32 %v8904, %v8905
  %v8907 = vshll.u32 920167782, %v8892
  %v8908 = vshrl.u32 1326507024, %v8893
  %v8909 = vor.u32 %v8907, %v8908
  %vm8910 = vcmp.lt.s32.totalorder %v8891, 1
  %vm8911 = vcmp.lt.s32.totalorder %v8891, 2
  %vm8912 = vcmp.lt.s32.totalorder %v8891, 3
  %vm8913 = vcmp.lt.s32.totalorder %v8891, 4
  %v8914 = vsel %vm8910, %v8894, %v8897
  %v8915 = vsel %vm8913, %v8903, 2102212464
  %v8916 = vsel %vm8912, %v8900, %v8915
  %v8917 = vsel %vm8911, %v8914, %v8916
  %v8918 = vsel %vm8910, %v8897, %v8900
  %v8919 = vsel %vm8913, %v8906, 920167782
  %v8920 = vsel %vm8912, %v8903, %v8919
  %v8921 = vsel %vm8911, %v8918, %v8920
  %v8922 = vsel %vm8910, %v8900, %v8903
  %v8923 = vsel %vm8913, %v8909, 1326507024
  %v8924 = vsel %vm8912, %v8906, %v8923
  %v8925 = vsel %vm8911, %v8922, %v8924
  %v8926 = vshll.u32 %v8886, 8
  %v8927 = vand.u32 %v8926, 65535
  %v8928 = vshrl.u32 %v8926, 16
  %v8929 = vand.u32 %v8925, 65535
  %v8930 = vshrl.u32 %v8925, 16
  %v8931 = vmul.u32 %v8927, %v8929
  %v8932 = vmul.u32 %v8927, %v8930
  %v8933 = vmul.u32 %v8928, %v8929
  %v8934 = vmul.u32 %v8928, %v8930
  %v8935 = vshll.u32 %v8932, 16
  %v8936 = vshrl.u32 %v8932, 16
  %v8937 = vshll.u32 %v8933, 16
  %v8938 = vshrl.u32 %v8933, 16
  %vm8939 = vc.u32 %v8931, %v8935
  %v8940 = vsel %vm8939, 1, 0
  %v8941 = vadd.s32 %v8931, %v8935
  %v8942 = vadd.s32 %v8934, %v8940
  %vm8943 = vc.u32 %v8941, %v8937
  %v8944 = vsel %vm8943, 1, 0
  %v8945 = vadd.s32 %v8941, %v8937
  %v8946 = vadd.s32 %v8942, %v8944
  %v8947 = vadd.s32 %v8946, %v8936
  %v8948 = vadd.s32 %v8947, %v8938
  %v8949 = vand.u32 %v8926, 65535
  %v8950 = vshrl.u32 %v8926, 16
  %v8951 = vand.u32 %v8921, 65535
  %v8952 = vshrl.u32 %v8921, 16
  %v8953 = vmul.u32 %v8949, %v8951
  %v8954 = vmul.u32 %v8949, %v8952
  %v8955 = vmul.u32 %v8950, %v8951
  %v8956 = vmul.u32 %v8950, %v8952
  %v8957 = vshll.u32 %v8954, 16
  %v8958 = vshrl.u32 %v8954, 16
  %v8959 = vshll.u32 %v8955, 16
  %v8960 = vshrl.u32 %v8955, 16
  %vm8961 = vc.u32 %v8953, %v8957
  %v8962 = vsel %vm8961, 1, 0
  %v8963 = vadd.s32 %v8953, %v8957
  %v8964 = vadd.s32 %v8956, %v8962
  %vm8965 = vc.u32 %v8963, %v8959
  %v8966 = vsel %vm8965, 1, 0
  %v8967 = vadd.s32 %v8963, %v8959
  %v8968 = vadd.s32 %v8964, %v8966
  %v8969 = vadd.s32 %v8968, %v8958
  %v8970 = vadd.s32 %v8969, %v8960
  %v8971 = vmul.u32 %v8926, %v8917
  %v8972 = vadd.s32 %v8948, %v8967
  %vm8973 = vc.u32 %v8948, %v8967
  %v8974 = vadd.s32 %v8970, 1
  %v8975 = vsel %vm8973, %v8974, %v8970
  %v8976 = vadd.s32 %v8971, %v8975
  %v8977 = vadd.s32 %v8976, 536870912
  %v8978 = vshrl.u32 %v8977, 30
  %v8979 = vshll.u32 %v8978, 30
  %v8980 = vsub.s32 %v8976, %v8979
  %vm8981 = vcmp.lt.s32.totalorder %v8980, 0
  %v8982 = vsub.s32 0, %v8980
  %v8983 = vsel %vm8981, %v8982, %v8980
  %v8984 = vclz %v8983
  %v8985 = vsub.s32 %v8984, 2
  %vm8986 = vcmp.gt.s32.totalorder 0, %v8985
  %v8987 = vsel %vm8986, 0, %v8985
  %v8988 = vsub.s32 32, %v8987
  %v8989 = vshll.u32 %v8980, %v8987
  %v8990 = vshrl.u32 %v8972, %v8988
  %v8991 = vor.u32 %v8989, %v8990
  %v8992 = vsub.s32 4294967266, %v8987
  %v8993 = vadd.s32 %v8992, 127
  %v8994 = vshll.u32 %v8993, 23
  %v8995 = vor.u32 4788187, %v8994
  %v8996 = vand.u32 2147483647, %v8995
  %v8998 = vcvt.s32.f32 %v8991
  %v8999 = vmul.f32 %v8998, %v8996
  %v9000 = vxor.u32 %v8999, 2147483648
  %v9001 = vsel %vm8880, %v9000, %v8999
  %v9002 = vsub.s32 4, %v8978
  %v9003 = vsel %vm8880, %v9002, %v8978
  %v9004 = vsel %vm8879, %v517, %v9001
  %v9005 = vsel %vm8879, 0, %v9003
  %v9006 = vmul.f32 %v9004, %v9004
  %v9007 = vmul.f32 %v9006, -0.001358992
  %v9008 = vadd.f32 %v9007, 0.041655596
  %v9009 = vmul.f32 %v9006, %v9008
  %v9010 = vadd.f32 %v9009, -0.4999988
  %v9011 = vmul.f32 %v9006, %v9010
  %v9012 = vadd.f32 1.0, %v9011
  %v9013 = vmul.f32 %v9004, %v9004
  %v9014 = vmul.f32 %v9013, -0.00019511016
  %v9015 = vadd.f32 %v9014, 0.008332121
  %v9016 = vmul.f32 %v9013, %v9015
  %v9017 = vadd.f32 %v9016, -0.16666654
  %v9018 = vmul.f32 %v9013, %v9017
  %v9019 = vadd.f32 %v9018, 1.0
  %v9020 = vmul.f32 %v9019, %v9004
  %vm9021 = vweird.f32 %v517
  %v9022 = vand.u32 %v9005, 3
  %vm9023 = vcmp.lt.s32.totalorder %v9022, 2
  %vm9024 = vcmp.eq.s32.totalorder %v9022, 0
  %v9025 = vxor.u32 %v9020, 2147483648
  %v9026 = vsel %vm9024, %v9012, %v9025
  %vm9027 = vcmp.eq.s32.totalorder %v9022, 2
  %v9028 = vxor.u32 %v9012, 2147483648
  %v9029 = vsel %vm9027, %v9028, %v9020
  %v9030 = vsel %vm9023, %v9026, %v9029
  %v9031 = vsel %vm9021, nan, %v9030
  %v9032 = vand.u32 2147483647, %v518
  %vm9033 = vcmp.le.f32.partialorder %v9032, 0.7853982
  %vm9034 = vcmp.lt.s32.totalorder %v518, 0
  %v9035 = vand.u32 %v518, 2139095040
  %v9036 = vshrl.u32 %v9035, 23
  %v9037 = vsub.s32 %v9036, 127
  %v9038 = vand.u32 2147483647, %v518
  %v9039 = vand.u32 %v9038, 8388607
  %v9040 = vor.u32 %v9039, 8388608
  %v9041 = vsub.s32 0, %v9040
  %v9042 = vadd.s32 %v9037, 1
  %vm9043 = vcmp.gt.s32.totalorder %v9042, 0
  %v9044 = vsel %vm9043, %v9042, 0
  %v9045 = vshrl.u32 %v9044, 5
  %v9046 = vand.u32 %v9044, 31
  %v9047 = vsub.s32 32, %v9046
  %v9048 = vshrl.u32 683565275, %v9047
  %v9049 = vshll.u32 683565275, %v9046
  %v9050 = vshrl.u32 2475754826, %v9047
  %v9051 = vor.u32 %v9049, %v9050
  %v9052 = vshll.u32 2475754826, %v9046
  %v9053 = vshrl.u32 2131351028, %v9047
  %v9054 = vor.u32 %v9052, %v9053
  %v9055 = vshll.u32 2131351028, %v9046
  %v9056 = vshrl.u32 2102212464, %v9047
  %v9057 = vor.u32 %v9055, %v9056
  %v9058 = vshll.u32 2102212464, %v9046
  %v9059 = vshrl.u32 920167782, %v9047
  %v9060 = vor.u32 %v9058, %v9059
  %v9061 = vshll.u32 920167782, %v9046
  %v9062 = vshrl.u32 1326507024, %v9047
  %v9063 = vor.u32 %v9061, %v9062
  %vm9064 = vcmp.lt.s32.totalorder %v9045, 1
  %vm9065 = vcmp.lt.s32.totalorder %v9045, 2
  %vm9066 = vcmp.lt.s32.totalorder %v9045, 3
  %vm9067 = vcmp.lt.s32.totalorder %v9045, 4
  %v9068 = vsel %vm9064, %v9048, %v9051
  %v9069 = vsel %vm9067, %v9057, 2102212464
  %v9070 = vsel %vm9066, %v9054, %v9069
  %v9071 = vsel %vm9065, %v9068, %v9070
  %v9072 = vsel %vm9064, %v9051, %v9054
  %v9073 = vsel %vm9067, %v9060, 920167782
  %v9074 = vsel %vm9066, %v9057, %v9073
  %v9075 = vsel %vm9065, %v9072, %v9074
  %v9076 = vsel %vm9064, %v9054, %v9057
  %v9077 = vsel %vm9067, %v9063, 1326507024
  %v9078 = vsel %vm9066, %v9060, %v9077
  %v9079 = vsel %vm9065, %v9076, %v9078
  %v9080 = vshll.u32 %v9040, 8
  %v9081 = vand.u32 %v9080, 65535
  %v9082 = vshrl.u32 %v9080, 16
  %v9083 = vand.u32 %v9079, 65535
  %v9084 = vshrl.u32 %v9079, 16
  %v9085 = vmul.u32 %v9081, %v9083
  %v9086 = vmul.u32 %v9081, %v9084
  %v9087 = vmul.u32 %v9082, %v9083
  %v9088 = vmul.u32 %v9082, %v9084
  %v9089 = vshll.u32 %v9086, 16
  %v9090 = vshrl.u32 %v9086, 16
  %v9091 = vshll.u32 %v9087, 16
  %v9092 = vshrl.u32 %v9087, 16
  %vm9093 = vc.u32 %v9085, %v9089
  %v9094 = vsel %vm9093, 1, 0
  %v9095 = vadd.s32 %v9085, %v9089
  %v9096 = vadd.s32 %v9088, %v9094
  %vm9097 = vc.u32 %v9095, %v9091
  %v9098 = vsel %vm9097, 1, 0
  %v9099 = vadd.s32 %v9095, %v9091
  %v9100 = vadd.s32 %v9096, %v9098
  %v9101 = vadd.s32 %v9100, %v9090
  %v9102 = vadd.s32 %v9101, %v9092
  %v9103 = vand.u32 %v9080, 65535
  %v9104 = vshrl.u32 %v9080, 16
  %v9105 = vand.u32 %v9075, 65535
  %v9106 = vshrl.u32 %v9075, 16
  %v9107 = vmul.u32 %v9103, %v9105
  %v9108 = vmul.u32 %v9103, %v9106
  %v9109 = vmul.u32 %v9104, %v9105
  %v9110 = vmul.u32 %v9104, %v9106
  %v9111 = vshll.u32 %v9108, 16
  %v9112 = vshrl.u32 %v9108, 16
  %v9113 = vshll.u32 %v9109, 16
  %v9114 = vshrl.u32 %v9109, 16
  %vm9115 = vc.u32 %v9107, %v9111
  %v9116 = vsel %vm9115, 1, 0
  %v9117 = vadd.s32 %v9107, %v9111
  %v9118 = vadd.s32 %v9110, %v9116
  %vm9119 = vc.u32 %v9117, %v9113
  %v9120 = vsel %vm9119, 1, 0
  %v9121 = vadd.s32 %v9117, %v9113
  %v9122 = vadd.s32 %v9118, %v9120
  %v9123 = vadd.s32 %v9122, %v9112
  %v9124 = vadd.s32 %v9123, %v9114
  %v9125 = vmul.u32 %v9080, %v9071
  %v9126 = vadd.s32 %v9102, %v9121
  %vm9127 = vc.u32 %v9102, %v9121
  %v9128 = vadd.s32 %v9124, 1
  %v9129 = vsel %vm9127, %v9128, %v9124
  %v9130 = vadd.s32 %v9125, %v9129
  %v9131 = vadd.s32 %v9130, 536870912
  %v9132 = vshrl.u32 %v9131, 30
  %v9133 = vshll.u32 %v9132, 30
  %v9134 = vsub.s32 %v9130, %v9133
  %vm9135 = vcmp.lt.s32.totalorder %v9134, 0
  %v9136 = vsub.s32 0, %v9134
  %v9137 = vsel %vm9135, %v9136, %v9134
  %v9138 = vclz %v9137
  %v9139 = vsub.s32 %v9138, 2
  %vm9140 = vcmp.gt.s32.totalorder 0, %v9139
  %v9141 = vsel %vm9140, 0, %v9139
  %v9142 = vsub.s32 32, %v9141
  %v9143 = vshll.u32 %v9134, %v9141
  %v9144 = vshrl.u32 %v9126, %v9142
  %v9145 = vor.u32 %v9143, %v9144
  %v9146 = vsub.s32 4294967266, %v9141
  %v9147 = vadd.s32 %v9146, 127
  %v9148 = vshll.u32 %v9147, 23
  %v9149 = vor.u32 4788187, %v9148
  %v9150 = vand.u32 2147483647, %v9149
  %v9152 = vcvt.s32.f32 %v9145
  %v9153 = vmul.f32 %v9152, %v9150
  %v9154 = vxor.u32 %v9153, 2147483648
  %v9155 = vsel %vm9034, %v9154, %v9153
  %v9156 = vsub.s32 4, %v9132
  %v9157 = vsel %vm9034, %v9156, %v9132
  %v9158 = vsel %vm9033, %v518, %v9155
  %v9159 = vsel %vm9033, 0, %v9157
  %v9160 = vmul.f32 %v9158, %v9158
  %v9161 = vmul.f32 %v9160, -0.001358992
  %v9162 = vadd.f32 %v9161, 0.041655596
  %v9163 = vmul.f32 %v9160, %v9162
  %v9164 = vadd.f32 %v9163, -0.4999988
  %v9165 = vmul.f32 %v9160, %v9164
  %v9166 = vadd.f32 1.0, %v9165
  %v9167 = vmul.f32 %v9158, %v9158
  %v9168 = vmul.f32 %v9167, -0.00019511016
  %v9169 = vadd.f32 %v9168, 0.008332121
  %v9170 = vmul.f32 %v9167, %v9169
  %v9171 = vadd.f32 %v9170, -0.16666654
  %v9172 = vmul.f32 %v9167, %v9171
  %v9173 = vadd.f32 %v9172, 1.0
  %v9174 = vmul.f32 %v9173, %v9158
  %vm9175 = vweird.f32 %v518
  %v9176 = vand.u32 %v9159, 3
  %vm9177 = vcmp.lt.s32.totalorder %v9176, 2
  %vm9178 = vcmp.eq.s32.totalorder %v9176, 0
  %v9179 = vxor.u32 %v9174, 2147483648
  %v9180 = vsel %vm9178, %v9166, %v9179
  %vm9181 = vcmp.eq.s32.totalorder %v9176, 2
  %v9182 = vxor.u32 %v9166, 2147483648
  %v9183 = vsel %vm9181, %v9182, %v9174
  %v9184 = vsel %vm9177, %v9180, %v9183
  %v9185 = vsel %vm9175, nan, %v9184
  %v9186 = vand.u32 2147483647, %v519
  %vm9187 = vcmp.le.f32.partialorder %v9186, 0.7853982
  %vm9188 = vcmp.lt.s32.totalorder %v519, 0
  %v9189 = vand.u32 %v519, 2139095040
  %v9190 = vshrl.u32 %v9189, 23
  %v9191 = vsub.s32 %v9190, 127
  %v9192 = vand.u32 2147483647, %v519
  %v9193 = vand.u32 %v9192, 8388607
  %v9194 = vor.u32 %v9193, 8388608
  %v9195 = vsub.s32 0, %v9194
  %v9196 = vadd.s32 %v9191, 1
  %vm9197 = vcmp.gt.s32.totalorder %v9196, 0
  %v9198 = vsel %vm9197, %v9196, 0
  %v9199 = vshrl.u32 %v9198, 5
  %v9200 = vand.u32 %v9198, 31
  %v9201 = vsub.s32 32, %v9200
  %v9202 = vshrl.u32 683565275, %v9201
  %v9203 = vshll.u32 683565275, %v9200
  %v9204 = vshrl.u32 2475754826, %v9201
  %v9205 = vor.u32 %v9203, %v9204
  %v9206 = vshll.u32 2475754826, %v9200
  %v9207 = vshrl.u32 2131351028, %v9201
  %v9208 = vor.u32 %v9206, %v9207
  %v9209 = vshll.u32 2131351028, %v9200
  %v9210 = vshrl.u32 2102212464, %v9201
  %v9211 = vor.u32 %v9209, %v9210
  %v9212 = vshll.u32 2102212464, %v9200
  %v9213 = vshrl.u32 920167782, %v9201
  %v9214 = vor.u32 %v9212, %v9213
  %v9215 = vshll.u32 920167782, %v9200
  %v9216 = vshrl.u32 1326507024, %v9201
  %v9217 = vor.u32 %v9215, %v9216
  %vm9218 = vcmp.lt.s32.totalorder %v9199, 1
  %vm9219 = vcmp.lt.s32.totalorder %v9199, 2
  %vm9220 = vcmp.lt.s32.totalorder %v9199, 3
  %vm9221 = vcmp.lt.s32.totalorder %v9199, 4
  %v9222 = vsel %vm9218, %v9202, %v9205
  %v9223 = vsel %vm9221, %v9211, 2102212464
  %v9224 = vsel %vm9220, %v9208, %v9223
  %v9225 = vsel %vm9219, %v9222, %v9224
  %v9226 = vsel %vm9218, %v9205, %v9208
  %v9227 = vsel %vm9221, %v9214, 920167782
  %v9228 = vsel %vm9220, %v9211, %v9227
  %v9229 = vsel %vm9219, %v9226, %v9228
  %v9230 = vsel %vm9218, %v9208, %v9211
  %v9231 = vsel %vm9221, %v9217, 1326507024
  %v9232 = vsel %vm9220, %v9214, %v9231
  %v9233 = vsel %vm9219, %v9230, %v9232
  %v9234 = vshll.u32 %v9194, 8
  %v9235 = vand.u32 %v9234, 65535
  %v9236 = vshrl.u32 %v9234, 16
  %v9237 = vand.u32 %v9233, 65535
  %v9238 = vshrl.u32 %v9233, 16
  %v9239 = vmul.u32 %v9235, %v9237
  %v9240 = vmul.u32 %v9235, %v9238
  %v9241 = vmul.u32 %v9236, %v9237
  %v9242 = vmul.u32 %v9236, %v9238
  %v9243 = vshll.u32 %v9240, 16
  %v9244 = vshrl.u32 %v9240, 16
  %v9245 = vshll.u32 %v9241, 16
  %v9246 = vshrl.u32 %v9241, 16
  %vm9247 = vc.u32 %v9239, %v9243
  %v9248 = vsel %vm9247, 1, 0
  %v9249 = vadd.s32 %v9239, %v9243
  %v9250 = vadd.s32 %v9242, %v9248
  %vm9251 = vc.u32 %v9249, %v9245
  %v9252 = vsel %vm9251, 1, 0
  %v9253 = vadd.s32 %v9249, %v9245
  %v9254 = vadd.s32 %v9250, %v9252
  %v9255 = vadd.s32 %v9254, %v9244
  %v9256 = vadd.s32 %v9255, %v9246
  %v9257 = vand.u32 %v9234, 65535
  %v9258 = vshrl.u32 %v9234, 16
  %v9259 = vand.u32 %v9229, 65535
  %v9260 = vshrl.u32 %v9229, 16
  %v9261 = vmul.u32 %v9257, %v9259
  %v9262 = vmul.u32 %v9257, %v9260
  %v9263 = vmul.u32 %v9258, %v9259
  %v9264 = vmul.u32 %v9258, %v9260
  %v9265 = vshll.u32 %v9262, 16
  %v9266 = vshrl.u32 %v9262, 16
  %v9267 = vshll.u32 %v9263, 16
  %v9268 = vshrl.u32 %v9263, 16
  %vm9269 = vc.u32 %v9261, %v9265
  %v9270 = vsel %vm9269, 1, 0
  %v9271 = vadd.s32 %v9261, %v9265
  %v9272 = vadd.s32 %v9264, %v9270
  %vm9273 = vc.u32 %v9271, %v9267
  %v9274 = vsel %vm9273, 1, 0
  %v9275 = vadd.s32 %v9271, %v9267
  %v9276 = vadd.s32 %v9272, %v9274
  %v9277 = vadd.s32 %v9276, %v9266
  %v9278 = vadd.s32 %v9277, %v9268
  %v9279 = vmul.u32 %v9234, %v9225
  %v9280 = vadd.s32 %v9256, %v9275
  %vm9281 = vc.u32 %v9256, %v9275
  %v9282 = vadd.s32 %v9278, 1
  %v9283 = vsel %vm9281, %v9282, %v9278
  %v9284 = vadd.s32 %v9279, %v9283
  %v9285 = vadd.s32 %v9284, 536870912
  %v9286 = vshrl.u32 %v9285, 30
  %v9287 = vshll.u32 %v9286, 30
  %v9288 = vsub.s32 %v9284, %v9287
  %vm9289 = vcmp.lt.s32.totalorder %v9288, 0
  %v9290 = vsub.s32 0, %v9288
  %v9291 = vsel %vm9289, %v9290, %v9288
  %v9292 = vclz %v9291
  %v9293 = vsub.s32 %v9292, 2
  %vm9294 = vcmp.gt.s32.totalorder 0, %v9293
  %v9295 = vsel %vm9294, 0, %v9293
  %v9296 = vsub.s32 32, %v9295
  %v9297 = vshll.u32 %v9288, %v9295
  %v9298 = vshrl.u32 %v9280, %v9296
  %v9299 = vor.u32 %v9297, %v9298
  %v9300 = vsub.s32 4294967266, %v9295
  %v9301 = vadd.s32 %v9300, 127
  %v9302 = vshll.u32 %v9301, 23
  %v9303 = vor.u32 4788187, %v9302
  %v9304 = vand.u32 2147483647, %v9303
  %v9306 = vcvt.s32.f32 %v9299
  %v9307 = vmul.f32 %v9306, %v9304
  %v9308 = vxor.u32 %v9307, 2147483648
  %v9309 = vsel %vm9188, %v9308, %v9307
  %v9310 = vsub.s32 4, %v9286
  %v9311 = vsel %vm9188, %v9310, %v9286
  %v9312 = vsel %vm9187, %v519, %v9309
  %v9313 = vsel %vm9187, 0, %v9311
  %v9314 = vmul.f32 %v9312, %v9312
  %v9315 = vmul.f32 %v9314, -0.001358992
  %v9316 = vadd.f32 %v9315, 0.041655596
  %v9317 = vmul.f32 %v9314, %v9316
  %v9318 = vadd.f32 %v9317, -0.4999988
  %v9319 = vmul.f32 %v9314, %v9318
  %v9320 = vadd.f32 1.0, %v9319
  %v9321 = vmul.f32 %v9312, %v9312
  %v9322 = vmul.f32 %v9321, -0.00019511016
  %v9323 = vadd.f32 %v9322, 0.008332121
  %v9324 = vmul.f32 %v9321, %v9323
  %v9325 = vadd.f32 %v9324, -0.16666654
  %v9326 = vmul.f32 %v9321, %v9325
  %v9327 = vadd.f32 %v9326, 1.0
  %v9328 = vmul.f32 %v9327, %v9312
  %vm9329 = vweird.f32 %v519
  %v9330 = vand.u32 %v9313, 3
  %vm9331 = vcmp.lt.s32.totalorder %v9330, 2
  %vm9332 = vcmp.eq.s32.totalorder %v9330, 0
  %v9333 = vxor.u32 %v9328, 2147483648
  %v9334 = vsel %vm9332, %v9320, %v9333
  %vm9335 = vcmp.eq.s32.totalorder %v9330, 2
  %v9336 = vxor.u32 %v9320, 2147483648
  %v9337 = vsel %vm9335, %v9336, %v9328
  %v9338 = vsel %vm9331, %v9334, %v9337
  %v9339 = vsel %vm9329, nan, %v9338
  %v9340 = vand.u32 2147483647, %v520
  %vm9341 = vcmp.le.f32.partialorder %v9340, 0.7853982
  %vm9342 = vcmp.lt.s32.totalorder %v520, 0
  %v9343 = vand.u32 %v520, 2139095040
  %v9344 = vshrl.u32 %v9343, 23
  %v9345 = vsub.s32 %v9344, 127
  %v9346 = vand.u32 2147483647, %v520
  %v9347 = vand.u32 %v9346, 8388607
  %v9348 = vor.u32 %v9347, 8388608
  %v9349 = vsub.s32 0, %v9348
  %v9350 = vadd.s32 %v9345, 1
  %vm9351 = vcmp.gt.s32.totalorder %v9350, 0
  %v9352 = vsel %vm9351, %v9350, 0
  %v9353 = vshrl.u32 %v9352, 5
  %v9354 = vand.u32 %v9352, 31
  %v9355 = vsub.s32 32, %v9354
  %v9356 = vshrl.u32 683565275, %v9355
  %v9357 = vshll.u32 683565275, %v9354
  %v9358 = vshrl.u32 2475754826, %v9355
  %v9359 = vor.u32 %v9357, %v9358
  %v9360 = vshll.u32 2475754826, %v9354
  %v9361 = vshrl.u32 2131351028, %v9355
  %v9362 = vor.u32 %v9360, %v9361
  %v9363 = vshll.u32 2131351028, %v9354
  %v9364 = vshrl.u32 2102212464, %v9355
  %v9365 = vor.u32 %v9363, %v9364
  %v9366 = vshll.u32 2102212464, %v9354
  %v9367 = vshrl.u32 920167782, %v9355
  %v9368 = vor.u32 %v9366, %v9367
  %v9369 = vshll.u32 920167782, %v9354
  %v9370 = vshrl.u32 1326507024, %v9355
  %v9371 = vor.u32 %v9369, %v9370
  %vm9372 = vcmp.lt.s32.totalorder %v9353, 1
  %vm9373 = vcmp.lt.s32.totalorder %v9353, 2
  %vm9374 = vcmp.lt.s32.totalorder %v9353, 3
  %vm9375 = vcmp.lt.s32.totalorder %v9353, 4
  %v9376 = vsel %vm9372, %v9356, %v9359
  %v9377 = vsel %vm9375, %v9365, 2102212464
  %v9378 = vsel %vm9374, %v9362, %v9377
  %v9379 = vsel %vm9373, %v9376, %v9378
  %v9380 = vsel %vm9372, %v9359, %v9362
  %v9381 = vsel %vm9375, %v9368, 920167782
  %v9382 = vsel %vm9374, %v9365, %v9381
  %v9383 = vsel %vm9373, %v9380, %v9382
  %v9384 = vsel %vm9372, %v9362, %v9365
  %v9385 = vsel %vm9375, %v9371, 1326507024
  %v9386 = vsel %vm9374, %v9368, %v9385
  %v9387 = vsel %vm9373, %v9384, %v9386
  %v9388 = vshll.u32 %v9348, 8
  %v9389 = vand.u32 %v9388, 65535
  %v9390 = vshrl.u32 %v9388, 16
  %v9391 = vand.u32 %v9387, 65535
  %v9392 = vshrl.u32 %v9387, 16
  %v9393 = vmul.u32 %v9389, %v9391
  %v9394 = vmul.u32 %v9389, %v9392
  %v9395 = vmul.u32 %v9390, %v9391
  %v9396 = vmul.u32 %v9390, %v9392
  %v9397 = vshll.u32 %v9394, 16
  %v9398 = vshrl.u32 %v9394, 16
  %v9399 = vshll.u32 %v9395, 16
  %v9400 = vshrl.u32 %v9395, 16
  %vm9401 = vc.u32 %v9393, %v9397
  %v9402 = vsel %vm9401, 1, 0
  %v9403 = vadd.s32 %v9393, %v9397
  %v9404 = vadd.s32 %v9396, %v9402
  %vm9405 = vc.u32 %v9403, %v9399
  %v9406 = vsel %vm9405, 1, 0
  %v9407 = vadd.s32 %v9403, %v9399
  %v9408 = vadd.s32 %v9404, %v9406
  %v9409 = vadd.s32 %v9408, %v9398
  %v9410 = vadd.s32 %v9409, %v9400
  %v9411 = vand.u32 %v9388, 65535
  %v9412 = vshrl.u32 %v9388, 16
  %v9413 = vand.u32 %v9383, 65535
  %v9414 = vshrl.u32 %v9383, 16
  %v9415 = vmul.u32 %v9411, %v9413
  %v9416 = vmul.u32 %v9411, %v9414
  %v9417 = vmul.u32 %v9412, %v9413
  %v9418 = vmul.u32 %v9412, %v9414
  %v9419 = vshll.u32 %v9416, 16
  %v9420 = vshrl.u32 %v9416, 16
  %v9421 = vshll.u32 %v9417, 16
  %v9422 = vshrl.u32 %v9417, 16
  %vm9423 = vc.u32 %v9415, %v9419
  %v9424 = vsel %vm9423, 1, 0
  %v9425 = vadd.s32 %v9415, %v9419
  %v9426 = vadd.s32 %v9418, %v9424
  %vm9427 = vc.u32 %v9425, %v9421
  %v9428 = vsel %vm9427, 1, 0
  %v9429 = vadd.s32 %v9425, %v9421
  %v9430 = vadd.s32 %v9426, %v9428
  %v9431 = vadd.s32 %v9430, %v9420
  %v9432 = vadd.s32 %v9431, %v9422
  %v9433 = vmul.u32 %v9388, %v9379
  %v9434 = vadd.s32 %v9410, %v9429
  %vm9435 = vc.u32 %v9410, %v9429
  %v9436 = vadd.s32 %v9432, 1
  %v9437 = vsel %vm9435, %v9436, %v9432
  %v9438 = vadd.s32 %v9433, %v9437
  %v9439 = vadd.s32 %v9438, 536870912
  %v9440 = vshrl.u32 %v9439, 30
  %v9441 = vshll.u32 %v9440, 30
  %v9442 = vsub.s32 %v9438, %v9441
  %vm9443 = vcmp.lt.s32.totalorder %v9442, 0
  %v9444 = vsub.s32 0, %v9442
  %v9445 = vsel %vm9443, %v9444, %v9442
  %v9446 = vclz %v9445
  %v9447 = vsub.s32 %v9446, 2
  %vm9448 = vcmp.gt.s32.totalorder 0, %v9447
  %v9449 = vsel %vm9448, 0, %v9447
  %v9450 = vsub.s32 32, %v9449
  %v9451 = vshll.u32 %v9442, %v9449
  %v9452 = vshrl.u32 %v9434, %v9450
  %v9453 = vor.u32 %v9451, %v9452
  %v9454 = vsub.s32 4294967266, %v9449
  %v9455 = vadd.s32 %v9454, 127
  %v9456 = vshll.u32 %v9455, 23
  %v9457 = vor.u32 4788187, %v9456
  %v9458 = vand.u32 2147483647, %v9457
  %v9460 = vcvt.s32.f32 %v9453
  %v9461 = vmul.f32 %v9460, %v9458
  %v9462 = vxor.u32 %v9461, 2147483648
  %v9463 = vsel %vm9342, %v9462, %v9461
  %v9464 = vsub.s32 4, %v9440
  %v9465 = vsel %vm9342, %v9464, %v9440
  %v9466 = vsel %vm9341, %v520, %v9463
  %v9467 = vsel %vm9341, 0, %v9465
  %v9468 = vmul.f32 %v9466, %v9466
  %v9469 = vmul.f32 %v9468, -0.001358992
  %v9470 = vadd.f32 %v9469, 0.041655596
  %v9471 = vmul.f32 %v9468, %v9470
  %v9472 = vadd.f32 %v9471, -0.4999988
  %v9473 = vmul.f32 %v9468, %v9472
  %v9474 = vadd.f32 1.0, %v9473
  %v9475 = vmul.f32 %v9466, %v9466
  %v9476 = vmul.f32 %v9475, -0.00019511016
  %v9477 = vadd.f32 %v9476, 0.008332121
  %v9478 = vmul.f32 %v9475, %v9477
  %v9479 = vadd.f32 %v9478, -0.16666654
  %v9480 = vmul.f32 %v9475, %v9479
  %v9481 = vadd.f32 %v9480, 1.0
  %v9482 = vmul.f32 %v9481, %v9466
  %vm9483 = vweird.f32 %v520
  %v9484 = vand.u32 %v9467, 3
  %vm9485 = vcmp.lt.s32.totalorder %v9484, 2
  %vm9486 = vcmp.eq.s32.totalorder %v9484, 0
  %v9487 = vxor.u32 %v9482, 2147483648
  %v9488 = vsel %vm9486, %v9474, %v9487
  %vm9489 = vcmp.eq.s32.totalorder %v9484, 2
  %v9490 = vxor.u32 %v9474, 2147483648
  %v9491 = vsel %vm9489, %v9490, %v9482
  %v9492 = vsel %vm9485, %v9488, %v9491
  %v9493 = vsel %vm9483, nan, %v9492
  %v9494 = vand.u32 2147483647, %v521
  %vm9495 = vcmp.le.f32.partialorder %v9494, 0.7853982
  %vm9496 = vcmp.lt.s32.totalorder %v521, 0
  %v9497 = vand.u32 %v521, 2139095040
  %v9498 = vshrl.u32 %v9497, 23
  %v9499 = vsub.s32 %v9498, 127
  %v9500 = vand.u32 2147483647, %v521
  %v9501 = vand.u32 %v9500, 8388607
  %v9502 = vor.u32 %v9501, 8388608
  %v9503 = vsub.s32 0, %v9502
  %v9504 = vadd.s32 %v9499, 1
  %vm9505 = vcmp.gt.s32.totalorder %v9504, 0
  %v9506 = vsel %vm9505, %v9504, 0
  %v9507 = vshrl.u32 %v9506, 5
  %v9508 = vand.u32 %v9506, 31
  %v9509 = vsub.s32 32, %v9508
  %v9510 = vshrl.u32 683565275, %v9509
  %v9511 = vshll.u32 683565275, %v9508
  %v9512 = vshrl.u32 2475754826, %v9509
  %v9513 = vor.u32 %v9511, %v9512
  %v9514 = vshll.u32 2475754826, %v9508
  %v9515 = vshrl.u32 2131351028, %v9509
  %v9516 = vor.u32 %v9514, %v9515
  %v9517 = vshll.u32 2131351028, %v9508
  %v9518 = vshrl.u32 2102212464, %v9509
  %v9519 = vor.u32 %v9517, %v9518
  %v9520 = vshll.u32 2102212464, %v9508
  %v9521 = vshrl.u32 920167782, %v9509
  %v9522 = vor.u32 %v9520, %v9521
  %v9523 = vshll.u32 920167782, %v9508
  %v9524 = vshrl.u32 1326507024, %v9509
  %v9525 = vor.u32 %v9523, %v9524
  %vm9526 = vcmp.lt.s32.totalorder %v9507, 1
  %vm9527 = vcmp.lt.s32.totalorder %v9507, 2
  %vm9528 = vcmp.lt.s32.totalorder %v9507, 3
  %vm9529 = vcmp.lt.s32.totalorder %v9507, 4
  %v9530 = vsel %vm9526, %v9510, %v9513
  %v9531 = vsel %vm9529, %v9519, 2102212464
  %v9532 = vsel %vm9528, %v9516, %v9531
  %v9533 = vsel %vm9527, %v9530, %v9532
  %v9534 = vsel %vm9526, %v9513, %v9516
  %v9535 = vsel %vm9529, %v9522, 920167782
  %v9536 = vsel %vm9528, %v9519, %v9535
  %v9537 = vsel %vm9527, %v9534, %v9536
  %v9538 = vsel %vm9526, %v9516, %v9519
  %v9539 = vsel %vm9529, %v9525, 1326507024
  %v9540 = vsel %vm9528, %v9522, %v9539
  %v9541 = vsel %vm9527, %v9538, %v9540
  %v9542 = vshll.u32 %v9502, 8
  %v9543 = vand.u32 %v9542, 65535
  %v9544 = vshrl.u32 %v9542, 16
  %v9545 = vand.u32 %v9541, 65535
  %v9546 = vshrl.u32 %v9541, 16
  %v9547 = vmul.u32 %v9543, %v9545
  %v9548 = vmul.u32 %v9543, %v9546
  %v9549 = vmul.u32 %v9544, %v9545
  %v9550 = vmul.u32 %v9544, %v9546
  %v9551 = vshll.u32 %v9548, 16
  %v9552 = vshrl.u32 %v9548, 16
  %v9553 = vshll.u32 %v9549, 16
  %v9554 = vshrl.u32 %v9549, 16
  %vm9555 = vc.u32 %v9547, %v9551
  %v9556 = vsel %vm9555, 1, 0
  %v9557 = vadd.s32 %v9547, %v9551
  %v9558 = vadd.s32 %v9550, %v9556
  %vm9559 = vc.u32 %v9557, %v9553
  %v9560 = vsel %vm9559, 1, 0
  %v9561 = vadd.s32 %v9557, %v9553
  %v9562 = vadd.s32 %v9558, %v9560
  %v9563 = vadd.s32 %v9562, %v9552
  %v9564 = vadd.s32 %v9563, %v9554
  %v9565 = vand.u32 %v9542, 65535
  %v9566 = vshrl.u32 %v9542, 16
  %v9567 = vand.u32 %v9537, 65535
  %v9568 = vshrl.u32 %v9537, 16
  %v9569 = vmul.u32 %v9565, %v9567
  %v9570 = vmul.u32 %v9565, %v9568
  %v9571 = vmul.u32 %v9566, %v9567
  %v9572 = vmul.u32 %v9566, %v9568
  %v9573 = vshll.u32 %v9570, 16
  %v9574 = vshrl.u32 %v9570, 16
  %v9575 = vshll.u32 %v9571, 16
  %v9576 = vshrl.u32 %v9571, 16
  %vm9577 = vc.u32 %v9569, %v9573
  %v9578 = vsel %vm9577, 1, 0
  %v9579 = vadd.s32 %v9569, %v9573
  %v9580 = vadd.s32 %v9572, %v9578
  %vm9581 = vc.u32 %v9579, %v9575
  %v9582 = vsel %vm9581, 1, 0
  %v9583 = vadd.s32 %v9579, %v9575
  %v9584 = vadd.s32 %v9580, %v9582
  %v9585 = vadd.s32 %v9584, %v9574
  %v9586 = vadd.s32 %v9585, %v9576
  %v9587 = vmul.u32 %v9542, %v9533
  %v9588 = vadd.s32 %v9564, %v9583
  %vm9589 = vc.u32 %v9564, %v9583
  %v9590 = vadd.s32 %v9586, 1
  %v9591 = vsel %vm9589, %v9590, %v9586
  %v9592 = vadd.s32 %v9587, %v9591
  %v9593 = vadd.s32 %v9592, 536870912
  %v9594 = vshrl.u32 %v9593, 30
  %v9595 = vshll.u32 %v9594, 30
  %v9596 = vsub.s32 %v9592, %v9595
  %vm9597 = vcmp.lt.s32.totalorder %v9596, 0
  %v9598 = vsub.s32 0, %v9596
  %v9599 = vsel %vm9597, %v9598, %v9596
  %v9600 = vclz %v9599
  %v9601 = vsub.s32 %v9600, 2
  %vm9602 = vcmp.gt.s32.totalorder 0, %v9601
  %v9603 = vsel %vm9602, 0, %v9601
  %v9604 = vsub.s32 32, %v9603
  %v9605 = vshll.u32 %v9596, %v9603
  %v9606 = vshrl.u32 %v9588, %v9604
  %v9607 = vor.u32 %v9605, %v9606
  %v9608 = vsub.s32 4294967266, %v9603
  %v9609 = vadd.s32 %v9608, 127
  %v9610 = vshll.u32 %v9609, 23
  %v9611 = vor.u32 4788187, %v9610
  %v9612 = vand.u32 2147483647, %v9611
  %v9614 = vcvt.s32.f32 %v9607
  %v9615 = vmul.f32 %v9614, %v9612
  %v9616 = vxor.u32 %v9615, 2147483648
  %v9617 = vsel %vm9496, %v9616, %v9615
  %v9618 = vsub.s32 4, %v9594
  %v9619 = vsel %vm9496, %v9618, %v9594
  %v9620 = vsel %vm9495, %v521, %v9617
  %v9621 = vsel %vm9495, 0, %v9619
  %v9622 = vmul.f32 %v9620, %v9620
  %v9623 = vmul.f32 %v9622, -0.001358992
  %v9624 = vadd.f32 %v9623, 0.041655596
  %v9625 = vmul.f32 %v9622, %v9624
  %v9626 = vadd.f32 %v9625, -0.4999988
  %v9627 = vmul.f32 %v9622, %v9626
  %v9628 = vadd.f32 1.0, %v9627
  %v9629 = vmul.f32 %v9620, %v9620
  %v9630 = vmul.f32 %v9629, -0.00019511016
  %v9631 = vadd.f32 %v9630, 0.008332121
  %v9632 = vmul.f32 %v9629, %v9631
  %v9633 = vadd.f32 %v9632, -0.16666654
  %v9634 = vmul.f32 %v9629, %v9633
  %v9635 = vadd.f32 %v9634, 1.0
  %v9636 = vmul.f32 %v9635, %v9620
  %vm9637 = vweird.f32 %v521
  %v9638 = vand.u32 %v9621, 3
  %vm9639 = vcmp.lt.s32.totalorder %v9638, 2
  %vm9640 = vcmp.eq.s32.totalorder %v9638, 0
  %v9641 = vxor.u32 %v9636, 2147483648
  %v9642 = vsel %vm9640, %v9628, %v9641
  %vm9643 = vcmp.eq.s32.totalorder %v9638, 2
  %v9644 = vxor.u32 %v9628, 2147483648
  %v9645 = vsel %vm9643, %v9644, %v9636
  %v9646 = vsel %vm9639, %v9642, %v9645
  %v9647 = vsel %vm9637, nan, %v9646
  %v9648 = vand.u32 2147483647, %v522
  %vm9649 = vcmp.le.f32.partialorder %v9648, 0.7853982
  %vm9650 = vcmp.lt.s32.totalorder %v522, 0
  %v9651 = vand.u32 %v522, 2139095040
  %v9652 = vshrl.u32 %v9651, 23
  %v9653 = vsub.s32 %v9652, 127
  %v9654 = vand.u32 2147483647, %v522
  %v9655 = vand.u32 %v9654, 8388607
  %v9656 = vor.u32 %v9655, 8388608
  %v9657 = vsub.s32 0, %v9656
  %v9658 = vadd.s32 %v9653, 1
  %vm9659 = vcmp.gt.s32.totalorder %v9658, 0
  %v9660 = vsel %vm9659, %v9658, 0
  %v9661 = vshrl.u32 %v9660, 5
  %v9662 = vand.u32 %v9660, 31
  %v9663 = vsub.s32 32, %v9662
  %v9664 = vshrl.u32 683565275, %v9663
  %v9665 = vshll.u32 683565275, %v9662
  %v9666 = vshrl.u32 2475754826, %v9663
  %v9667 = vor.u32 %v9665, %v9666
  %v9668 = vshll.u32 2475754826, %v9662
  %v9669 = vshrl.u32 2131351028, %v9663
  %v9670 = vor.u32 %v9668, %v9669
  %v9671 = vshll.u32 2131351028, %v9662
  %v9672 = vshrl.u32 2102212464, %v9663
  %v9673 = vor.u32 %v9671, %v9672
  %v9674 = vshll.u32 2102212464, %v9662
  %v9675 = vshrl.u32 920167782, %v9663
  %v9676 = vor.u32 %v9674, %v9675
  %v9677 = vshll.u32 920167782, %v9662
  %v9678 = vshrl.u32 1326507024, %v9663
  %v9679 = vor.u32 %v9677, %v9678
  %vm9680 = vcmp.lt.s32.totalorder %v9661, 1
  %vm9681 = vcmp.lt.s32.totalorder %v9661, 2
  %vm9682 = vcmp.lt.s32.totalorder %v9661, 3
  %vm9683 = vcmp.lt.s32.totalorder %v9661, 4
  %v9684 = vsel %vm9680, %v9664, %v9667
  %v9685 = vsel %vm9683, %v9673, 2102212464
  %v9686 = vsel %vm9682, %v9670, %v9685
  %v9687 = vsel %vm9681, %v9684, %v9686
  %v9688 = vsel %vm9680, %v9667, %v9670
  %v9689 = vsel %vm9683, %v9676, 920167782
  %v9690 = vsel %vm9682, %v9673, %v9689
  %v9691 = vsel %vm9681, %v9688, %v9690
  %v9692 = vsel %vm9680, %v9670, %v9673
  %v9693 = vsel %vm9683, %v9679, 1326507024
  %v9694 = vsel %vm9682, %v9676, %v9693
  %v9695 = vsel %vm9681, %v9692, %v9694
  %v9696 = vshll.u32 %v9656, 8
  %v9697 = vand.u32 %v9696, 65535
  %v9698 = vshrl.u32 %v9696, 16
  %v9699 = vand.u32 %v9695, 65535
  %v9700 = vshrl.u32 %v9695, 16
  %v9701 = vmul.u32 %v9697, %v9699
  %v9702 = vmul.u32 %v9697, %v9700
  %v9703 = vmul.u32 %v9698, %v9699
  %v9704 = vmul.u32 %v9698, %v9700
  %v9705 = vshll.u32 %v9702, 16
  %v9706 = vshrl.u32 %v9702, 16
  %v9707 = vshll.u32 %v9703, 16
  %v9708 = vshrl.u32 %v9703, 16
  %vm9709 = vc.u32 %v9701, %v9705
  %v9710 = vsel %vm9709, 1, 0
  %v9711 = vadd.s32 %v9701, %v9705
  %v9712 = vadd.s32 %v9704, %v9710
  %vm9713 = vc.u32 %v9711, %v9707
  %v9714 = vsel %vm9713, 1, 0
  %v9715 = vadd.s32 %v9711, %v9707
  %v9716 = vadd.s32 %v9712, %v9714
  %v9717 = vadd.s32 %v9716, %v9706
  %v9718 = vadd.s32 %v9717, %v9708
  %v9719 = vand.u32 %v9696, 65535
  %v9720 = vshrl.u32 %v9696, 16
  %v9721 = vand.u32 %v9691, 65535
  %v9722 = vshrl.u32 %v9691, 16
  %v9723 = vmul.u32 %v9719, %v9721
  %v9724 = vmul.u32 %v9719, %v9722
  %v9725 = vmul.u32 %v9720, %v9721
  %v9726 = vmul.u32 %v9720, %v9722
  %v9727 = vshll.u32 %v9724, 16
  %v9728 = vshrl.u32 %v9724, 16
  %v9729 = vshll.u32 %v9725, 16
  %v9730 = vshrl.u32 %v9725, 16
  %vm9731 = vc.u32 %v9723, %v9727
  %v9732 = vsel %vm9731, 1, 0
  %v9733 = vadd.s32 %v9723, %v9727
  %v9734 = vadd.s32 %v9726, %v9732
  %vm9735 = vc.u32 %v9733, %v9729
  %v9736 = vsel %vm9735, 1, 0
  %v9737 = vadd.s32 %v9733, %v9729
  %v9738 = vadd.s32 %v9734, %v9736
  %v9739 = vadd.s32 %v9738, %v9728
  %v9740 = vadd.s32 %v9739, %v9730
  %v9741 = vmul.u32 %v9696, %v9687
  %v9742 = vadd.s32 %v9718, %v9737
  %vm9743 = vc.u32 %v9718, %v9737
  %v9744 = vadd.s32 %v9740, 1
  %v9745 = vsel %vm9743, %v9744, %v9740
  %v9746 = vadd.s32 %v9741, %v9745
  %v9747 = vadd.s32 %v9746, 536870912
  %v9748 = vshrl.u32 %v9747, 30
  %v9749 = vshll.u32 %v9748, 30
  %v9750 = vsub.s32 %v9746, %v9749
  %vm9751 = vcmp.lt.s32.totalorder %v9750, 0
  %v9752 = vsub.s32 0, %v9750
  %v9753 = vsel %vm9751, %v9752, %v9750
  %v9754 = vclz %v9753
  %v9755 = vsub.s32 %v9754, 2
  %vm9756 = vcmp.gt.s32.totalorder 0, %v9755
  %v9757 = vsel %vm9756, 0, %v9755
  %v9758 = vsub.s32 32, %v9757
  %v9759 = vshll.u32 %v9750, %v9757
  %v9760 = vshrl.u32 %v9742, %v9758
  %v9761 = vor.u32 %v9759, %v9760
  %v9762 = vsub.s32 4294967266, %v9757
  %v9763 = vadd.s32 %v9762, 127
  %v9764 = vshll.u32 %v9763, 23
  %v9765 = vor.u32 4788187, %v9764
  %v9766 = vand.u32 2147483647, %v9765
  %v9768 = vcvt.s32.f32 %v9761
  %v9769 = vmul.f32 %v9768, %v9766
  %v9770 = vxor.u32 %v9769, 2147483648
  %v9771 = vsel %vm9650, %v9770, %v9769
  %v9772 = vsub.s32 4, %v9748
  %v9773 = vsel %vm9650, %v9772, %v9748
  %v9774 = vsel %vm9649, %v522, %v9771
  %v9775 = vsel %vm9649, 0, %v9773
  %v9776 = vmul.f32 %v9774, %v9774
  %v9777 = vmul.f32 %v9776, -0.001358992
  %v9778 = vadd.f32 %v9777, 0.041655596
  %v9779 = vmul.f32 %v9776, %v9778
  %v9780 = vadd.f32 %v9779, -0.4999988
  %v9781 = vmul.f32 %v9776, %v9780
  %v9782 = vadd.f32 1.0, %v9781
  %v9783 = vmul.f32 %v9774, %v9774
  %v9784 = vmul.f32 %v9783, -0.00019511016
  %v9785 = vadd.f32 %v9784, 0.008332121
  %v9786 = vmul.f32 %v9783, %v9785
  %v9787 = vadd.f32 %v9786, -0.16666654
  %v9788 = vmul.f32 %v9783, %v9787
  %v9789 = vadd.f32 %v9788, 1.0
  %v9790 = vmul.f32 %v9789, %v9774
  %vm9791 = vweird.f32 %v522
  %v9792 = vand.u32 %v9775, 3
  %vm9793 = vcmp.lt.s32.totalorder %v9792, 2
  %vm9794 = vcmp.eq.s32.totalorder %v9792, 0
  %v9795 = vxor.u32 %v9790, 2147483648
  %v9796 = vsel %vm9794, %v9782, %v9795
  %vm9797 = vcmp.eq.s32.totalorder %v9792, 2
  %v9798 = vxor.u32 %v9782, 2147483648
  %v9799 = vsel %vm9797, %v9798, %v9790
  %v9800 = vsel %vm9793, %v9796, %v9799
  %v9801 = vsel %vm9791, nan, %v9800
  %v9802 = vand.u32 2147483647, %v523
  %vm9803 = vcmp.le.f32.partialorder %v9802, 0.7853982
  %vm9804 = vcmp.lt.s32.totalorder %v523, 0
  %v9805 = vand.u32 %v523, 2139095040
  %v9806 = vshrl.u32 %v9805, 23
  %v9807 = vsub.s32 %v9806, 127
  %v9808 = vand.u32 2147483647, %v523
  %v9809 = vand.u32 %v9808, 8388607
  %v9810 = vor.u32 %v9809, 8388608
  %v9811 = vsub.s32 0, %v9810
  %v9812 = vadd.s32 %v9807, 1
  %vm9813 = vcmp.gt.s32.totalorder %v9812, 0
  %v9814 = vsel %vm9813, %v9812, 0
  %v9815 = vshrl.u32 %v9814, 5
  %v9816 = vand.u32 %v9814, 31
  %v9817 = vsub.s32 32, %v9816
  %v9818 = vshrl.u32 683565275, %v9817
  %v9819 = vshll.u32 683565275, %v9816
  %v9820 = vshrl.u32 2475754826, %v9817
  %v9821 = vor.u32 %v9819, %v9820
  %v9822 = vshll.u32 2475754826, %v9816
  %v9823 = vshrl.u32 2131351028, %v9817
  %v9824 = vor.u32 %v9822, %v9823
  %v9825 = vshll.u32 2131351028, %v9816
  %v9826 = vshrl.u32 2102212464, %v9817
  %v9827 = vor.u32 %v9825, %v9826
  %v9828 = vshll.u32 2102212464, %v9816
  %v9829 = vshrl.u32 920167782, %v9817
  %v9830 = vor.u32 %v9828, %v9829
  %v9831 = vshll.u32 920167782, %v9816
  %v9832 = vshrl.u32 1326507024, %v9817
  %v9833 = vor.u32 %v9831, %v9832
  %vm9834 = vcmp.lt.s32.totalorder %v9815, 1
  %vm9835 = vcmp.lt.s32.totalorder %v9815, 2
  %vm9836 = vcmp.lt.s32.totalorder %v9815, 3
  %vm9837 = vcmp.lt.s32.totalorder %v9815, 4
  %v9838 = vsel %vm9834, %v9818, %v9821
  %v9839 = vsel %vm9837, %v9827, 2102212464
  %v9840 = vsel %vm9836, %v9824, %v9839
  %v9841 = vsel %vm9835, %v9838, %v9840
  %v9842 = vsel %vm9834, %v9821, %v9824
  %v9843 = vsel %vm9837, %v9830, 920167782
  %v9844 = vsel %vm9836, %v9827, %v9843
  %v9845 = vsel %vm9835, %v9842, %v9844
  %v9846 = vsel %vm9834, %v9824, %v9827
  %v9847 = vsel %vm9837, %v9833, 1326507024
  %v9848 = vsel %vm9836, %v9830, %v9847
  %v9849 = vsel %vm9835, %v9846, %v9848
  %v9850 = vshll.u32 %v9810, 8
  %v9851 = vand.u32 %v9850, 65535
  %v9852 = vshrl.u32 %v9850, 16
  %v9853 = vand.u32 %v9849, 65535
  %v9854 = vshrl.u32 %v9849, 16
  %v9855 = vmul.u32 %v9851, %v9853
  %v9856 = vmul.u32 %v9851, %v9854
  %v9857 = vmul.u32 %v9852, %v9853
  %v9858 = vmul.u32 %v9852, %v9854
  %v9859 = vshll.u32 %v9856, 16
  %v9860 = vshrl.u32 %v9856, 16
  %v9861 = vshll.u32 %v9857, 16
  %v9862 = vshrl.u32 %v9857, 16
  %vm9863 = vc.u32 %v9855, %v9859
  %v9864 = vsel %vm9863, 1, 0
  %v9865 = vadd.s32 %v9855, %v9859
  %v9866 = vadd.s32 %v9858, %v9864
  %vm9867 = vc.u32 %v9865, %v9861
  %v9868 = vsel %vm9867, 1, 0
  %v9869 = vadd.s32 %v9865, %v9861
  %v9870 = vadd.s32 %v9866, %v9868
  %v9871 = vadd.s32 %v9870, %v9860
  %v9872 = vadd.s32 %v9871, %v9862
  %v9873 = vand.u32 %v9850, 65535
  %v9874 = vshrl.u32 %v9850, 16
  %v9875 = vand.u32 %v9845, 65535
  %v9876 = vshrl.u32 %v9845, 16
  %v9877 = vmul.u32 %v9873, %v9875
  %v9878 = vmul.u32 %v9873, %v9876
  %v9879 = vmul.u32 %v9874, %v9875
  %v9880 = vmul.u32 %v9874, %v9876
  %v9881 = vshll.u32 %v9878, 16
  %v9882 = vshrl.u32 %v9878, 16
  %v9883 = vshll.u32 %v9879, 16
  %v9884 = vshrl.u32 %v9879, 16
  %vm9885 = vc.u32 %v9877, %v9881
  %v9886 = vsel %vm9885, 1, 0
  %v9887 = vadd.s32 %v9877, %v9881
  %v9888 = vadd.s32 %v9880, %v9886
  %vm9889 = vc.u32 %v9887, %v9883
  %v9890 = vsel %vm9889, 1, 0
  %v9891 = vadd.s32 %v9887, %v9883
  %v9892 = vadd.s32 %v9888, %v9890
  %v9893 = vadd.s32 %v9892, %v9882
  %v9894 = vadd.s32 %v9893, %v9884
  %v9895 = vmul.u32 %v9850, %v9841
  %v9896 = vadd.s32 %v9872, %v9891
  %vm9897 = vc.u32 %v9872, %v9891
  %v9898 = vadd.s32 %v9894, 1
  %v9899 = vsel %vm9897, %v9898, %v9894
  %v9900 = vadd.s32 %v9895, %v9899
  %v9901 = vadd.s32 %v9900, 536870912
  %v9902 = vshrl.u32 %v9901, 30
  %v9903 = vshll.u32 %v9902, 30
  %v9904 = vsub.s32 %v9900, %v9903
  %vm9905 = vcmp.lt.s32.totalorder %v9904, 0
  %v9906 = vsub.s32 0, %v9904
  %v9907 = vsel %vm9905, %v9906, %v9904
  %v9908 = vclz %v9907
  %v9909 = vsub.s32 %v9908, 2
  %vm9910 = vcmp.gt.s32.totalorder 0, %v9909
  %v9911 = vsel %vm9910, 0, %v9909
  %v9912 = vsub.s32 32, %v9911
  %v9913 = vshll.u32 %v9904, %v9911
  %v9914 = vshrl.u32 %v9896, %v9912
  %v9915 = vor.u32 %v9913, %v9914
  %v9916 = vsub.s32 4294967266, %v9911
  %v9917 = vadd.s32 %v9916, 127
  %v9918 = vshll.u32 %v9917, 23
  %v9919 = vor.u32 4788187, %v9918
  %v9920 = vand.u32 2147483647, %v9919
  %v9922 = vcvt.s32.f32 %v9915
  %v9923 = vmul.f32 %v9922, %v9920
  %v9924 = vxor.u32 %v9923, 2147483648
  %v9925 = vsel %vm9804, %v9924, %v9923
  %v9926 = vsub.s32 4, %v9902
  %v9927 = vsel %vm9804, %v9926, %v9902
  %v9928 = vsel %vm9803, %v523, %v9925
  %v9929 = vsel %vm9803, 0, %v9927
  %v9930 = vmul.f32 %v9928, %v9928
  %v9931 = vmul.f32 %v9930, -0.001358992
  %v9932 = vadd.f32 %v9931, 0.041655596
  %v9933 = vmul.f32 %v9930, %v9932
  %v9934 = vadd.f32 %v9933, -0.4999988
  %v9935 = vmul.f32 %v9930, %v9934
  %v9936 = vadd.f32 1.0, %v9935
  %v9937 = vmul.f32 %v9928, %v9928
  %v9938 = vmul.f32 %v9937, -0.00019511016
  %v9939 = vadd.f32 %v9938, 0.008332121
  %v9940 = vmul.f32 %v9937, %v9939
  %v9941 = vadd.f32 %v9940, -0.16666654
  %v9942 = vmul.f32 %v9937, %v9941
  %v9943 = vadd.f32 %v9942, 1.0
  %v9944 = vmul.f32 %v9943, %v9928
  %vm9945 = vweird.f32 %v523
  %v9946 = vand.u32 %v9929, 3
  %vm9947 = vcmp.lt.s32.totalorder %v9946, 2
  %vm9948 = vcmp.eq.s32.totalorder %v9946, 0
  %v9949 = vxor.u32 %v9944, 2147483648
  %v9950 = vsel %vm9948, %v9936, %v9949
  %vm9951 = vcmp.eq.s32.totalorder %v9946, 2
  %v9952 = vxor.u32 %v9936, 2147483648
  %v9953 = vsel %vm9951, %v9952, %v9944
  %v9954 = vsel %vm9947, %v9950, %v9953
  %v9955 = vsel %vm9945, nan, %v9954
  %v9956 = vand.u32 2147483647, %v524
  %vm9957 = vcmp.le.f32.partialorder %v9956, 0.7853982
  %vm9958 = vcmp.lt.s32.totalorder %v524, 0
  %v9959 = vand.u32 %v524, 2139095040
  %v9960 = vshrl.u32 %v9959, 23
  %v9961 = vsub.s32 %v9960, 127
  %v9962 = vand.u32 2147483647, %v524
  %v9963 = vand.u32 %v9962, 8388607
  %v9964 = vor.u32 %v9963, 8388608
  %v9965 = vsub.s32 0, %v9964
  %v9966 = vadd.s32 %v9961, 1
  %vm9967 = vcmp.gt.s32.totalorder %v9966, 0
  %v9968 = vsel %vm9967, %v9966, 0
  %v9969 = vshrl.u32 %v9968, 5
  %v9970 = vand.u32 %v9968, 31
  %v9971 = vsub.s32 32, %v9970
  %v9972 = vshrl.u32 683565275, %v9971
  %v9973 = vshll.u32 683565275, %v9970
  %v9974 = vshrl.u32 2475754826, %v9971
  %v9975 = vor.u32 %v9973, %v9974
  %v9976 = vshll.u32 2475754826, %v9970
  %v9977 = vshrl.u32 2131351028, %v9971
  %v9978 = vor.u32 %v9976, %v9977
  %v9979 = vshll.u32 2131351028, %v9970
  %v9980 = vshrl.u32 2102212464, %v9971
  %v9981 = vor.u32 %v9979, %v9980
  %v9982 = vshll.u32 2102212464, %v9970
  %v9983 = vshrl.u32 920167782, %v9971
  %v9984 = vor.u32 %v9982, %v9983
  %v9985 = vshll.u32 920167782, %v9970
  %v9986 = vshrl.u32 1326507024, %v9971
  %v9987 = vor.u32 %v9985, %v9986
  %vm9988 = vcmp.lt.s32.totalorder %v9969, 1
  %vm9989 = vcmp.lt.s32.totalorder %v9969, 2
  %vm9990 = vcmp.lt.s32.totalorder %v9969, 3
  %vm9991 = vcmp.lt.s32.totalorder %v9969, 4
  %v9992 = vsel %vm9988, %v9972, %v9975
  %v9993 = vsel %vm9991, %v9981, 2102212464
  %v9994 = vsel %vm9990, %v9978, %v9993
  %v9995 = vsel %vm9989, %v9992, %v9994
  %v9996 = vsel %vm9988, %v9975, %v9978
  %v9997 = vsel %vm9991, %v9984, 920167782
  %v9998 = vsel %vm9990, %v9981, %v9997
  %v9999 = vsel %vm9989, %v9996, %v9998
  %v10000 = vsel %vm9988, %v9978, %v9981
  %v10001 = vsel %vm9991, %v9987, 1326507024
  %v10002 = vsel %vm9990, %v9984, %v10001
  %v10003 = vsel %vm9989, %v10000, %v10002
  %v10004 = vshll.u32 %v9964, 8
  %v10005 = vand.u32 %v10004, 65535
  %v10006 = vshrl.u32 %v10004, 16
  %v10007 = vand.u32 %v10003, 65535
  %v10008 = vshrl.u32 %v10003, 16
  %v10009 = vmul.u32 %v10005, %v10007
  %v10010 = vmul.u32 %v10005, %v10008
  %v10011 = vmul.u32 %v10006, %v10007
  %v10012 = vmul.u32 %v10006, %v10008
  %v10013 = vshll.u32 %v10010, 16
  %v10014 = vshrl.u32 %v10010, 16
  %v10015 = vshll.u32 %v10011, 16
  %v10016 = vshrl.u32 %v10011, 16
  %vm10017 = vc.u32 %v10009, %v10013
  %v10018 = vsel %vm10017, 1, 0
  %v10019 = vadd.s32 %v10009, %v10013
  %v10020 = vadd.s32 %v10012, %v10018
  %vm10021 = vc.u32 %v10019, %v10015
  %v10022 = vsel %vm10021, 1, 0
  %v10023 = vadd.s32 %v10019, %v10015
  %v10024 = vadd.s32 %v10020, %v10022
  %v10025 = vadd.s32 %v10024, %v10014
  %v10026 = vadd.s32 %v10025, %v10016
  %v10027 = vand.u32 %v10004, 65535
  %v10028 = vshrl.u32 %v10004, 16
  %v10029 = vand.u32 %v9999, 65535
  %v10030 = vshrl.u32 %v9999, 16
  %v10031 = vmul.u32 %v10027, %v10029
  %v10032 = vmul.u32 %v10027, %v10030
  %v10033 = vmul.u32 %v10028, %v10029
  %v10034 = vmul.u32 %v10028, %v10030
  %v10035 = vshll.u32 %v10032, 16
  %v10036 = vshrl.u32 %v10032, 16
  %v10037 = vshll.u32 %v10033, 16
  %v10038 = vshrl.u32 %v10033, 16
  %vm10039 = vc.u32 %v10031, %v10035
  %v10040 = vsel %vm10039, 1, 0
  %v10041 = vadd.s32 %v10031, %v10035
  %v10042 = vadd.s32 %v10034, %v10040
  %vm10043 = vc.u32 %v10041, %v10037
  %v10044 = vsel %vm10043, 1, 0
  %v10045 = vadd.s32 %v10041, %v10037
  %v10046 = vadd.s32 %v10042, %v10044
  %v10047 = vadd.s32 %v10046, %v10036
  %v10048 = vadd.s32 %v10047, %v10038
  %v10049 = vmul.u32 %v10004, %v9995
  %v10050 = vadd.s32 %v10026, %v10045
  %vm10051 = vc.u32 %v10026, %v10045
  %v10052 = vadd.s32 %v10048, 1
  %v10053 = vsel %vm10051, %v10052, %v10048
  %v10054 = vadd.s32 %v10049, %v10053
  %v10055 = vadd.s32 %v10054, 536870912
  %v10056 = vshrl.u32 %v10055, 30
  %v10057 = vshll.u32 %v10056, 30
  %v10058 = vsub.s32 %v10054, %v10057
  %vm10059 = vcmp.lt.s32.totalorder %v10058, 0
  %v10060 = vsub.s32 0, %v10058
  %v10061 = vsel %vm10059, %v10060, %v10058
  %v10062 = vclz %v10061
  %v10063 = vsub.s32 %v10062, 2
  %vm10064 = vcmp.gt.s32.totalorder 0, %v10063
  %v10065 = vsel %vm10064, 0, %v10063
  %v10066 = vsub.s32 32, %v10065
  %v10067 = vshll.u32 %v10058, %v10065
  %v10068 = vshrl.u32 %v10050, %v10066
  %v10069 = vor.u32 %v10067, %v10068
  %v10070 = vsub.s32 4294967266, %v10065
  %v10071 = vadd.s32 %v10070, 127
  %v10072 = vshll.u32 %v10071, 23
  %v10073 = vor.u32 4788187, %v10072
  %v10074 = vand.u32 2147483647, %v10073
  %v10076 = vcvt.s32.f32 %v10069
  %v10077 = vmul.f32 %v10076, %v10074
  %v10078 = vxor.u32 %v10077, 2147483648
  %v10079 = vsel %vm9958, %v10078, %v10077
  %v10080 = vsub.s32 4, %v10056
  %v10081 = vsel %vm9958, %v10080, %v10056
  %v10082 = vsel %vm9957, %v524, %v10079
  %v10083 = vsel %vm9957, 0, %v10081
  %v10084 = vmul.f32 %v10082, %v10082
  %v10085 = vmul.f32 %v10084, -0.001358992
  %v10086 = vadd.f32 %v10085, 0.041655596
  %v10087 = vmul.f32 %v10084, %v10086
  %v10088 = vadd.f32 %v10087, -0.4999988
  %v10089 = vmul.f32 %v10084, %v10088
  %v10090 = vadd.f32 1.0, %v10089
  %v10091 = vmul.f32 %v10082, %v10082
  %v10092 = vmul.f32 %v10091, -0.00019511016
  %v10093 = vadd.f32 %v10092, 0.008332121
  %v10094 = vmul.f32 %v10091, %v10093
  %v10095 = vadd.f32 %v10094, -0.16666654
  %v10096 = vmul.f32 %v10091, %v10095
  %v10097 = vadd.f32 %v10096, 1.0
  %v10098 = vmul.f32 %v10097, %v10082
  %vm10099 = vweird.f32 %v524
  %v10100 = vand.u32 %v10083, 3
  %vm10101 = vcmp.lt.s32.totalorder %v10100, 2
  %vm10102 = vcmp.eq.s32.totalorder %v10100, 0
  %v10103 = vxor.u32 %v10098, 2147483648
  %v10104 = vsel %vm10102, %v10090, %v10103
  %vm10105 = vcmp.eq.s32.totalorder %v10100, 2
  %v10106 = vxor.u32 %v10090, 2147483648
  %v10107 = vsel %vm10105, %v10106, %v10098
  %v10108 = vsel %vm10101, %v10104, %v10107
  %v10109 = vsel %vm10099, nan, %v10108
  %v10110 = vand.u32 2147483647, %v525
  %vm10111 = vcmp.le.f32.partialorder %v10110, 0.7853982
  %vm10112 = vcmp.lt.s32.totalorder %v525, 0
  %v10113 = vand.u32 %v525, 2139095040
  %v10114 = vshrl.u32 %v10113, 23
  %v10115 = vsub.s32 %v10114, 127
  %v10116 = vand.u32 2147483647, %v525
  %v10117 = vand.u32 %v10116, 8388607
  %v10118 = vor.u32 %v10117, 8388608
  %v10119 = vsub.s32 0, %v10118
  %v10120 = vadd.s32 %v10115, 1
  %vm10121 = vcmp.gt.s32.totalorder %v10120, 0
  %v10122 = vsel %vm10121, %v10120, 0
  %v10123 = vshrl.u32 %v10122, 5
  %v10124 = vand.u32 %v10122, 31
  %v10125 = vsub.s32 32, %v10124
  %v10126 = vshrl.u32 683565275, %v10125
  %v10127 = vshll.u32 683565275, %v10124
  %v10128 = vshrl.u32 2475754826, %v10125
  %v10129 = vor.u32 %v10127, %v10128
  %v10130 = vshll.u32 2475754826, %v10124
  %v10131 = vshrl.u32 2131351028, %v10125
  %v10132 = vor.u32 %v10130, %v10131
  %v10133 = vshll.u32 2131351028, %v10124
  %v10134 = vshrl.u32 2102212464, %v10125
  %v10135 = vor.u32 %v10133, %v10134
  %v10136 = vshll.u32 2102212464, %v10124
  %v10137 = vshrl.u32 920167782, %v10125
  %v10138 = vor.u32 %v10136, %v10137
  %v10139 = vshll.u32 920167782, %v10124
  %v10140 = vshrl.u32 1326507024, %v10125
  %v10141 = vor.u32 %v10139, %v10140
  %vm10142 = vcmp.lt.s32.totalorder %v10123, 1
  %vm10143 = vcmp.lt.s32.totalorder %v10123, 2
  %vm10144 = vcmp.lt.s32.totalorder %v10123, 3
  %vm10145 = vcmp.lt.s32.totalorder %v10123, 4
  %v10146 = vsel %vm10142, %v10126, %v10129
  %v10147 = vsel %vm10145, %v10135, 2102212464
  %v10148 = vsel %vm10144, %v10132, %v10147
  %v10149 = vsel %vm10143, %v10146, %v10148
  %v10150 = vsel %vm10142, %v10129, %v10132
  %v10151 = vsel %vm10145, %v10138, 920167782
  %v10152 = vsel %vm10144, %v10135, %v10151
  %v10153 = vsel %vm10143, %v10150, %v10152
  %v10154 = vsel %vm10142, %v10132, %v10135
  %v10155 = vsel %vm10145, %v10141, 1326507024
  %v10156 = vsel %vm10144, %v10138, %v10155
  %v10157 = vsel %vm10143, %v10154, %v10156
  %v10158 = vshll.u32 %v10118, 8
  %v10159 = vand.u32 %v10158, 65535
  %v10160 = vshrl.u32 %v10158, 16
  %v10161 = vand.u32 %v10157, 65535
  %v10162 = vshrl.u32 %v10157, 16
  %v10163 = vmul.u32 %v10159, %v10161
  %v10164 = vmul.u32 %v10159, %v10162
  %v10165 = vmul.u32 %v10160, %v10161
  %v10166 = vmul.u32 %v10160, %v10162
  %v10167 = vshll.u32 %v10164, 16
  %v10168 = vshrl.u32 %v10164, 16
  %v10169 = vshll.u32 %v10165, 16
  %v10170 = vshrl.u32 %v10165, 16
  %vm10171 = vc.u32 %v10163, %v10167
  %v10172 = vsel %vm10171, 1, 0
  %v10173 = vadd.s32 %v10163, %v10167
  %v10174 = vadd.s32 %v10166, %v10172
  %vm10175 = vc.u32 %v10173, %v10169
  %v10176 = vsel %vm10175, 1, 0
  %v10177 = vadd.s32 %v10173, %v10169
  %v10178 = vadd.s32 %v10174, %v10176
  %v10179 = vadd.s32 %v10178, %v10168
  %v10180 = vadd.s32 %v10179, %v10170
  %v10181 = vand.u32 %v10158, 65535
  %v10182 = vshrl.u32 %v10158, 16
  %v10183 = vand.u32 %v10153, 65535
  %v10184 = vshrl.u32 %v10153, 16
  %v10185 = vmul.u32 %v10181, %v10183
  %v10186 = vmul.u32 %v10181, %v10184
  %v10187 = vmul.u32 %v10182, %v10183
  %v10188 = vmul.u32 %v10182, %v10184
  %v10189 = vshll.u32 %v10186, 16
  %v10190 = vshrl.u32 %v10186, 16
  %v10191 = vshll.u32 %v10187, 16
  %v10192 = vshrl.u32 %v10187, 16
  %vm10193 = vc.u32 %v10185, %v10189
  %v10194 = vsel %vm10193, 1, 0
  %v10195 = vadd.s32 %v10185, %v10189
  %v10196 = vadd.s32 %v10188, %v10194
  %vm10197 = vc.u32 %v10195, %v10191
  %v10198 = vsel %vm10197, 1, 0
  %v10199 = vadd.s32 %v10195, %v10191
  %v10200 = vadd.s32 %v10196, %v10198
  %v10201 = vadd.s32 %v10200, %v10190
  %v10202 = vadd.s32 %v10201, %v10192
  %v10203 = vmul.u32 %v10158, %v10149
  %v10204 = vadd.s32 %v10180, %v10199
  %vm10205 = vc.u32 %v10180, %v10199
  %v10206 = vadd.s32 %v10202, 1
  %v10207 = vsel %vm10205, %v10206, %v10202
  %v10208 = vadd.s32 %v10203, %v10207
  %v10209 = vadd.s32 %v10208, 536870912
  %v10210 = vshrl.u32 %v10209, 30
  %v10211 = vshll.u32 %v10210, 30
  %v10212 = vsub.s32 %v10208, %v10211
  %vm10213 = vcmp.lt.s32.totalorder %v10212, 0
  %v10214 = vsub.s32 0, %v10212
  %v10215 = vsel %vm10213, %v10214, %v10212
  %v10216 = vclz %v10215
  %v10217 = vsub.s32 %v10216, 2
  %vm10218 = vcmp.gt.s32.totalorder 0, %v10217
  %v10219 = vsel %vm10218, 0, %v10217
  %v10220 = vsub.s32 32, %v10219
  %v10221 = vshll.u32 %v10212, %v10219
  %v10222 = vshrl.u32 %v10204, %v10220
  %v10223 = vor.u32 %v10221, %v10222
  %v10224 = vsub.s32 4294967266, %v10219
  %v10225 = vadd.s32 %v10224, 127
  %v10226 = vshll.u32 %v10225, 23
  %v10227 = vor.u32 4788187, %v10226
  %v10228 = vand.u32 2147483647, %v10227
  %v10230 = vcvt.s32.f32 %v10223
  %v10231 = vmul.f32 %v10230, %v10228
  %v10232 = vxor.u32 %v10231, 2147483648
  %v10233 = vsel %vm10112, %v10232, %v10231
  %v10234 = vsub.s32 4, %v10210
  %v10235 = vsel %vm10112, %v10234, %v10210
  %v10236 = vsel %vm10111, %v525, %v10233
  %v10237 = vsel %vm10111, 0, %v10235
  %v10238 = vmul.f32 %v10236, %v10236
  %v10239 = vmul.f32 %v10238, -0.001358992
  %v10240 = vadd.f32 %v10239, 0.041655596
  %v10241 = vmul.f32 %v10238, %v10240
  %v10242 = vadd.f32 %v10241, -0.4999988
  %v10243 = vmul.f32 %v10238, %v10242
  %v10244 = vadd.f32 1.0, %v10243
  %v10245 = vmul.f32 %v10236, %v10236
  %v10246 = vmul.f32 %v10245, -0.00019511016
  %v10247 = vadd.f32 %v10246, 0.008332121
  %v10248 = vmul.f32 %v10245, %v10247
  %v10249 = vadd.f32 %v10248, -0.16666654
  %v10250 = vmul.f32 %v10245, %v10249
  %v10251 = vadd.f32 %v10250, 1.0
  %v10252 = vmul.f32 %v10251, %v10236
  %vm10253 = vweird.f32 %v525
  %v10254 = vand.u32 %v10237, 3
  %vm10255 = vcmp.lt.s32.totalorder %v10254, 2
  %vm10256 = vcmp.eq.s32.totalorder %v10254, 0
  %v10257 = vxor.u32 %v10252, 2147483648
  %v10258 = vsel %vm10256, %v10244, %v10257
  %vm10259 = vcmp.eq.s32.totalorder %v10254, 2
  %v10260 = vxor.u32 %v10244, 2147483648
  %v10261 = vsel %vm10259, %v10260, %v10252
  %v10262 = vsel %vm10255, %v10258, %v10261
  %v10263 = vsel %vm10253, nan, %v10262
  %v10264 = vand.u32 2147483647, %v526
  %vm10265 = vcmp.le.f32.partialorder %v10264, 0.7853982
  %vm10266 = vcmp.lt.s32.totalorder %v526, 0
  %v10267 = vand.u32 %v526, 2139095040
  %v10268 = vshrl.u32 %v10267, 23
  %v10269 = vsub.s32 %v10268, 127
  %v10270 = vand.u32 2147483647, %v526
  %v10271 = vand.u32 %v10270, 8388607
  %v10272 = vor.u32 %v10271, 8388608
  %v10273 = vsub.s32 0, %v10272
  %v10274 = vadd.s32 %v10269, 1
  %vm10275 = vcmp.gt.s32.totalorder %v10274, 0
  %v10276 = vsel %vm10275, %v10274, 0
  %v10277 = vshrl.u32 %v10276, 5
  %v10278 = vand.u32 %v10276, 31
  %v10279 = vsub.s32 32, %v10278
  %v10280 = vshrl.u32 683565275, %v10279
  %v10281 = vshll.u32 683565275, %v10278
  %v10282 = vshrl.u32 2475754826, %v10279
  %v10283 = vor.u32 %v10281, %v10282
  %v10284 = vshll.u32 2475754826, %v10278
  %v10285 = vshrl.u32 2131351028, %v10279
  %v10286 = vor.u32 %v10284, %v10285
  %v10287 = vshll.u32 2131351028, %v10278
  %v10288 = vshrl.u32 2102212464, %v10279
  %v10289 = vor.u32 %v10287, %v10288
  %v10290 = vshll.u32 2102212464, %v10278
  %v10291 = vshrl.u32 920167782, %v10279
  %v10292 = vor.u32 %v10290, %v10291
  %v10293 = vshll.u32 920167782, %v10278
  %v10294 = vshrl.u32 1326507024, %v10279
  %v10295 = vor.u32 %v10293, %v10294
  %vm10296 = vcmp.lt.s32.totalorder %v10277, 1
  %vm10297 = vcmp.lt.s32.totalorder %v10277, 2
  %vm10298 = vcmp.lt.s32.totalorder %v10277, 3
  %vm10299 = vcmp.lt.s32.totalorder %v10277, 4
  %v10300 = vsel %vm10296, %v10280, %v10283
  %v10301 = vsel %vm10299, %v10289, 2102212464
  %v10302 = vsel %vm10298, %v10286, %v10301
  %v10303 = vsel %vm10297, %v10300, %v10302
  %v10304 = vsel %vm10296, %v10283, %v10286
  %v10305 = vsel %vm10299, %v10292, 920167782
  %v10306 = vsel %vm10298, %v10289, %v10305
  %v10307 = vsel %vm10297, %v10304, %v10306
  %v10308 = vsel %vm10296, %v10286, %v10289
  %v10309 = vsel %vm10299, %v10295, 1326507024
  %v10310 = vsel %vm10298, %v10292, %v10309
  %v10311 = vsel %vm10297, %v10308, %v10310
  %v10312 = vshll.u32 %v10272, 8
  %v10313 = vand.u32 %v10312, 65535
  %v10314 = vshrl.u32 %v10312, 16
  %v10315 = vand.u32 %v10311, 65535
  %v10316 = vshrl.u32 %v10311, 16
  %v10317 = vmul.u32 %v10313, %v10315
  %v10318 = vmul.u32 %v10313, %v10316
  %v10319 = vmul.u32 %v10314, %v10315
  %v10320 = vmul.u32 %v10314, %v10316
  %v10321 = vshll.u32 %v10318, 16
  %v10322 = vshrl.u32 %v10318, 16
  %v10323 = vshll.u32 %v10319, 16
  %v10324 = vshrl.u32 %v10319, 16
  %vm10325 = vc.u32 %v10317, %v10321
  %v10326 = vsel %vm10325, 1, 0
  %v10327 = vadd.s32 %v10317, %v10321
  %v10328 = vadd.s32 %v10320, %v10326
  %vm10329 = vc.u32 %v10327, %v10323
  %v10330 = vsel %vm10329, 1, 0
  %v10331 = vadd.s32 %v10327, %v10323
  %v10332 = vadd.s32 %v10328, %v10330
  %v10333 = vadd.s32 %v10332, %v10322
  %v10334 = vadd.s32 %v10333, %v10324
  %v10335 = vand.u32 %v10312, 65535
  %v10336 = vshrl.u32 %v10312, 16
  %v10337 = vand.u32 %v10307, 65535
  %v10338 = vshrl.u32 %v10307, 16
  %v10339 = vmul.u32 %v10335, %v10337
  %v10340 = vmul.u32 %v10335, %v10338
  %v10341 = vmul.u32 %v10336, %v10337
  %v10342 = vmul.u32 %v10336, %v10338
  %v10343 = vshll.u32 %v10340, 16
  %v10344 = vshrl.u32 %v10340, 16
  %v10345 = vshll.u32 %v10341, 16
  %v10346 = vshrl.u32 %v10341, 16
  %vm10347 = vc.u32 %v10339, %v10343
  %v10348 = vsel %vm10347, 1, 0
  %v10349 = vadd.s32 %v10339, %v10343
  %v10350 = vadd.s32 %v10342, %v10348
  %vm10351 = vc.u32 %v10349, %v10345
  %v10352 = vsel %vm10351, 1, 0
  %v10353 = vadd.s32 %v10349, %v10345
  %v10354 = vadd.s32 %v10350, %v10352
  %v10355 = vadd.s32 %v10354, %v10344
  %v10356 = vadd.s32 %v10355, %v10346
  %v10357 = vmul.u32 %v10312, %v10303
  %v10358 = vadd.s32 %v10334, %v10353
  %vm10359 = vc.u32 %v10334, %v10353
  %v10360 = vadd.s32 %v10356, 1
  %v10361 = vsel %vm10359, %v10360, %v10356
  %v10362 = vadd.s32 %v10357, %v10361
  %v10363 = vadd.s32 %v10362, 536870912
  %v10364 = vshrl.u32 %v10363, 30
  %v10365 = vshll.u32 %v10364, 30
  %v10366 = vsub.s32 %v10362, %v10365
  %vm10367 = vcmp.lt.s32.totalorder %v10366, 0
  %v10368 = vsub.s32 0, %v10366
  %v10369 = vsel %vm10367, %v10368, %v10366
  %v10370 = vclz %v10369
  %v10371 = vsub.s32 %v10370, 2
  %vm10372 = vcmp.gt.s32.totalorder 0, %v10371
  %v10373 = vsel %vm10372, 0, %v10371
  %v10374 = vsub.s32 32, %v10373
  %v10375 = vshll.u32 %v10366, %v10373
  %v10376 = vshrl.u32 %v10358, %v10374
  %v10377 = vor.u32 %v10375, %v10376
  %v10378 = vsub.s32 4294967266, %v10373
  %v10379 = vadd.s32 %v10378, 127
  %v10380 = vshll.u32 %v10379, 23
  %v10381 = vor.u32 4788187, %v10380
  %v10382 = vand.u32 2147483647, %v10381
  %v10384 = vcvt.s32.f32 %v10377
  %v10385 = vmul.f32 %v10384, %v10382
  %v10386 = vxor.u32 %v10385, 2147483648
  %v10387 = vsel %vm10266, %v10386, %v10385
  %v10388 = vsub.s32 4, %v10364
  %v10389 = vsel %vm10266, %v10388, %v10364
  %v10390 = vsel %vm10265, %v526, %v10387
  %v10391 = vsel %vm10265, 0, %v10389
  %v10392 = vmul.f32 %v10390, %v10390
  %v10393 = vmul.f32 %v10392, -0.001358992
  %v10394 = vadd.f32 %v10393, 0.041655596
  %v10395 = vmul.f32 %v10392, %v10394
  %v10396 = vadd.f32 %v10395, -0.4999988
  %v10397 = vmul.f32 %v10392, %v10396
  %v10398 = vadd.f32 1.0, %v10397
  %v10399 = vmul.f32 %v10390, %v10390
  %v10400 = vmul.f32 %v10399, -0.00019511016
  %v10401 = vadd.f32 %v10400, 0.008332121
  %v10402 = vmul.f32 %v10399, %v10401
  %v10403 = vadd.f32 %v10402, -0.16666654
  %v10404 = vmul.f32 %v10399, %v10403
  %v10405 = vadd.f32 %v10404, 1.0
  %v10406 = vmul.f32 %v10405, %v10390
  %vm10407 = vweird.f32 %v526
  %v10408 = vand.u32 %v10391, 3
  %vm10409 = vcmp.lt.s32.totalorder %v10408, 2
  %vm10410 = vcmp.eq.s32.totalorder %v10408, 0
  %v10411 = vxor.u32 %v10406, 2147483648
  %v10412 = vsel %vm10410, %v10398, %v10411
  %vm10413 = vcmp.eq.s32.totalorder %v10408, 2
  %v10414 = vxor.u32 %v10398, 2147483648
  %v10415 = vsel %vm10413, %v10414, %v10406
  %v10416 = vsel %vm10409, %v10412, %v10415
  %v10417 = vsel %vm10407, nan, %v10416
  %v10418 = vsel %vm529, %v684, %v5643
  %v10419 = vsel %vm529, %v839, %v5797
  %v10420 = vsel %vm529, %v994, %v5951
  %v10421 = vsel %vm529, %v1149, %v6105
  %v10422 = vsel %vm529, %v1304, %v6259
  %v10423 = vsel %vm529, %v1459, %v6413
  %v10424 = vsel %vm529, %v1614, %v6567
  %v10425 = vsel %vm529, %v1769, %v6721
  %v10426 = vsel %vm529, %v1924, %v6875
  %v10427 = vsel %vm529, %v2079, %v7029
  %v10428 = vsel %vm529, %v2234, %v7183
  %v10429 = vsel %vm529, %v2389, %v7337
  %v10430 = vsel %vm529, %v2544, %v7491
  %v10431 = vsel %vm529, %v2699, %v7645
  %v10432 = vsel %vm529, %v2854, %v7799
  %v10433 = vsel %vm529, %v3009, %v7953
  %v10434 = vsel %vm529, %v3164, %v8107
  %v10435 = vsel %vm529, %v3319, %v8261
  %v10436 = vsel %vm529, %v3474, %v8415
  %v10437 = vsel %vm529, %v3629, %v8569
  %v10438 = vsel %vm529, %v3784, %v8723
  %v10439 = vsel %vm529, %v3939, %v8877
  %v10440 = vsel %vm529, %v4094, %v9031
  %v10441 = vsel %vm529, %v4249, %v9185
  %v10442 = vsel %vm529, %v4404, %v9339
  %v10443 = vsel %vm529, %v4559, %v9493
  %v10444 = vsel %vm529, %v4714, %v9647
  %v10445 = vsel %vm529, %v4869, %v9801
  %v10446 = vsel %vm529, %v5024, %v9955
  %v10447 = vsel %vm529, %v5179, %v10109
  %v10448 = vsel %vm529, %v5334, %v10263
  %v10449 = vsel %vm529, %v5489, %v10417
  %vm10450 = vcmask 261120
  %10451 = vst.msk [vmem:[%s2] sm:$0xff] %vm10450, %v10418
  %10452 = vst.msk [vmem:[%s2 + $0x8] sm:$0xff] %vm10450, %v10419
  %10453 = vst.msk [vmem:[%s2 + $0x10] sm:$0xff] %vm10450, %v10420
  %10454 = vst.msk [vmem:[%s2 + $0x18] sm:$0xff] %vm10450, %v10421
  %10455 = vst.msk [vmem:[%s2 + $0x20] sm:$0xff] %vm10450, %v10422
  %10456 = vst.msk [vmem:[%s2 + $0x28] sm:$0xff] %vm10450, %v10423
  %10457 = vst.msk [vmem:[%s2 + $0x30] sm:$0xff] %vm10450, %v10424
  %10458 = vst.msk [vmem:[%s2 + $0x38] sm:$0xff] %vm10450, %v10425
  %10459 = vst.msk [vmem:[%s2 + $0x40] sm:$0xff] %vm10450, %v10426
  %10460 = vst.msk [vmem:[%s2 + $0x48] sm:$0xff] %vm10450, %v10427
  %10461 = vst.msk [vmem:[%s2 + $0x50] sm:$0xff] %vm10450, %v10428
  %10462 = vst.msk [vmem:[%s2 + $0x58] sm:$0xff] %vm10450, %v10429
  %10463 = vst.msk [vmem:[%s2 + $0x60] sm:$0xff] %vm10450, %v10430
  %10464 = vst.msk [vmem:[%s2 + $0x68] sm:$0xff] %vm10450, %v10431
  %10465 = vst.msk [vmem:[%s2 + $0x70] sm:$0xff] %vm10450, %v10432
  %10466 = vst.msk [vmem:[%s2 + $0x78] sm:$0xff] %vm10450, %v10433
  %10467 = vst.msk [vmem:[%s2 + $0x80] sm:$0xff] %vm10450, %v10434
  %10468 = vst.msk [vmem:[%s2 + $0x88] sm:$0xff] %vm10450, %v10435
  %10469 = vst.msk [vmem:[%s2 + $0x90] sm:$0xff] %vm10450, %v10436
  %10470 = vst.msk [vmem:[%s2 + $0x98] sm:$0xff] %vm10450, %v10437
  %10471 = vst.msk [vmem:[%s2 + $0xa0] sm:$0xff] %vm10450, %v10438
  %10472 = vst.msk [vmem:[%s2 + $0xa8] sm:$0xff] %vm10450, %v10439
  %10473 = vst.msk [vmem:[%s2 + $0xb0] sm:$0xff] %vm10450, %v10440
  %10474 = vst.msk [vmem:[%s2 + $0xb8] sm:$0xff] %vm10450, %v10441
  %10475 = vst.msk [vmem:[%s2 + $0xc0] sm:$0xff] %vm10450, %v10442
  %10476 = vst.msk [vmem:[%s2 + $0xc8] sm:$0xff] %vm10450, %v10443
  %10477 = vst.msk [vmem:[%s2 + $0xd0] sm:$0xff] %vm10450, %v10444
  %10478 = vst.msk [vmem:[%s2 + $0xd8] sm:$0xff] %vm10450, %v10445
  %10479 = vst.msk [vmem:[%s2 + $0xe0] sm:$0xff] %vm10450, %v10446
  %10480 = vst.msk [vmem:[%s2 + $0xe8] sm:$0xff] %vm10450, %v10447
  %10481 = vst.msk [vmem:[%s2 + $0xf0] sm:$0xff] %vm10450, %v10448
  %10482 = vst.msk [vmem:[%s2 + $0xf8] sm:$0xff] %vm10450, %v10449
  // Predicated region
  $region10: #{tpu_custom_call.1} parent=0 // pred_check
    _
  $region11: #{tpu_custom_call.1} parent=0 // pred_check_branch
    %10484 = sbr.rel (0) target = $region13
  $region12: #{tpu_custom_call.1} parent=0 // pred_region
    _
  $region13: #{tpu_custom_call.1} parent=0 // pred_fallthru
    _
  // Predicated region
  $region14: #{tpu_custom_call.1} parent=0 // pred_check
    _
  $region15: #{tpu_custom_call.1} parent=0 // pred_check_branch
    %10486 = sbr.rel (0) target = $region17
  $region16: #{tpu_custom_call.1} parent=0 // pred_region
    _
  $region17: #{tpu_custom_call.1} parent=0 // pred_fallthru
    _

</llo_original>
